<compile_context>
chip_gen: v7x
topology: tpu7x:2x2x1
jax: 0.10.0
libtpu: 0.0.40
codegen_flags: <defaults>
</compile_context>

<pallas_src>
import functools

import jax
import jax.numpy as jnp
from jax import lax
from jax.experimental import pallas as pl
from jax.experimental.pallas import tpu as pltpu

BN_EPS = 1e-5
LANE = 128
DEFAULT_TILE_M = 1024                   # sweep 512-2048 per generation
VMEM_LIMIT_BYTES = 48 * 1024 * 1024     # fits v7x (64 MiB VMEM) with headroom


# ------------------------------ small helpers ------------------------------ #

def _round_up(x, m):
    return (x + m - 1) // m * m


def _pad_axis(a, axis, new_size):
    pad = new_size - a.shape[axis]
    if pad == 0:
        return a
    widths = [(0, 0)] * a.ndim
    widths[axis] = (0, pad)
    return jnp.pad(a, widths)


def _bn_affine(col_sum, col_ssq, gamma, beta, count):
    """Finalize per-channel BN (training mode, biased var) into scale/shift."""
    mean = col_sum / count
    var = jnp.maximum(col_ssq / count - mean * mean, 0.0)
    inv = lax.rsqrt(var + BN_EPS)
    scale = gamma * inv
    shift = beta - mean * scale
    return scale, shift


def _reduce_stats(partial):
    """(nblk, 8, C) per-block partials (row 0 non-zero) -> (1, C) f32."""
    return partial.reshape(-1, partial.shape[-1]).sum(axis=0, keepdims=True)


def _row0_mask(c):
    """(8, C) bool mask selecting sublane-row 0 (kernel-side helper)."""
    return lax.broadcasted_iota(jnp.int32, (8, c), 0) == 0


def _compiler_params():
    return pltpu.CompilerParams(dimension_semantics=("parallel",),
                                vmem_limit_bytes=VMEM_LIMIT_BYTES)


# ------------------------------ Pallas kernels ------------------------------ #

def _mm_stats_kernel(x_ref, w_ref, y_ref, sum_ref, ssq_ref):
    """y = x @ w (bf16 MXU, f32 acc); per-block partial channel stats.

    Caller zero-pads extra / invalid rows of x so they contribute 0 to stats.
    """
    y = jnp.dot(x_ref[...], w_ref[...], preferred_element_type=jnp.float32)
    y_ref[...] = y.astype(y_ref.dtype)
    c = y.shape[-1]
    r0 = _row0_mask(c)
    sum_ref[0] = jnp.where(r0, jnp.sum(y, axis=0, keepdims=True), 0.0)
    ssq_ref[0] = jnp.where(r0, jnp.sum(y * y, axis=0, keepdims=True), 0.0)


def _bnrelu_mm_stats_kernel(x_ref, scale_ref, shift_ref, w_ref, mask_ref,
                            y_ref, sum_ref, ssq_ref):
    """Fused BN+ReLU prologue -> 1x1 matmul -> per-block partial stats.

    mask_ref (tile_m, 1) zeroes invalid rows (wrap columns of the wp-strided
    layout and M-padding rows) BEFORE the matmul so they contribute 0.
    """
    x = x_ref[...].astype(jnp.float32) * scale_ref[...] + shift_ref[...]
    x = jnp.maximum(x, 0.0) * mask_ref[...]
    y = jnp.dot(x.astype(jnp.bfloat16), w_ref[...],
                preferred_element_type=jnp.float32)
    y_ref[...] = y.astype(y_ref.dtype)
    c = y.shape[-1]
    r0 = _row0_mask(c)
    sum_ref[0] = jnp.where(r0, jnp.sum(y, axis=0, keepdims=True), 0.0)
    ssq_ref[0] = jnp.where(r0, jnp.sum(y * y, axis=0, keepdims=True), 0.0)


def _conv3x3_fused_kernel(y1_ref, scale_ref, shift_ref, w_ref, mask_ref,
                          y2_ref, sum_ref, ssq_ref, xpad_ref,
                          *, h, wp, dil, s_rows):
    """Fused BN1+ReLU prologue + 3x3 conv (9 row-offset matmuls) + stats.

    Activations use wp-strided pseudo rows (wp = w + 2*dil) so every (kh, kw)
    tap is a single STATIC flat row-offset slice of a padded VMEM scratch --
    no windowed 3-D slices or reshapes (no relayout copies).  The halo is
    zero AFTER the affine+ReLU: top/bottom halo rows are memset every step,
    the interleaved left/right halo comes from the wrap columns which are
    zeroed by mask_ref before the scratch store.
    """
    cin = xpad_ref.shape[-1]
    cout = w_ref.shape[-1]
    hw = h * wp
    top = dil * wp + dil

    # Halo regions not covered by the interior store (re-zeroed every step so
    # each grid step is fully independent -> safe under "parallel").
    xpad_ref[0:top, :] = jnp.zeros((top, cin), xpad_ref.dtype)
    xpad_ref[top + hw:s_rows, :] = jnp.zeros((s_rows - top - hw, cin),
                                             xpad_ref.dtype)

    # BN1 affine + ReLU prologue; wrap columns zeroed AFTER affine+ReLU.
    x = y1_ref[0].astype(jnp.float32) * scale_ref[...] + shift_ref[...]
    x = jnp.maximum(x, 0.0) * mask_ref[...]
    xpad_ref[top:top + hw, :] = x

    # 3x3 conv: 9 accumulated MXU matmuls, each tap a flat row-offset slice.
    # TODO(synk): on v6e/v7x, concatenating taps along K (K=384/1152) would
    # improve MXU fill for width_p=128 stages.
    acc = jnp.zeros((hw, cout), jnp.float32)
    for kh in range(3):
        for kw in range(3):
            off = kh * dil * wp + kw * dil                      # static int
            patch = xpad_ref[off:off + hw, :].astype(jnp.bfloat16)
            acc = acc + jnp.dot(patch, w_ref[kh * 3 + kw],
                                preferred_element_type=jnp.float32)
    acc = acc * mask_ref[...]                                   # zero wrap cols

    y2_ref[0] = acc.astype(y2_ref.dtype)
    r0 = _row0_mask(cout)
    sum_ref[0] = jnp.where(r0, jnp.sum(acc, axis=0, keepdims=True), 0.0)
    ssq_ref[0] = jnp.where(r0, jnp.sum(acc * acc, axis=0, keepdims=True), 0.0)


def _bn_add_relu_apply_kernel(y_ref, scale_ref, shift_ref, res_ref, o_ref):
    y = y_ref[...].astype(jnp.float32) * scale_ref[...] + shift_ref[...]
    o_ref[...] = jnp.maximum(y + res_ref[...].astype(jnp.float32),
                             0.0).astype(o_ref.dtype)


# --------------------------- pallas_call wrappers --------------------------- #

def _matmul_stats(x, w, *, tile_m):
    m_pad, k = x.shape
    n_out = w.shape[1]
    nblk = m_pad // tile_m
    flops = 2 * m_pad * k * n_out
    bytes_accessed = (m_pad * k * 2 + k * n_out * 2 + m_pad * n_out * 2
                      + 2 * nblk * 8 * n_out * 4)
    return pl.pallas_call(
        _mm_stats_kernel,
        out_shape=(jax.ShapeDtypeStruct((m_pad, n_out), jnp.bfloat16),
                   jax.ShapeDtypeStruct((nblk, 8, n_out), jnp.float32),
                   jax.ShapeDtypeStruct((nblk, 8, n_out), jnp.float32)),
        grid=(nblk,),
        in_specs=[pl.BlockSpec((tile_m, k), lambda i: (i, 0)),
                  pl.BlockSpec((k, n_out), lambda i: (0, 0))],
        out_specs=(pl.BlockSpec((tile_m, n_out), lambda i: (i, 0)),
                   pl.BlockSpec((1, 8, n_out), lambda i: (i, 0, 0)),
                   pl.BlockSpec((1, 8, n_out), lambda i: (i, 0, 0))),
        compiler_params=_compiler_params(),
        cost_estimate=pl.CostEstimate(flops=flops, transcendentals=0,
                                      bytes_accessed=bytes_accessed),
    )(x, w)


def _bnrelu_matmul_stats(x, scale, shift, w, mask, *, tile_m):
    m_pad, k = x.shape
    n_out = w.shape[1]
    nblk = m_pad // tile_m
    flops = 2 * m_pad * k * n_out
    bytes_accessed = (m_pad * k * 2 + 2 * k * 4 + k * n_out * 2 + m_pad * 4
                      + m_pad * n_out * 2 + 2 * nblk * 8 * n_out * 4)
    return pl.pallas_call(
        _bnrelu_mm_stats_kernel,
        out_shape=(jax.ShapeDtypeStruct((m_pad, n_out), jnp.bfloat16),
                   jax.ShapeDtypeStruct((nblk, 8, n_out), jnp.float32),
                   jax.ShapeDtypeStruct((nblk, 8, n_out), jnp.float32)),
        grid=(nblk,),
        in_specs=[pl.BlockSpec((tile_m, k), lambda i: (i, 0)),
                  pl.BlockSpec((1, k), lambda i: (0, 0)),
                  pl.BlockSpec((1, k), lambda i: (0, 0)),
                  pl.BlockSpec((k, n_out), lambda i: (0, 0)),
                  pl.BlockSpec((tile_m, 1), lambda i: (i, 0))],
        out_specs=(pl.BlockSpec((tile_m, n_out), lambda i: (i, 0)),
                   pl.BlockSpec((1, 8, n_out), lambda i: (i, 0, 0)),
                   pl.BlockSpec((1, 8, n_out), lambda i: (i, 0, 0))),
        compiler_params=_compiler_params(),
        cost_estimate=pl.CostEstimate(flops=flops, transcendentals=0,
                                      bytes_accessed=bytes_accessed),
    )(x, scale, shift, w, mask)


def _conv3x3_fused(y1_img, scale, shift, w9, mask_img, *, h, wp, dil):
    n, hw, cin = y1_img.shape
    cout = w9.shape[-1]
    s_rows = _round_up((h + 2 * dil) * wp + 2 * dil, 8)
    kern = functools.partial(_conv3x3_fused_kernel, h=h, wp=wp, dil=dil,
                             s_rows=s_rows)
    flops = 2 * n * hw * 9 * cin * cout
    bytes_accessed = (n * hw * cin * 2 + 9 * cin * cout * 2 + hw * 4
                      + n * hw * cout * 2 + 2 * n * 8 * cout * 4)
    # TODO(synk): for large spatial stages / v7x, also tile over output-row
    # blocks (grid=(n, h_tiles)) to bound the f32 accumulator and input block.
    return pl.pallas_call(
        kern,
        out_shape=(jax.ShapeDtypeStruct((n, hw, cout), jnp.bfloat16),
                   jax.ShapeDtypeStruct((n, 8, cout), jnp.float32),
                   jax.ShapeDtypeStruct((n, 8, cout), jnp.float32)),
        grid=(n,),
        in_specs=[pl.BlockSpec((1, hw, cin), lambda i: (i, 0, 0)),
                  pl.BlockSpec((1, cin), lambda i: (0, 0)),
                  pl.BlockSpec((1, cin), lambda i: (0, 0)),
                  pl.BlockSpec((9, cin, cout), lambda i: (0, 0, 0)),
                  pl.BlockSpec((hw, 1), lambda i: (0, 0))],
        out_specs=(pl.BlockSpec((1, hw, cout), lambda i: (i, 0, 0)),
                   pl.BlockSpec((1, 8, cout), lambda i: (i, 0, 0)),
                   pl.BlockSpec((1, 8, cout), lambda i: (i, 0, 0))),
        scratch_shapes=[pltpu.VMEM((s_rows, cin), jnp.float32)],
        compiler_params=_compiler_params(),
        cost_estimate=pl.CostEstimate(flops=flops, transcendentals=0,
                                      bytes_accessed=bytes_accessed),
    )(y1_img, scale, shift, w9, mask_img)


def _bn_add_relu_apply(y, scale, shift, res, *, tile_m):
    m_pad, c = y.shape
    return pl.pallas_call(
        _bn_add_relu_apply_kernel,
        out_shape=jax.ShapeDtypeStruct((m_pad, c), jnp.float32),
        grid=(m_pad // tile_m,),
        in_specs=[pl.BlockSpec((tile_m, c), lambda i: (i, 0)),
                  pl.BlockSpec((1, c), lambda i: (0, 0)),
                  pl.BlockSpec((1, c), lambda i: (0, 0)),
                  pl.BlockSpec((tile_m, c), lambda i: (i, 0))],
        out_specs=pl.BlockSpec((tile_m, c), lambda i: (i, 0)),
        compiler_params=_compiler_params(),
    )(y, scale, shift, res)


# ------------------------------- params / glue ------------------------------ #

def init_bottleneck_params(key, inplanes, planes, groups=1, base_width=64):
    width = int(planes * (base_width / 64.0)) * groups
    out_ch = planes * 4
    ks = jax.random.split(key, 9)
    p = {
        # conv weights in PyTorch (O, I, kH, kW) layout
        "w1": 0.1 * jax.random.normal(ks[0], (width, inplanes, 1, 1), jnp.float32),
        "w2": 0.1 * jax.random.normal(ks[1], (width, width, 3, 3), jnp.float32),
        "w3": 0.1 * jax.random.normal(ks[2], (out_ch, width, 1, 1), jnp.float32),
        "g1": 1.0 + 0.1 * jax.random.normal(ks[3], (width,), jnp.float32),
        "b1": 0.1 * jax.random.normal(ks[4], (width,), jnp.float32),
        "g2": 1.0 + 0.1 * jax.random.normal(ks[5], (width,), jnp.float32),
        "b2": 0.1 * jax.random.normal(ks[6], (width,), jnp.float32),
        "g3": 1.0 + 0.1 * jax.random.normal(ks[7], (out_ch,), jnp.float32),
        "b3": 0.1 * jax.random.normal(ks[8], (out_ch,), jnp.float32),
    }
    return p, width, out_ch


@functools.partial(jax.jit,
                   static_argnames=("stride", "dilation", "groups", "tile_m"))
def bottleneck_forward(x_nchw, params, stride=1, dilation=1, groups=1,
                       tile_m=DEFAULT_TILE_M):
    """Pallas implementation of Bottleneck.forward (downsample=None path)."""
    # TODO(synk): downsample branch, stride>1 and groups>1 are not implemented;
    # with downsample=None the residual add requires stride==1 and cin==4*planes.
    n, cin, h, w = x_nchw.shape
    width = params["w1"].shape[0]
    out_ch = params["w3"].shape[0]
    assert stride == 1 and groups == 1 and cin == out_ch
    assert tile_m % 8 == 0

    cin_p = _round_up(cin, LANE)
    width_p = _round_up(width, LANE)
    out_p = _round_up(out_ch, LANE)          # == cin_p since cin == out_ch

    pad = dilation
    wp = w + 2 * pad                          # pseudo-row width (wrap cols masked)
    mrow = n * h * wp                         # pseudo rows carried end to end
    count = n * h * w                         # true BN pixel count
    tm = min(tile_m, _round_up(mrow, 8))
    m_pad = _round_up(mrow, tm)

    # ---------------- layout / padding (trace-time glue) ---------------- #
    # TODO(synk): for stacked blocks, keep activations in this NHWC/padded
    # layout between blocks so the transposes/pads are paid once per network.
    x_nhwc = jnp.transpose(x_nchw, (0, 2, 3, 1))
    x_p = jnp.pad(x_nhwc, ((0, 0), (0, 0), (0, wp - w), (0, cin_p - cin)))
    # bf16 residual == conv1 input (single shared HBM buffer)
    identity = _pad_axis(x_p.reshape(mrow, cin_p).astype(jnp.bfloat16), 0, m_pad)

    # column-validity masks for the wp-strided pseudo layout
    col_valid = (jnp.arange(wp) < w).astype(jnp.float32)
    mask_img = jnp.tile(col_valid, h)[:, None]                       # (h*wp, 1)
    mask_all = _pad_axis(jnp.tile(col_valid, n * h), 0, m_pad)[:, None]

    # weights: bf16, channel-padded, matmul layout
    w1p = _pad_axis(_pad_axis(params["w1"][:, :, 0, 0].T, 0, cin_p),
                    1, width_p).astype(jnp.bfloat16)
    w2t = jnp.transpose(params["w2"], (2, 3, 1, 0))          # (kh, kw, I, O)
    w2p = _pad_axis(_pad_axis(w2t, 2, width_p), 3, width_p)
    w2p = w2p.reshape(9, width_p, width_p).astype(jnp.bfloat16)
    w3p = _pad_axis(_pad_axis(params["w3"][:, :, 0, 0].T, 0, width_p),
                    1, out_p).astype(jnp.bfloat16)

    g1 = _pad_axis(params["g1"][None, :], 1, width_p)
    b1 = _pad_axis(params["b1"][None, :], 1, width_p)
    g2 = _pad_axis(params["g2"][None, :], 1, width_p)
    b2 = _pad_axis(params["b2"][None, :], 1, width_p)
    g3 = _pad_axis(params["g3"][None, :], 1, out_p)
    b3 = _pad_axis(params["b3"][None, :], 1, out_p)

    # ---------------- conv1 (1x1) + bn1 stats ---------------- #
    y1, s1, ss1 = _matmul_stats(identity, w1p, tile_m=tm)
    scale1, shift1 = _bn_affine(_reduce_stats(s1), _reduce_stats(ss1),
                                g1, b1, count)

    # ------- conv2 (3x3) with fused BN1+ReLU prologue + bn2 stats ------- #
    y1_img = y1[:mrow].reshape(n, h * wp, width_p)
    y2, s2, ss2 = _conv3x3_fused(y1_img, scale1, shift1, w2p, mask_img,
                                 h=h, wp=wp, dil=dilation)
    scale2, shift2 = _bn_affine(_reduce_stats(s2), _reduce_stats(ss2),
                                g2, b2, count)

    # ------- conv3 (1x1) with fused BN2+ReLU prologue + bn3 stats ------- #
    y2_flat = _pad_axis(y2.reshape(mrow, width_p), 0, m_pad)
    y3, s3, ss3 = _bnrelu_matmul_stats(y2_flat, scale2, shift2, w3p, mask_all,
                                       tile_m=tm)
    scale3, shift3 = _bn_affine(_reduce_stats(s3), _reduce_stats(ss3),
                                g3, b3, count)

    # ---------------- bn3 apply + residual add + relu ---------------- #
    out_flat = _bn_add_relu_apply(y3, scale3, shift3, identity, tile_m=tm)

    out = out_flat[:mrow].reshape(n, h, wp, out_p)[:, :, :w, :out_ch]
    return jnp.transpose(out, (0, 3, 1, 2))                  # NHWC -> NCHW


# ------------------------- pure-JAX reference check ------------------------- #

def _ref_bottleneck(x, p, stride=1, dilation=1):
    dn = ("NCHW", "OIHW", "NCHW")

    def bn_relu(y, g, b, relu=True):
        mean = y.mean(axis=(0, 2, 3), keepdims=True)
        var = y.var(axis=(0, 2, 3), keepdims=True)            # biased
        out = (y - mean) / jnp.sqrt(var + BN_EPS)
        out = out * g.reshape(1, -1, 1, 1) + b.reshape(1, -1, 1, 1)
        return jnp.maximum(out, 0.0) if relu else out

    y = lax.conv_general_dilated(x, p["w1"], (1, 1), "VALID", dimension_numbers=dn)
    y = bn_relu(y, p["g1"], p["b1"])
    y = lax.conv_general_dilated(
        y, p["w2"], (stride, stride), [(dilation, dilation)] * 2,
        rhs_dilation=(dilation, dilation), dimension_numbers=dn)
    y = bn_relu(y, p["g2"], p["b2"])
    y = lax.conv_general_dilated(y, p["w3"], (1, 1), "VALID", dimension_numbers=dn)
    y = bn_relu(y, p["g3"], p["b3"], relu=False)
    return jnp.maximum(y + x, 0.0)


# ----------------------------------- main ----------------------------------- #

if __name__ == "__main__":
    key = jax.random.PRNGKey(0)
    kx, kp = jax.random.split(key)

    batch, planes, spatial = 2, 8, 16
    inplanes = planes * 4                                      # residual adds cleanly
    x = jax.random.normal(kx, (batch, inplanes, spatial, spatial), jnp.float32)

    params, width, out_ch = init_bottleneck_params(kp, inplanes, planes)

    # tile_m=128 exercises the multi-block M grid, per-block partial stats and
    # the row/column masking of padded rows.
    out = bottleneck_forward(x, params, stride=1, dilation=1, tile_m=128)
    out = jax.block_until_ready(out)
    assert out.shape == (batch, out_ch, spatial, spatial), out.shape

    ref = jax.block_until_ready(_ref_bottleneck(x, params, stride=1, dilation=1))
    max_err = float(jnp.max(jnp.abs(out - ref)))
    mean_err = float(jnp.mean(jnp.abs(out - ref)))
    # bf16 matmul operands + bf16 residual through three BN layers -> relaxed tol.
    assert max_err < 1e-1 and mean_err < 2e-2, (max_err, mean_err)

    print("KERNEL_OK")
</pallas_src>

<mosaic_0001>
module attributes {stable_mosaic.version = 11 : i64} {
  func.func @_mm_stats_kernel(%arg0: i32, %arg1: memref<128x128xbf16, #tpu.memory_space<vmem>>, %arg2: memref<128x128xbf16, #tpu.memory_space<vmem>>, %arg3: memref<128x128xbf16, #tpu.memory_space<vmem>>, %arg4: memref<1x8x128xf32, #tpu.memory_space<vmem>>, %arg5: memref<1x8x128xf32, #tpu.memory_space<vmem>>) attributes {dimension_semantics = [#tpu.dimension_semantics<parallel>], iteration_bounds = array<i64: 5>, scalar_prefetch = 0 : i64, scratch_operands = 0 : i64, tpu.core_type = #tpu.core_type<tc>, window_params = [{transform_indices = @transform_0, window_bounds = array<i64: 128, 128>}, {pipeline_mode = #tpu.pipeline_mode<synchronous>, transform_indices = @transform_1, window_bounds = array<i64: 128, 128>}, {transform_indices = @transform_2, window_bounds = array<i64: 128, 128>}, {transform_indices = @transform_3, window_bounds = array<i64: 1, 8, 128>}, {transform_indices = @transform_4, window_bounds = array<i64: 1, 8, 128>}]} {
    %c0 = arith.constant 0 : index
    %c0_0 = arith.constant 0 : index
    %0 = vector.load %arg1[%c0, %c0_0] : memref<128x128xbf16, #tpu.memory_space<vmem>>, vector<128x128xbf16>
    %c0_1 = arith.constant 0 : index
    %c0_2 = arith.constant 0 : index
    %1 = vector.load %arg2[%c0_1, %c0_2] : memref<128x128xbf16, #tpu.memory_space<vmem>>, vector<128x128xbf16>
    %cst = arith.constant dense<0.000000e+00> : vector<128x128xf32>
    %2 = tpu.matmul %0, %1, %cst {dimension_numbers = #tpu.dot_dimension_numbers<[1], [0], [0], [1], [0, 0, 1, 1], [], []>} : vector<128x128xbf16>, vector<128x128xbf16>, vector<128x128xf32> -> vector<128x128xf32>
    %3 = arith.truncf %2 : vector<128x128xf32> to vector<128x128xbf16>
    %c0_3 = arith.constant 0 : index
    %c0_4 = arith.constant 0 : index
    %4 = vector.load %arg3[%c0_3, %c0_4] : memref<128x128xbf16, #tpu.memory_space<vmem>>, vector<128x128xbf16>
    tpu.vector_store %arg3[%c0_3, %c0_4], %3 {strides = array<i32>} : memref<128x128xbf16, #tpu.memory_space<vmem>>, vector<128x128xbf16>,
    %5 = tpu.iota {dimensions = array<i32: 0>} : vector<8x128xi32>
    %c0_i32 = arith.constant 0 : i32
    %6 = vector.broadcast %c0_i32 : i32 to vector<8x128xi32>
    %7 = arith.cmpi eq, %5, %6 : vector<8x128xi32>
    %cst_5 = arith.constant dense<0.000000e+00> : vector<128xf32>
    %8 = vector.multi_reduction <add>, %2, %cst_5 [0] : vector<128x128xf32> to vector<128xf32>
    %9 = vector.shape_cast %8 : vector<128xf32> to vector<1x128xf32>
    %cst_6 = arith.constant 0.000000e+00 : f32
    %10 = vector.shape_cast %9 : vector<1x128xf32> to vector<1x128xf32>
    %11 = vector.broadcast %10 : vector<1x128xf32> to vector<8x128xf32>
    %12 = vector.broadcast %cst_6 : f32 to vector<8x128xf32>
    %13 = arith.select %7, %11, %12 : vector<8x128xi1>, vector<8x128xf32>
    %c0_7 = arith.constant 0 : index
    %c0_8 = arith.constant 0 : index
    %c0_9 = arith.constant 0 : index
    %14 = vector.load %arg4[%c0_7, %c0_8, %c0_9] : memref<1x8x128xf32, #tpu.memory_space<vmem>>, vector<1x8x128xf32>
    %15 = vector.shape_cast %14 : vector<1x8x128xf32> to vector<8x128xf32>
    %16 = vector.shape_cast %13 : vector<8x128xf32> to vector<1x8x128xf32>
    tpu.vector_store %arg4[%c0_7, %c0_8, %c0_9], %16 {strides = array<i32>} : memref<1x8x128xf32, #tpu.memory_space<vmem>>, vector<1x8x128xf32>,
    %17 = arith.mulf %2, %2 : vector<128x128xf32>
    %cst_10 = arith.constant dense<0.000000e+00> : vector<128xf32>
    %18 = vector.multi_reduction <add>, %17, %cst_10 [0] : vector<128x128xf32> to vector<128xf32>
    %19 = vector.shape_cast %18 : vector<128xf32> to vector<1x128xf32>
    %cst_11 = arith.constant 0.000000e+00 : f32
    %20 = vector.shape_cast %19 : vector<1x128xf32> to vector<1x128xf32>
    %21 = vector.broadcast %20 : vector<1x128xf32> to vector<8x128xf32>
    %22 = vector.broadcast %cst_11 : f32 to vector<8x128xf32>
    %23 = arith.select %7, %21, %22 : vector<8x128xi1>, vector<8x128xf32>
    %c0_12 = arith.constant 0 : index
    %c0_13 = arith.constant 0 : index
    %c0_14 = arith.constant 0 : index
    %24 = vector.load %arg5[%c0_12, %c0_13, %c0_14] : memref<1x8x128xf32, #tpu.memory_space<vmem>>, vector<1x8x128xf32>
    %25 = vector.shape_cast %24 : vector<1x8x128xf32> to vector<8x128xf32>
    %26 = vector.shape_cast %23 : vector<8x128xf32> to vector<1x8x128xf32>
    tpu.vector_store %arg5[%c0_12, %c0_13, %c0_14], %26 {strides = array<i32>} : memref<1x8x128xf32, #tpu.memory_space<vmem>>, vector<1x8x128xf32>,
    return
  }
  func.func @transform_0(%arg0: i32) -> (i32, i32) {
    %c0_i32 = arith.constant 0 : i32
    %c0_i32_0 = arith.constant 0 : i32
    return %arg0, %c0_i32 : i32, i32
  }
  func.func @transform_1(%arg0: i32) -> (i32, i32) {
    %c0_i32 = arith.constant 0 : i32
    %c0_i32_0 = arith.constant 0 : i32
    %c0_i32_1 = arith.constant 0 : i32
    return %c0_i32, %c0_i32_0 : i32, i32
  }
  func.func @transform_2(%arg0: i32) -> (i32, i32) {
    %c0_i32 = arith.constant 0 : i32
    %c0_i32_0 = arith.constant 0 : i32
    return %arg0, %c0_i32 : i32, i32
  }
  func.func @transform_3(%arg0: i32) -> (i32, i32, i32) {
    %c0_i32 = arith.constant 0 : i32
    %c0_i32_0 = arith.constant 0 : i32
    %c0_i32_1 = arith.constant 0 : i32
    return %arg0, %c0_i32, %c0_i32_0 : i32, i32, i32
  }
  func.func @transform_4(%arg0: i32) -> (i32, i32, i32) {
    %c0_i32 = arith.constant 0 : i32
    %c0_i32_0 = arith.constant 0 : i32
    %c0_i32_1 = arith.constant 0 : i32
    return %arg0, %c0_i32, %c0_i32_0 : i32, i32, i32
  }
}

module attributes {stable_mosaic.version = 11 : i64} {
  func.func @_conv3x3_fused_kernel(%arg0: i32, %arg1: memref<1x288x128xbf16, #tpu.memory_space<vmem>>, %arg2: memref<1x128xf32, #tpu.memory_space<vmem>>, %arg3: memref<1x128xf32, #tpu.memory_space<vmem>>, %arg4: memref<9x128x128xbf16, #tpu.memory_space<vmem>>, %arg5: memref<288x1xf32, #tpu.memory_space<vmem>>, %arg6: memref<1x288x128xbf16, #tpu.memory_space<vmem>>, %arg7: memref<1x8x128xf32, #tpu.memory_space<vmem>>, %arg8: memref<1x8x128xf32, #tpu.memory_space<vmem>>, %arg9: memref<328x128xf32, #tpu.memory_space<vmem>>) attributes {dimension_semantics = [#tpu.dimension_semantics<parallel>], iteration_bounds = array<i64: 2>, scalar_prefetch = 0 : i64, scratch_operands = 1 : i64, tpu.core_type = #tpu.core_type<tc>, window_params = [{transform_indices = @transform_0, window_bounds = array<i64: 1, 288, 128>}, {pipeline_mode = #tpu.pipeline_mode<synchronous>, transform_indices = @transform_1, window_bounds = array<i64: 1, 128>}, {pipeline_mode = #tpu.pipeline_mode<synchronous>, transform_indices = @transform_2, window_bounds = array<i64: 1, 128>}, {pipeline_mode = #tpu.pipeline_mode<synchronous>, transform_indices = @transform_3, window_bounds = array<i64: 9, 128, 128>}, {pipeline_mode = #tpu.pipeline_mode<synchronous>, transform_indices = @transform_4, window_bounds = array<i64: 288, 1>}, {transform_indices = @transform_5, window_bounds = array<i64: 1, 288, 128>}, {transform_indices = @transform_6, window_bounds = array<i64: 1, 8, 128>}, {transform_indices = @transform_7, window_bounds = array<i64: 1, 8, 128>}]} {
    %cst = arith.constant 0.000000e+00 : f32
    %0 = vector.broadcast %cst : f32 to vector<19x128xf32>
    %c0 = arith.constant 0 : index
    %c0_0 = arith.constant 0 : index
    %1 = vector.load %arg9[%c0, %c0_0] : memref<328x128xf32, #tpu.memory_space<vmem>>, vector<19x128xf32>
    tpu.vector_store %arg9[%c0, %c0_0], %0 {strides = array<i32>} : memref<328x128xf32, #tpu.memory_space<vmem>>, vector<19x128xf32>,
    %cst_1 = arith.constant 0.000000e+00 : f32
    %2 = vector.broadcast %cst_1 : f32 to vector<21x128xf32>
    %c307 = arith.constant 307 : index
    %c0_2 = arith.constant 0 : index
    %3 = vector.load %arg9[%c307, %c0_2] : memref<328x128xf32, #tpu.memory_space<vmem>>, vector<21x128xf32>
    tpu.vector_store %arg9[%c307, %c0_2], %2 {strides = array<i32>} : memref<328x128xf32, #tpu.memory_space<vmem>>, vector<21x128xf32>,
    %c0_3 = arith.constant 0 : index
    %c0_4 = arith.constant 0 : index
    %c0_5 = arith.constant 0 : index
    %4 = vector.load %arg1[%c0_3, %c0_4, %c0_5] : memref<1x288x128xbf16, #tpu.memory_space<vmem>>, vector<1x288x128xbf16>
    %5 = vector.shape_cast %4 : vector<1x288x128xbf16> to vector<288x128xbf16>
    %6 = arith.extf %5 : vector<288x128xbf16> to vector<288x128xf32>
    %c0_6 = arith.constant 0 : index
    %c0_7 = arith.constant 0 : index
    %7 = vector.load %arg2[%c0_6, %c0_7] : memref<1x128xf32, #tpu.memory_space<vmem>>, vector<1x128xf32>
    %8 = vector.broadcast %7 : vector<1x128xf32> to vector<288x128xf32>
    %9 = arith.mulf %6, %8 : vector<288x128xf32>
    %c0_8 = arith.constant 0 : index
    %c0_9 = arith.constant 0 : index
    %10 = vector.load %arg3[%c0_8, %c0_9] : memref<1x128xf32, #tpu.memory_space<vmem>>, vector<1x128xf32>
    %11 = vector.broadcast %10 : vector<1x128xf32> to vector<288x128xf32>
    %12 = arith.addf %9, %11 : vector<288x128xf32>
    %cst_10 = arith.constant 0.000000e+00 : f32
    %13 = vector.broadcast %cst_10 : f32 to vector<288x128xf32>
    %14 = arith.maximumf %12, %13 : vector<288x128xf32>
    %c0_11 = arith.constant 0 : index
    %c0_12 = arith.constant 0 : index
    %15 = vector.load %arg5[%c0_11, %c0_12] : memref<288x1xf32, #tpu.memory_space<vmem>>, vector<288x1xf32>
    %16 = vector.broadcast %15 : vector<288x1xf32> to vector<288x128xf32>
    %17 = arith.mulf %14, %16 : vector<288x128xf32>
    %c19 = arith.constant 19 : index
    %c0_13 = arith.constant 0 : index
    %18 = vector.load %arg9[%c19, %c0_13] : memref<328x128xf32, #tpu.memory_space<vmem>>, vector<288x128xf32>
    tpu.vector_store %arg9[%c19, %c0_13], %17 {strides = array<i32>} : memref<328x128xf32, #tpu.memory_space<vmem>>, vector<288x128xf32>,
    %cst_14 = arith.constant 0.000000e+00 : f32
    %19 = vector.broadcast %cst_14 : f32 to vector<288x128xf32>
    %c0_15 = arith.constant 0 : index
    %c0_16 = arith.constant 0 : index
    %20 = vector.load %arg9[%c0_15, %c0_16] : memref<328x128xf32, #tpu.memory_space<vmem>>, vector<288x128xf32>
    %21 = arith.truncf %20 : vector<288x128xf32> to vector<288x128xbf16>
    %c0_17 = arith.constant 0 : index
    %c0_18 = arith.constant 0 : index
    %c0_19 = arith.constant 0 : index
    %22 = vector.load %arg4[%c0_17, %c0_18, %c0_19] : memref<9x128x128xbf16, #tpu.memory_space<vmem>>, vector<1x128x128xbf16>
    %23 = vector.shape_cast %22 : vector<1x128x128xbf16> to vector<128x128xbf16>
    %cst_20 = arith.constant dense<0.000000e+00> : vector<288x128xf32>
    %24 = tpu.matmul %21, %23, %cst_20 {dimension_numbers = #tpu.dot_dimension_numbers<[1], [0], [0], [1], [0, 0, 1, 1], [], []>} : vector<288x128xbf16>, vector<128x128xbf16>, vector<288x128xf32> -> vector<288x128xf32>
    %25 = arith.addf %19, %24 : vector<288x128xf32>
    %c1 = arith.constant 1 : index
    %c0_21 = arith.constant 0 : index
    %26 = vector.load %arg9[%c1, %c0_21] : memref<328x128xf32, #tpu.memory_space<vmem>>, vector<288x128xf32>
    %27 = arith.truncf %26 : vector<288x128xf32> to vector<288x128xbf16>
    %c1_22 = arith.constant 1 : index
    %c0_23 = arith.constant 0 : index
    %c0_24 = arith.constant 0 : index
    %28 = vector.load %arg4[%c1_22, %c0_23, %c0_24] : memref<9x128x128xbf16, #tpu.memory_space<vmem>>, vector<1x128x128xbf16>
    %29 = vector.shape_cast %28 : vector<1x128x128xbf16> to vector<128x128xbf16>
    %cst_25 = arith.constant dense<0.000000e+00> : vector<288x128xf32>
    %30 = tpu.matmul %27, %29, %cst_25 {dimension_numbers = #tpu.dot_dimension_numbers<[1], [0], [0], [1], [0, 0, 1, 1], [], []>} : vector<288x128xbf16>, vector<128x128xbf16>, vector<288x128xf32> -> vector<288x128xf32>
    %31 = arith.addf %25, %30 : vector<288x128xf32>
    %c2 = arith.constant 2 : index
    %c0_26 = arith.constant 0 : index
    %32 = vector.load %arg9[%c2, %c0_26] : memref<328x128xf32, #tpu.memory_space<vmem>>, vector<288x128xf32>
    %33 = arith.truncf %32 : vector<288x128xf32> to vector<288x128xbf16>
    %c2_27 = arith.constant 2 : index
    %c0_28 = arith.constant 0 : index
    %c0_29 = arith.constant 0 : index
    %34 = vector.load %arg4[%c2_27, %c0_28, %c0_29] : memref<9x128x128xbf16, #tpu.memory_space<vmem>>, vector<1x128x128xbf16>
    %35 = vector.shape_cast %34 : vector<1x128x128xbf16> to vector<128x128xbf16>
    %cst_30 = arith.constant dense<0.000000e+00> : vector<288x128xf32>
    %36 = tpu.matmul %33, %35, %cst_30 {dimension_numbers = #tpu.dot_dimension_numbers<[1], [0], [0], [1], [0, 0, 1, 1], [], []>} : vector<288x128xbf16>, vector<128x128xbf16>, vector<288x128xf32> -> vector<288x128xf32>
    %37 = arith.addf %31, %36 : vector<288x128xf32>
    %c18 = arith.constant 18 : index
    %c0_31 = arith.constant 0 : index
    %38 = vector.load %arg9[%c18, %c0_31] : memref<328x128xf32, #tpu.memory_space<vmem>>, vector<288x128xf32>
    %39 = arith.truncf %38 : vector<288x128xf32> to vector<288x128xbf16>
    %c3 = arith.constant 3 : index
    %c0_32 = arith.constant 0 : index
    %c0_33 = arith.constant 0 : index
    %40 = vector.load %arg4[%c3, %c0_32, %c0_33] : memref<9x128x128xbf16, #tpu.memory_space<vmem>>, vector<1x128x128xbf16>
    %41 = vector.shape_cast %40 : vector<1x128x128xbf16> to vector<128x128xbf16>
    %cst_34 = arith.constant dense<0.000000e+00> : vector<288x128xf32>
    %42 = tpu.matmul %39, %41, %cst_34 {dimension_numbers = #tpu.dot_dimension_numbers<[1], [0], [0], [1], [0, 0, 1, 1], [], []>} : vector<288x128xbf16>, vector<128x128xbf16>, vector<288x128xf32> -> vector<288x128xf32>
    %43 = arith.addf %37, %42 : vector<288x128xf32>
    %c19_35 = arith.constant 19 : index
    %c0_36 = arith.constant 0 : index
    %44 = vector.load %arg9[%c19_35, %c0_36] : memref<328x128xf32, #tpu.memory_space<vmem>>, vector<288x128xf32>
    %45 = arith.truncf %44 : vector<288x128xf32> to vector<288x128xbf16>
    %c4 = arith.constant 4 : index
    %c0_37 = arith.constant 0 : index
    %c0_38 = arith.constant 0 : index
    %46 = vector.load %arg4[%c4, %c0_37, %c0_38] : memref<9x128x128xbf16, #tpu.memory_space<vmem>>, vector<1x128x128xbf16>
    %47 = vector.shape_cast %46 : vector<1x128x128xbf16> to vector<128x128xbf16>
    %cst_39 = arith.constant dense<0.000000e+00> : vector<288x128xf32>
    %48 = tpu.matmul %45, %47, %cst_39 {dimension_numbers = #tpu.dot_dimension_numbers<[1], [0], [0], [1], [0, 0, 1, 1], [], []>} : vector<288x128xbf16>, vector<128x128xbf16>, vector<288x128xf32> -> vector<288x128xf32>
    %49 = arith.addf %43, %48 : vector<288x128xf32>
    %c20 = arith.constant 20 : index
    %c0_40 = arith.constant 0 : index
    %50 = vector.load %arg9[%c20, %c0_40] : memref<328x128xf32, #tpu.memory_space<vmem>>, vector<288x128xf32>
    %51 = arith.truncf %50 : vector<288x128xf32> to vector<288x128xbf16>
    %c5 = arith.constant 5 : index
    %c0_41 = arith.constant 0 : index
    %c0_42 = arith.constant 0 : index
    %52 = vector.load %arg4[%c5, %c0_41, %c0_42] : memref<9x128x128xbf16, #tpu.memory_space<vmem>>, vector<1x128x128xbf16>
    %53 = vector.shape_cast %52 : vector<1x128x128xbf16> to vector<128x128xbf16>
    %cst_43 = arith.constant dense<0.000000e+00> : vector<288x128xf32>
    %54 = tpu.matmul %51, %53, %cst_43 {dimension_numbers = #tpu.dot_dimension_numbers<[1], [0], [0], [1], [0, 0, 1, 1], [], []>} : vector<288x128xbf16>, vector<128x128xbf16>, vector<288x128xf32> -> vector<288x128xf32>
    %55 = arith.addf %49, %54 : vector<288x128xf32>
    %c36 = arith.constant 36 : index
    %c0_44 = arith.constant 0 : index
    %56 = vector.load %arg9[%c36, %c0_44] : memref<328x128xf32, #tpu.memory_space<vmem>>, vector<288x128xf32>
    %57 = arith.truncf %56 : vector<288x128xf32> to vector<288x128xbf16>
    %c6 = arith.constant 6 : index
    %c0_45 = arith.constant 0 : index
    %c0_46 = arith.constant 0 : index
    %58 = vector.load %arg4[%c6, %c0_45, %c0_46] : memref<9x128x128xbf16, #tpu.memory_space<vmem>>, vector<1x128x128xbf16>
    %59 = vector.shape_cast %58 : vector<1x128x128xbf16> to vector<128x128xbf16>
    %cst_47 = arith.constant dense<0.000000e+00> : vector<288x128xf32>
    %60 = tpu.matmul %57, %59, %cst_47 {dimension_numbers = #tpu.dot_dimension_numbers<[1], [0], [0], [1], [0, 0, 1, 1], [], []>} : vector<288x128xbf16>, vector<128x128xbf16>, vector<288x128xf32> -> vector<288x128xf32>
    %61 = arith.addf %55, %60 : vector<288x128xf32>
    %c37 = arith.constant 37 : index
    %c0_48 = arith.constant 0 : index
    %62 = vector.load %arg9[%c37, %c0_48] : memref<328x128xf32, #tpu.memory_space<vmem>>, vector<288x128xf32>
    %63 = arith.truncf %62 : vector<288x128xf32> to vector<288x128xbf16>
    %c7 = arith.constant 7 : index
    %c0_49 = arith.constant 0 : index
    %c0_50 = arith.constant 0 : index
    %64 = vector.load %arg4[%c7, %c0_49, %c0_50] : memref<9x128x128xbf16, #tpu.memory_space<vmem>>, vector<1x128x128xbf16>
    %65 = vector.shape_cast %64 : vector<1x128x128xbf16> to vector<128x128xbf16>
    %cst_51 = arith.constant dense<0.000000e+00> : vector<288x128xf32>
    %66 = tpu.matmul %63, %65, %cst_51 {dimension_numbers = #tpu.dot_dimension_numbers<[1], [0], [0], [1], [0, 0, 1, 1], [], []>} : vector<288x128xbf16>, vector<128x128xbf16>, vector<288x128xf32> -> vector<288x128xf32>
    %67 = arith.addf %61, %66 : vector<288x128xf32>
    %c38 = arith.constant 38 : index
    %c0_52 = arith.constant 0 : index
    %68 = vector.load %arg9[%c38, %c0_52] : memref<328x128xf32, #tpu.memory_space<vmem>>, vector<288x128xf32>
    %69 = arith.truncf %68 : vector<288x128xf32> to vector<288x128xbf16>
    %c8 = arith.constant 8 : index
    %c0_53 = arith.constant 0 : index
    %c0_54 = arith.constant 0 : index
    %70 = vector.load %arg4[%c8, %c0_53, %c0_54] : memref<9x128x128xbf16, #tpu.memory_space<vmem>>, vector<1x128x128xbf16>
    %71 = vector.shape_cast %70 : vector<1x128x128xbf16> to vector<128x128xbf16>
    %cst_55 = arith.constant dense<0.000000e+00> : vector<288x128xf32>
    %72 = tpu.matmul %69, %71, %cst_55 {dimension_numbers = #tpu.dot_dimension_numbers<[1], [0], [0], [1], [0, 0, 1, 1], [], []>} : vector<288x128xbf16>, vector<128x128xbf16>, vector<288x128xf32> -> vector<288x128xf32>
    %73 = arith.addf %67, %72 : vector<288x128xf32>
    %c0_56 = arith.constant 0 : index
    %c0_57 = arith.constant 0 : index
    %74 = vector.load %arg5[%c0_56, %c0_57] : memref<288x1xf32, #tpu.memory_space<vmem>>, vector<288x1xf32>
    %75 = vector.broadcast %74 : vector<288x1xf32> to vector<288x128xf32>
    %76 = arith.mulf %73, %75 : vector<288x128xf32>
    %77 = arith.truncf %76 : vector<288x128xf32> to vector<288x128xbf16>
    %c0_58 = arith.constant 0 : index
    %c0_59 = arith.constant 0 : index
    %c0_60 = arith.constant 0 : index
    %78 = vector.load %arg6[%c0_58, %c0_59, %c0_60] : memref<1x288x128xbf16, #tpu.memory_space<vmem>>, vector<1x288x128xbf16>
    %79 = vector.shape_cast %78 : vector<1x288x128xbf16> to vector<288x128xbf16>
    %80 = vector.shape_cast %77 : vector<288x128xbf16> to vector<1x288x128xbf16>
    tpu.vector_store %arg6[%c0_58, %c0_59, %c0_60], %80 {strides = array<i32>} : memref<1x288x128xbf16, #tpu.memory_space<vmem>>, vector<1x288x128xbf16>,
    %81 = tpu.iota {dimensions = array<i32: 0>} : vector<8x128xi32>
    %c0_i32 = arith.constant 0 : i32
    %82 = vector.broadcast %c0_i32 : i32 to vector<8x128xi32>
    %83 = arith.cmpi eq, %81, %82 : vector<8x128xi32>
    %cst_61 = arith.constant dense<0.000000e+00> : vector<128xf32>
    %84 = vector.multi_reduction <add>, %76, %cst_61 [0] : vector<288x128xf32> to vector<128xf32>
    %85 = vector.shape_cast %84 : vector<128xf32> to vector<1x128xf32>
    %cst_62 = arith.constant 0.000000e+00 : f32
    %86 = vector.shape_cast %85 : vector<1x128xf32> to vector<1x128xf32>
    %87 = vector.broadcast %86 : vector<1x128xf32> to vector<8x128xf32>
    %88 = vector.broadcast %cst_62 : f32 to vector<8x128xf32>
    %89 = arith.select %83, %87, %88 : vector<8x128xi1>, vector<8x128xf32>
    %c0_63 = arith.constant 0 : index
    %c0_64 = arith.constant 0 : index
    %c0_65 = arith.constant 0 : index
    %90 = vector.load %arg7[%c0_63, %c0_64, %c0_65] : memref<1x8x128xf32, #tpu.memory_space<vmem>>, vector<1x8x128xf32>
    %91 = vector.shape_cast %90 : vector<1x8x128xf32> to vector<8x128xf32>
    %92 = vector.shape_cast %89 : vector<8x128xf32> to vector<1x8x128xf32>
    tpu.vector_store %arg7[%c0_63, %c0_64, %c0_65], %92 {strides = array<i32>} : memref<1x8x128xf32, #tpu.memory_space<vmem>>, vector<1x8x128xf32>,
    %93 = arith.mulf %76, %76 : vector<288x128xf32>
    %cst_66 = arith.constant dense<0.000000e+00> : vector<128xf32>
    %94 = vector.multi_reduction <add>, %93, %cst_66 [0] : vector<288x128xf32> to vector<128xf32>
    %95 = vector.shape_cast %94 : vector<128xf32> to vector<1x128xf32>
    %cst_67 = arith.constant 0.000000e+00 : f32
    %96 = vector.shape_cast %95 : vector<1x128xf32> to vector<1x128xf32>
    %97 = vector.broadcast %96 : vector<1x128xf32> to vector<8x128xf32>
    %98 = vector.broadcast %cst_67 : f32 to vector<8x128xf32>
    %99 = arith.select %83, %97, %98 : vector<8x128xi1>, vector<8x128xf32>
    %c0_68 = arith.constant 0 : index
    %c0_69 = arith.constant 0 : index
    %c0_70 = arith.constant 0 : index
    %100 = vector.load %arg8[%c0_68, %c0_69, %c0_70] : memref<1x8x128xf32, #tpu.memory_space<vmem>>, vector<1x8x128xf32>
    %101 = vector.shape_cast %100 : vector<1x8x128xf32> to vector<8x128xf32>
    %102 = vector.shape_cast %99 : vector<8x128xf32> to vector<1x8x128xf32>
    tpu.vector_store %arg8[%c0_68, %c0_69, %c0_70], %102 {strides = array<i32>} : memref<1x8x128xf32, #tpu.memory_space<vmem>>, vector<1x8x128xf32>,
    return
  }
  func.func @transform_0(%arg0: i32) -> (i32, i32, i32) {
    %c0_i32 = arith.constant 0 : i32
    %c0_i32_0 = arith.constant 0 : i32
    %c0_i32_1 = arith.constant 0 : i32
    return %arg0, %c0_i32, %c0_i32_0 : i32, i32, i32
  }
  func.func @transform_1(%arg0: i32) -> (i32, i32) {
    %c0_i32 = arith.constant 0 : i32
    %c0_i32_0 = arith.constant 0 : i32
    %c0_i32_1 = arith.constant 0 : i32
    return %c0_i32, %c0_i32_0 : i32, i32
  }
  func.func @transform_2(%arg0: i32) -> (i32, i32) {
    %c0_i32 = arith.constant 0 : i32
    %c0_i32_0 = arith.constant 0 : i32
    %c0_i32_1 = arith.constant 0 : i32
    return %c0_i32, %c0_i32_0 : i32, i32
  }
  func.func @transform_3(%arg0: i32) -> (i32, i32, i32) {
    %c0_i32 = arith.constant 0 : i32
    %c0_i32_0 = arith.constant 0 : i32
    %c0_i32_1 = arith.constant 0 : i32
    %c0_i32_2 = arith.constant 0 : i32
    return %c0_i32, %c0_i32_0, %c0_i32_1 : i32, i32, i32
  }
  func.func @transform_4(%arg0: i32) -> (i32, i32) {
    %c0_i32 = arith.constant 0 : i32
    %c0_i32_0 = arith.constant 0 : i32
    %c0_i32_1 = arith.constant 0 : i32
    return %c0_i32, %c0_i32_0 : i32, i32
  }
  func.func @transform_5(%arg0: i32) -> (i32, i32, i32) {
    %c0_i32 = arith.constant 0 : i32
    %c0_i32_0 = arith.constant 0 : i32
    %c0_i32_1 = arith.constant 0 : i32
    return %arg0, %c0_i32, %c0_i32_0 : i32, i32, i32
  }
  func.func @transform_6(%arg0: i32) -> (i32, i32, i32) {
    %c0_i32 = arith.constant 0 : i32
    %c0_i32_0 = arith.constant 0 : i32
    %c0_i32_1 = arith.constant 0 : i32
    return %arg0, %c0_i32, %c0_i32_0 : i32, i32, i32
  }
  func.func @transform_7(%arg0: i32) -> (i32, i32, i32) {
    %c0_i32 = arith.constant 0 : i32
    %c0_i32_0 = arith.constant 0 : i32
    %c0_i32_1 = arith.constant 0 : i32
    return %arg0, %c0_i32, %c0_i32_0 : i32, i32, i32
  }
}

module attributes {stable_mosaic.version = 11 : i64} {
  func.func @_bnrelu_mm_stats_kernel(%arg0: i32, %arg1: memref<128x128xbf16, #tpu.memory_space<vmem>>, %arg2: memref<1x128xf32, #tpu.memory_space<vmem>>, %arg3: memref<1x128xf32, #tpu.memory_space<vmem>>, %arg4: memref<128x128xbf16, #tpu.memory_space<vmem>>, %arg5: memref<128x1xf32, #tpu.memory_space<vmem>>, %arg6: memref<128x128xbf16, #tpu.memory_space<vmem>>, %arg7: memref<1x8x128xf32, #tpu.memory_space<vmem>>, %arg8: memref<1x8x128xf32, #tpu.memory_space<vmem>>) attributes {dimension_semantics = [#tpu.dimension_semantics<parallel>], iteration_bounds = array<i64: 5>, scalar_prefetch = 0 : i64, scratch_operands = 0 : i64, tpu.core_type = #tpu.core_type<tc>, window_params = [{transform_indices = @transform_0, window_bounds = array<i64: 128, 128>}, {pipeline_mode = #tpu.pipeline_mode<synchronous>, transform_indices = @transform_1, window_bounds = array<i64: 1, 128>}, {pipeline_mode = #tpu.pipeline_mode<synchronous>, transform_indices = @transform_2, window_bounds = array<i64: 1, 128>}, {pipeline_mode = #tpu.pipeline_mode<synchronous>, transform_indices = @transform_3, window_bounds = array<i64: 128, 128>}, {transform_indices = @transform_4, window_bounds = array<i64: 128, 1>}, {transform_indices = @transform_5, window_bounds = array<i64: 128, 128>}, {transform_indices = @transform_6, window_bounds = array<i64: 1, 8, 128>}, {transform_indices = @transform_7, window_bounds = array<i64: 1, 8, 128>}]} {
    %c0 = arith.constant 0 : index
    %c0_0 = arith.constant 0 : index
    %0 = vector.load %arg1[%c0, %c0_0] : memref<128x128xbf16, #tpu.memory_space<vmem>>, vector<128x128xbf16>
    %1 = arith.extf %0 : vector<128x128xbf16> to vector<128x128xf32>
    %c0_1 = arith.constant 0 : index
    %c0_2 = arith.constant 0 : index
    %2 = vector.load %arg2[%c0_1, %c0_2] : memref<1x128xf32, #tpu.memory_space<vmem>>, vector<1x128xf32>
    %3 = vector.broadcast %2 : vector<1x128xf32> to vector<128x128xf32>
    %4 = arith.mulf %1, %3 : vector<128x128xf32>
    %c0_3 = arith.constant 0 : index
    %c0_4 = arith.constant 0 : index
    %5 = vector.load %arg3[%c0_3, %c0_4] : memref<1x128xf32, #tpu.memory_space<vmem>>, vector<1x128xf32>
    %6 = vector.broadcast %5 : vector<1x128xf32> to vector<128x128xf32>
    %7 = arith.addf %4, %6 : vector<128x128xf32>
    %cst = arith.constant 0.000000e+00 : f32
    %8 = vector.broadcast %cst : f32 to vector<128x128xf32>
    %9 = arith.maximumf %7, %8 : vector<128x128xf32>
    %c0_5 = arith.constant 0 : index
    %c0_6 = arith.constant 0 : index
    %10 = vector.load %arg5[%c0_5, %c0_6] : memref<128x1xf32, #tpu.memory_space<vmem>>, vector<128x1xf32>
    %11 = vector.broadcast %10 : vector<128x1xf32> to vector<128x128xf32>
    %12 = arith.mulf %9, %11 : vector<128x128xf32>
    %13 = arith.truncf %12 : vector<128x128xf32> to vector<128x128xbf16>
    %c0_7 = arith.constant 0 : index
    %c0_8 = arith.constant 0 : index
    %14 = vector.load %arg4[%c0_7, %c0_8] : memref<128x128xbf16, #tpu.memory_space<vmem>>, vector<128x128xbf16>
    %cst_9 = arith.constant dense<0.000000e+00> : vector<128x128xf32>
    %15 = tpu.matmul %13, %14, %cst_9 {dimension_numbers = #tpu.dot_dimension_numbers<[1], [0], [0], [1], [0, 0, 1, 1], [], []>} : vector<128x128xbf16>, vector<128x128xbf16>, vector<128x128xf32> -> vector<128x128xf32>
    %16 = arith.truncf %15 : vector<128x128xf32> to vector<128x128xbf16>
    %c0_10 = arith.constant 0 : index
    %c0_11 = arith.constant 0 : index
    %17 = vector.load %arg6[%c0_10, %c0_11] : memref<128x128xbf16, #tpu.memory_space<vmem>>, vector<128x128xbf16>
    tpu.vector_store %arg6[%c0_10, %c0_11], %16 {strides = array<i32>} : memref<128x128xbf16, #tpu.memory_space<vmem>>, vector<128x128xbf16>,
    %18 = tpu.iota {dimensions = array<i32: 0>} : vector<8x128xi32>
    %c0_i32 = arith.constant 0 : i32
    %19 = vector.broadcast %c0_i32 : i32 to vector<8x128xi32>
    %20 = arith.cmpi eq, %18, %19 : vector<8x128xi32>
    %cst_12 = arith.constant dense<0.000000e+00> : vector<128xf32>
    %21 = vector.multi_reduction <add>, %15, %cst_12 [0] : vector<128x128xf32> to vector<128xf32>
    %22 = vector.shape_cast %21 : vector<128xf32> to vector<1x128xf32>
    %cst_13 = arith.constant 0.000000e+00 : f32
    %23 = vector.shape_cast %22 : vector<1x128xf32> to vector<1x128xf32>
    %24 = vector.broadcast %23 : vector<1x128xf32> to vector<8x128xf32>
    %25 = vector.broadcast %cst_13 : f32 to vector<8x128xf32>
    %26 = arith.select %20, %24, %25 : vector<8x128xi1>, vector<8x128xf32>
    %c0_14 = arith.constant 0 : index
    %c0_15 = arith.constant 0 : index
    %c0_16 = arith.constant 0 : index
    %27 = vector.load %arg7[%c0_14, %c0_15, %c0_16] : memref<1x8x128xf32, #tpu.memory_space<vmem>>, vector<1x8x128xf32>
    %28 = vector.shape_cast %27 : vector<1x8x128xf32> to vector<8x128xf32>
    %29 = vector.shape_cast %26 : vector<8x128xf32> to vector<1x8x128xf32>
    tpu.vector_store %arg7[%c0_14, %c0_15, %c0_16], %29 {strides = array<i32>} : memref<1x8x128xf32, #tpu.memory_space<vmem>>, vector<1x8x128xf32>,
    %30 = arith.mulf %15, %15 : vector<128x128xf32>
    %cst_17 = arith.constant dense<0.000000e+00> : vector<128xf32>
    %31 = vector.multi_reduction <add>, %30, %cst_17 [0] : vector<128x128xf32> to vector<128xf32>
    %32 = vector.shape_cast %31 : vector<128xf32> to vector<1x128xf32>
    %cst_18 = arith.constant 0.000000e+00 : f32
    %33 = vector.shape_cast %32 : vector<1x128xf32> to vector<1x128xf32>
    %34 = vector.broadcast %33 : vector<1x128xf32> to vector<8x128xf32>
    %35 = vector.broadcast %cst_18 : f32 to vector<8x128xf32>
    %36 = arith.select %20, %34, %35 : vector<8x128xi1>, vector<8x128xf32>
    %c0_19 = arith.constant 0 : index
    %c0_20 = arith.constant 0 : index
    %c0_21 = arith.constant 0 : index
    %37 = vector.load %arg8[%c0_19, %c0_20, %c0_21] : memref<1x8x128xf32, #tpu.memory_space<vmem>>, vector<1x8x128xf32>
    %38 = vector.shape_cast %37 : vector<1x8x128xf32> to vector<8x128xf32>
    %39 = vector.shape_cast %36 : vector<8x128xf32> to vector<1x8x128xf32>
    tpu.vector_store %arg8[%c0_19, %c0_20, %c0_21], %39 {strides = array<i32>} : memref<1x8x128xf32, #tpu.memory_space<vmem>>, vector<1x8x128xf32>,
    return
  }
  func.func @transform_0(%arg0: i32) -> (i32, i32) {
    %c0_i32 = arith.constant 0 : i32
    %c0_i32_0 = arith.constant 0 : i32
    return %arg0, %c0_i32 : i32, i32
  }
  func.func @transform_1(%arg0: i32) -> (i32, i32) {
    %c0_i32 = arith.constant 0 : i32
    %c0_i32_0 = arith.constant 0 : i32
    %c0_i32_1 = arith.constant 0 : i32
    return %c0_i32, %c0_i32_0 : i32, i32
  }
  func.func @transform_2(%arg0: i32) -> (i32, i32) {
    %c0_i32 = arith.constant 0 : i32
    %c0_i32_0 = arith.constant 0 : i32
    %c0_i32_1 = arith.constant 0 : i32
    return %c0_i32, %c0_i32_0 : i32, i32
  }
  func.func @transform_3(%arg0: i32) -> (i32, i32) {
    %c0_i32 = arith.constant 0 : i32
    %c0_i32_0 = arith.constant 0 : i32
    %c0_i32_1 = arith.constant 0 : i32
    return %c0_i32, %c0_i32_0 : i32, i32
  }
  func.func @transform_4(%arg0: i32) -> (i32, i32) {
    %c0_i32 = arith.constant 0 : i32
    %c0_i32_0 = arith.constant 0 : i32
    return %arg0, %c0_i32 : i32, i32
  }
  func.func @transform_5(%arg0: i32) -> (i32, i32) {
    %c0_i32 = arith.constant 0 : i32
    %c0_i32_0 = arith.constant 0 : i32
    return %arg0, %c0_i32 : i32, i32
  }
  func.func @transform_6(%arg0: i32) -> (i32, i32, i32) {
    %c0_i32 = arith.constant 0 : i32
    %c0_i32_0 = arith.constant 0 : i32
    %c0_i32_1 = arith.constant 0 : i32
    return %arg0, %c0_i32, %c0_i32_0 : i32, i32, i32
  }
  func.func @transform_7(%arg0: i32) -> (i32, i32, i32) {
    %c0_i32 = arith.constant 0 : i32
    %c0_i32_0 = arith.constant 0 : i32
    %c0_i32_1 = arith.constant 0 : i32
    return %arg0, %c0_i32, %c0_i32_0 : i32, i32, i32
  }
}

module attributes {stable_mosaic.version = 11 : i64} {
  func.func @_bn_add_relu_apply_kernel(%arg0: i32, %arg1: memref<128x128xbf16, #tpu.memory_space<vmem>>, %arg2: memref<1x128xf32, #tpu.memory_space<vmem>>, %arg3: memref<1x128xf32, #tpu.memory_space<vmem>>, %arg4: memref<128x128xbf16, #tpu.memory_space<vmem>>, %arg5: memref<128x128xf32, #tpu.memory_space<vmem>>) attributes {dimension_semantics = [#tpu.dimension_semantics<parallel>], iteration_bounds = array<i64: 5>, scalar_prefetch = 0 : i64, scratch_operands = 0 : i64, tpu.core_type = #tpu.core_type<tc>, window_params = [{transform_indices = @transform_0, window_bounds = array<i64: 128, 128>}, {pipeline_mode = #tpu.pipeline_mode<synchronous>, transform_indices = @transform_1, window_bounds = array<i64: 1, 128>}, {pipeline_mode = #tpu.pipeline_mode<synchronous>, transform_indices = @transform_2, window_bounds = array<i64: 1, 128>}, {transform_indices = @transform_3, window_bounds = array<i64: 128, 128>}, {transform_indices = @transform_4, window_bounds = array<i64: 128, 128>}]} {
    %c0 = arith.constant 0 : index
    %c0_0 = arith.constant 0 : index
    %0 = vector.load %arg1[%c0, %c0_0] : memref<128x128xbf16, #tpu.memory_space<vmem>>, vector<128x128xbf16>
    %1 = arith.extf %0 : vector<128x128xbf16> to vector<128x128xf32>
    %c0_1 = arith.constant 0 : index
    %c0_2 = arith.constant 0 : index
    %2 = vector.load %arg2[%c0_1, %c0_2] : memref<1x128xf32, #tpu.memory_space<vmem>>, vector<1x128xf32>
    %3 = vector.broadcast %2 : vector<1x128xf32> to vector<128x128xf32>
    %4 = arith.mulf %1, %3 : vector<128x128xf32>
    %c0_3 = arith.constant 0 : index
    %c0_4 = arith.constant 0 : index
    %5 = vector.load %arg3[%c0_3, %c0_4] : memref<1x128xf32, #tpu.memory_space<vmem>>, vector<1x128xf32>
    %6 = vector.broadcast %5 : vector<1x128xf32> to vector<128x128xf32>
    %7 = arith.addf %4, %6 : vector<128x128xf32>
    %c0_5 = arith.constant 0 : index
    %c0_6 = arith.constant 0 : index
    %8 = vector.load %arg4[%c0_5, %c0_6] : memref<128x128xbf16, #tpu.memory_space<vmem>>, vector<128x128xbf16>
    %9 = arith.extf %8 : vector<128x128xbf16> to vector<128x128xf32>
    %10 = arith.addf %7, %9 : vector<128x128xf32>
    %cst = arith.constant 0.000000e+00 : f32
    %11 = vector.broadcast %cst : f32 to vector<128x128xf32>
    %12 = arith.maximumf %10, %11 : vector<128x128xf32>
    %c0_7 = arith.constant 0 : index
    %c0_8 = arith.constant 0 : index
    %13 = vector.load %arg5[%c0_7, %c0_8] : memref<128x128xf32, #tpu.memory_space<vmem>>, vector<128x128xf32>
    tpu.vector_store %arg5[%c0_7, %c0_8], %12 {strides = array<i32>} : memref<128x128xf32, #tpu.memory_space<vmem>>, vector<128x128xf32>,
    return
  }
  func.func @transform_0(%arg0: i32) -> (i32, i32) {
    %c0_i32 = arith.constant 0 : i32
    %c0_i32_0 = arith.constant 0 : i32
    return %arg0, %c0_i32 : i32, i32
  }
  func.func @transform_1(%arg0: i32) -> (i32, i32) {
    %c0_i32 = arith.constant 0 : i32
    %c0_i32_0 = arith.constant 0 : i32
    %c0_i32_1 = arith.constant 0 : i32
    return %c0_i32, %c0_i32_0 : i32, i32
  }
  func.func @transform_2(%arg0: i32) -> (i32, i32) {
    %c0_i32 = arith.constant 0 : i32
    %c0_i32_0 = arith.constant 0 : i32
    %c0_i32_1 = arith.constant 0 : i32
    return %c0_i32, %c0_i32_0 : i32, i32
  }
  func.func @transform_3(%arg0: i32) -> (i32, i32) {
    %c0_i32 = arith.constant 0 : i32
    %c0_i32_0 = arith.constant 0 : i32
    return %arg0, %c0_i32 : i32, i32
  }
  func.func @transform_4(%arg0: i32) -> (i32, i32) {
    %c0_i32 = arith.constant 0 : i32
    %c0_i32_0 = arith.constant 0 : i32
    return %arg0, %c0_i32 : i32, i32
  }
}

</mosaic_0001>

<llo_original>
// kernel: tile.13
$region0: #{tile.13}
  #allocation0 [shape = 's32[1]{0}', space=sflag, size = 0x4, scoped, tag = 'scoped memory for tile.13']
  %s0 = inlined_call_operand.vmem [shape: f32[18], index: 0, kind: input, shape index: {}]
  %s1 = inlined_call_operand.vmem [shape: f32[16,18], index: 1, kind: output, shape index: {}]
  // Predicated region
  $region2: #{tile.13} parent=0 // pred_check
    _
  $region3: #{tile.13} parent=0 // pred_check_branch
    %3 = sbr.rel (0) target = $region5
  $region4: #{tile.13} parent=0 // pred_region
    _
  $region5: #{tile.13} parent=0 // pred_fallthru
    _
  %v4 = vld [vmem:[%s0] ss:$0 sm:$0xff]
  %5 = vst [vmem:[%s1] sm:$0xff] %v4
  %s6 = scalar_lea.vmem %s1, 8
  %7 = vst [vmem:[%s6] sm:$0xff] %v4

// kernel: tile.0
$region0: #{tile.0}
  %s0 = inlined_call_operand.vmem [shape: f32[16,18], index: 0, kind: input, shape index: {}]
  %s1 = inlined_call_operand.vmem [shape: f32[288,1], index: 1, kind: output, shape index: {}]
  %v2 = vld [vmem:[%s0] sm:$0xff]
  %vm3 = vcmask 7168
  %4 = vst.msk [vmem:[%s1] ss:$18 sm:$0xff] %vm3, %v2
  %s5 = scalar_lea.vmem %s0, 8
  %v6 = vld [vmem:[%s5] sm:$0xff]
  %vm7 = vcmask 7168
  %s8 = scalar_lea.vmem %s1, 144
  %9 = vst.msk [vmem:[%s8] ss:$18 sm:$0xff] %vm7, %v6
  %v10 = vld.sshfl [vmem:[%s0] sm:$0xff pattern:$0xf6d4b290]
  %11 = vrot.lane.b32.xlu0 %v10, 127
  %v12 = vpop.permute.xlu0 %11
  %vm13 = vcmask 7168
  %s14 = scalar_lea.vmem %s1, 1
  %15 = vst.msk [vmem:[%s14] ss:$162 sm:$0x3] %vm13, %v12
  %s16 = scalar_lea.vmem %s1, 4294967009
  %17 = vst.msk [vmem:[%s16] ss:$162 sm:$0xc] %vm13, %v12
  %s18 = scalar_lea.vmem %s1, 4294966721
  %19 = vst.msk [vmem:[%s18] ss:$162 sm:$0x30] %vm13, %v12
  %s20 = scalar_lea.vmem %s1, 4294966433
  %21 = vst.msk [vmem:[%s20] ss:$162 sm:$0xc0] %vm13, %v12
  %s22 = scalar_lea.vmem %s0, 1
  %v23 = vld.sshfl [vmem:[%s22] sm:$0xff pattern:$0x6d4b2907]
  %24 = vrot.lane.b32.xlu0 %v23, 127
  %v25 = vpop.permute.xlu0 %24
  %vm26 = vcmask 7168
  %s27 = scalar_lea.vmem %s1, 145
  %28 = vst.msk [vmem:[%s27] ss:$-126 sm:$0x3] %vm26, %v25
  %s29 = scalar_lea.vmem %s1, 433
  %30 = vst.msk [vmem:[%s29] ss:$-126 sm:$0xc] %vm26, %v25
  %s31 = scalar_lea.vmem %s1, 721
  %32 = vst.msk [vmem:[%s31] ss:$-126 sm:$0x30] %vm26, %v25
  %s33 = scalar_lea.vmem %s1, 1009
  %34 = vst.msk [vmem:[%s33] ss:$-126 sm:$0xc0] %vm26, %v25
  %v35 = vld.sshfl [vmem:[%s0] sm:$0xff pattern:$0x6d4b2907]
  %36 = vrot.lane.b32.xlu0 %v35, 126
  %v37 = vpop.permute.xlu0 %36
  %vm38 = vcmask 7168
  %s39 = scalar_lea.vmem %s1, 128
  %40 = vst.msk [vmem:[%s39] ss:$-126 sm:$0x3] %vm38, %v37
  %s41 = scalar_lea.vmem %s1, 416
  %42 = vst.msk [vmem:[%s41] ss:$-126 sm:$0xc] %vm38, %v37
  %s43 = scalar_lea.vmem %s1, 704
  %44 = vst.msk [vmem:[%s43] ss:$-126 sm:$0x30] %vm38, %v37
  %s45 = scalar_lea.vmem %s1, 992
  %46 = vst.msk [vmem:[%s45] ss:$-126 sm:$0xc0] %vm38, %v37
  %s47 = scalar_lea.vmem %s0, 1
  %v48 = vld.sshfl [vmem:[%s47] sm:$0xff pattern:$0xd4b2907e]
  %49 = vrot.lane.b32.xlu0 %v48, 126
  %v50 = vpop.permute.xlu0 %49
  %vm51 = vcmask 7168
  %s52 = scalar_lea.vmem %s1, 272
  %53 = vst.msk [vmem:[%s52] ss:$-126 sm:$0x7] %vm51, %v50
  %s54 = scalar_lea.vmem %s1, 560
  %55 = vst.msk [vmem:[%s54] ss:$-126 sm:$0x18] %vm51, %v50
  %s56 = scalar_lea.vmem %s1, 848
  %57 = vst.msk [vmem:[%s56] ss:$-126 sm:$0x60] %vm51, %v50
  %s58 = scalar_lea.vmem %s1, 247
  %59 = vst.msk [vmem:[%s58] sm:$0x80] %vm51, %v50
  %v60 = vld.sshfl [vmem:[%s0] sm:$0xff pattern:$0x6d4b2907]
  %61 = vrot.lane.b32.xlu0 %v60, 125
  %v62 = vpop.permute.xlu0 %61
  %vm63 = vcmask 7168
  %s64 = scalar_lea.vmem %s1, 129
  %65 = vst.msk [vmem:[%s64] ss:$-126 sm:$0x3] %vm63, %v62
  %s66 = scalar_lea.vmem %s1, 417
  %67 = vst.msk [vmem:[%s66] ss:$-126 sm:$0xc] %vm63, %v62
  %s68 = scalar_lea.vmem %s1, 705
  %69 = vst.msk [vmem:[%s68] ss:$-126 sm:$0x30] %vm63, %v62
  %s70 = scalar_lea.vmem %s1, 993
  %71 = vst.msk [vmem:[%s70] ss:$-126 sm:$0xc0] %vm63, %v62
  %s72 = scalar_lea.vmem %s0, 1
  %v73 = vld.sshfl [vmem:[%s72] sm:$0xff pattern:$0xd4b2907e]
  %74 = vrot.lane.b32.xlu0 %v73, 125
  %v75 = vpop.permute.xlu0 %74
  %vm76 = vcmask 7168
  %s77 = scalar_lea.vmem %s1, 273
  %78 = vst.msk [vmem:[%s77] ss:$-126 sm:$0x7] %vm76, %v75
  %s79 = scalar_lea.vmem %s1, 561
  %80 = vst.msk [vmem:[%s79] ss:$-126 sm:$0x18] %vm76, %v75
  %s81 = scalar_lea.vmem %s1, 849
  %82 = vst.msk [vmem:[%s81] ss:$-126 sm:$0x60] %vm76, %v75
  %s83 = scalar_lea.vmem %s1, 248
  %84 = vst.msk [vmem:[%s83] sm:$0x80] %vm76, %v75
  %v85 = vld.sshfl [vmem:[%s0] sm:$0xff pattern:$0xd4b2907e]
  %86 = vrot.lane.b32.xlu0 %v85, 124
  %v87 = vpop.permute.xlu0 %86
  %vm88 = vcmask 7168
  %s89 = scalar_lea.vmem %s1, 256
  %90 = vst.msk [vmem:[%s89] ss:$-126 sm:$0x7] %vm88, %v87
  %s91 = scalar_lea.vmem %s1, 544
  %92 = vst.msk [vmem:[%s91] ss:$-126 sm:$0x18] %vm88, %v87
  %s93 = scalar_lea.vmem %s1, 832
  %94 = vst.msk [vmem:[%s93] ss:$-126 sm:$0x60] %vm88, %v87
  %s95 = scalar_lea.vmem %s1, 231
  %96 = vst.msk [vmem:[%s95] sm:$0x80] %vm88, %v87
  %s97 = scalar_lea.vmem %s0, 1
  %v98 = vld.sshfl [vmem:[%s97] sm:$0xff pattern:$0x4b2907e5]
  %99 = vrot.lane.b32.xlu0 %v98, 124
  %v100 = vpop.permute.xlu0 %99
  %vm101 = vcmask 7168
  %s102 = scalar_lea.vmem %s1, 112
  %103 = vst.msk [vmem:[%s102] ss:$162 sm:$0x3] %vm101, %v100
  %s104 = scalar_lea.vmem %s1, 400
  %105 = vst.msk [vmem:[%s104] ss:$-126 sm:$0xc] %vm101, %v100
  %s106 = scalar_lea.vmem %s1, 688
  %107 = vst.msk [vmem:[%s106] ss:$-126 sm:$0x30] %vm101, %v100
  %s108 = scalar_lea.vmem %s1, 976
  %109 = vst.msk [vmem:[%s108] ss:$-126 sm:$0xc0] %vm101, %v100
  %v110 = vld.sshfl [vmem:[%s0] sm:$0xff pattern:$0xd4b2907e]
  %111 = vrot.lane.b32.xlu0 %v110, 123
  %v112 = vpop.permute.xlu0 %111
  %vm113 = vcmask 7168
  %s114 = scalar_lea.vmem %s1, 257
  %115 = vst.msk [vmem:[%s114] ss:$-126 sm:$0x7] %vm113, %v112
  %s116 = scalar_lea.vmem %s1, 545
  %117 = vst.msk [vmem:[%s116] ss:$-126 sm:$0x18] %vm113, %v112
  %s118 = scalar_lea.vmem %s1, 833
  %119 = vst.msk [vmem:[%s118] ss:$-126 sm:$0x60] %vm113, %v112
  %s120 = scalar_lea.vmem %s1, 232
  %121 = vst.msk [vmem:[%s120] sm:$0x80] %vm113, %v112
  %s122 = scalar_lea.vmem %s0, 1
  %v123 = vld.sshfl [vmem:[%s122] sm:$0xff pattern:$0x4b2907e5]
  %124 = vrot.lane.b32.xlu0 %v123, 123
  %v125 = vpop.permute.xlu0 %124
  %vm126 = vcmask 7168
  %s127 = scalar_lea.vmem %s1, 113
  %128 = vst.msk [vmem:[%s127] ss:$162 sm:$0x3] %vm126, %v125
  %s129 = scalar_lea.vmem %s1, 401
  %130 = vst.msk [vmem:[%s129] ss:$-126 sm:$0xc] %vm126, %v125
  %s131 = scalar_lea.vmem %s1, 689
  %132 = vst.msk [vmem:[%s131] ss:$-126 sm:$0x30] %vm126, %v125
  %s133 = scalar_lea.vmem %s1, 977
  %134 = vst.msk [vmem:[%s133] ss:$-126 sm:$0xc0] %vm126, %v125
  %v135 = vld.sshfl [vmem:[%s0] sm:$0xff pattern:$0x4b2907e5]
  %136 = vrot.lane.b32.xlu0 %v135, 122
  %v137 = vpop.permute.xlu0 %136
  %vm138 = vcmask 7168
  %s139 = scalar_lea.vmem %s1, 96
  %140 = vst.msk [vmem:[%s139] ss:$162 sm:$0x3] %vm138, %v137
  %s141 = scalar_lea.vmem %s1, 384
  %142 = vst.msk [vmem:[%s141] ss:$-126 sm:$0xc] %vm138, %v137
  %s143 = scalar_lea.vmem %s1, 672
  %144 = vst.msk [vmem:[%s143] ss:$-126 sm:$0x30] %vm138, %v137
  %s145 = scalar_lea.vmem %s1, 960
  %146 = vst.msk [vmem:[%s145] ss:$-126 sm:$0xc0] %vm138, %v137
  %s147 = scalar_lea.vmem %s0, 1
  %v148 = vld.sshfl [vmem:[%s147] sm:$0xff pattern:$0xb2907e5c]
  %149 = vrot.lane.b32.xlu0 %v148, 122
  %v150 = vpop.permute.xlu0 %149
  %vm151 = vcmask 7168
  %s152 = scalar_lea.vmem %s1, 240
  %153 = vst.msk [vmem:[%s152] ss:$-126 sm:$0x3] %vm151, %v150
  %s154 = scalar_lea.vmem %s1, 528
  %155 = vst.msk [vmem:[%s154] ss:$-126 sm:$0x1c] %vm151, %v150
  %s156 = scalar_lea.vmem %s1, 816
  %157 = vst.msk [vmem:[%s156] ss:$-126 sm:$0x60] %vm151, %v150
  %s158 = scalar_lea.vmem %s1, 215
  %159 = vst.msk [vmem:[%s158] sm:$0x80] %vm151, %v150
  %v160 = vld.sshfl [vmem:[%s0] sm:$0xff pattern:$0x4b2907e5]
  %161 = vrot.lane.b32.xlu0 %v160, 121
  %v162 = vpop.permute.xlu0 %161
  %vm163 = vcmask 7168
  %s164 = scalar_lea.vmem %s1, 97
  %165 = vst.msk [vmem:[%s164] ss:$162 sm:$0x3] %vm163, %v162
  %s166 = scalar_lea.vmem %s1, 385
  %167 = vst.msk [vmem:[%s166] ss:$-126 sm:$0xc] %vm163, %v162
  %s168 = scalar_lea.vmem %s1, 673
  %169 = vst.msk [vmem:[%s168] ss:$-126 sm:$0x30] %vm163, %v162
  %s170 = scalar_lea.vmem %s1, 961
  %171 = vst.msk [vmem:[%s170] ss:$-126 sm:$0xc0] %vm163, %v162
  %s172 = scalar_lea.vmem %s0, 1
  %v173 = vld.sshfl [vmem:[%s172] sm:$0xff pattern:$0xb2907e5c]
  %174 = vrot.lane.b32.xlu0 %v173, 121
  %v175 = vpop.permute.xlu0 %174
  %vm176 = vcmask 7168
  %s177 = scalar_lea.vmem %s1, 241
  %178 = vst.msk [vmem:[%s177] ss:$-126 sm:$0x3] %vm176, %v175
  %s179 = scalar_lea.vmem %s1, 529
  %180 = vst.msk [vmem:[%s179] ss:$-126 sm:$0x1c] %vm176, %v175
  %s181 = scalar_lea.vmem %s1, 817
  %182 = vst.msk [vmem:[%s181] ss:$-126 sm:$0x60] %vm176, %v175
  %s183 = scalar_lea.vmem %s1, 216
  %184 = vst.msk [vmem:[%s183] sm:$0x80] %vm176, %v175
  %v185 = vld.sshfl [vmem:[%s0] sm:$0xff pattern:$0xb2907e5c]
  %186 = vrot.lane.b32.xlu0 %v185, 120
  %v187 = vpop.permute.xlu0 %186
  %vm188 = vcmask 7168
  %s189 = scalar_lea.vmem %s1, 224
  %190 = vst.msk [vmem:[%s189] ss:$-126 sm:$0x3] %vm188, %v187
  %s191 = scalar_lea.vmem %s1, 512
  %192 = vst.msk [vmem:[%s191] ss:$-126 sm:$0x1c] %vm188, %v187
  %s193 = scalar_lea.vmem %s1, 800
  %194 = vst.msk [vmem:[%s193] ss:$-126 sm:$0x60] %vm188, %v187
  %s195 = scalar_lea.vmem %s1, 199
  %196 = vst.msk [vmem:[%s195] sm:$0x80] %vm188, %v187
  %s197 = scalar_lea.vmem %s0, 1
  %v198 = vld.sshfl [vmem:[%s197] sm:$0xff pattern:$0x2907e5c3]
  %199 = vrot.lane.b32.xlu0 %v198, 120
  %v200 = vpop.permute.xlu0 %199
  %vm201 = vcmask 7168
  %s202 = scalar_lea.vmem %s1, 80
  %203 = vst.msk [vmem:[%s202] ss:$162 sm:$0x3] %vm201, %v200
  %s204 = scalar_lea.vmem %s1, 4294967088
  %205 = vst.msk [vmem:[%s204] ss:$162 sm:$0xc] %vm201, %v200
  %s206 = scalar_lea.vmem %s1, 656
  %207 = vst.msk [vmem:[%s206] ss:$-126 sm:$0x30] %vm201, %v200
  %s208 = scalar_lea.vmem %s1, 944
  %209 = vst.msk [vmem:[%s208] ss:$-126 sm:$0xc0] %vm201, %v200
  %v210 = vld.sshfl [vmem:[%s0] sm:$0xff pattern:$0xb2907e5c]
  %211 = vrot.lane.b32.xlu0 %v210, 119
  %v212 = vpop.permute.xlu0 %211
  %vm213 = vcmask 7168
  %s214 = scalar_lea.vmem %s1, 225
  %215 = vst.msk [vmem:[%s214] ss:$-126 sm:$0x3] %vm213, %v212
  %s216 = scalar_lea.vmem %s1, 513
  %217 = vst.msk [vmem:[%s216] ss:$-126 sm:$0x1c] %vm213, %v212
  %s218 = scalar_lea.vmem %s1, 801
  %219 = vst.msk [vmem:[%s218] ss:$-126 sm:$0x60] %vm213, %v212
  %s220 = scalar_lea.vmem %s1, 200
  %221 = vst.msk [vmem:[%s220] sm:$0x80] %vm213, %v212
  %s222 = scalar_lea.vmem %s0, 1
  %v223 = vld.sshfl [vmem:[%s222] sm:$0xff pattern:$0x2907e5c3]
  %224 = vrot.lane.b32.xlu0 %v223, 119
  %v225 = vpop.permute.xlu0 %224
  %vm226 = vcmask 7168
  %s227 = scalar_lea.vmem %s1, 81
  %228 = vst.msk [vmem:[%s227] ss:$162 sm:$0x3] %vm226, %v225
  %s229 = scalar_lea.vmem %s1, 4294967089
  %230 = vst.msk [vmem:[%s229] ss:$162 sm:$0xc] %vm226, %v225
  %s231 = scalar_lea.vmem %s1, 657
  %232 = vst.msk [vmem:[%s231] ss:$-126 sm:$0x30] %vm226, %v225
  %s233 = scalar_lea.vmem %s1, 945
  %234 = vst.msk [vmem:[%s233] ss:$-126 sm:$0xc0] %vm226, %v225
  %v235 = vld.sshfl [vmem:[%s0] sm:$0xff pattern:$0x2907e5c3]
  %236 = vrot.lane.b32.xlu0 %v235, 118
  %v237 = vpop.permute.xlu0 %236
  %vm238 = vcmask 7168
  %s239 = scalar_lea.vmem %s1, 64
  %240 = vst.msk [vmem:[%s239] ss:$162 sm:$0x3] %vm238, %v237
  %s241 = scalar_lea.vmem %s1, 4294967072
  %242 = vst.msk [vmem:[%s241] ss:$162 sm:$0xc] %vm238, %v237
  %s243 = scalar_lea.vmem %s1, 640
  %244 = vst.msk [vmem:[%s243] ss:$-126 sm:$0x30] %vm238, %v237
  %s245 = scalar_lea.vmem %s1, 928
  %246 = vst.msk [vmem:[%s245] ss:$-126 sm:$0xc0] %vm238, %v237
  %s247 = scalar_lea.vmem %s0, 1
  %v248 = vld.sshfl [vmem:[%s247] sm:$0xff pattern:$0x907e5c3a]
  %249 = vrot.lane.b32.xlu0 %v248, 118
  %v250 = vpop.permute.xlu0 %249
  %vm251 = vcmask 7168
  %s252 = scalar_lea.vmem %s1, 208
  %253 = vst.msk [vmem:[%s252] ss:$-126 sm:$0x3] %vm251, %v250
  %s254 = scalar_lea.vmem %s1, 496
  %255 = vst.msk [vmem:[%s254] ss:$-126 sm:$0xc] %vm251, %v250
  %s256 = scalar_lea.vmem %s1, 784
  %257 = vst.msk [vmem:[%s256] ss:$-126 sm:$0x70] %vm251, %v250
  %s258 = scalar_lea.vmem %s1, 183
  %259 = vst.msk [vmem:[%s258] sm:$0x80] %vm251, %v250
  %v260 = vld.sshfl [vmem:[%s0] sm:$0xff pattern:$0x2907e5c3]
  %261 = vrot.lane.b32.xlu0 %v260, 117
  %v262 = vpop.permute.xlu0 %261
  %vm263 = vcmask 7168
  %s264 = scalar_lea.vmem %s1, 65
  %265 = vst.msk [vmem:[%s264] ss:$162 sm:$0x3] %vm263, %v262
  %s266 = scalar_lea.vmem %s1, 4294967073
  %267 = vst.msk [vmem:[%s266] ss:$162 sm:$0xc] %vm263, %v262
  %s268 = scalar_lea.vmem %s1, 641
  %269 = vst.msk [vmem:[%s268] ss:$-126 sm:$0x30] %vm263, %v262
  %s270 = scalar_lea.vmem %s1, 929
  %271 = vst.msk [vmem:[%s270] ss:$-126 sm:$0xc0] %vm263, %v262
  %s272 = scalar_lea.vmem %s0, 1
  %v273 = vld.sshfl [vmem:[%s272] sm:$0xff pattern:$0x907e5c3a]
  %274 = vrot.lane.b32.xlu0 %v273, 117
  %v275 = vpop.permute.xlu0 %274
  %vm276 = vcmask 7168
  %s277 = scalar_lea.vmem %s1, 209
  %278 = vst.msk [vmem:[%s277] ss:$-126 sm:$0x3] %vm276, %v275
  %s279 = scalar_lea.vmem %s1, 497
  %280 = vst.msk [vmem:[%s279] ss:$-126 sm:$0xc] %vm276, %v275
  %s281 = scalar_lea.vmem %s1, 785
  %282 = vst.msk [vmem:[%s281] ss:$-126 sm:$0x70] %vm276, %v275
  %s283 = scalar_lea.vmem %s1, 184
  %284 = vst.msk [vmem:[%s283] sm:$0x80] %vm276, %v275
  %v285 = vld.sshfl [vmem:[%s0] sm:$0xff pattern:$0x907e5c3a]
  %286 = vrot.lane.b32.xlu0 %v285, 116
  %v287 = vpop.permute.xlu0 %286
  %vm288 = vcmask 7168
  %s289 = scalar_lea.vmem %s1, 192
  %290 = vst.msk [vmem:[%s289] ss:$-126 sm:$0x3] %vm288, %v287
  %s291 = scalar_lea.vmem %s1, 480
  %292 = vst.msk [vmem:[%s291] ss:$-126 sm:$0xc] %vm288, %v287
  %s293 = scalar_lea.vmem %s1, 768
  %294 = vst.msk [vmem:[%s293] ss:$-126 sm:$0x70] %vm288, %v287
  %s295 = scalar_lea.vmem %s1, 167
  %296 = vst.msk [vmem:[%s295] sm:$0x80] %vm288, %v287
  %s297 = scalar_lea.vmem %s0, 1
  %v298 = vld.sshfl [vmem:[%s297] sm:$0xff pattern:$0x7e5c3a1]
  %299 = vrot.lane.b32.xlu0 %v298, 116
  %v300 = vpop.permute.xlu0 %299
  %vm301 = vcmask 7168
  %s302 = scalar_lea.vmem %s1, 48
  %303 = vst.msk [vmem:[%s302] ss:$162 sm:$0x3] %vm301, %v300
  %s304 = scalar_lea.vmem %s1, 4294967056
  %305 = vst.msk [vmem:[%s304] ss:$162 sm:$0xc] %vm301, %v300
  %s306 = scalar_lea.vmem %s1, 4294966768
  %307 = vst.msk [vmem:[%s306] ss:$162 sm:$0x30] %vm301, %v300
  %s308 = scalar_lea.vmem %s1, 912
  %309 = vst.msk [vmem:[%s308] ss:$-126 sm:$0xc0] %vm301, %v300
  %v310 = vld.sshfl [vmem:[%s0] sm:$0xff pattern:$0x907e5c3a]
  %311 = vrot.lane.b32.xlu0 %v310, 115
  %v312 = vpop.permute.xlu0 %311
  %vm313 = vcmask 7168
  %s314 = scalar_lea.vmem %s1, 193
  %315 = vst.msk [vmem:[%s314] ss:$-126 sm:$0x3] %vm313, %v312
  %s316 = scalar_lea.vmem %s1, 481
  %317 = vst.msk [vmem:[%s316] ss:$-126 sm:$0xc] %vm313, %v312
  %s318 = scalar_lea.vmem %s1, 769
  %319 = vst.msk [vmem:[%s318] ss:$-126 sm:$0x70] %vm313, %v312
  %s320 = scalar_lea.vmem %s1, 168
  %321 = vst.msk [vmem:[%s320] sm:$0x80] %vm313, %v312
  %s322 = scalar_lea.vmem %s0, 1
  %v323 = vld.sshfl [vmem:[%s322] sm:$0xff pattern:$0x7e5c3a1]
  %324 = vrot.lane.b32.xlu0 %v323, 115
  %v325 = vpop.permute.xlu0 %324
  %vm326 = vcmask 7168
  %s327 = scalar_lea.vmem %s1, 49
  %328 = vst.msk [vmem:[%s327] ss:$162 sm:$0x3] %vm326, %v325
  %s329 = scalar_lea.vmem %s1, 4294967057
  %330 = vst.msk [vmem:[%s329] ss:$162 sm:$0xc] %vm326, %v325
  %s331 = scalar_lea.vmem %s1, 4294966769
  %332 = vst.msk [vmem:[%s331] ss:$162 sm:$0x30] %vm326, %v325
  %s333 = scalar_lea.vmem %s1, 913
  %334 = vst.msk [vmem:[%s333] ss:$-126 sm:$0xc0] %vm326, %v325
  %v335 = vld.sshfl [vmem:[%s0] sm:$0xff pattern:$0x7e5c3a1]
  %336 = vrot.lane.b32.xlu0 %v335, 114
  %v337 = vpop.permute.xlu0 %336
  %vm338 = vcmask 7168
  %s339 = scalar_lea.vmem %s1, 32
  %340 = vst.msk [vmem:[%s339] ss:$162 sm:$0x3] %vm338, %v337
  %s341 = scalar_lea.vmem %s1, 4294967040
  %342 = vst.msk [vmem:[%s341] ss:$162 sm:$0xc] %vm338, %v337
  %s343 = scalar_lea.vmem %s1, 4294966752
  %344 = vst.msk [vmem:[%s343] ss:$162 sm:$0x30] %vm338, %v337
  %s345 = scalar_lea.vmem %s1, 896
  %346 = vst.msk [vmem:[%s345] ss:$-126 sm:$0xc0] %vm338, %v337
  %s347 = scalar_lea.vmem %s0, 2
  %v348 = vld.sshfl [vmem:[%s347] sm:$0xff pattern:$0x6d4b2907]
  %349 = vrot.lane.b32.xlu0 %v348, 114
  %v350 = vpop.permute.xlu0 %349
  %vm351 = vcmask 7168
  %s352 = scalar_lea.vmem %s1, 176
  %353 = vst.msk [vmem:[%s352] ss:$-126 sm:$0x3] %vm351, %v350
  %s354 = scalar_lea.vmem %s1, 464
  %355 = vst.msk [vmem:[%s354] ss:$-126 sm:$0xc] %vm351, %v350
  %s356 = scalar_lea.vmem %s1, 752
  %357 = vst.msk [vmem:[%s356] ss:$-126 sm:$0x30] %vm351, %v350
  %s358 = scalar_lea.vmem %s1, 1040
  %359 = vst.msk [vmem:[%s358] ss:$-126 sm:$0xc0] %vm351, %v350
  %v360 = vld.sshfl [vmem:[%s0] sm:$0xff pattern:$0x7e5c3a1]
  %361 = vrot.lane.b32.xlu0 %v360, 113
  %v362 = vpop.permute.xlu0 %361
  %vm363 = vcmask 7168
  %s364 = scalar_lea.vmem %s1, 33
  %365 = vst.msk [vmem:[%s364] ss:$162 sm:$0x3] %vm363, %v362
  %s366 = scalar_lea.vmem %s1, 4294967041
  %367 = vst.msk [vmem:[%s366] ss:$162 sm:$0xc] %vm363, %v362
  %s368 = scalar_lea.vmem %s1, 4294966753
  %369 = vst.msk [vmem:[%s368] ss:$162 sm:$0x30] %vm363, %v362
  %s370 = scalar_lea.vmem %s1, 897
  %371 = vst.msk [vmem:[%s370] ss:$-126 sm:$0xc0] %vm363, %v362
  %s372 = scalar_lea.vmem %s0, 2
  %v373 = vld.sshfl [vmem:[%s372] sm:$0xff pattern:$0x6d4b2907]
  %374 = vrot.lane.b32.xlu0 %v373, 113
  %v375 = vpop.permute.xlu0 %374
  %vm376 = vcmask 7168
  %s377 = scalar_lea.vmem %s1, 177
  %378 = vst.msk [vmem:[%s377] ss:$-126 sm:$0x3] %vm376, %v375
  %s379 = scalar_lea.vmem %s1, 465
  %380 = vst.msk [vmem:[%s379] ss:$-126 sm:$0xc] %vm376, %v375
  %s381 = scalar_lea.vmem %s1, 753
  %382 = vst.msk [vmem:[%s381] ss:$-126 sm:$0x30] %vm376, %v375
  %s383 = scalar_lea.vmem %s1, 1041
  %384 = vst.msk [vmem:[%s383] ss:$-126 sm:$0xc0] %vm376, %v375
  %s385 = scalar_lea.vmem %s0, 1
  %v386 = vld.sshfl [vmem:[%s385] sm:$0xff pattern:$0x6d4b2907]
  %387 = vrot.lane.b32.xlu0 %v386, 112
  %v388 = vpop.permute.xlu0 %387
  %vm389 = vcmask 7168
  %s390 = scalar_lea.vmem %s1, 160
  %391 = vst.msk [vmem:[%s390] ss:$-126 sm:$0x3] %vm389, %v388
  %s392 = scalar_lea.vmem %s1, 448
  %393 = vst.msk [vmem:[%s392] ss:$-126 sm:$0xc] %vm389, %v388
  %s394 = scalar_lea.vmem %s1, 736
  %395 = vst.msk [vmem:[%s394] ss:$-126 sm:$0x30] %vm389, %v388
  %s396 = scalar_lea.vmem %s1, 1024
  %397 = vst.msk [vmem:[%s396] ss:$-126 sm:$0xc0] %vm389, %v388
  %v398 = vld.sshfl [vmem:[%s0] sm:$0xff pattern:$0xf6d4b290]
  %399 = vrot.lane.b32.xlu0 %v398, 112
  %v400 = vpop.permute.xlu0 %399
  %vm401 = vcmask 7168
  %s402 = scalar_lea.vmem %s1, 16
  %403 = vst.msk [vmem:[%s402] ss:$162 sm:$0x3] %vm401, %v400
  %s404 = scalar_lea.vmem %s1, 4294967024
  %405 = vst.msk [vmem:[%s404] ss:$162 sm:$0xc] %vm401, %v400
  %s406 = scalar_lea.vmem %s1, 4294966736
  %407 = vst.msk [vmem:[%s406] ss:$162 sm:$0x30] %vm401, %v400
  %s408 = scalar_lea.vmem %s1, 4294966448
  %409 = vst.msk [vmem:[%s408] ss:$162 sm:$0xc0] %vm401, %v400
  %s410 = scalar_lea.vmem %s0, 1
  %v411 = vld.sshfl [vmem:[%s410] sm:$0xff pattern:$0x6d4b2907]
  %412 = vrot.lane.b32.xlu0 %v411, 111
  %v413 = vpop.permute.xlu0 %412
  %vm414 = vcmask 7168
  %s415 = scalar_lea.vmem %s1, 161
  %416 = vst.msk [vmem:[%s415] ss:$-126 sm:$0x3] %vm414, %v413
  %s417 = scalar_lea.vmem %s1, 449
  %418 = vst.msk [vmem:[%s417] ss:$-126 sm:$0xc] %vm414, %v413
  %s419 = scalar_lea.vmem %s1, 737
  %420 = vst.msk [vmem:[%s419] ss:$-126 sm:$0x30] %vm414, %v413
  %s421 = scalar_lea.vmem %s1, 1025
  %422 = vst.msk [vmem:[%s421] ss:$-126 sm:$0xc0] %vm414, %v413
  %v423 = vld.sshfl [vmem:[%s0] sm:$0xff pattern:$0xf6d4b290]
  %424 = vrot.lane.b32.xlu0 %v423, 111
  %v425 = vpop.permute.xlu0 %424
  %vm426 = vcmask 7168
  %s427 = scalar_lea.vmem %s1, 17
  %428 = vst.msk [vmem:[%s427] ss:$162 sm:$0x3] %vm426, %v425
  %s429 = scalar_lea.vmem %s1, 4294967025
  %430 = vst.msk [vmem:[%s429] ss:$162 sm:$0xc] %vm426, %v425
  %s431 = scalar_lea.vmem %s1, 4294966737
  %432 = vst.msk [vmem:[%s431] ss:$162 sm:$0x30] %vm426, %v425
  %s433 = scalar_lea.vmem %s1, 4294966449
  %434 = vst.msk [vmem:[%s433] ss:$162 sm:$0xc0] %vm426, %v425

// kernel: tile.18
$region0: #{tile.18}
  #allocation0 [shape = 's32[1]{0}', space=sflag, size = 0x4, scoped, tag = 'scoped memory for tile.18']
  %s0 = inlined_call_operand.vmem [shape: f32[18], index: 0, kind: input, shape index: {}]
  %s1 = inlined_call_operand.vmem [shape: f32[32,18], index: 1, kind: output, shape index: {}]
  // Predicated region
  $region2: #{tile.18} parent=0 // pred_check
    _
  $region3: #{tile.18} parent=0 // pred_check_branch
    %3 = sbr.rel (0) target = $region5
  $region4: #{tile.18} parent=0 // pred_region
    _
  $region5: #{tile.18} parent=0 // pred_fallthru
    _
  %v4 = vld [vmem:[%s0] ss:$0 sm:$0xff]
  %5 = vst [vmem:[%s1] sm:$0xff] %v4
  %s6 = scalar_lea.vmem %s1, 8
  %7 = vst [vmem:[%s6] sm:$0xff] %v4
  %s8 = scalar_lea.vmem %s1, 16
  %9 = vst [vmem:[%s8] sm:$0xff] %v4
  %s10 = scalar_lea.vmem %s1, 24
  %11 = vst [vmem:[%s10] sm:$0xff] %v4

// kernel: tile.19
$region0: #{tile.19}
  %s0 = inlined_call_operand.vmem [shape: f32[32,18], index: 0, kind: input, shape index: {}]
  %s1 = inlined_call_operand.vmem [shape: f32[576], index: 1, kind: output, shape index: {}]
  %v2 = vld [vmem:[%s0] sm:$0x1]
  %vm3 = vcmask 146432
  %4 = vst.msk [vmem:[%s1] sm:$0x1] %vm3, %v2
  %s5 = scalar_lea.vmem %s0, 7
  %v6 = vld [vmem:[%s5] sm:$0x1]
  %s7 = scalar_lea.vmem %s0, 7
  %v8 = vld [vmem:[%s7] sm:$0x1]
  %vm9 = vcmask 15360
  %v10 = vsel %vm9, %v8, %v6
  %11 = vrot.lane.b32.xlu0 %v10, 126
  %v12 = vpop.permute.xlu0 %11
  %vm13 = vcmask 130048
  %s14 = scalar_lea.vmem %s1, 1
  %15 = vst.msk [vmem:[%s14] sm:$0x1] %vm13, %v12
  %vm16 = vcmask 1048560
  %17 = vst.msk [vmem:[%s1] sm:$0x1] %vm16, %v12
  %s18 = scalar_lea.vmem %s0, 14
  %v19 = vld [vmem:[%s18] sm:$0x1]
  %s20 = scalar_lea.vmem %s0, 14
  %v21 = vld [vmem:[%s20] sm:$0x1]
  %vm22 = vcmask 31744
  %v23 = vsel %vm22, %v21, %v19
  %24 = vrot.lane.b32.xlu0 %v23, 124
  %v25 = vpop.permute.xlu0 %24
  %vm26 = vcmask 113664
  %s27 = scalar_lea.vmem %s1, 2
  %28 = vst.msk [vmem:[%s27] sm:$0x1] %vm26, %v25
  %vm29 = vcmask 1048544
  %s30 = scalar_lea.vmem %s1, 1
  %31 = vst.msk [vmem:[%s30] sm:$0x1] %vm29, %v25
  %s32 = scalar_lea.vmem %s0, 21
  %v33 = vld [vmem:[%s32] sm:$0x1]
  %s34 = scalar_lea.vmem %s0, 21
  %v35 = vld [vmem:[%s34] sm:$0x1]
  %vm36 = vcmask 48128
  %v37 = vsel %vm36, %v35, %v33
  %38 = vrot.lane.b32.xlu0 %v37, 122
  %v39 = vpop.permute.xlu0 %38
  %vm40 = vcmask 97280
  %s41 = scalar_lea.vmem %s1, 3
  %42 = vst.msk [vmem:[%s41] sm:$0x1] %vm40, %v39
  %vm43 = vcmask 1048528
  %s44 = scalar_lea.vmem %s1, 2
  %45 = vst.msk [vmem:[%s44] sm:$0x1] %vm43, %v39
  %s46 = scalar_lea.vmem %s0, 28
  %v47 = vld [vmem:[%s46] sm:$0x1]
  %s48 = scalar_lea.vmem %s0, 28
  %v49 = vld [vmem:[%s48] sm:$0x1]
  %vm50 = vcmask 64512
  %v51 = vsel %vm50, %v49, %v47
  %52 = vrot.lane.b32.xlu0 %v51, 120
  %v53 = vpop.permute.xlu0 %52
  %vm54 = vcmask 80896
  %s55 = scalar_lea.vmem %s1, 4
  %56 = vst.msk [vmem:[%s55] sm:$0x1] %vm54, %v53
  %vm57 = vcmask 1048512
  %s58 = scalar_lea.vmem %s1, 3
  %59 = vst.msk [vmem:[%s58] sm:$0x1] %vm57, %v53
  %s60 = scalar_lea.vmem %s0, 6
  %v61 = vld [vmem:[%s60] sm:$0x1]
  %62 = vrot.lane.b32.xlu0 %v61, 108
  %v63 = vpop.permute.xlu0 %62
  %vm64 = vcmask 1032032
  %65 = vst.msk [vmem:[%s1] sm:$0x1] %vm64, %v63
  %s66 = scalar_lea.vmem %s0, 13
  %v67 = vld [vmem:[%s66] sm:$0x1]
  %68 = vrot.lane.b32.xlu0 %v67, 106
  %v69 = vpop.permute.xlu0 %68
  %vm70 = vcmask 1015632
  %s71 = scalar_lea.vmem %s1, 1
  %72 = vst.msk [vmem:[%s71] sm:$0x1] %vm70, %v69
  %s73 = scalar_lea.vmem %s0, 20
  %v74 = vld [vmem:[%s73] sm:$0x1]
  %75 = vrot.lane.b32.xlu0 %v74, 104
  %v76 = vpop.permute.xlu0 %75
  %vm77 = vcmask 999232
  %s78 = scalar_lea.vmem %s1, 2
  %79 = vst.msk [vmem:[%s78] sm:$0x1] %vm77, %v76
  %s80 = scalar_lea.vmem %s0, 27
  %v81 = vld [vmem:[%s80] sm:$0x1]
  %82 = vrot.lane.b32.xlu0 %v81, 102
  %v83 = vpop.permute.xlu0 %82
  %vm84 = vcmask 982832
  %s85 = scalar_lea.vmem %s1, 3
  %86 = vst.msk [vmem:[%s85] sm:$0x1] %vm84, %v83
  %s87 = scalar_lea.vmem %s0, 5
  %v88 = vld [vmem:[%s87] sm:$0x1]
  %89 = vrot.lane.b32.xlu0 %v88, 90
  %v90 = vpop.permute.xlu0 %89
  %vm91 = vcmask 884432
  %92 = vst.msk [vmem:[%s1] sm:$0x1] %vm91, %v90
  %s93 = scalar_lea.vmem %s0, 12
  %v94 = vld [vmem:[%s93] sm:$0x1]
  %95 = vrot.lane.b32.xlu0 %v94, 88
  %v96 = vpop.permute.xlu0 %95
  %vm97 = vcmask 868032
  %s98 = scalar_lea.vmem %s1, 1
  %99 = vst.msk [vmem:[%s98] sm:$0x1] %vm97, %v96
  %s100 = scalar_lea.vmem %s0, 19
  %v101 = vld [vmem:[%s100] sm:$0x1]
  %102 = vrot.lane.b32.xlu0 %v101, 86
  %v103 = vpop.permute.xlu0 %102
  %vm104 = vcmask 851632
  %s105 = scalar_lea.vmem %s1, 2
  %106 = vst.msk [vmem:[%s105] sm:$0x1] %vm104, %v103
  %s107 = scalar_lea.vmem %s0, 26
  %v108 = vld [vmem:[%s107] sm:$0x1]
  %109 = vrot.lane.b32.xlu0 %v108, 84
  %v110 = vpop.permute.xlu0 %109
  %vm111 = vcmask 835232
  %s112 = scalar_lea.vmem %s1, 3
  %113 = vst.msk [vmem:[%s112] sm:$0x1] %vm111, %v110
  %s114 = scalar_lea.vmem %s0, 4
  %v115 = vld [vmem:[%s114] sm:$0x1]
  %116 = vrot.lane.b32.xlu0 %v115, 72
  %v117 = vpop.permute.xlu0 %116
  %vm118 = vcmask 736832
  %119 = vst.msk [vmem:[%s1] sm:$0x1] %vm118, %v117
  %s120 = scalar_lea.vmem %s0, 11
  %v121 = vld [vmem:[%s120] sm:$0x1]
  %122 = vrot.lane.b32.xlu0 %v121, 70
  %v123 = vpop.permute.xlu0 %122
  %vm124 = vcmask 720432
  %s125 = scalar_lea.vmem %s1, 1
  %126 = vst.msk [vmem:[%s125] sm:$0x1] %vm124, %v123
  %s127 = scalar_lea.vmem %s0, 18
  %v128 = vld [vmem:[%s127] sm:$0x1]
  %129 = vrot.lane.b32.xlu0 %v128, 68
  %v130 = vpop.permute.xlu0 %129
  %vm131 = vcmask 704032
  %s132 = scalar_lea.vmem %s1, 2
  %133 = vst.msk [vmem:[%s132] sm:$0x1] %vm131, %v130
  %s134 = scalar_lea.vmem %s0, 25
  %v135 = vld [vmem:[%s134] sm:$0x1]
  %136 = vrot.lane.b32.xlu0 %v135, 66
  %v137 = vpop.permute.xlu0 %136
  %vm138 = vcmask 687632
  %s139 = scalar_lea.vmem %s1, 3
  %140 = vst.msk [vmem:[%s139] sm:$0x1] %vm138, %v137
  %s141 = scalar_lea.vmem %s0, 3
  %v142 = vld [vmem:[%s141] sm:$0x1]
  %143 = vrot.lane.b32.xlu0 %v142, 54
  %v144 = vpop.permute.xlu0 %143
  %vm145 = vcmask 589232
  %146 = vst.msk [vmem:[%s1] sm:$0x1] %vm145, %v144
  %s147 = scalar_lea.vmem %s0, 10
  %v148 = vld [vmem:[%s147] sm:$0x1]
  %149 = vrot.lane.b32.xlu0 %v148, 52
  %v150 = vpop.permute.xlu0 %149
  %vm151 = vcmask 572832
  %s152 = scalar_lea.vmem %s1, 1
  %153 = vst.msk [vmem:[%s152] sm:$0x1] %vm151, %v150
  %s154 = scalar_lea.vmem %s0, 17
  %v155 = vld [vmem:[%s154] sm:$0x1]
  %156 = vrot.lane.b32.xlu0 %v155, 50
  %v157 = vpop.permute.xlu0 %156
  %vm158 = vcmask 556432
  %s159 = scalar_lea.vmem %s1, 2
  %160 = vst.msk [vmem:[%s159] sm:$0x1] %vm158, %v157
  %s161 = scalar_lea.vmem %s0, 24
  %v162 = vld [vmem:[%s161] sm:$0x1]
  %163 = vrot.lane.b32.xlu0 %v162, 48
  %v164 = vpop.permute.xlu0 %163
  %vm165 = vcmask 540032
  %s166 = scalar_lea.vmem %s1, 3
  %167 = vst.msk [vmem:[%s166] sm:$0x1] %vm165, %v164
  %s168 = scalar_lea.vmem %s0, 31
  %v169 = vld [vmem:[%s168] sm:$0x1]
  %170 = vrot.lane.b32.xlu0 %v169, 46
  %v171 = vpop.permute.xlu0 %170
  %vm172 = vcmask 523632
  %s173 = scalar_lea.vmem %s1, 4
  %174 = vst.msk [vmem:[%s173] sm:$0x1] %vm172, %v171
  %s175 = scalar_lea.vmem %s0, 2
  %v176 = vld [vmem:[%s175] sm:$0x1]
  %177 = vrot.lane.b32.xlu0 %v176, 36
  %v178 = vpop.permute.xlu0 %177
  %vm179 = vcmask 441632
  %180 = vst.msk [vmem:[%s1] sm:$0x1] %vm179, %v178
  %s181 = scalar_lea.vmem %s0, 9
  %v182 = vld [vmem:[%s181] sm:$0x1]
  %183 = vrot.lane.b32.xlu0 %v182, 34
  %v184 = vpop.permute.xlu0 %183
  %vm185 = vcmask 425232
  %s186 = scalar_lea.vmem %s1, 1
  %187 = vst.msk [vmem:[%s186] sm:$0x1] %vm185, %v184
  %s188 = scalar_lea.vmem %s0, 16
  %v189 = vld [vmem:[%s188] sm:$0x1]
  %190 = vrot.lane.b32.xlu0 %v189, 32
  %v191 = vpop.permute.xlu0 %190
  %vm192 = vcmask 408832
  %s193 = scalar_lea.vmem %s1, 2
  %194 = vst.msk [vmem:[%s193] sm:$0x1] %vm192, %v191
  %s195 = scalar_lea.vmem %s0, 23
  %v196 = vld [vmem:[%s195] sm:$0x1]
  %197 = vrot.lane.b32.xlu0 %v196, 30
  %v198 = vpop.permute.xlu0 %197
  %vm199 = vcmask 392432
  %s200 = scalar_lea.vmem %s1, 3
  %201 = vst.msk [vmem:[%s200] sm:$0x1] %vm199, %v198
  %s202 = scalar_lea.vmem %s0, 30
  %v203 = vld [vmem:[%s202] sm:$0x1]
  %204 = vrot.lane.b32.xlu0 %v203, 28
  %v205 = vpop.permute.xlu0 %204
  %vm206 = vcmask 376032
  %s207 = scalar_lea.vmem %s1, 4
  %208 = vst.msk [vmem:[%s207] sm:$0x1] %vm206, %v205
  %s209 = scalar_lea.vmem %s0, 1
  %v210 = vld [vmem:[%s209] sm:$0x1]
  %211 = vrot.lane.b32.xlu0 %v210, 18
  %v212 = vpop.permute.xlu0 %211
  %vm213 = vcmask 294032
  %214 = vst.msk [vmem:[%s1] sm:$0x1] %vm213, %v212
  %s215 = scalar_lea.vmem %s0, 8
  %v216 = vld [vmem:[%s215] sm:$0x1]
  %217 = vrot.lane.b32.xlu0 %v216, 16
  %v218 = vpop.permute.xlu0 %217
  %vm219 = vcmask 277632
  %s220 = scalar_lea.vmem %s1, 1
  %221 = vst.msk [vmem:[%s220] sm:$0x1] %vm219, %v218
  %s222 = scalar_lea.vmem %s0, 15
  %v223 = vld [vmem:[%s222] sm:$0x1]
  %224 = vrot.lane.b32.xlu0 %v223, 14
  %v225 = vpop.permute.xlu0 %224
  %vm226 = vcmask 261232
  %s227 = scalar_lea.vmem %s1, 2
  %228 = vst.msk [vmem:[%s227] sm:$0x1] %vm226, %v225
  %s229 = scalar_lea.vmem %s0, 22
  %v230 = vld [vmem:[%s229] sm:$0x1]
  %231 = vrot.lane.b32.xlu0 %v230, 12
  %v232 = vpop.permute.xlu0 %231
  %vm233 = vcmask 244832
  %s234 = scalar_lea.vmem %s1, 3
  %235 = vst.msk [vmem:[%s234] sm:$0x1] %vm233, %v232
  %s236 = scalar_lea.vmem %s0, 29
  %v237 = vld [vmem:[%s236] sm:$0x1]
  %238 = vrot.lane.b32.xlu0 %v237, 10
  %v239 = vpop.permute.xlu0 %238
  %vm240 = vcmask 228432
  %s241 = scalar_lea.vmem %s1, 4
  %242 = vst.msk [vmem:[%s241] sm:$0x1] %vm240, %v239

// kernel: bottleneck_forward.4
$region0: #{bottleneck_forward.4}
  #allocation0 [shape = 'u32[]', space=smem, size = 0x4, offset = 0x4, fixed_abs, tag = 'smem constant byte address 0x4 - core index']
  #allocation1 [shape = 'u32[144,128]{1,0:T(1,128)}', space=vmem, size = 0x12000, scoped, tag = 'internal scratch']
  %s0 = inlined_call_operand.vmem [shape: bf16[640,128], index: 0, kind: input, shape index: {}]
  %s1 = inlined_call_operand.vmem [shape: bf16[128,128], index: 1, kind: input, shape index: {}]
  %s2 = inlined_call_operand.vmem [shape: bf16[640,128], index: 2, kind: output, shape index: {0}]
  %s3 = inlined_call_operand.vmem [shape: f32[5,8,128], index: 3, kind: output, shape index: {1}]
  %s4 = inlined_call_operand.vmem [shape: f32[5,8,128], index: 4, kind: output, shape index: {2}]
  %5 = xla_tuple %s2, %s3, %s4
  %s6 = sld [smem:[#allocation0]]
  $region57: #{bottleneck_forward.4} parent=0
    _
  %s8 = ssub.s32 1, %s6
  %s9 = scalar_select 0, %s8, %s6
  loop: start=0, step=1, limit=7
  $region2: #{bottleneck_forward.4} parent=0 // loop_pre_header
    _
  $region3: #{bottleneck_forward.4} parent=0 // loop_header
    %s11 = sphi 0, %s15
    %p12 = scmp.ge.s32.totalorder %s11, 7
    %s21 = sphi 0, %s23
    %s24 = sphi 0, %s21
    %s25 = sphi 0, %s24
    %s41 = sphi 0, %s25
    %s45 = sphi 0, %s45
    %s47 = sphi 0, %s45
    %s48 = sphi 0, %s47
    %s62 = sphi 0, %s48
    %s68 = sphi 0, %s70
    %s71 = sphi 0, %s68
    %s72 = sphi 0, %s71
    %s88 = sphi 0, %s72
    %s94 = sphi 0, %s96
    %s97 = sphi 0, %s94
    %s98 = sphi 0, %s97
    %s114 = sphi 0, %s98
    %s120 = sphi 0, %s122
    %s123 = sphi 0, %s120
    %s124 = sphi 0, %s123
    %s140 = sphi 0, %s124
  $region4: #{bottleneck_forward.4} parent=0 // loop_header_branch
    %14 = sbr.rel (%p12) target = $region8
  $region5: #{bottleneck_forward.4} parent=0 // loop_body
    %s16 = ssub.s32 %s11, 1
    %s17 = ssub.s32 %s11, 2
    %s18 = sadd.s32 %s11, 1
    %s19 = ssub.s32 %s11, %s18
    %p20 = scmp.eq.s32.totalorder %s19, 0
    %s22 = sadd.s32 %s21, 1
    %s23 = scalar_select %p20, %s21, %s22
    %p26 = pneg %p20
    %p27 = scmp.eq.s32.totalorder %s11, 4
    %p28 = por %p26, %p27
    %p29 = scmp.ne.s32.totalorder %s21, %s24
    %p30 = scmp.eq.s32.totalorder %s11, 0
    %p31 = por %p29, %p30
    %p32 = scmp.ne.s32.totalorder %s21, %s24
    %p33 = scmp.eq.s32.totalorder %s16, 4
    %p34 = por %p32, %p33
    %p35 = scmp.ne.s32.totalorder %s24, %s25
    %p36 = scmp.eq.s32.totalorder %s16, 0
    %p37 = por %p35, %p36
    %p38 = scmp.ne.s32.totalorder %s24, %s25
    %p39 = scmp.eq.s32.totalorder %s17, 4
    %p40 = por %p38, %p39
    %p42 = scmp.ne.s32.totalorder %s25, %s41
    %p43 = scmp.eq.s32.totalorder %s17, 0
    %p44 = por %p42, %p43
    %s46 = sadd.s32 %s45, 1
    %p49 = scmp.eq.s32.totalorder %s11, 4
    %p50 = scmp.ne.s32.totalorder %s45, %s47
    %p51 = scmp.eq.s32.totalorder %s11, 0
    %p52 = por %p50, %p51
    %p53 = scmp.ne.s32.totalorder %s45, %s47
    %p54 = scmp.eq.s32.totalorder %s16, 4
    %p55 = por %p53, %p54
    %p56 = scmp.ne.s32.totalorder %s47, %s48
    %p57 = scmp.eq.s32.totalorder %s16, 0
    %p58 = por %p56, %p57
    %p59 = scmp.ne.s32.totalorder %s47, %s48
    %p60 = scmp.eq.s32.totalorder %s17, 4
    %p61 = por %p59, %p60
    %p63 = scmp.ne.s32.totalorder %s48, %s62
    %p64 = scmp.eq.s32.totalorder %s17, 0
    %p65 = por %p63, %p64
    %s66 = ssub.s32 %s11, %s18
    %p67 = scmp.eq.s32.totalorder %s66, 0
    %s69 = sadd.s32 %s68, 1
    %s70 = scalar_select %p67, %s68, %s69
    %p73 = pneg %p67
    %p74 = scmp.eq.s32.totalorder %s11, 4
    %p75 = por %p73, %p74
    %p76 = scmp.ne.s32.totalorder %s68, %s71
    %p77 = scmp.eq.s32.totalorder %s11, 0
    %p78 = por %p76, %p77
    %p79 = scmp.ne.s32.totalorder %s68, %s71
    %p80 = scmp.eq.s32.totalorder %s16, 4
    %p81 = por %p79, %p80
    %p82 = scmp.ne.s32.totalorder %s71, %s72
    %p83 = scmp.eq.s32.totalorder %s16, 0
    %p84 = por %p82, %p83
    %p85 = scmp.ne.s32.totalorder %s71, %s72
    %p86 = scmp.eq.s32.totalorder %s17, 4
    %p87 = por %p85, %p86
    %p89 = scmp.ne.s32.totalorder %s72, %s88
    %p90 = scmp.eq.s32.totalorder %s17, 0
    %p91 = por %p89, %p90
    %s92 = ssub.s32 %s11, %s18
    %p93 = scmp.eq.s32.totalorder %s92, 0
    %s95 = sadd.s32 %s94, 1
    %s96 = scalar_select %p93, %s94, %s95
    %p99 = pneg %p93
    %p100 = scmp.eq.s32.totalorder %s11, 4
    %p101 = por %p99, %p100
    %p102 = scmp.ne.s32.totalorder %s94, %s97
    %p103 = scmp.eq.s32.totalorder %s11, 0
    %p104 = por %p102, %p103
    %p105 = scmp.ne.s32.totalorder %s94, %s97
    %p106 = scmp.eq.s32.totalorder %s16, 4
    %p107 = por %p105, %p106
    %p108 = scmp.ne.s32.totalorder %s97, %s98
    %p109 = scmp.eq.s32.totalorder %s16, 0
    %p110 = por %p108, %p109
    %p111 = scmp.ne.s32.totalorder %s97, %s98
    %p112 = scmp.eq.s32.totalorder %s17, 4
    %p113 = por %p111, %p112
    %p115 = scmp.ne.s32.totalorder %s98, %s114
    %p116 = scmp.eq.s32.totalorder %s17, 0
    %p117 = por %p115, %p116
    %s118 = ssub.s32 %s11, %s18
    %p119 = scmp.eq.s32.totalorder %s118, 0
    %s121 = sadd.s32 %s120, 1
    %s122 = scalar_select %p119, %s120, %s121
    %p125 = pneg %p119
    %p126 = scmp.eq.s32.totalorder %s11, 4
    %p127 = por %p125, %p126
    %p128 = scmp.ne.s32.totalorder %s120, %s123
    %p129 = scmp.eq.s32.totalorder %s11, 0
    %p130 = por %p128, %p129
    %p131 = scmp.ne.s32.totalorder %s120, %s123
    %p132 = scmp.eq.s32.totalorder %s16, 4
    %p133 = por %p131, %p132
    %p134 = scmp.ne.s32.totalorder %s123, %s124
    %p135 = scmp.eq.s32.totalorder %s16, 0
    %p136 = por %p134, %p135
    %p137 = scmp.ne.s32.totalorder %s123, %s124
    %p138 = scmp.eq.s32.totalorder %s17, 4
    %p139 = por %p137, %p138
    %p141 = scmp.ne.s32.totalorder %s124, %s140
    %p142 = scmp.eq.s32.totalorder %s17, 0
    %p143 = por %p141, %p142
    %p144 = scmp.le.s32.totalorder 1, %s11
    %p145 = scmp.lt.s32.totalorder %s11, 6
    %p146 = pnand %p144, %p145
    %p147 = pneg %p146
    // Predicated region
    $region9: #{bottleneck_forward.4} parent=5 // pred_check
      _
    $region10: #{bottleneck_forward.4} parent=5 // pred_check_branch
      %149 = sbr.rel (%p146) target = $region12
    $region11: #{bottleneck_forward.4} parent=5 // pred_region
      %s150 = ssub.s32 %s11, 1
      // Predicated region
      $region13: #{bottleneck_forward.4} parent=11 // pred_check
        %p151 = pneg %p58
      $region14: #{bottleneck_forward.4} parent=11 // pred_check_branch
        %153 = sbr.rel (%p151) target = $region16
      $region15: #{bottleneck_forward.4} parent=11 // pred_region
        _
      $region16: #{bottleneck_forward.4} parent=11 // pred_fallthru
        _
    $region12: #{bottleneck_forward.4} parent=5 // pred_fallthru
      _
    %p154 = scmp.lt.s32.totalorder %s11, 5
    // Predicated region
    $region17: #{bottleneck_forward.4} parent=5 // pred_check
      %p155 = pneg %p154
    $region18: #{bottleneck_forward.4} parent=5 // pred_check_branch
      %157 = sbr.rel (%p155) target = $region20
    $region19: #{bottleneck_forward.4} parent=5 // pred_region
      // Predicated region
      $region21: #{bottleneck_forward.4} parent=19 // pred_check
        %p158 = pneg %p31
      $region22: #{bottleneck_forward.4} parent=19 // pred_check_branch
        %160 = sbr.rel (%p158) target = $region24
      $region23: #{bottleneck_forward.4} parent=19 // pred_region
        %s161 = smul.u32 16, %s11
        %p162 = scmp.lt.s32.totalorder %s161, 79
        %s163 = scalar_select %p162, %s161, 79
        %s164 = smul.addr %s163, 4
        %s165 = scalar_lea.vmem %s0, %s164
        %s166 = smul.u32 16, %s11
      $region24: #{bottleneck_forward.4} parent=19 // pred_fallthru
        _
    $region20: #{bottleneck_forward.4} parent=5 // pred_fallthru
      _
    %p167 = scmp.le.s32.totalorder 1, %s11
    %p168 = scmp.lt.s32.totalorder %s11, 6
    %p169 = pnand %p167, %p168
    %p170 = pneg %p169
    // Predicated region
    $region25: #{bottleneck_forward.4} parent=5 // pred_check
      _
    $region26: #{bottleneck_forward.4} parent=5 // pred_check_branch
      %172 = sbr.rel (%p169) target = $region28
    $region27: #{bottleneck_forward.4} parent=5 // pred_region
      %s173 = ssub.s32 %s11, 1
      %s174 = smul.u32 16, %s16
      %p175 = scmp.lt.s32.totalorder %s174, 79
      %s176 = scalar_select %p175, %s174, 79
      %s177 = smul.addr %s176, 4
      %s178 = scalar_lea.vmem %s0, %s177
      %p179 = pneg %p37
      %p180 = pneg %p34
      %p181 = pneg %p58
      %p182 = pneg %p55
      %p183 = pneg %p84
      %p184 = pneg %p81
      %s185 = smul.u32 16, %s16
      %p186 = scmp.lt.s32.totalorder %s185, 79
      %s187 = scalar_select %p186, %s185, 79
      %s188 = smul.addr %s187, 4
      %s189 = scalar_lea.vmem %s2, %s188
      %p190 = pneg %p110
      %p191 = pneg %p107
      %p192 = scmp.lt.s32.totalorder %s16, 4
      %s193 = scalar_select %p192, %s16, 4
      %s194 = smul.addr %s193, 8
      %s195 = scalar_lea.vmem %s3, %s194
      %p196 = pneg %p136
      %p197 = pneg %p133
      %p198 = scmp.lt.s32.totalorder %s16, 4
      %s199 = scalar_select %p198, %s16, 4
      %s200 = smul.addr %s199, 8
      %s201 = scalar_lea.vmem %s4, %s200
      %s202 = smul.u32 16, %s16
      %p203 = scmp.lt.s32.totalorder %s202, 79
      %s204 = scalar_select %p203, %s202, 79
      %s205 = smul.addr %s204, 4
      %s206 = scalar_lea.vmem %s0, %s205
      %s207 = smul.u32 16, %s16
      %s208 = smul.u32 16, %s16
      %p209 = scmp.lt.s32.totalorder %s208, 79
      %s210 = scalar_select %p209, %s208, 79
      %s211 = smul.addr %s210, 4
      %s212 = scalar_lea.vmem %s2, %s211
      %s213 = smul.u32 16, %s16
      %p214 = scmp.lt.s32.totalorder %s16, 4
      %s215 = scalar_select %p214, %s16, 4
      %s216 = smul.addr %s215, 8
      %s217 = scalar_lea.vmem %s3, %s216
      %p218 = scmp.lt.s32.totalorder %s16, 4
      %s219 = scalar_select %p218, %s16, 4
      %s220 = smul.addr %s219, 8
      %s221 = scalar_lea.vmem %s4, %s220
      %v223 = vld [vmem:[%s206] sm:$0xf]
      %v224 = vld [vmem:[%s206 + $0x4] sm:$0xf]
      %v225 = vld [vmem:[%s206 + $0x8] sm:$0xf]
      %v226 = vld [vmem:[%s206 + $0xc] sm:$0xf]
      %v227 = vld [vmem:[%s206 + $0x10] sm:$0xf]
      %v228 = vld [vmem:[%s206 + $0x14] sm:$0xf]
      %v229 = vld [vmem:[%s206 + $0x18] sm:$0xf]
      %v230 = vld [vmem:[%s206 + $0x1c] sm:$0xf]
      %v231 = vld [vmem:[%s206 + $0x20] sm:$0xf]
      %v232 = vld [vmem:[%s206 + $0x24] sm:$0xf]
      %v233 = vld [vmem:[%s206 + $0x28] sm:$0xf]
      %v234 = vld [vmem:[%s206 + $0x2c] sm:$0xf]
      %v235 = vld [vmem:[%s206 + $0x30] sm:$0xf]
      %v236 = vld [vmem:[%s206 + $0x34] sm:$0xf]
      %v237 = vld [vmem:[%s206 + $0x38] sm:$0xf]
      %v238 = vld [vmem:[%s206 + $0x3c] sm:$0xf]
      %v239 = vld [vmem:[%s1] sm:$0xf]
      %v240 = vld [vmem:[%s1 + $0x4] sm:$0xf]
      %v241 = vld [vmem:[%s1 + $0x8] sm:$0xf]
      %v242 = vld [vmem:[%s1 + $0xc] sm:$0xf]
      %v243 = vld [vmem:[%s1 + $0x10] sm:$0xf]
      %v244 = vld [vmem:[%s1 + $0x14] sm:$0xf]
      %v245 = vld [vmem:[%s1 + $0x18] sm:$0xf]
      %v246 = vld [vmem:[%s1 + $0x1c] sm:$0xf]
      %v247 = vld [vmem:[%s1 + $0x20] sm:$0xf]
      %v248 = vld [vmem:[%s1 + $0x24] sm:$0xf]
      %v249 = vld [vmem:[%s1 + $0x28] sm:$0xf]
      %v250 = vld [vmem:[%s1 + $0x2c] sm:$0xf]
      %v251 = vld [vmem:[%s1 + $0x30] sm:$0xf]
      %v252 = vld [vmem:[%s1 + $0x34] sm:$0xf]
      %v253 = vld [vmem:[%s1 + $0x38] sm:$0xf]
      %v254 = vld [vmem:[%s1 + $0x3c] sm:$0xf]
      %v271 = vunpack.c.l.b16 %v223
      %v272 = vunpack.c.l.b16 %v224
      %v273 = vunpack.c.l.b16 %v225
      %v274 = vunpack.c.l.b16 %v226
      %v275 = vunpack.c.l.b16 %v227
      %v276 = vunpack.c.l.b16 %v228
      %v277 = vunpack.c.l.b16 %v229
      %v278 = vunpack.c.l.b16 %v230
      %v279 = vunpack.c.l.b16 %v231
      %v280 = vunpack.c.l.b16 %v232
      %v281 = vunpack.c.l.b16 %v233
      %v282 = vunpack.c.l.b16 %v234
      %v283 = vunpack.c.l.b16 %v235
      %v284 = vunpack.c.l.b16 %v236
      %v285 = vunpack.c.l.b16 %v237
      %v286 = vunpack.c.l.b16 %v238
      %v287 = vpack.c.b16 %v272, %v271
      %v288 = vpack.c.b16 %v274, %v273
      %v289 = vpack.c.b16 %v276, %v275
      %v290 = vpack.c.b16 %v278, %v277
      %v291 = vpack.c.b16 %v280, %v279
      %v292 = vpack.c.b16 %v282, %v281
      %v293 = vpack.c.b16 %v284, %v283
      %v294 = vpack.c.b16 %v286, %v285
      %v319 = vunpack.c.l.b16 %v239
      %v320 = vunpack.c.l.b16 %v240
      %v321 = vunpack.c.l.b16 %v241
      %v322 = vunpack.c.l.b16 %v242
      %v323 = vunpack.c.l.b16 %v243
      %v324 = vunpack.c.l.b16 %v244
      %v325 = vunpack.c.l.b16 %v245
      %v326 = vunpack.c.l.b16 %v246
      %v327 = vunpack.c.l.b16 %v247
      %v328 = vunpack.c.l.b16 %v248
      %v329 = vunpack.c.l.b16 %v249
      %v330 = vunpack.c.l.b16 %v250
      %v331 = vunpack.c.l.b16 %v251
      %v332 = vunpack.c.l.b16 %v252
      %v333 = vunpack.c.l.b16 %v253
      %v334 = vunpack.c.l.b16 %v254
      %v335 = vpack.c.b16 %v320, %v319
      %v336 = vpack.c.b16 %v322, %v321
      %v337 = vpack.c.b16 %v324, %v323
      %v338 = vpack.c.b16 %v326, %v325
      %v339 = vpack.c.b16 %v328, %v327
      %v340 = vpack.c.b16 %v330, %v329
      %v341 = vpack.c.b16 %v332, %v331
      %v342 = vpack.c.b16 %v334, %v333
      %351 = vmatprep.subr.bf16.mxu0 0
      %352 = vmatpush1.bf16.msra.mxu0 %v335
      %353 = vmatprep.subr.bf16.mxu0 0
      %354 = vmatpush1.bf16.msra.mxu0 %v336
      %355 = vmatprep.subr.bf16.mxu0 0
      %356 = vmatpush1.bf16.msra.mxu0 %v337
      %357 = vmatprep.subr.bf16.mxu0 0
      %358 = vmatpush1.bf16.msra.mxu0 %v338
      %359 = vmatprep.subr.bf16.mxu0 0
      %360 = vmatpush1.bf16.msra.mxu0 %v339
      %361 = vmatprep.subr.bf16.mxu0 0
      %362 = vmatpush1.bf16.msra.mxu0 %v340
      %363 = vmatprep.subr.bf16.mxu0 0
      %364 = vmatpush1.bf16.msra.mxu0 %v341
      %365 = vmatprep.subr.bf16.mxu0 0
      %366 = vmatpush1.bf16.msra.mxu0 %v342
      %367 = vmatprep.subr.bf16.mxu0 0
      %368 = vmatpush1.bf16.msra.mxu0 0
      %369 = vmatprep.subr.bf16.mxu0 0
      %370 = vmatpush1.bf16.msra.mxu0 0
      %371 = vmatprep.subr.bf16.mxu0 0
      %372 = vmatpush1.bf16.msra.mxu0 0
      %373 = vmatprep.subr.bf16.mxu0 0
      %374 = vmatpush1.bf16.msra.mxu0 0
      %375 = vmatprep.subr.bf16.mxu0 0
      %376 = vmatpush1.bf16.msra.mxu0 0
      %377 = vmatprep.subr.bf16.mxu0 0
      %378 = vmatpush1.bf16.msra.mxu0 0
      %379 = vmatprep.subr.bf16.mxu0 0
      %380 = vmatpush1.bf16.msra.mxu0 0
      %381 = vmatprep.subr.bf16.mxu0 0
      %382 = vmatpush1.bf16.msra.mxu0 0
      %383 = vmatprep.mubr.bf16.mxu0 0
      %384 = vmatmul.mubr.bf16.gmra.mrb[0].mxu0 %v287
      %v385 = vpop.f32.mrb[0].mxu0
      %v386 = vadd.f32 0.0, %v385
      %v387 = vpop.f32.mrb[0].mxu0
      %v388 = vpop.f32.mrb[0].mxu0
      %v389 = vadd.f32 0.0, %v388
      %v390 = vpop.f32.mrb[0].mxu0
      %391 = vmatprep.mubr.bf16.mxu0 0
      %392 = vmatmul.mubr.bf16.gmra.mrb[0].mxu0 %v288
      %v393 = vpop.f32.mrb[0].mxu0
      %v394 = vadd.f32 0.0, %v393
      %v395 = vpop.f32.mrb[0].mxu0
      %v396 = vpop.f32.mrb[0].mxu0
      %v397 = vadd.f32 0.0, %v396
      %v398 = vpop.f32.mrb[0].mxu0
      %399 = vmatprep.mubr.bf16.mxu0 0
      %400 = vmatmul.mubr.bf16.gmra.mrb[0].mxu0 %v289
      %v401 = vpop.f32.mrb[0].mxu0
      %v402 = vadd.f32 0.0, %v401
      %v403 = vpop.f32.mrb[0].mxu0
      %v404 = vpop.f32.mrb[0].mxu0
      %v405 = vadd.f32 0.0, %v404
      %v406 = vpop.f32.mrb[0].mxu0
      %407 = vmatprep.mubr.bf16.mxu0 0
      %408 = vmatmul.mubr.bf16.gmra.mrb[0].mxu0 %v290
      %v409 = vpop.f32.mrb[0].mxu0
      %v410 = vadd.f32 0.0, %v409
      %v411 = vpop.f32.mrb[0].mxu0
      %v412 = vpop.f32.mrb[0].mxu0
      %v413 = vadd.f32 0.0, %v412
      %v414 = vpop.f32.mrb[0].mxu0
      %415 = vmatprep.mubr.bf16.mxu0 0
      %416 = vmatmul.mubr.bf16.gmra.mrb[0].mxu0 %v291
      %v417 = vpop.f32.mrb[0].mxu0
      %v418 = vadd.f32 0.0, %v417
      %v419 = vpop.f32.mrb[0].mxu0
      %v420 = vpop.f32.mrb[0].mxu0
      %v421 = vadd.f32 0.0, %v420
      %v422 = vpop.f32.mrb[0].mxu0
      %423 = vmatprep.mubr.bf16.mxu0 0
      %424 = vmatmul.mubr.bf16.gmra.mrb[0].mxu0 %v292
      %v425 = vpop.f32.mrb[0].mxu0
      %v426 = vadd.f32 0.0, %v425
      %v427 = vpop.f32.mrb[0].mxu0
      %v428 = vpop.f32.mrb[0].mxu0
      %v429 = vadd.f32 0.0, %v428
      %v430 = vpop.f32.mrb[0].mxu0
      %431 = vmatprep.mubr.bf16.mxu0 0
      %432 = vmatmul.mubr.bf16.gmra.mrb[0].mxu0 %v293
      %v433 = vpop.f32.mrb[0].mxu0
      %v434 = vadd.f32 0.0, %v433
      %v435 = vpop.f32.mrb[0].mxu0
      %v436 = vpop.f32.mrb[0].mxu0
      %v437 = vadd.f32 0.0, %v436
      %v438 = vpop.f32.mrb[0].mxu0
      %439 = vmatprep.mubr.bf16.mxu0 0
      %440 = vmatmul.mubr.bf16.gmra.mrb[0].mxu0 %v294
      %v441 = vpop.f32.mrb[0].mxu0
      %v442 = vadd.f32 0.0, %v441
      %v443 = vpop.f32.mrb[0].mxu0
      %v444 = vpop.f32.mrb[0].mxu0
      %v445 = vadd.f32 0.0, %v444
      %v446 = vpop.f32.mrb[0].mxu0
      %447 = vdwg.mxu0
      %v448 = vpack.c.bf16 %v389, %v386
      %v449 = vpack.c.bf16 %v397, %v394
      %v450 = vpack.c.bf16 %v405, %v402
      %v451 = vpack.c.bf16 %v413, %v410
      %v452 = vpack.c.bf16 %v421, %v418
      %v453 = vpack.c.bf16 %v429, %v426
      %v454 = vpack.c.bf16 %v437, %v434
      %v455 = vpack.c.bf16 %v445, %v442
      %v464 = vunpack.c.l.b16 %v448
      %v465 = vunpack.c.h.b16 %v448
      %v466 = vunpack.c.l.b16 %v449
      %v467 = vunpack.c.h.b16 %v449
      %v468 = vunpack.c.l.b16 %v450
      %v469 = vunpack.c.h.b16 %v450
      %v470 = vunpack.c.l.b16 %v451
      %v471 = vunpack.c.h.b16 %v451
      %v472 = vunpack.c.l.b16 %v452
      %v473 = vunpack.c.h.b16 %v452
      %v474 = vunpack.c.l.b16 %v453
      %v475 = vunpack.c.h.b16 %v453
      %v476 = vunpack.c.l.b16 %v454
      %v477 = vunpack.c.h.b16 %v454
      %v478 = vunpack.c.l.b16 %v455
      %v479 = vunpack.c.h.b16 %v455
      %v480 = vpack.c.b16 %v464, %v464
      %v481 = vpack.c.b16 %v465, %v465
      %v482 = vpack.c.b16 %v466, %v466
      %v483 = vpack.c.b16 %v467, %v467
      %v484 = vpack.c.b16 %v468, %v468
      %v485 = vpack.c.b16 %v469, %v469
      %v486 = vpack.c.b16 %v470, %v470
      %v487 = vpack.c.b16 %v471, %v471
      %v488 = vpack.c.b16 %v472, %v472
      %v489 = vpack.c.b16 %v473, %v473
      %v490 = vpack.c.b16 %v474, %v474
      %v491 = vpack.c.b16 %v475, %v475
      %v492 = vpack.c.b16 %v476, %v476
      %v493 = vpack.c.b16 %v477, %v477
      %v494 = vpack.c.b16 %v478, %v478
      %v495 = vpack.c.b16 %v479, %v479
      %512 = vst [vmem:[%s212] sm:$0xf] %v480
      %513 = vst [vmem:[%s212 + $0x4] sm:$0xf] %v481
      %514 = vst [vmem:[%s212 + $0x8] sm:$0xf] %v482
      %515 = vst [vmem:[%s212 + $0xc] sm:$0xf] %v483
      %516 = vst [vmem:[%s212 + $0x10] sm:$0xf] %v484
      %517 = vst [vmem:[%s212 + $0x14] sm:$0xf] %v485
      %518 = vst [vmem:[%s212 + $0x18] sm:$0xf] %v486
      %519 = vst [vmem:[%s212 + $0x1c] sm:$0xf] %v487
      %520 = vst [vmem:[%s212 + $0x20] sm:$0xf] %v488
      %521 = vst [vmem:[%s212 + $0x24] sm:$0xf] %v489
      %522 = vst [vmem:[%s212 + $0x28] sm:$0xf] %v490
      %523 = vst [vmem:[%s212 + $0x2c] sm:$0xf] %v491
      %524 = vst [vmem:[%s212 + $0x30] sm:$0xf] %v492
      %525 = vst [vmem:[%s212 + $0x34] sm:$0xf] %v493
      %526 = vst [vmem:[%s212 + $0x38] sm:$0xf] %v494
      %527 = vst [vmem:[%s212 + $0x3c] sm:$0xf] %v495
      %v528 = vlaneseq
      %v529 = vshrl.u32 %v528, 7
      %vm530 = vcmp.eq.s32.totalorder %v529, 0
      %v531 = vadd.f32 %v386, %v389
      %v532 = vadd.f32 %v531, %v394
      %v533 = vadd.f32 %v532, %v397
      %v534 = vadd.f32 %v533, %v402
      %v535 = vadd.f32 %v534, %v405
      %v536 = vadd.f32 %v535, %v410
      %v537 = vadd.f32 %v536, %v413
      %v538 = vadd.f32 %v537, %v418
      %v539 = vadd.f32 %v538, %v421
      %v540 = vadd.f32 %v539, %v426
      %v541 = vadd.f32 %v540, %v429
      %v542 = vadd.f32 %v541, %v434
      %v543 = vadd.f32 %v542, %v437
      %v544 = vadd.f32 %v543, %v442
      %v545 = vadd.f32 %v544, %v445
      %v546 = vrot.slane %v545, 4
      %v547 = vadd.f32 %v545, %v546
      %v548 = vrot.slane %v547, 2
      %v549 = vadd.f32 %v547, %v548
      %v550 = vrot.slane %v549, 1
      %v551 = vadd.f32 %v549, %v550
      %v552 = vsel %vm530, %v551, 0.0
      %553 = vst [vmem:[%s217] sm:$0xff] %v552
      %v554 = vmul.f32 %v386, %v386
      %v555 = vmul.f32 %v389, %v389
      %v556 = vmul.f32 %v394, %v394
      %v557 = vmul.f32 %v397, %v397
      %v558 = vmul.f32 %v402, %v402
      %v559 = vmul.f32 %v405, %v405
      %v560 = vmul.f32 %v410, %v410
      %v561 = vmul.f32 %v413, %v413
      %v562 = vmul.f32 %v418, %v418
      %v563 = vmul.f32 %v421, %v421
      %v564 = vmul.f32 %v426, %v426
      %v565 = vmul.f32 %v429, %v429
      %v566 = vmul.f32 %v434, %v434
      %v567 = vmul.f32 %v437, %v437
      %v568 = vmul.f32 %v442, %v442
      %v569 = vmul.f32 %v445, %v445
      %v570 = vadd.f32 %v554, %v555
      %v571 = vadd.f32 %v570, %v556
      %v572 = vadd.f32 %v571, %v557
      %v573 = vadd.f32 %v572, %v558
      %v574 = vadd.f32 %v573, %v559
      %v575 = vadd.f32 %v574, %v560
      %v576 = vadd.f32 %v575, %v561
      %v577 = vadd.f32 %v576, %v562
      %v578 = vadd.f32 %v577, %v563
      %v579 = vadd.f32 %v578, %v564
      %v580 = vadd.f32 %v579, %v565
      %v581 = vadd.f32 %v580, %v566
      %v582 = vadd.f32 %v581, %v567
      %v583 = vadd.f32 %v582, %v568
      %v584 = vadd.f32 %v583, %v569
      %v585 = vrot.slane %v584, 4
      %v586 = vadd.f32 %v584, %v585
      %v587 = vrot.slane %v586, 2
      %v588 = vadd.f32 %v586, %v587
      %v589 = vrot.slane %v588, 1
      %v590 = vadd.f32 %v588, %v589
      %v591 = vsel %vm530, %v590, 0.0
      %592 = vst [vmem:[%s221] sm:$0xff] %v591
      %s593 = smul.u32 16, %s16
      %p594 = scmp.lt.s32.totalorder %s593, 79
      %s595 = scalar_select %p594, %s593, 79
      %s596 = smul.addr %s595, 4
      %s597 = scalar_lea.vmem %s2, %s596
      %p598 = scmp.lt.s32.totalorder %s16, 4
      %s599 = scalar_select %p598, %s16, 4
      %s600 = smul.addr %s599, 8
      %s601 = scalar_lea.vmem %s3, %s600
      %p602 = scmp.lt.s32.totalorder %s16, 4
      %s603 = scalar_select %p602, %s16, 4
      %s604 = smul.addr %s603, 8
      %s605 = scalar_lea.vmem %s4, %s604
      // Predicated region
      $region29: #{bottleneck_forward.4} parent=27 // pred_check
        %p606 = pneg %p81
      $region30: #{bottleneck_forward.4} parent=27 // pred_check_branch
        %608 = sbr.rel (%p606) target = $region32
      $region31: #{bottleneck_forward.4} parent=27 // pred_region
        %s609 = smul.u32 16, %s16
      $region32: #{bottleneck_forward.4} parent=27 // pred_fallthru
        _
      // Predicated region
      $region33: #{bottleneck_forward.4} parent=27 // pred_check
        %p610 = pneg %p107
      $region34: #{bottleneck_forward.4} parent=27 // pred_check_branch
        %612 = sbr.rel (%p610) target = $region36
      $region35: #{bottleneck_forward.4} parent=27 // pred_region
        _
      $region36: #{bottleneck_forward.4} parent=27 // pred_fallthru
        _
      // Predicated region
      $region37: #{bottleneck_forward.4} parent=27 // pred_check
        %p613 = pneg %p133
      $region38: #{bottleneck_forward.4} parent=27 // pred_check_branch
        %615 = sbr.rel (%p613) target = $region40
      $region39: #{bottleneck_forward.4} parent=27 // pred_region
        _
      $region40: #{bottleneck_forward.4} parent=27 // pred_fallthru
        _
    $region28: #{bottleneck_forward.4} parent=5 // pred_fallthru
      _
    %p616 = scmp.le.s32.totalorder 2, %s11
    // Predicated region
    $region41: #{bottleneck_forward.4} parent=5 // pred_check
      %p617 = pneg %p616
    $region42: #{bottleneck_forward.4} parent=5 // pred_check_branch
      %619 = sbr.rel (%p617) target = $region44
    $region43: #{bottleneck_forward.4} parent=5 // pred_region
      %s620 = ssub.s32 %s11, 2
      // Predicated region
      $region45: #{bottleneck_forward.4} parent=43 // pred_check
        %p621 = pneg %p87
      $region46: #{bottleneck_forward.4} parent=43 // pred_check_branch
        %623 = sbr.rel (%p621) target = $region48
      $region47: #{bottleneck_forward.4} parent=43 // pred_region
        %s624 = smul.u32 16, %s17
        %p625 = scmp.lt.s32.totalorder %s624, 79
        %s626 = scalar_select %p625, %s624, 79
        %s627 = smul.addr %s626, 4
        %s628 = scalar_lea.vmem %s2, %s627
      $region48: #{bottleneck_forward.4} parent=43 // pred_fallthru
        _
      // Predicated region
      $region49: #{bottleneck_forward.4} parent=43 // pred_check
        %p629 = pneg %p113
      $region50: #{bottleneck_forward.4} parent=43 // pred_check_branch
        %631 = sbr.rel (%p629) target = $region52
      $region51: #{bottleneck_forward.4} parent=43 // pred_region
        %p632 = scmp.lt.s32.totalorder %s17, 4
        %s633 = scalar_select %p632, %s17, 4
        %s634 = smul.addr %s633, 8
        %s635 = scalar_lea.vmem %s3, %s634
      $region52: #{bottleneck_forward.4} parent=43 // pred_fallthru
        _
      // Predicated region
      $region53: #{bottleneck_forward.4} parent=43 // pred_check
        %p636 = pneg %p139
      $region54: #{bottleneck_forward.4} parent=43 // pred_check_branch
        %638 = sbr.rel (%p636) target = $region56
      $region55: #{bottleneck_forward.4} parent=43 // pred_region
        %p639 = scmp.lt.s32.totalorder %s17, 4
        %s640 = scalar_select %p639, %s17, 4
        %s641 = smul.addr %s640, 8
        %s642 = scalar_lea.vmem %s4, %s641
      $region56: #{bottleneck_forward.4} parent=43 // pred_fallthru
        _
    $region44: #{bottleneck_forward.4} parent=5 // pred_fallthru
      _
  $region6: #{bottleneck_forward.4} parent=0 // loop_footer
    %s15 = sadd.s32 1, %s11
  $region7: #{bottleneck_forward.4} parent=0 // loop_footer_branch
    %10 = sbr.rel target = $region3
  $region8: #{bottleneck_forward.4} parent=0 // loop_exit
    _

// kernel: bottleneck_forward.6
$region0: #{bottleneck_forward.6}
  #allocation0 [shape = 'u32[]', space=smem, size = 0x4, offset = 0x4, fixed_abs, tag = 'smem constant byte address 0x4 - core index']
  #allocation1 [shape = 'u32[144,128]{1,0:T(1,128)}', space=vmem, size = 0x12000, scoped, tag = 'internal scratch']
  %s0 = inlined_call_operand.vmem [shape: bf16[640,128], index: 0, kind: input, shape index: {}]
  %s1 = inlined_call_operand.vmem [shape: f32[1,128], index: 1, kind: input, shape index: {}]
  %s2 = inlined_call_operand.vmem [shape: f32[1,128], index: 2, kind: input, shape index: {}]
  %s3 = inlined_call_operand.vmem [shape: bf16[128,128], index: 3, kind: input, shape index: {}]
  %s4 = inlined_call_operand.vmem [shape: f32[640,1], index: 4, kind: input, shape index: {}]
  %s5 = inlined_call_operand.vmem [shape: bf16[640,128], index: 5, kind: output, shape index: {0}]
  %s6 = inlined_call_operand.vmem [shape: f32[5,8,128], index: 6, kind: output, shape index: {1}]
  %s7 = inlined_call_operand.vmem [shape: f32[5,8,128], index: 7, kind: output, shape index: {2}]
  %8 = xla_tuple %s5, %s6, %s7
  %s9 = sld [smem:[#allocation0]]
  $region69: #{bottleneck_forward.6} parent=0
    _
  %s11 = ssub.s32 1, %s9
  %s12 = scalar_select 0, %s11, %s9
  loop: start=0, step=1, limit=7
  $region2: #{bottleneck_forward.6} parent=0 // loop_pre_header
    _
  $region3: #{bottleneck_forward.6} parent=0 // loop_header
    %s14 = sphi 0, %s18
    %p15 = scmp.ge.s32.totalorder %s14, 7
    %s24 = sphi 0, %s26
    %s27 = sphi 0, %s24
    %s28 = sphi 0, %s27
    %s44 = sphi 0, %s28
    %s48 = sphi 0, %s48
    %s50 = sphi 0, %s48
    %s51 = sphi 0, %s50
    %s65 = sphi 0, %s51
    %s69 = sphi 0, %s69
    %s71 = sphi 0, %s69
    %s72 = sphi 0, %s71
    %s86 = sphi 0, %s72
    %s90 = sphi 0, %s90
    %s92 = sphi 0, %s90
    %s93 = sphi 0, %s92
    %s107 = sphi 0, %s93
    %s113 = sphi 0, %s115
    %s116 = sphi 0, %s113
    %s117 = sphi 0, %s116
    %s133 = sphi 0, %s117
    %s139 = sphi 0, %s141
    %s142 = sphi 0, %s139
    %s143 = sphi 0, %s142
    %s159 = sphi 0, %s143
    %s165 = sphi 0, %s167
    %s168 = sphi 0, %s165
    %s169 = sphi 0, %s168
    %s185 = sphi 0, %s169
    %s191 = sphi 0, %s193
    %s194 = sphi 0, %s191
    %s195 = sphi 0, %s194
    %s211 = sphi 0, %s195
  $region4: #{bottleneck_forward.6} parent=0 // loop_header_branch
    %17 = sbr.rel (%p15) target = $region8
  $region5: #{bottleneck_forward.6} parent=0 // loop_body
    %s19 = ssub.s32 %s14, 1
    %s20 = ssub.s32 %s14, 2
    %s21 = sadd.s32 %s14, 1
    %s22 = ssub.s32 %s14, %s21
    %p23 = scmp.eq.s32.totalorder %s22, 0
    %s25 = sadd.s32 %s24, 1
    %s26 = scalar_select %p23, %s24, %s25
    %p29 = pneg %p23
    %p30 = scmp.eq.s32.totalorder %s14, 4
    %p31 = por %p29, %p30
    %p32 = scmp.ne.s32.totalorder %s24, %s27
    %p33 = scmp.eq.s32.totalorder %s14, 0
    %p34 = por %p32, %p33
    %p35 = scmp.ne.s32.totalorder %s24, %s27
    %p36 = scmp.eq.s32.totalorder %s19, 4
    %p37 = por %p35, %p36
    %p38 = scmp.ne.s32.totalorder %s27, %s28
    %p39 = scmp.eq.s32.totalorder %s19, 0
    %p40 = por %p38, %p39
    %p41 = scmp.ne.s32.totalorder %s27, %s28
    %p42 = scmp.eq.s32.totalorder %s20, 4
    %p43 = por %p41, %p42
    %p45 = scmp.ne.s32.totalorder %s28, %s44
    %p46 = scmp.eq.s32.totalorder %s20, 0
    %p47 = por %p45, %p46
    %s49 = sadd.s32 %s48, 1
    %p52 = scmp.eq.s32.totalorder %s14, 4
    %p53 = scmp.ne.s32.totalorder %s48, %s50
    %p54 = scmp.eq.s32.totalorder %s14, 0
    %p55 = por %p53, %p54
    %p56 = scmp.ne.s32.totalorder %s48, %s50
    %p57 = scmp.eq.s32.totalorder %s19, 4
    %p58 = por %p56, %p57
    %p59 = scmp.ne.s32.totalorder %s50, %s51
    %p60 = scmp.eq.s32.totalorder %s19, 0
    %p61 = por %p59, %p60
    %p62 = scmp.ne.s32.totalorder %s50, %s51
    %p63 = scmp.eq.s32.totalorder %s20, 4
    %p64 = por %p62, %p63
    %p66 = scmp.ne.s32.totalorder %s51, %s65
    %p67 = scmp.eq.s32.totalorder %s20, 0
    %p68 = por %p66, %p67
    %s70 = sadd.s32 %s69, 1
    %p73 = scmp.eq.s32.totalorder %s14, 4
    %p74 = scmp.ne.s32.totalorder %s69, %s71
    %p75 = scmp.eq.s32.totalorder %s14, 0
    %p76 = por %p74, %p75
    %p77 = scmp.ne.s32.totalorder %s69, %s71
    %p78 = scmp.eq.s32.totalorder %s19, 4
    %p79 = por %p77, %p78
    %p80 = scmp.ne.s32.totalorder %s71, %s72
    %p81 = scmp.eq.s32.totalorder %s19, 0
    %p82 = por %p80, %p81
    %p83 = scmp.ne.s32.totalorder %s71, %s72
    %p84 = scmp.eq.s32.totalorder %s20, 4
    %p85 = por %p83, %p84
    %p87 = scmp.ne.s32.totalorder %s72, %s86
    %p88 = scmp.eq.s32.totalorder %s20, 0
    %p89 = por %p87, %p88
    %s91 = sadd.s32 %s90, 1
    %p94 = scmp.eq.s32.totalorder %s14, 4
    %p95 = scmp.ne.s32.totalorder %s90, %s92
    %p96 = scmp.eq.s32.totalorder %s14, 0
    %p97 = por %p95, %p96
    %p98 = scmp.ne.s32.totalorder %s90, %s92
    %p99 = scmp.eq.s32.totalorder %s19, 4
    %p100 = por %p98, %p99
    %p101 = scmp.ne.s32.totalorder %s92, %s93
    %p102 = scmp.eq.s32.totalorder %s19, 0
    %p103 = por %p101, %p102
    %p104 = scmp.ne.s32.totalorder %s92, %s93
    %p105 = scmp.eq.s32.totalorder %s20, 4
    %p106 = por %p104, %p105
    %p108 = scmp.ne.s32.totalorder %s93, %s107
    %p109 = scmp.eq.s32.totalorder %s20, 0
    %p110 = por %p108, %p109
    %s111 = ssub.s32 %s14, %s21
    %p112 = scmp.eq.s32.totalorder %s111, 0
    %s114 = sadd.s32 %s113, 1
    %s115 = scalar_select %p112, %s113, %s114
    %p118 = pneg %p112
    %p119 = scmp.eq.s32.totalorder %s14, 4
    %p120 = por %p118, %p119
    %p121 = scmp.ne.s32.totalorder %s113, %s116
    %p122 = scmp.eq.s32.totalorder %s14, 0
    %p123 = por %p121, %p122
    %p124 = scmp.ne.s32.totalorder %s113, %s116
    %p125 = scmp.eq.s32.totalorder %s19, 4
    %p126 = por %p124, %p125
    %p127 = scmp.ne.s32.totalorder %s116, %s117
    %p128 = scmp.eq.s32.totalorder %s19, 0
    %p129 = por %p127, %p128
    %p130 = scmp.ne.s32.totalorder %s116, %s117
    %p131 = scmp.eq.s32.totalorder %s20, 4
    %p132 = por %p130, %p131
    %p134 = scmp.ne.s32.totalorder %s117, %s133
    %p135 = scmp.eq.s32.totalorder %s20, 0
    %p136 = por %p134, %p135
    %s137 = ssub.s32 %s14, %s21
    %p138 = scmp.eq.s32.totalorder %s137, 0
    %s140 = sadd.s32 %s139, 1
    %s141 = scalar_select %p138, %s139, %s140
    %p144 = pneg %p138
    %p145 = scmp.eq.s32.totalorder %s14, 4
    %p146 = por %p144, %p145
    %p147 = scmp.ne.s32.totalorder %s139, %s142
    %p148 = scmp.eq.s32.totalorder %s14, 0
    %p149 = por %p147, %p148
    %p150 = scmp.ne.s32.totalorder %s139, %s142
    %p151 = scmp.eq.s32.totalorder %s19, 4
    %p152 = por %p150, %p151
    %p153 = scmp.ne.s32.totalorder %s142, %s143
    %p154 = scmp.eq.s32.totalorder %s19, 0
    %p155 = por %p153, %p154
    %p156 = scmp.ne.s32.totalorder %s142, %s143
    %p157 = scmp.eq.s32.totalorder %s20, 4
    %p158 = por %p156, %p157
    %p160 = scmp.ne.s32.totalorder %s143, %s159
    %p161 = scmp.eq.s32.totalorder %s20, 0
    %p162 = por %p160, %p161
    %s163 = ssub.s32 %s14, %s21
    %p164 = scmp.eq.s32.totalorder %s163, 0
    %s166 = sadd.s32 %s165, 1
    %s167 = scalar_select %p164, %s165, %s166
    %p170 = pneg %p164
    %p171 = scmp.eq.s32.totalorder %s14, 4
    %p172 = por %p170, %p171
    %p173 = scmp.ne.s32.totalorder %s165, %s168
    %p174 = scmp.eq.s32.totalorder %s14, 0
    %p175 = por %p173, %p174
    %p176 = scmp.ne.s32.totalorder %s165, %s168
    %p177 = scmp.eq.s32.totalorder %s19, 4
    %p178 = por %p176, %p177
    %p179 = scmp.ne.s32.totalorder %s168, %s169
    %p180 = scmp.eq.s32.totalorder %s19, 0
    %p181 = por %p179, %p180
    %p182 = scmp.ne.s32.totalorder %s168, %s169
    %p183 = scmp.eq.s32.totalorder %s20, 4
    %p184 = por %p182, %p183
    %p186 = scmp.ne.s32.totalorder %s169, %s185
    %p187 = scmp.eq.s32.totalorder %s20, 0
    %p188 = por %p186, %p187
    %s189 = ssub.s32 %s14, %s21
    %p190 = scmp.eq.s32.totalorder %s189, 0
    %s192 = sadd.s32 %s191, 1
    %s193 = scalar_select %p190, %s191, %s192
    %p196 = pneg %p190
    %p197 = scmp.eq.s32.totalorder %s14, 4
    %p198 = por %p196, %p197
    %p199 = scmp.ne.s32.totalorder %s191, %s194
    %p200 = scmp.eq.s32.totalorder %s14, 0
    %p201 = por %p199, %p200
    %p202 = scmp.ne.s32.totalorder %s191, %s194
    %p203 = scmp.eq.s32.totalorder %s19, 4
    %p204 = por %p202, %p203
    %p205 = scmp.ne.s32.totalorder %s194, %s195
    %p206 = scmp.eq.s32.totalorder %s19, 0
    %p207 = por %p205, %p206
    %p208 = scmp.ne.s32.totalorder %s194, %s195
    %p209 = scmp.eq.s32.totalorder %s20, 4
    %p210 = por %p208, %p209
    %p212 = scmp.ne.s32.totalorder %s195, %s211
    %p213 = scmp.eq.s32.totalorder %s20, 0
    %p214 = por %p212, %p213
    %p215 = scmp.le.s32.totalorder 1, %s14
    %p216 = scmp.lt.s32.totalorder %s14, 6
    %p217 = pnand %p215, %p216
    %p218 = pneg %p217
    // Predicated region
    $region9: #{bottleneck_forward.6} parent=5 // pred_check
      _
    $region10: #{bottleneck_forward.6} parent=5 // pred_check_branch
      %220 = sbr.rel (%p217) target = $region12
    $region11: #{bottleneck_forward.6} parent=5 // pred_region
      %s221 = ssub.s32 %s14, 1
      // Predicated region
      $region13: #{bottleneck_forward.6} parent=11 // pred_check
        %p222 = pneg %p61
      $region14: #{bottleneck_forward.6} parent=11 // pred_check_branch
        %224 = sbr.rel (%p222) target = $region16
      $region15: #{bottleneck_forward.6} parent=11 // pred_region
        _
      $region16: #{bottleneck_forward.6} parent=11 // pred_fallthru
        _
      // Predicated region
      $region17: #{bottleneck_forward.6} parent=11 // pred_check
        %p225 = pneg %p82
      $region18: #{bottleneck_forward.6} parent=11 // pred_check_branch
        %227 = sbr.rel (%p225) target = $region20
      $region19: #{bottleneck_forward.6} parent=11 // pred_region
        _
      $region20: #{bottleneck_forward.6} parent=11 // pred_fallthru
        _
      // Predicated region
      $region21: #{bottleneck_forward.6} parent=11 // pred_check
        %p228 = pneg %p103
      $region22: #{bottleneck_forward.6} parent=11 // pred_check_branch
        %230 = sbr.rel (%p228) target = $region24
      $region23: #{bottleneck_forward.6} parent=11 // pred_region
        _
      $region24: #{bottleneck_forward.6} parent=11 // pred_fallthru
        _
    $region12: #{bottleneck_forward.6} parent=5 // pred_fallthru
      _
    %p231 = scmp.lt.s32.totalorder %s14, 5
    // Predicated region
    $region25: #{bottleneck_forward.6} parent=5 // pred_check
      %p232 = pneg %p231
    $region26: #{bottleneck_forward.6} parent=5 // pred_check_branch
      %234 = sbr.rel (%p232) target = $region28
    $region27: #{bottleneck_forward.6} parent=5 // pred_region
      // Predicated region
      $region29: #{bottleneck_forward.6} parent=27 // pred_check
        %p235 = pneg %p34
      $region30: #{bottleneck_forward.6} parent=27 // pred_check_branch
        %237 = sbr.rel (%p235) target = $region32
      $region31: #{bottleneck_forward.6} parent=27 // pred_region
        %s238 = smul.u32 16, %s14
        %p239 = scmp.lt.s32.totalorder %s238, 79
        %s240 = scalar_select %p239, %s238, 79
        %s241 = smul.addr %s240, 4
        %s242 = scalar_lea.vmem %s0, %s241
        %s243 = smul.u32 16, %s14
      $region32: #{bottleneck_forward.6} parent=27 // pred_fallthru
        _
      // Predicated region
      $region33: #{bottleneck_forward.6} parent=27 // pred_check
        %p244 = pneg %p123
      $region34: #{bottleneck_forward.6} parent=27 // pred_check_branch
        %246 = sbr.rel (%p244) target = $region36
      $region35: #{bottleneck_forward.6} parent=27 // pred_region
        %s247 = smul.u32 16, %s14
        %p248 = scmp.lt.s32.totalorder %s247, 79
        %s249 = scalar_select %p248, %s247, 79
        %s250 = smul.addr %s249, 8
        %s251 = scalar_lea.vmem %s4, %s250
        %s252 = smul.u32 16, %s14
      $region36: #{bottleneck_forward.6} parent=27 // pred_fallthru
        _
    $region28: #{bottleneck_forward.6} parent=5 // pred_fallthru
      _
    %p253 = scmp.le.s32.totalorder 1, %s14
    %p254 = scmp.lt.s32.totalorder %s14, 6
    %p255 = pnand %p253, %p254
    %p256 = pneg %p255
    // Predicated region
    $region37: #{bottleneck_forward.6} parent=5 // pred_check
      _
    $region38: #{bottleneck_forward.6} parent=5 // pred_check_branch
      %258 = sbr.rel (%p255) target = $region40
    $region39: #{bottleneck_forward.6} parent=5 // pred_region
      %s259 = ssub.s32 %s14, 1
      %s260 = smul.u32 16, %s19
      %p261 = scmp.lt.s32.totalorder %s260, 79
      %s262 = scalar_select %p261, %s260, 79
      %s263 = smul.addr %s262, 4
      %s264 = scalar_lea.vmem %s0, %s263
      %p265 = pneg %p40
      %p266 = pneg %p37
      %p267 = pneg %p61
      %p268 = pneg %p58
      %p269 = pneg %p82
      %p270 = pneg %p79
      %p271 = pneg %p103
      %p272 = pneg %p100
      %s273 = smul.u32 16, %s19
      %p274 = scmp.lt.s32.totalorder %s273, 79
      %s275 = scalar_select %p274, %s273, 79
      %s276 = smul.addr %s275, 8
      %s277 = scalar_lea.vmem %s4, %s276
      %p278 = pneg %p129
      %p279 = pneg %p126
      %p280 = pneg %p155
      %p281 = pneg %p152
      %s282 = smul.u32 16, %s19
      %p283 = scmp.lt.s32.totalorder %s282, 79
      %s284 = scalar_select %p283, %s282, 79
      %s285 = smul.addr %s284, 4
      %s286 = scalar_lea.vmem %s5, %s285
      %p287 = pneg %p181
      %p288 = pneg %p178
      %p289 = scmp.lt.s32.totalorder %s19, 4
      %s290 = scalar_select %p289, %s19, 4
      %s291 = smul.addr %s290, 8
      %s292 = scalar_lea.vmem %s6, %s291
      %p293 = pneg %p207
      %p294 = pneg %p204
      %p295 = scmp.lt.s32.totalorder %s19, 4
      %s296 = scalar_select %p295, %s19, 4
      %s297 = smul.addr %s296, 8
      %s298 = scalar_lea.vmem %s7, %s297
      %s299 = smul.u32 16, %s19
      %p300 = scmp.lt.s32.totalorder %s299, 79
      %s301 = scalar_select %p300, %s299, 79
      %s302 = smul.addr %s301, 4
      %s303 = scalar_lea.vmem %s0, %s302
      %s304 = smul.u32 16, %s19
      %s305 = smul.u32 16, %s19
      %p306 = scmp.lt.s32.totalorder %s305, 79
      %s307 = scalar_select %p306, %s305, 79
      %s308 = smul.addr %s307, 8
      %s309 = scalar_lea.vmem %s4, %s308
      %s310 = smul.u32 16, %s19
      %s311 = smul.u32 16, %s19
      %p312 = scmp.lt.s32.totalorder %s311, 79
      %s313 = scalar_select %p312, %s311, 79
      %s314 = smul.addr %s313, 4
      %s315 = scalar_lea.vmem %s5, %s314
      %s316 = smul.u32 16, %s19
      %p317 = scmp.lt.s32.totalorder %s19, 4
      %s318 = scalar_select %p317, %s19, 4
      %s319 = smul.addr %s318, 8
      %s320 = scalar_lea.vmem %s6, %s319
      %p321 = scmp.lt.s32.totalorder %s19, 4
      %s322 = scalar_select %p321, %s19, 4
      %s323 = smul.addr %s322, 8
      %s324 = scalar_lea.vmem %s7, %s323
      %v326 = vld [vmem:[%s303] sm:$0xf]
      %v327 = vld [vmem:[%s303 + $0x4] sm:$0xf]
      %v328 = vld [vmem:[%s303 + $0x8] sm:$0xf]
      %v329 = vld [vmem:[%s303 + $0xc] sm:$0xf]
      %v330 = vld [vmem:[%s303 + $0x10] sm:$0xf]
      %v331 = vld [vmem:[%s303 + $0x14] sm:$0xf]
      %v332 = vld [vmem:[%s303 + $0x18] sm:$0xf]
      %v333 = vld [vmem:[%s303 + $0x1c] sm:$0xf]
      %v334 = vld [vmem:[%s303 + $0x20] sm:$0xf]
      %v335 = vld [vmem:[%s303 + $0x24] sm:$0xf]
      %v336 = vld [vmem:[%s303 + $0x28] sm:$0xf]
      %v337 = vld [vmem:[%s303 + $0x2c] sm:$0xf]
      %v338 = vld [vmem:[%s303 + $0x30] sm:$0xf]
      %v339 = vld [vmem:[%s303 + $0x34] sm:$0xf]
      %v340 = vld [vmem:[%s303 + $0x38] sm:$0xf]
      %v341 = vld [vmem:[%s303 + $0x3c] sm:$0xf]
      %v342 = vunpack.c.l.bf16 %v326
      %v343 = vunpack.c.l.bf16 %v327
      %v344 = vunpack.c.l.bf16 %v328
      %v345 = vunpack.c.l.bf16 %v329
      %v346 = vunpack.c.l.bf16 %v330
      %v347 = vunpack.c.l.bf16 %v331
      %v348 = vunpack.c.l.bf16 %v332
      %v349 = vunpack.c.l.bf16 %v333
      %v350 = vunpack.c.l.bf16 %v334
      %v351 = vunpack.c.l.bf16 %v335
      %v352 = vunpack.c.l.bf16 %v336
      %v353 = vunpack.c.l.bf16 %v337
      %v354 = vunpack.c.l.bf16 %v338
      %v355 = vunpack.c.l.bf16 %v339
      %v356 = vunpack.c.l.bf16 %v340
      %v357 = vunpack.c.l.bf16 %v341
      %v358 = vld [vmem:[%s1] sm:$0x1]
      %v360 = vlaneseq
      %v361 = vshrl.u32 %v360, 7
      %v362 = vsub.s32 0, %v361
      %v363 = vrot.slane %v358, %v362
      %v365 = vmul.f32 %v342, %v363
      %v366 = vmul.f32 %v343, %v363
      %v367 = vmul.f32 %v344, %v363
      %v368 = vmul.f32 %v345, %v363
      %v369 = vmul.f32 %v346, %v363
      %v370 = vmul.f32 %v347, %v363
      %v371 = vmul.f32 %v348, %v363
      %v372 = vmul.f32 %v349, %v363
      %v373 = vmul.f32 %v350, %v363
      %v374 = vmul.f32 %v351, %v363
      %v375 = vmul.f32 %v352, %v363
      %v376 = vmul.f32 %v353, %v363
      %v377 = vmul.f32 %v354, %v363
      %v378 = vmul.f32 %v355, %v363
      %v379 = vmul.f32 %v356, %v363
      %v380 = vmul.f32 %v357, %v363
      %v381 = vld [vmem:[%s2] sm:$0x1]
      %v383 = vlaneseq
      %v384 = vshrl.u32 %v383, 7
      %v385 = vsub.s32 0, %v384
      %v386 = vrot.slane %v381, %v385
      %v388 = vadd.f32 %v365, %v386
      %v389 = vadd.f32 %v366, %v386
      %v390 = vadd.f32 %v367, %v386
      %v391 = vadd.f32 %v368, %v386
      %v392 = vadd.f32 %v369, %v386
      %v393 = vadd.f32 %v370, %v386
      %v394 = vadd.f32 %v371, %v386
      %v395 = vadd.f32 %v372, %v386
      %v396 = vadd.f32 %v373, %v386
      %v397 = vadd.f32 %v374, %v386
      %v398 = vadd.f32 %v375, %v386
      %v399 = vadd.f32 %v376, %v386
      %v400 = vadd.f32 %v377, %v386
      %v401 = vadd.f32 %v378, %v386
      %v402 = vadd.f32 %v379, %v386
      %v403 = vadd.f32 %v380, %v386
      %v404 = vmax.f32 %v388, 0.0
      %v405 = vmax.f32 %v389, 0.0
      %v406 = vmax.f32 %v390, 0.0
      %v407 = vmax.f32 %v391, 0.0
      %v408 = vmax.f32 %v392, 0.0
      %v409 = vmax.f32 %v393, 0.0
      %v410 = vmax.f32 %v394, 0.0
      %v411 = vmax.f32 %v395, 0.0
      %v412 = vmax.f32 %v396, 0.0
      %v413 = vmax.f32 %v397, 0.0
      %v414 = vmax.f32 %v398, 0.0
      %v415 = vmax.f32 %v399, 0.0
      %v416 = vmax.f32 %v400, 0.0
      %v417 = vmax.f32 %v401, 0.0
      %v418 = vmax.f32 %v402, 0.0
      %v419 = vmax.f32 %v403, 0.0
      %v420 = vld [vmem:[%s309] sm:$0xff]
      %v421 = vld [vmem:[%s309 + $0x8] sm:$0xff]
      %v422 = vld [vmem:[%s309 + $0x10] sm:$0xff]
      %v423 = vld [vmem:[%s309 + $0x18] sm:$0xff]
      %v424 = vld [vmem:[%s309 + $0x20] sm:$0xff]
      %v425 = vld [vmem:[%s309 + $0x28] sm:$0xff]
      %v426 = vld [vmem:[%s309 + $0x30] sm:$0xff]
      %v427 = vld [vmem:[%s309 + $0x38] sm:$0xff]
      %v428 = vld [vmem:[%s309 + $0x40] sm:$0xff]
      %v429 = vld [vmem:[%s309 + $0x48] sm:$0xff]
      %v430 = vld [vmem:[%s309 + $0x50] sm:$0xff]
      %v431 = vld [vmem:[%s309 + $0x58] sm:$0xff]
      %v432 = vld [vmem:[%s309 + $0x60] sm:$0xff]
      %v433 = vld [vmem:[%s309 + $0x68] sm:$0xff]
      %v434 = vld [vmem:[%s309 + $0x70] sm:$0xff]
      %v435 = vld [vmem:[%s309 + $0x78] sm:$0xff]
      %437 = vset.pattern.permute.xlu0 0
      %438 = vperm.xlu0 %437, %v420
      %v439 = vpop.permute.xlu0 %438
      %442 = vset.pattern.permute.xlu0 0
      %443 = vperm.xlu0 %442, %v421
      %v444 = vpop.permute.xlu0 %443
      %447 = vset.pattern.permute.xlu0 0
      %448 = vperm.xlu0 %447, %v422
      %v449 = vpop.permute.xlu0 %448
      %452 = vset.pattern.permute.xlu0 0
      %453 = vperm.xlu0 %452, %v423
      %v454 = vpop.permute.xlu0 %453
      %457 = vset.pattern.permute.xlu0 0
      %458 = vperm.xlu0 %457, %v424
      %v459 = vpop.permute.xlu0 %458
      %462 = vset.pattern.permute.xlu0 0
      %463 = vperm.xlu0 %462, %v425
      %v464 = vpop.permute.xlu0 %463
      %467 = vset.pattern.permute.xlu0 0
      %468 = vperm.xlu0 %467, %v426
      %v469 = vpop.permute.xlu0 %468
      %472 = vset.pattern.permute.xlu0 0
      %473 = vperm.xlu0 %472, %v427
      %v474 = vpop.permute.xlu0 %473
      %477 = vset.pattern.permute.xlu0 0
      %478 = vperm.xlu0 %477, %v428
      %v479 = vpop.permute.xlu0 %478
      %482 = vset.pattern.permute.xlu0 0
      %483 = vperm.xlu0 %482, %v429
      %v484 = vpop.permute.xlu0 %483
      %487 = vset.pattern.permute.xlu0 0
      %488 = vperm.xlu0 %487, %v430
      %v489 = vpop.permute.xlu0 %488
      %492 = vset.pattern.permute.xlu0 0
      %493 = vperm.xlu0 %492, %v431
      %v494 = vpop.permute.xlu0 %493
      %497 = vset.pattern.permute.xlu0 0
      %498 = vperm.xlu0 %497, %v432
      %v499 = vpop.permute.xlu0 %498
      %502 = vset.pattern.permute.xlu0 0
      %503 = vperm.xlu0 %502, %v433
      %v504 = vpop.permute.xlu0 %503
      %507 = vset.pattern.permute.xlu0 0
      %508 = vperm.xlu0 %507, %v434
      %v509 = vpop.permute.xlu0 %508
      %512 = vset.pattern.permute.xlu0 0
      %513 = vperm.xlu0 %512, %v435
      %v514 = vpop.permute.xlu0 %513
      %v516 = vmul.f32 %v404, %v439
      %v517 = vmul.f32 %v405, %v444
      %v518 = vmul.f32 %v406, %v449
      %v519 = vmul.f32 %v407, %v454
      %v520 = vmul.f32 %v408, %v459
      %v521 = vmul.f32 %v409, %v464
      %v522 = vmul.f32 %v410, %v469
      %v523 = vmul.f32 %v411, %v474
      %v524 = vmul.f32 %v412, %v479
      %v525 = vmul.f32 %v413, %v484
      %v526 = vmul.f32 %v414, %v489
      %v527 = vmul.f32 %v415, %v494
      %v528 = vmul.f32 %v416, %v499
      %v529 = vmul.f32 %v417, %v504
      %v530 = vmul.f32 %v418, %v509
      %v531 = vmul.f32 %v419, %v514
      %v532 = vpack.c.bf16 %v517, %v516
      %v533 = vpack.c.bf16 %v519, %v518
      %v534 = vpack.c.bf16 %v521, %v520
      %v535 = vpack.c.bf16 %v523, %v522
      %v536 = vpack.c.bf16 %v525, %v524
      %v537 = vpack.c.bf16 %v527, %v526
      %v538 = vpack.c.bf16 %v529, %v528
      %v539 = vpack.c.bf16 %v531, %v530
      %v540 = vld [vmem:[%s3] sm:$0xf]
      %v541 = vld [vmem:[%s3 + $0x4] sm:$0xf]
      %v542 = vld [vmem:[%s3 + $0x8] sm:$0xf]
      %v543 = vld [vmem:[%s3 + $0xc] sm:$0xf]
      %v544 = vld [vmem:[%s3 + $0x10] sm:$0xf]
      %v545 = vld [vmem:[%s3 + $0x14] sm:$0xf]
      %v546 = vld [vmem:[%s3 + $0x18] sm:$0xf]
      %v547 = vld [vmem:[%s3 + $0x1c] sm:$0xf]
      %v548 = vld [vmem:[%s3 + $0x20] sm:$0xf]
      %v549 = vld [vmem:[%s3 + $0x24] sm:$0xf]
      %v550 = vld [vmem:[%s3 + $0x28] sm:$0xf]
      %v551 = vld [vmem:[%s3 + $0x2c] sm:$0xf]
      %v552 = vld [vmem:[%s3 + $0x30] sm:$0xf]
      %v553 = vld [vmem:[%s3 + $0x34] sm:$0xf]
      %v554 = vld [vmem:[%s3 + $0x38] sm:$0xf]
      %v555 = vld [vmem:[%s3 + $0x3c] sm:$0xf]
      %v572 = vunpack.c.l.b16 %v540
      %v573 = vunpack.c.l.b16 %v541
      %v574 = vunpack.c.l.b16 %v542
      %v575 = vunpack.c.l.b16 %v543
      %v576 = vunpack.c.l.b16 %v544
      %v577 = vunpack.c.l.b16 %v545
      %v578 = vunpack.c.l.b16 %v546
      %v579 = vunpack.c.l.b16 %v547
      %v580 = vunpack.c.l.b16 %v548
      %v581 = vunpack.c.l.b16 %v549
      %v582 = vunpack.c.l.b16 %v550
      %v583 = vunpack.c.l.b16 %v551
      %v584 = vunpack.c.l.b16 %v552
      %v585 = vunpack.c.l.b16 %v553
      %v586 = vunpack.c.l.b16 %v554
      %v587 = vunpack.c.l.b16 %v555
      %v588 = vpack.c.b16 %v573, %v572
      %v589 = vpack.c.b16 %v575, %v574
      %v590 = vpack.c.b16 %v577, %v576
      %v591 = vpack.c.b16 %v579, %v578
      %v592 = vpack.c.b16 %v581, %v580
      %v593 = vpack.c.b16 %v583, %v582
      %v594 = vpack.c.b16 %v585, %v584
      %v595 = vpack.c.b16 %v587, %v586
      %604 = vmatprep.subr.bf16.mxu0 0
      %605 = vmatpush1.bf16.msra.mxu0 %v588
      %606 = vmatprep.subr.bf16.mxu0 0
      %607 = vmatpush1.bf16.msra.mxu0 %v589
      %608 = vmatprep.subr.bf16.mxu0 0
      %609 = vmatpush1.bf16.msra.mxu0 %v590
      %610 = vmatprep.subr.bf16.mxu0 0
      %611 = vmatpush1.bf16.msra.mxu0 %v591
      %612 = vmatprep.subr.bf16.mxu0 0
      %613 = vmatpush1.bf16.msra.mxu0 %v592
      %614 = vmatprep.subr.bf16.mxu0 0
      %615 = vmatpush1.bf16.msra.mxu0 %v593
      %616 = vmatprep.subr.bf16.mxu0 0
      %617 = vmatpush1.bf16.msra.mxu0 %v594
      %618 = vmatprep.subr.bf16.mxu0 0
      %619 = vmatpush1.bf16.msra.mxu0 %v595
      %620 = vmatprep.subr.bf16.mxu0 0
      %621 = vmatpush1.bf16.msra.mxu0 0
      %622 = vmatprep.subr.bf16.mxu0 0
      %623 = vmatpush1.bf16.msra.mxu0 0
      %624 = vmatprep.subr.bf16.mxu0 0
      %625 = vmatpush1.bf16.msra.mxu0 0
      %626 = vmatprep.subr.bf16.mxu0 0
      %627 = vmatpush1.bf16.msra.mxu0 0
      %628 = vmatprep.subr.bf16.mxu0 0
      %629 = vmatpush1.bf16.msra.mxu0 0
      %630 = vmatprep.subr.bf16.mxu0 0
      %631 = vmatpush1.bf16.msra.mxu0 0
      %632 = vmatprep.subr.bf16.mxu0 0
      %633 = vmatpush1.bf16.msra.mxu0 0
      %634 = vmatprep.subr.bf16.mxu0 0
      %635 = vmatpush1.bf16.msra.mxu0 0
      %636 = vmatprep.mubr.bf16.mxu0 0
      %637 = vmatmul.mubr.bf16.gmra.mrb[0].mxu0 %v532
      %v638 = vpop.f32.mrb[0].mxu0
      %v639 = vadd.f32 0.0, %v638
      %v640 = vpop.f32.mrb[0].mxu0
      %v641 = vpop.f32.mrb[0].mxu0
      %v642 = vadd.f32 0.0, %v641
      %v643 = vpop.f32.mrb[0].mxu0
      %644 = vmatprep.mubr.bf16.mxu0 0
      %645 = vmatmul.mubr.bf16.gmra.mrb[0].mxu0 %v533
      %v646 = vpop.f32.mrb[0].mxu0
      %v647 = vadd.f32 0.0, %v646
      %v648 = vpop.f32.mrb[0].mxu0
      %v649 = vpop.f32.mrb[0].mxu0
      %v650 = vadd.f32 0.0, %v649
      %v651 = vpop.f32.mrb[0].mxu0
      %652 = vmatprep.mubr.bf16.mxu0 0
      %653 = vmatmul.mubr.bf16.gmra.mrb[0].mxu0 %v534
      %v654 = vpop.f32.mrb[0].mxu0
      %v655 = vadd.f32 0.0, %v654
      %v656 = vpop.f32.mrb[0].mxu0
      %v657 = vpop.f32.mrb[0].mxu0
      %v658 = vadd.f32 0.0, %v657
      %v659 = vpop.f32.mrb[0].mxu0
      %660 = vmatprep.mubr.bf16.mxu0 0
      %661 = vmatmul.mubr.bf16.gmra.mrb[0].mxu0 %v535
      %v662 = vpop.f32.mrb[0].mxu0
      %v663 = vadd.f32 0.0, %v662
      %v664 = vpop.f32.mrb[0].mxu0
      %v665 = vpop.f32.mrb[0].mxu0
      %v666 = vadd.f32 0.0, %v665
      %v667 = vpop.f32.mrb[0].mxu0
      %668 = vmatprep.mubr.bf16.mxu0 0
      %669 = vmatmul.mubr.bf16.gmra.mrb[0].mxu0 %v536
      %v670 = vpop.f32.mrb[0].mxu0
      %v671 = vadd.f32 0.0, %v670
      %v672 = vpop.f32.mrb[0].mxu0
      %v673 = vpop.f32.mrb[0].mxu0
      %v674 = vadd.f32 0.0, %v673
      %v675 = vpop.f32.mrb[0].mxu0
      %676 = vmatprep.mubr.bf16.mxu0 0
      %677 = vmatmul.mubr.bf16.gmra.mrb[0].mxu0 %v537
      %v678 = vpop.f32.mrb[0].mxu0
      %v679 = vadd.f32 0.0, %v678
      %v680 = vpop.f32.mrb[0].mxu0
      %v681 = vpop.f32.mrb[0].mxu0
      %v682 = vadd.f32 0.0, %v681
      %v683 = vpop.f32.mrb[0].mxu0
      %684 = vmatprep.mubr.bf16.mxu0 0
      %685 = vmatmul.mubr.bf16.gmra.mrb[0].mxu0 %v538
      %v686 = vpop.f32.mrb[0].mxu0
      %v687 = vadd.f32 0.0, %v686
      %v688 = vpop.f32.mrb[0].mxu0
      %v689 = vpop.f32.mrb[0].mxu0
      %v690 = vadd.f32 0.0, %v689
      %v691 = vpop.f32.mrb[0].mxu0
      %692 = vmatprep.mubr.bf16.mxu0 0
      %693 = vmatmul.mubr.bf16.gmra.mrb[0].mxu0 %v539
      %v694 = vpop.f32.mrb[0].mxu0
      %v695 = vadd.f32 0.0, %v694
      %v696 = vpop.f32.mrb[0].mxu0
      %v697 = vpop.f32.mrb[0].mxu0
      %v698 = vadd.f32 0.0, %v697
      %v699 = vpop.f32.mrb[0].mxu0
      %700 = vdwg.mxu0
      %v701 = vpack.c.bf16 %v642, %v639
      %v702 = vpack.c.bf16 %v650, %v647
      %v703 = vpack.c.bf16 %v658, %v655
      %v704 = vpack.c.bf16 %v666, %v663
      %v705 = vpack.c.bf16 %v674, %v671
      %v706 = vpack.c.bf16 %v682, %v679
      %v707 = vpack.c.bf16 %v690, %v687
      %v708 = vpack.c.bf16 %v698, %v695
      %v717 = vunpack.c.l.b16 %v701
      %v718 = vunpack.c.h.b16 %v701
      %v719 = vunpack.c.l.b16 %v702
      %v720 = vunpack.c.h.b16 %v702
      %v721 = vunpack.c.l.b16 %v703
      %v722 = vunpack.c.h.b16 %v703
      %v723 = vunpack.c.l.b16 %v704
      %v724 = vunpack.c.h.b16 %v704
      %v725 = vunpack.c.l.b16 %v705
      %v726 = vunpack.c.h.b16 %v705
      %v727 = vunpack.c.l.b16 %v706
      %v728 = vunpack.c.h.b16 %v706
      %v729 = vunpack.c.l.b16 %v707
      %v730 = vunpack.c.h.b16 %v707
      %v731 = vunpack.c.l.b16 %v708
      %v732 = vunpack.c.h.b16 %v708
      %v733 = vpack.c.b16 %v717, %v717
      %v734 = vpack.c.b16 %v718, %v718
      %v735 = vpack.c.b16 %v719, %v719
      %v736 = vpack.c.b16 %v720, %v720
      %v737 = vpack.c.b16 %v721, %v721
      %v738 = vpack.c.b16 %v722, %v722
      %v739 = vpack.c.b16 %v723, %v723
      %v740 = vpack.c.b16 %v724, %v724
      %v741 = vpack.c.b16 %v725, %v725
      %v742 = vpack.c.b16 %v726, %v726
      %v743 = vpack.c.b16 %v727, %v727
      %v744 = vpack.c.b16 %v728, %v728
      %v745 = vpack.c.b16 %v729, %v729
      %v746 = vpack.c.b16 %v730, %v730
      %v747 = vpack.c.b16 %v731, %v731
      %v748 = vpack.c.b16 %v732, %v732
      %765 = vst [vmem:[%s315] sm:$0xf] %v733
      %766 = vst [vmem:[%s315 + $0x4] sm:$0xf] %v734
      %767 = vst [vmem:[%s315 + $0x8] sm:$0xf] %v735
      %768 = vst [vmem:[%s315 + $0xc] sm:$0xf] %v736
      %769 = vst [vmem:[%s315 + $0x10] sm:$0xf] %v737
      %770 = vst [vmem:[%s315 + $0x14] sm:$0xf] %v738
      %771 = vst [vmem:[%s315 + $0x18] sm:$0xf] %v739
      %772 = vst [vmem:[%s315 + $0x1c] sm:$0xf] %v740
      %773 = vst [vmem:[%s315 + $0x20] sm:$0xf] %v741
      %774 = vst [vmem:[%s315 + $0x24] sm:$0xf] %v742
      %775 = vst [vmem:[%s315 + $0x28] sm:$0xf] %v743
      %776 = vst [vmem:[%s315 + $0x2c] sm:$0xf] %v744
      %777 = vst [vmem:[%s315 + $0x30] sm:$0xf] %v745
      %778 = vst [vmem:[%s315 + $0x34] sm:$0xf] %v746
      %779 = vst [vmem:[%s315 + $0x38] sm:$0xf] %v747
      %780 = vst [vmem:[%s315 + $0x3c] sm:$0xf] %v748
      %v781 = vlaneseq
      %v782 = vshrl.u32 %v781, 7
      %vm783 = vcmp.eq.s32.totalorder %v782, 0
      %v784 = vadd.f32 %v639, %v642
      %v785 = vadd.f32 %v784, %v647
      %v786 = vadd.f32 %v785, %v650
      %v787 = vadd.f32 %v786, %v655
      %v788 = vadd.f32 %v787, %v658
      %v789 = vadd.f32 %v788, %v663
      %v790 = vadd.f32 %v789, %v666
      %v791 = vadd.f32 %v790, %v671
      %v792 = vadd.f32 %v791, %v674
      %v793 = vadd.f32 %v792, %v679
      %v794 = vadd.f32 %v793, %v682
      %v795 = vadd.f32 %v794, %v687
      %v796 = vadd.f32 %v795, %v690
      %v797 = vadd.f32 %v796, %v695
      %v798 = vadd.f32 %v797, %v698
      %v799 = vrot.slane %v798, 4
      %v800 = vadd.f32 %v798, %v799
      %v801 = vrot.slane %v800, 2
      %v802 = vadd.f32 %v800, %v801
      %v803 = vrot.slane %v802, 1
      %v804 = vadd.f32 %v802, %v803
      %v805 = vsel %vm783, %v804, 0.0
      %806 = vst [vmem:[%s320] sm:$0xff] %v805
      %v807 = vmul.f32 %v639, %v639
      %v808 = vmul.f32 %v642, %v642
      %v809 = vmul.f32 %v647, %v647
      %v810 = vmul.f32 %v650, %v650
      %v811 = vmul.f32 %v655, %v655
      %v812 = vmul.f32 %v658, %v658
      %v813 = vmul.f32 %v663, %v663
      %v814 = vmul.f32 %v666, %v666
      %v815 = vmul.f32 %v671, %v671
      %v816 = vmul.f32 %v674, %v674
      %v817 = vmul.f32 %v679, %v679
      %v818 = vmul.f32 %v682, %v682
      %v819 = vmul.f32 %v687, %v687
      %v820 = vmul.f32 %v690, %v690
      %v821 = vmul.f32 %v695, %v695
      %v822 = vmul.f32 %v698, %v698
      %v823 = vadd.f32 %v807, %v808
      %v824 = vadd.f32 %v823, %v809
      %v825 = vadd.f32 %v824, %v810
      %v826 = vadd.f32 %v825, %v811
      %v827 = vadd.f32 %v826, %v812
      %v828 = vadd.f32 %v827, %v813
      %v829 = vadd.f32 %v828, %v814
      %v830 = vadd.f32 %v829, %v815
      %v831 = vadd.f32 %v830, %v816
      %v832 = vadd.f32 %v831, %v817
      %v833 = vadd.f32 %v832, %v818
      %v834 = vadd.f32 %v833, %v819
      %v835 = vadd.f32 %v834, %v820
      %v836 = vadd.f32 %v835, %v821
      %v837 = vadd.f32 %v836, %v822
      %v838 = vrot.slane %v837, 4
      %v839 = vadd.f32 %v837, %v838
      %v840 = vrot.slane %v839, 2
      %v841 = vadd.f32 %v839, %v840
      %v842 = vrot.slane %v841, 1
      %v843 = vadd.f32 %v841, %v842
      %v844 = vsel %vm783, %v843, 0.0
      %845 = vst [vmem:[%s324] sm:$0xff] %v844
      %s846 = smul.u32 16, %s19
      %p847 = scmp.lt.s32.totalorder %s846, 79
      %s848 = scalar_select %p847, %s846, 79
      %s849 = smul.addr %s848, 4
      %s850 = scalar_lea.vmem %s5, %s849
      %p851 = scmp.lt.s32.totalorder %s19, 4
      %s852 = scalar_select %p851, %s19, 4
      %s853 = smul.addr %s852, 8
      %s854 = scalar_lea.vmem %s6, %s853
      %p855 = scmp.lt.s32.totalorder %s19, 4
      %s856 = scalar_select %p855, %s19, 4
      %s857 = smul.addr %s856, 8
      %s858 = scalar_lea.vmem %s7, %s857
      // Predicated region
      $region41: #{bottleneck_forward.6} parent=39 // pred_check
        %p859 = pneg %p152
      $region42: #{bottleneck_forward.6} parent=39 // pred_check_branch
        %861 = sbr.rel (%p859) target = $region44
      $region43: #{bottleneck_forward.6} parent=39 // pred_region
        %s862 = smul.u32 16, %s19
      $region44: #{bottleneck_forward.6} parent=39 // pred_fallthru
        _
      // Predicated region
      $region45: #{bottleneck_forward.6} parent=39 // pred_check
        %p863 = pneg %p178
      $region46: #{bottleneck_forward.6} parent=39 // pred_check_branch
        %865 = sbr.rel (%p863) target = $region48
      $region47: #{bottleneck_forward.6} parent=39 // pred_region
        _
      $region48: #{bottleneck_forward.6} parent=39 // pred_fallthru
        _
      // Predicated region
      $region49: #{bottleneck_forward.6} parent=39 // pred_check
        %p866 = pneg %p204
      $region50: #{bottleneck_forward.6} parent=39 // pred_check_branch
        %868 = sbr.rel (%p866) target = $region52
      $region51: #{bottleneck_forward.6} parent=39 // pred_region
        _
      $region52: #{bottleneck_forward.6} parent=39 // pred_fallthru
        _
    $region40: #{bottleneck_forward.6} parent=5 // pred_fallthru
      _
    %p869 = scmp.le.s32.totalorder 2, %s14
    // Predicated region
    $region53: #{bottleneck_forward.6} parent=5 // pred_check
      %p870 = pneg %p869
    $region54: #{bottleneck_forward.6} parent=5 // pred_check_branch
      %872 = sbr.rel (%p870) target = $region56
    $region55: #{bottleneck_forward.6} parent=5 // pred_region
      %s873 = ssub.s32 %s14, 2
      // Predicated region
      $region57: #{bottleneck_forward.6} parent=55 // pred_check
        %p874 = pneg %p158
      $region58: #{bottleneck_forward.6} parent=55 // pred_check_branch
        %876 = sbr.rel (%p874) target = $region60
      $region59: #{bottleneck_forward.6} parent=55 // pred_region
        %s877 = smul.u32 16, %s20
        %p878 = scmp.lt.s32.totalorder %s877, 79
        %s879 = scalar_select %p878, %s877, 79
        %s880 = smul.addr %s879, 4
        %s881 = scalar_lea.vmem %s5, %s880
      $region60: #{bottleneck_forward.6} parent=55 // pred_fallthru
        _
      // Predicated region
      $region61: #{bottleneck_forward.6} parent=55 // pred_check
        %p882 = pneg %p184
      $region62: #{bottleneck_forward.6} parent=55 // pred_check_branch
        %884 = sbr.rel (%p882) target = $region64
      $region63: #{bottleneck_forward.6} parent=55 // pred_region
        %p885 = scmp.lt.s32.totalorder %s20, 4
        %s886 = scalar_select %p885, %s20, 4
        %s887 = smul.addr %s886, 8
        %s888 = scalar_lea.vmem %s6, %s887
      $region64: #{bottleneck_forward.6} parent=55 // pred_fallthru
        _
      // Predicated region
      $region65: #{bottleneck_forward.6} parent=55 // pred_check
        %p889 = pneg %p210
      $region66: #{bottleneck_forward.6} parent=55 // pred_check_branch
        %891 = sbr.rel (%p889) target = $region68
      $region67: #{bottleneck_forward.6} parent=55 // pred_region
        %p892 = scmp.lt.s32.totalorder %s20, 4
        %s893 = scalar_select %p892, %s20, 4
        %s894 = smul.addr %s893, 8
        %s895 = scalar_lea.vmem %s7, %s894
      $region68: #{bottleneck_forward.6} parent=55 // pred_fallthru
        _
    $region56: #{bottleneck_forward.6} parent=5 // pred_fallthru
      _
  $region6: #{bottleneck_forward.6} parent=0 // loop_footer
    %s18 = sadd.s32 1, %s14
  $region7: #{bottleneck_forward.6} parent=0 // loop_footer_branch
    %13 = sbr.rel target = $region3
  $region8: #{bottleneck_forward.6} parent=0 // loop_exit
    _

// kernel: bottleneck_forward.7
$region0: #{bottleneck_forward.7}
  #allocation0 [shape = 'u32[]', space=smem, size = 0x4, offset = 0x4, fixed_abs, tag = 'smem constant byte address 0x4 - core index']
  #allocation1 [shape = 'u32[144,128]{1,0:T(1,128)}', space=vmem, size = 0x12000, scoped, tag = 'internal scratch']
  %s0 = inlined_call_operand.vmem [shape: bf16[640,128], index: 0, kind: input, shape index: {}]
  %s1 = inlined_call_operand.vmem [shape: f32[1,128], index: 1, kind: input, shape index: {}]
  %s2 = inlined_call_operand.vmem [shape: f32[1,128], index: 2, kind: input, shape index: {}]
  %s3 = inlined_call_operand.vmem [shape: bf16[640,128], index: 3, kind: input, shape index: {}]
  %s4 = inlined_call_operand.vmem [shape: f32[640,128], index: 4, kind: output, shape index: {}]
  %s5 = sld [smem:[#allocation0]]
  $region49: #{bottleneck_forward.7} parent=0
    _
  %s7 = ssub.s32 1, %s5
  %s8 = scalar_select 0, %s7, %s5
  loop: start=0, step=1, limit=7
  $region2: #{bottleneck_forward.7} parent=0 // loop_pre_header
    _
  $region3: #{bottleneck_forward.7} parent=0 // loop_header
    %s10 = sphi 0, %s14
    %p11 = scmp.ge.s32.totalorder %s10, 7
    %s20 = sphi 0, %s22
    %s23 = sphi 0, %s20
    %s24 = sphi 0, %s23
    %s40 = sphi 0, %s24
    %s44 = sphi 0, %s44
    %s46 = sphi 0, %s44
    %s47 = sphi 0, %s46
    %s61 = sphi 0, %s47
    %s65 = sphi 0, %s65
    %s67 = sphi 0, %s65
    %s68 = sphi 0, %s67
    %s82 = sphi 0, %s68
    %s88 = sphi 0, %s90
    %s91 = sphi 0, %s88
    %s92 = sphi 0, %s91
    %s108 = sphi 0, %s92
    %s114 = sphi 0, %s116
    %s117 = sphi 0, %s114
    %s118 = sphi 0, %s117
    %s134 = sphi 0, %s118
  $region4: #{bottleneck_forward.7} parent=0 // loop_header_branch
    %13 = sbr.rel (%p11) target = $region8
  $region5: #{bottleneck_forward.7} parent=0 // loop_body
    %s15 = ssub.s32 %s10, 1
    %s16 = ssub.s32 %s10, 2
    %s17 = sadd.s32 %s10, 1
    %s18 = ssub.s32 %s10, %s17
    %p19 = scmp.eq.s32.totalorder %s18, 0
    %s21 = sadd.s32 %s20, 1
    %s22 = scalar_select %p19, %s20, %s21
    %p25 = pneg %p19
    %p26 = scmp.eq.s32.totalorder %s10, 4
    %p27 = por %p25, %p26
    %p28 = scmp.ne.s32.totalorder %s20, %s23
    %p29 = scmp.eq.s32.totalorder %s10, 0
    %p30 = por %p28, %p29
    %p31 = scmp.ne.s32.totalorder %s20, %s23
    %p32 = scmp.eq.s32.totalorder %s15, 4
    %p33 = por %p31, %p32
    %p34 = scmp.ne.s32.totalorder %s23, %s24
    %p35 = scmp.eq.s32.totalorder %s15, 0
    %p36 = por %p34, %p35
    %p37 = scmp.ne.s32.totalorder %s23, %s24
    %p38 = scmp.eq.s32.totalorder %s16, 4
    %p39 = por %p37, %p38
    %p41 = scmp.ne.s32.totalorder %s24, %s40
    %p42 = scmp.eq.s32.totalorder %s16, 0
    %p43 = por %p41, %p42
    %s45 = sadd.s32 %s44, 1
    %p48 = scmp.eq.s32.totalorder %s10, 4
    %p49 = scmp.ne.s32.totalorder %s44, %s46
    %p50 = scmp.eq.s32.totalorder %s10, 0
    %p51 = por %p49, %p50
    %p52 = scmp.ne.s32.totalorder %s44, %s46
    %p53 = scmp.eq.s32.totalorder %s15, 4
    %p54 = por %p52, %p53
    %p55 = scmp.ne.s32.totalorder %s46, %s47
    %p56 = scmp.eq.s32.totalorder %s15, 0
    %p57 = por %p55, %p56
    %p58 = scmp.ne.s32.totalorder %s46, %s47
    %p59 = scmp.eq.s32.totalorder %s16, 4
    %p60 = por %p58, %p59
    %p62 = scmp.ne.s32.totalorder %s47, %s61
    %p63 = scmp.eq.s32.totalorder %s16, 0
    %p64 = por %p62, %p63
    %s66 = sadd.s32 %s65, 1
    %p69 = scmp.eq.s32.totalorder %s10, 4
    %p70 = scmp.ne.s32.totalorder %s65, %s67
    %p71 = scmp.eq.s32.totalorder %s10, 0
    %p72 = por %p70, %p71
    %p73 = scmp.ne.s32.totalorder %s65, %s67
    %p74 = scmp.eq.s32.totalorder %s15, 4
    %p75 = por %p73, %p74
    %p76 = scmp.ne.s32.totalorder %s67, %s68
    %p77 = scmp.eq.s32.totalorder %s15, 0
    %p78 = por %p76, %p77
    %p79 = scmp.ne.s32.totalorder %s67, %s68
    %p80 = scmp.eq.s32.totalorder %s16, 4
    %p81 = por %p79, %p80
    %p83 = scmp.ne.s32.totalorder %s68, %s82
    %p84 = scmp.eq.s32.totalorder %s16, 0
    %p85 = por %p83, %p84
    %s86 = ssub.s32 %s10, %s17
    %p87 = scmp.eq.s32.totalorder %s86, 0
    %s89 = sadd.s32 %s88, 1
    %s90 = scalar_select %p87, %s88, %s89
    %p93 = pneg %p87
    %p94 = scmp.eq.s32.totalorder %s10, 4
    %p95 = por %p93, %p94
    %p96 = scmp.ne.s32.totalorder %s88, %s91
    %p97 = scmp.eq.s32.totalorder %s10, 0
    %p98 = por %p96, %p97
    %p99 = scmp.ne.s32.totalorder %s88, %s91
    %p100 = scmp.eq.s32.totalorder %s15, 4
    %p101 = por %p99, %p100
    %p102 = scmp.ne.s32.totalorder %s91, %s92
    %p103 = scmp.eq.s32.totalorder %s15, 0
    %p104 = por %p102, %p103
    %p105 = scmp.ne.s32.totalorder %s91, %s92
    %p106 = scmp.eq.s32.totalorder %s16, 4
    %p107 = por %p105, %p106
    %p109 = scmp.ne.s32.totalorder %s92, %s108
    %p110 = scmp.eq.s32.totalorder %s16, 0
    %p111 = por %p109, %p110
    %s112 = ssub.s32 %s10, %s17
    %p113 = scmp.eq.s32.totalorder %s112, 0
    %s115 = sadd.s32 %s114, 1
    %s116 = scalar_select %p113, %s114, %s115
    %p119 = pneg %p113
    %p120 = scmp.eq.s32.totalorder %s10, 4
    %p121 = por %p119, %p120
    %p122 = scmp.ne.s32.totalorder %s114, %s117
    %p123 = scmp.eq.s32.totalorder %s10, 0
    %p124 = por %p122, %p123
    %p125 = scmp.ne.s32.totalorder %s114, %s117
    %p126 = scmp.eq.s32.totalorder %s15, 4
    %p127 = por %p125, %p126
    %p128 = scmp.ne.s32.totalorder %s117, %s118
    %p129 = scmp.eq.s32.totalorder %s15, 0
    %p130 = por %p128, %p129
    %p131 = scmp.ne.s32.totalorder %s117, %s118
    %p132 = scmp.eq.s32.totalorder %s16, 4
    %p133 = por %p131, %p132
    %p135 = scmp.ne.s32.totalorder %s118, %s134
    %p136 = scmp.eq.s32.totalorder %s16, 0
    %p137 = por %p135, %p136
    %p138 = scmp.le.s32.totalorder 1, %s10
    %p139 = scmp.lt.s32.totalorder %s10, 6
    %p140 = pnand %p138, %p139
    %p141 = pneg %p140
    // Predicated region
    $region9: #{bottleneck_forward.7} parent=5 // pred_check
      _
    $region10: #{bottleneck_forward.7} parent=5 // pred_check_branch
      %143 = sbr.rel (%p140) target = $region12
    $region11: #{bottleneck_forward.7} parent=5 // pred_region
      %s144 = ssub.s32 %s10, 1
      // Predicated region
      $region13: #{bottleneck_forward.7} parent=11 // pred_check
        %p145 = pneg %p57
      $region14: #{bottleneck_forward.7} parent=11 // pred_check_branch
        %147 = sbr.rel (%p145) target = $region16
      $region15: #{bottleneck_forward.7} parent=11 // pred_region
        _
      $region16: #{bottleneck_forward.7} parent=11 // pred_fallthru
        _
      // Predicated region
      $region17: #{bottleneck_forward.7} parent=11 // pred_check
        %p148 = pneg %p78
      $region18: #{bottleneck_forward.7} parent=11 // pred_check_branch
        %150 = sbr.rel (%p148) target = $region20
      $region19: #{bottleneck_forward.7} parent=11 // pred_region
        _
      $region20: #{bottleneck_forward.7} parent=11 // pred_fallthru
        _
    $region12: #{bottleneck_forward.7} parent=5 // pred_fallthru
      _
    %p151 = scmp.lt.s32.totalorder %s10, 5
    // Predicated region
    $region21: #{bottleneck_forward.7} parent=5 // pred_check
      %p152 = pneg %p151
    $region22: #{bottleneck_forward.7} parent=5 // pred_check_branch
      %154 = sbr.rel (%p152) target = $region24
    $region23: #{bottleneck_forward.7} parent=5 // pred_region
      // Predicated region
      $region25: #{bottleneck_forward.7} parent=23 // pred_check
        %p155 = pneg %p30
      $region26: #{bottleneck_forward.7} parent=23 // pred_check_branch
        %157 = sbr.rel (%p155) target = $region28
      $region27: #{bottleneck_forward.7} parent=23 // pred_region
        %s158 = smul.u32 16, %s10
        %p159 = scmp.lt.s32.totalorder %s158, 79
        %s160 = scalar_select %p159, %s158, 79
        %s161 = smul.addr %s160, 4
        %s162 = scalar_lea.vmem %s0, %s161
        %s163 = smul.u32 16, %s10
      $region28: #{bottleneck_forward.7} parent=23 // pred_fallthru
        _
      // Predicated region
      $region29: #{bottleneck_forward.7} parent=23 // pred_check
        %p164 = pneg %p98
      $region30: #{bottleneck_forward.7} parent=23 // pred_check_branch
        %166 = sbr.rel (%p164) target = $region32
      $region31: #{bottleneck_forward.7} parent=23 // pred_region
        %s167 = smul.u32 16, %s10
        %p168 = scmp.lt.s32.totalorder %s167, 79
        %s169 = scalar_select %p168, %s167, 79
        %s170 = smul.addr %s169, 4
        %s171 = scalar_lea.vmem %s3, %s170
        %s172 = smul.u32 16, %s10
      $region32: #{bottleneck_forward.7} parent=23 // pred_fallthru
        _
    $region24: #{bottleneck_forward.7} parent=5 // pred_fallthru
      _
    %p173 = scmp.le.s32.totalorder 1, %s10
    %p174 = scmp.lt.s32.totalorder %s10, 6
    %p175 = pnand %p173, %p174
    %p176 = pneg %p175
    // Predicated region
    $region33: #{bottleneck_forward.7} parent=5 // pred_check
      _
    $region34: #{bottleneck_forward.7} parent=5 // pred_check_branch
      %178 = sbr.rel (%p175) target = $region36
    $region35: #{bottleneck_forward.7} parent=5 // pred_region
      %s179 = ssub.s32 %s10, 1
      %s180 = smul.u32 16, %s15
      %p181 = scmp.lt.s32.totalorder %s180, 79
      %s182 = scalar_select %p181, %s180, 79
      %s183 = smul.addr %s182, 4
      %s184 = scalar_lea.vmem %s0, %s183
      %p185 = pneg %p36
      %p186 = pneg %p33
      %p187 = pneg %p57
      %p188 = pneg %p54
      %p189 = pneg %p78
      %p190 = pneg %p75
      %s191 = smul.u32 16, %s15
      %p192 = scmp.lt.s32.totalorder %s191, 79
      %s193 = scalar_select %p192, %s191, 79
      %s194 = smul.addr %s193, 4
      %s195 = scalar_lea.vmem %s3, %s194
      %p196 = pneg %p104
      %p197 = pneg %p101
      %p198 = pneg %p130
      %p199 = pneg %p127
      %s200 = smul.u32 16, %s15
      %p201 = scmp.lt.s32.totalorder %s200, 79
      %s202 = scalar_select %p201, %s200, 79
      %s203 = smul.addr %s202, 8
      %s204 = scalar_lea.vmem %s4, %s203
      %s205 = smul.u32 16, %s15
      %p206 = scmp.lt.s32.totalorder %s205, 79
      %s207 = scalar_select %p206, %s205, 79
      %s208 = smul.addr %s207, 4
      %s209 = scalar_lea.vmem %s0, %s208
      %s210 = smul.u32 16, %s15
      %s211 = smul.u32 16, %s15
      %p212 = scmp.lt.s32.totalorder %s211, 79
      %s213 = scalar_select %p212, %s211, 79
      %s214 = smul.addr %s213, 4
      %s215 = scalar_lea.vmem %s3, %s214
      %s216 = smul.u32 16, %s15
      %s217 = smul.u32 16, %s15
      %p218 = scmp.lt.s32.totalorder %s217, 79
      %s219 = scalar_select %p218, %s217, 79
      %s220 = smul.addr %s219, 8
      %s221 = scalar_lea.vmem %s4, %s220
      %s222 = smul.u32 16, %s15
      %v223 = vld [vmem:[%s209] sm:$0xf]
      %v224 = vld [vmem:[%s209 + $0x4] sm:$0xf]
      %v225 = vld [vmem:[%s209 + $0x8] sm:$0xf]
      %v226 = vld [vmem:[%s209 + $0xc] sm:$0xf]
      %v227 = vld [vmem:[%s209 + $0x10] sm:$0xf]
      %v228 = vld [vmem:[%s209 + $0x14] sm:$0xf]
      %v229 = vld [vmem:[%s209 + $0x18] sm:$0xf]
      %v230 = vld [vmem:[%s209 + $0x1c] sm:$0xf]
      %v231 = vld [vmem:[%s209 + $0x20] sm:$0xf]
      %v232 = vld [vmem:[%s209 + $0x24] sm:$0xf]
      %v233 = vld [vmem:[%s209 + $0x28] sm:$0xf]
      %v234 = vld [vmem:[%s209 + $0x2c] sm:$0xf]
      %v235 = vld [vmem:[%s209 + $0x30] sm:$0xf]
      %v236 = vld [vmem:[%s209 + $0x34] sm:$0xf]
      %v237 = vld [vmem:[%s209 + $0x38] sm:$0xf]
      %v238 = vld [vmem:[%s209 + $0x3c] sm:$0xf]
      %v239 = vunpack.c.l.bf16 %v223
      %v240 = vunpack.c.l.bf16 %v224
      %v241 = vunpack.c.l.bf16 %v225
      %v242 = vunpack.c.l.bf16 %v226
      %v243 = vunpack.c.l.bf16 %v227
      %v244 = vunpack.c.l.bf16 %v228
      %v245 = vunpack.c.l.bf16 %v229
      %v246 = vunpack.c.l.bf16 %v230
      %v247 = vunpack.c.l.bf16 %v231
      %v248 = vunpack.c.l.bf16 %v232
      %v249 = vunpack.c.l.bf16 %v233
      %v250 = vunpack.c.l.bf16 %v234
      %v251 = vunpack.c.l.bf16 %v235
      %v252 = vunpack.c.l.bf16 %v236
      %v253 = vunpack.c.l.bf16 %v237
      %v254 = vunpack.c.l.bf16 %v238
      %v255 = vld [vmem:[%s1] sm:$0x1]
      %v257 = vlaneseq
      %v258 = vshrl.u32 %v257, 7
      %v259 = vsub.s32 0, %v258
      %v260 = vrot.slane %v255, %v259
      %v262 = vmul.f32 %v239, %v260
      %v263 = vmul.f32 %v240, %v260
      %v264 = vmul.f32 %v241, %v260
      %v265 = vmul.f32 %v242, %v260
      %v266 = vmul.f32 %v243, %v260
      %v267 = vmul.f32 %v244, %v260
      %v268 = vmul.f32 %v245, %v260
      %v269 = vmul.f32 %v246, %v260
      %v270 = vmul.f32 %v247, %v260
      %v271 = vmul.f32 %v248, %v260
      %v272 = vmul.f32 %v249, %v260
      %v273 = vmul.f32 %v250, %v260
      %v274 = vmul.f32 %v251, %v260
      %v275 = vmul.f32 %v252, %v260
      %v276 = vmul.f32 %v253, %v260
      %v277 = vmul.f32 %v254, %v260
      %v278 = vld [vmem:[%s2] sm:$0x1]
      %v280 = vlaneseq
      %v281 = vshrl.u32 %v280, 7
      %v282 = vsub.s32 0, %v281
      %v283 = vrot.slane %v278, %v282
      %v285 = vadd.f32 %v262, %v283
      %v286 = vadd.f32 %v263, %v283
      %v287 = vadd.f32 %v264, %v283
      %v288 = vadd.f32 %v265, %v283
      %v289 = vadd.f32 %v266, %v283
      %v290 = vadd.f32 %v267, %v283
      %v291 = vadd.f32 %v268, %v283
      %v292 = vadd.f32 %v269, %v283
      %v293 = vadd.f32 %v270, %v283
      %v294 = vadd.f32 %v271, %v283
      %v295 = vadd.f32 %v272, %v283
      %v296 = vadd.f32 %v273, %v283
      %v297 = vadd.f32 %v274, %v283
      %v298 = vadd.f32 %v275, %v283
      %v299 = vadd.f32 %v276, %v283
      %v300 = vadd.f32 %v277, %v283
      %v301 = vld [vmem:[%s215] sm:$0xf]
      %v302 = vld [vmem:[%s215 + $0x4] sm:$0xf]
      %v303 = vld [vmem:[%s215 + $0x8] sm:$0xf]
      %v304 = vld [vmem:[%s215 + $0xc] sm:$0xf]
      %v305 = vld [vmem:[%s215 + $0x10] sm:$0xf]
      %v306 = vld [vmem:[%s215 + $0x14] sm:$0xf]
      %v307 = vld [vmem:[%s215 + $0x18] sm:$0xf]
      %v308 = vld [vmem:[%s215 + $0x1c] sm:$0xf]
      %v309 = vld [vmem:[%s215 + $0x20] sm:$0xf]
      %v310 = vld [vmem:[%s215 + $0x24] sm:$0xf]
      %v311 = vld [vmem:[%s215 + $0x28] sm:$0xf]
      %v312 = vld [vmem:[%s215 + $0x2c] sm:$0xf]
      %v313 = vld [vmem:[%s215 + $0x30] sm:$0xf]
      %v314 = vld [vmem:[%s215 + $0x34] sm:$0xf]
      %v315 = vld [vmem:[%s215 + $0x38] sm:$0xf]
      %v316 = vld [vmem:[%s215 + $0x3c] sm:$0xf]
      %v317 = vunpack.c.l.bf16 %v301
      %v318 = vunpack.c.l.bf16 %v302
      %v319 = vunpack.c.l.bf16 %v303
      %v320 = vunpack.c.l.bf16 %v304
      %v321 = vunpack.c.l.bf16 %v305
      %v322 = vunpack.c.l.bf16 %v306
      %v323 = vunpack.c.l.bf16 %v307
      %v324 = vunpack.c.l.bf16 %v308
      %v325 = vunpack.c.l.bf16 %v309
      %v326 = vunpack.c.l.bf16 %v310
      %v327 = vunpack.c.l.bf16 %v311
      %v328 = vunpack.c.l.bf16 %v312
      %v329 = vunpack.c.l.bf16 %v313
      %v330 = vunpack.c.l.bf16 %v314
      %v331 = vunpack.c.l.bf16 %v315
      %v332 = vunpack.c.l.bf16 %v316
      %v333 = vadd.f32 %v285, %v317
      %v334 = vadd.f32 %v286, %v318
      %v335 = vadd.f32 %v287, %v319
      %v336 = vadd.f32 %v288, %v320
      %v337 = vadd.f32 %v289, %v321
      %v338 = vadd.f32 %v290, %v322
      %v339 = vadd.f32 %v291, %v323
      %v340 = vadd.f32 %v292, %v324
      %v341 = vadd.f32 %v293, %v325
      %v342 = vadd.f32 %v294, %v326
      %v343 = vadd.f32 %v295, %v327
      %v344 = vadd.f32 %v296, %v328
      %v345 = vadd.f32 %v297, %v329
      %v346 = vadd.f32 %v298, %v330
      %v347 = vadd.f32 %v299, %v331
      %v348 = vadd.f32 %v300, %v332
      %v349 = vmax.f32 %v333, 0.0
      %v350 = vmax.f32 %v334, 0.0
      %v351 = vmax.f32 %v335, 0.0
      %v352 = vmax.f32 %v336, 0.0
      %v353 = vmax.f32 %v337, 0.0
      %v354 = vmax.f32 %v338, 0.0
      %v355 = vmax.f32 %v339, 0.0
      %v356 = vmax.f32 %v340, 0.0
      %v357 = vmax.f32 %v341, 0.0
      %v358 = vmax.f32 %v342, 0.0
      %v359 = vmax.f32 %v343, 0.0
      %v360 = vmax.f32 %v344, 0.0
      %v361 = vmax.f32 %v345, 0.0
      %v362 = vmax.f32 %v346, 0.0
      %v363 = vmax.f32 %v347, 0.0
      %v364 = vmax.f32 %v348, 0.0
      %365 = vst [vmem:[%s221] sm:$0xff] %v349
      %366 = vst [vmem:[%s221 + $0x8] sm:$0xff] %v350
      %367 = vst [vmem:[%s221 + $0x10] sm:$0xff] %v351
      %368 = vst [vmem:[%s221 + $0x18] sm:$0xff] %v352
      %369 = vst [vmem:[%s221 + $0x20] sm:$0xff] %v353
      %370 = vst [vmem:[%s221 + $0x28] sm:$0xff] %v354
      %371 = vst [vmem:[%s221 + $0x30] sm:$0xff] %v355
      %372 = vst [vmem:[%s221 + $0x38] sm:$0xff] %v356
      %373 = vst [vmem:[%s221 + $0x40] sm:$0xff] %v357
      %374 = vst [vmem:[%s221 + $0x48] sm:$0xff] %v358
      %375 = vst [vmem:[%s221 + $0x50] sm:$0xff] %v359
      %376 = vst [vmem:[%s221 + $0x58] sm:$0xff] %v360
      %377 = vst [vmem:[%s221 + $0x60] sm:$0xff] %v361
      %378 = vst [vmem:[%s221 + $0x68] sm:$0xff] %v362
      %379 = vst [vmem:[%s221 + $0x70] sm:$0xff] %v363
      %380 = vst [vmem:[%s221 + $0x78] sm:$0xff] %v364
      %s381 = smul.u32 16, %s15
      %p382 = scmp.lt.s32.totalorder %s381, 79
      %s383 = scalar_select %p382, %s381, 79
      %s384 = smul.addr %s383, 8
      %s385 = scalar_lea.vmem %s4, %s384
      // Predicated region
      $region37: #{bottleneck_forward.7} parent=35 // pred_check
        %p386 = pneg %p127
      $region38: #{bottleneck_forward.7} parent=35 // pred_check_branch
        %388 = sbr.rel (%p386) target = $region40
      $region39: #{bottleneck_forward.7} parent=35 // pred_region
        %s389 = smul.u32 16, %s15
      $region40: #{bottleneck_forward.7} parent=35 // pred_fallthru
        _
    $region36: #{bottleneck_forward.7} parent=5 // pred_fallthru
      _
    %p390 = scmp.le.s32.totalorder 2, %s10
    // Predicated region
    $region41: #{bottleneck_forward.7} parent=5 // pred_check
      %p391 = pneg %p390
    $region42: #{bottleneck_forward.7} parent=5 // pred_check_branch
      %393 = sbr.rel (%p391) target = $region44
    $region43: #{bottleneck_forward.7} parent=5 // pred_region
      %s394 = ssub.s32 %s10, 2
      // Predicated region
      $region45: #{bottleneck_forward.7} parent=43 // pred_check
        %p395 = pneg %p133
      $region46: #{bottleneck_forward.7} parent=43 // pred_check_branch
        %397 = sbr.rel (%p395) target = $region48
      $region47: #{bottleneck_forward.7} parent=43 // pred_region
        %s398 = smul.u32 16, %s16
        %p399 = scmp.lt.s32.totalorder %s398, 79
        %s400 = scalar_select %p399, %s398, 79
        %s401 = smul.addr %s400, 8
        %s402 = scalar_lea.vmem %s4, %s401
      $region48: #{bottleneck_forward.7} parent=43 // pred_fallthru
        _
    $region44: #{bottleneck_forward.7} parent=5 // pred_fallthru
      _
  $region6: #{bottleneck_forward.7} parent=0 // loop_footer
    %s14 = sadd.s32 1, %s10
  $region7: #{bottleneck_forward.7} parent=0 // loop_footer_branch
    %9 = sbr.rel target = $region3
  $region8: #{bottleneck_forward.7} parent=0 // loop_exit
    _

// kernel: bottleneck_forward.5
$region0: #{bottleneck_forward.5}
  #allocation0 [shape = 'u32[]', space=smem, size = 0x4, offset = 0x4, fixed_abs, tag = 'smem constant byte address 0x4 - core index']
  #allocation1 [shape = 'u32[144,128]{1,0:T(1,128)}', space=vmem, size = 0x12000, scoped, tag = 'internal scratch']
  #allocation2 [shape = 'f32[328,128]{1,0:T(8,128)}', space=vmem, size = 0x29000, scoped, tag = 'scratch operand']
  %s0 = inlined_call_operand.vmem [shape: bf16[2,288,128], index: 0, kind: input, shape index: {}]
  %s1 = inlined_call_operand.vmem [shape: f32[1,128], index: 1, kind: input, shape index: {}]
  %s2 = inlined_call_operand.vmem [shape: f32[1,128], index: 2, kind: input, shape index: {}]
  %s3 = inlined_call_operand.vmem [shape: bf16[9,128,128], index: 3, kind: input, shape index: {}]
  %s4 = inlined_call_operand.vmem [shape: f32[288,1], index: 4, kind: input, shape index: {}]
  %s5 = inlined_call_operand.vmem [shape: bf16[2,288,128], index: 5, kind: output, shape index: {0}]
  %s6 = inlined_call_operand.vmem [shape: f32[2,8,128], index: 6, kind: output, shape index: {1}]
  %s7 = inlined_call_operand.vmem [shape: f32[2,8,128], index: 7, kind: output, shape index: {2}]
  %8 = xla_tuple %s5, %s6, %s7
  %s9 = sld [smem:[#allocation0]]
  $region69: #{bottleneck_forward.5} parent=0
    _
  %s11 = ssub.s32 1, %s9
  %s12 = scalar_select 0, %s11, %s9
  loop: start=0, step=1, limit=4
  $region2: #{bottleneck_forward.5} parent=0 // loop_pre_header
    _
  $region3: #{bottleneck_forward.5} parent=0 // loop_header
    %s14 = sphi 0, %s18
    %p15 = scmp.ge.s32.totalorder %s14, 4
    %s24 = sphi 0, %s26
    %s27 = sphi 0, %s24
    %s28 = sphi 0, %s27
    %s44 = sphi 0, %s28
    %s48 = sphi 0, %s48
    %s50 = sphi 0, %s48
    %s51 = sphi 0, %s50
    %s65 = sphi 0, %s51
    %s69 = sphi 0, %s69
    %s71 = sphi 0, %s69
    %s72 = sphi 0, %s71
    %s86 = sphi 0, %s72
    %s90 = sphi 0, %s90
    %s92 = sphi 0, %s90
    %s93 = sphi 0, %s92
    %s107 = sphi 0, %s93
    %s111 = sphi 0, %s111
    %s113 = sphi 0, %s111
    %s114 = sphi 0, %s113
    %s128 = sphi 0, %s114
    %s134 = sphi 0, %s136
    %s137 = sphi 0, %s134
    %s138 = sphi 0, %s137
    %s154 = sphi 0, %s138
    %s160 = sphi 0, %s162
    %s163 = sphi 0, %s160
    %s164 = sphi 0, %s163
    %s180 = sphi 0, %s164
    %s186 = sphi 0, %s188
    %s189 = sphi 0, %s186
    %s190 = sphi 0, %s189
    %s206 = sphi 0, %s190
  $region4: #{bottleneck_forward.5} parent=0 // loop_header_branch
    %17 = sbr.rel (%p15) target = $region8
  $region5: #{bottleneck_forward.5} parent=0 // loop_body
    %s19 = ssub.s32 %s14, 1
    %s20 = ssub.s32 %s14, 2
    %s21 = sadd.s32 %s14, 1
    %s22 = ssub.s32 %s14, %s21
    %p23 = scmp.eq.s32.totalorder %s22, 0
    %s25 = sadd.s32 %s24, 1
    %s26 = scalar_select %p23, %s24, %s25
    %p29 = pneg %p23
    %p30 = scmp.eq.s32.totalorder %s14, 1
    %p31 = por %p29, %p30
    %p32 = scmp.ne.s32.totalorder %s24, %s27
    %p33 = scmp.eq.s32.totalorder %s14, 0
    %p34 = por %p32, %p33
    %p35 = scmp.ne.s32.totalorder %s24, %s27
    %p36 = scmp.eq.s32.totalorder %s19, 1
    %p37 = por %p35, %p36
    %p38 = scmp.ne.s32.totalorder %s27, %s28
    %p39 = scmp.eq.s32.totalorder %s19, 0
    %p40 = por %p38, %p39
    %p41 = scmp.ne.s32.totalorder %s27, %s28
    %p42 = scmp.eq.s32.totalorder %s20, 1
    %p43 = por %p41, %p42
    %p45 = scmp.ne.s32.totalorder %s28, %s44
    %p46 = scmp.eq.s32.totalorder %s20, 0
    %p47 = por %p45, %p46
    %s49 = sadd.s32 %s48, 1
    %p52 = scmp.eq.s32.totalorder %s14, 1
    %p53 = scmp.ne.s32.totalorder %s48, %s50
    %p54 = scmp.eq.s32.totalorder %s14, 0
    %p55 = por %p53, %p54
    %p56 = scmp.ne.s32.totalorder %s48, %s50
    %p57 = scmp.eq.s32.totalorder %s19, 1
    %p58 = por %p56, %p57
    %p59 = scmp.ne.s32.totalorder %s50, %s51
    %p60 = scmp.eq.s32.totalorder %s19, 0
    %p61 = por %p59, %p60
    %p62 = scmp.ne.s32.totalorder %s50, %s51
    %p63 = scmp.eq.s32.totalorder %s20, 1
    %p64 = por %p62, %p63
    %p66 = scmp.ne.s32.totalorder %s51, %s65
    %p67 = scmp.eq.s32.totalorder %s20, 0
    %p68 = por %p66, %p67
    %s70 = sadd.s32 %s69, 1
    %p73 = scmp.eq.s32.totalorder %s14, 1
    %p74 = scmp.ne.s32.totalorder %s69, %s71
    %p75 = scmp.eq.s32.totalorder %s14, 0
    %p76 = por %p74, %p75
    %p77 = scmp.ne.s32.totalorder %s69, %s71
    %p78 = scmp.eq.s32.totalorder %s19, 1
    %p79 = por %p77, %p78
    %p80 = scmp.ne.s32.totalorder %s71, %s72
    %p81 = scmp.eq.s32.totalorder %s19, 0
    %p82 = por %p80, %p81
    %p83 = scmp.ne.s32.totalorder %s71, %s72
    %p84 = scmp.eq.s32.totalorder %s20, 1
    %p85 = por %p83, %p84
    %p87 = scmp.ne.s32.totalorder %s72, %s86
    %p88 = scmp.eq.s32.totalorder %s20, 0
    %p89 = por %p87, %p88
    %s91 = sadd.s32 %s90, 1
    %p94 = scmp.eq.s32.totalorder %s14, 1
    %p95 = scmp.ne.s32.totalorder %s90, %s92
    %p96 = scmp.eq.s32.totalorder %s14, 0
    %p97 = por %p95, %p96
    %p98 = scmp.ne.s32.totalorder %s90, %s92
    %p99 = scmp.eq.s32.totalorder %s19, 1
    %p100 = por %p98, %p99
    %p101 = scmp.ne.s32.totalorder %s92, %s93
    %p102 = scmp.eq.s32.totalorder %s19, 0
    %p103 = por %p101, %p102
    %p104 = scmp.ne.s32.totalorder %s92, %s93
    %p105 = scmp.eq.s32.totalorder %s20, 1
    %p106 = por %p104, %p105
    %p108 = scmp.ne.s32.totalorder %s93, %s107
    %p109 = scmp.eq.s32.totalorder %s20, 0
    %p110 = por %p108, %p109
    %s112 = sadd.s32 %s111, 1
    %p115 = scmp.eq.s32.totalorder %s14, 1
    %p116 = scmp.ne.s32.totalorder %s111, %s113
    %p117 = scmp.eq.s32.totalorder %s14, 0
    %p118 = por %p116, %p117
    %p119 = scmp.ne.s32.totalorder %s111, %s113
    %p120 = scmp.eq.s32.totalorder %s19, 1
    %p121 = por %p119, %p120
    %p122 = scmp.ne.s32.totalorder %s113, %s114
    %p123 = scmp.eq.s32.totalorder %s19, 0
    %p124 = por %p122, %p123
    %p125 = scmp.ne.s32.totalorder %s113, %s114
    %p126 = scmp.eq.s32.totalorder %s20, 1
    %p127 = por %p125, %p126
    %p129 = scmp.ne.s32.totalorder %s114, %s128
    %p130 = scmp.eq.s32.totalorder %s20, 0
    %p131 = por %p129, %p130
    %s132 = ssub.s32 %s14, %s21
    %p133 = scmp.eq.s32.totalorder %s132, 0
    %s135 = sadd.s32 %s134, 1
    %s136 = scalar_select %p133, %s134, %s135
    %p139 = pneg %p133
    %p140 = scmp.eq.s32.totalorder %s14, 1
    %p141 = por %p139, %p140
    %p142 = scmp.ne.s32.totalorder %s134, %s137
    %p143 = scmp.eq.s32.totalorder %s14, 0
    %p144 = por %p142, %p143
    %p145 = scmp.ne.s32.totalorder %s134, %s137
    %p146 = scmp.eq.s32.totalorder %s19, 1
    %p147 = por %p145, %p146
    %p148 = scmp.ne.s32.totalorder %s137, %s138
    %p149 = scmp.eq.s32.totalorder %s19, 0
    %p150 = por %p148, %p149
    %p151 = scmp.ne.s32.totalorder %s137, %s138
    %p152 = scmp.eq.s32.totalorder %s20, 1
    %p153 = por %p151, %p152
    %p155 = scmp.ne.s32.totalorder %s138, %s154
    %p156 = scmp.eq.s32.totalorder %s20, 0
    %p157 = por %p155, %p156
    %s158 = ssub.s32 %s14, %s21
    %p159 = scmp.eq.s32.totalorder %s158, 0
    %s161 = sadd.s32 %s160, 1
    %s162 = scalar_select %p159, %s160, %s161
    %p165 = pneg %p159
    %p166 = scmp.eq.s32.totalorder %s14, 1
    %p167 = por %p165, %p166
    %p168 = scmp.ne.s32.totalorder %s160, %s163
    %p169 = scmp.eq.s32.totalorder %s14, 0
    %p170 = por %p168, %p169
    %p171 = scmp.ne.s32.totalorder %s160, %s163
    %p172 = scmp.eq.s32.totalorder %s19, 1
    %p173 = por %p171, %p172
    %p174 = scmp.ne.s32.totalorder %s163, %s164
    %p175 = scmp.eq.s32.totalorder %s19, 0
    %p176 = por %p174, %p175
    %p177 = scmp.ne.s32.totalorder %s163, %s164
    %p178 = scmp.eq.s32.totalorder %s20, 1
    %p179 = por %p177, %p178
    %p181 = scmp.ne.s32.totalorder %s164, %s180
    %p182 = scmp.eq.s32.totalorder %s20, 0
    %p183 = por %p181, %p182
    %s184 = ssub.s32 %s14, %s21
    %p185 = scmp.eq.s32.totalorder %s184, 0
    %s187 = sadd.s32 %s186, 1
    %s188 = scalar_select %p185, %s186, %s187
    %p191 = pneg %p185
    %p192 = scmp.eq.s32.totalorder %s14, 1
    %p193 = por %p191, %p192
    %p194 = scmp.ne.s32.totalorder %s186, %s189
    %p195 = scmp.eq.s32.totalorder %s14, 0
    %p196 = por %p194, %p195
    %p197 = scmp.ne.s32.totalorder %s186, %s189
    %p198 = scmp.eq.s32.totalorder %s19, 1
    %p199 = por %p197, %p198
    %p200 = scmp.ne.s32.totalorder %s189, %s190
    %p201 = scmp.eq.s32.totalorder %s19, 0
    %p202 = por %p200, %p201
    %p203 = scmp.ne.s32.totalorder %s189, %s190
    %p204 = scmp.eq.s32.totalorder %s20, 1
    %p205 = por %p203, %p204
    %p207 = scmp.ne.s32.totalorder %s190, %s206
    %p208 = scmp.eq.s32.totalorder %s20, 0
    %p209 = por %p207, %p208
    %p210 = scmp.le.s32.totalorder 1, %s14
    %p211 = scmp.lt.s32.totalorder %s14, 3
    %p212 = pnand %p210, %p211
    %p213 = pneg %p212
    // Predicated region
    $region9: #{bottleneck_forward.5} parent=5 // pred_check
      _
    $region10: #{bottleneck_forward.5} parent=5 // pred_check_branch
      %215 = sbr.rel (%p212) target = $region12
    $region11: #{bottleneck_forward.5} parent=5 // pred_region
      %s216 = ssub.s32 %s14, 1
      // Predicated region
      $region13: #{bottleneck_forward.5} parent=11 // pred_check
        %p217 = pneg %p61
      $region14: #{bottleneck_forward.5} parent=11 // pred_check_branch
        %219 = sbr.rel (%p217) target = $region16
      $region15: #{bottleneck_forward.5} parent=11 // pred_region
        _
      $region16: #{bottleneck_forward.5} parent=11 // pred_fallthru
        _
      // Predicated region
      $region17: #{bottleneck_forward.5} parent=11 // pred_check
        %p220 = pneg %p82
      $region18: #{bottleneck_forward.5} parent=11 // pred_check_branch
        %222 = sbr.rel (%p220) target = $region20
      $region19: #{bottleneck_forward.5} parent=11 // pred_region
        _
      $region20: #{bottleneck_forward.5} parent=11 // pred_fallthru
        _
      // Predicated region
      $region21: #{bottleneck_forward.5} parent=11 // pred_check
        %p223 = pneg %p103
      $region22: #{bottleneck_forward.5} parent=11 // pred_check_branch
        %225 = sbr.rel (%p223) target = $region24
      $region23: #{bottleneck_forward.5} parent=11 // pred_region
        _
      $region24: #{bottleneck_forward.5} parent=11 // pred_fallthru
        _
      // Predicated region
      $region25: #{bottleneck_forward.5} parent=11 // pred_check
        %p226 = pneg %p124
      $region26: #{bottleneck_forward.5} parent=11 // pred_check_branch
        %228 = sbr.rel (%p226) target = $region28
      $region27: #{bottleneck_forward.5} parent=11 // pred_region
        _
      $region28: #{bottleneck_forward.5} parent=11 // pred_fallthru
        _
    $region12: #{bottleneck_forward.5} parent=5 // pred_fallthru
      _
    %p229 = scmp.lt.s32.totalorder %s14, 2
    // Predicated region
    $region29: #{bottleneck_forward.5} parent=5 // pred_check
      %p230 = pneg %p229
    $region30: #{bottleneck_forward.5} parent=5 // pred_check_branch
      %232 = sbr.rel (%p230) target = $region32
    $region31: #{bottleneck_forward.5} parent=5 // pred_region
      // Predicated region
      $region33: #{bottleneck_forward.5} parent=31 // pred_check
        %p233 = pneg %p34
      $region34: #{bottleneck_forward.5} parent=31 // pred_check_branch
        %235 = sbr.rel (%p233) target = $region36
      $region35: #{bottleneck_forward.5} parent=31 // pred_region
        %p236 = scmp.lt.s32.totalorder %s14, 1
        %s237 = scalar_select %p236, %s14, 1
        %s238 = smul.addr %s237, 36
        %s239 = smul.addr %s238, 4
        %s240 = scalar_lea.vmem %s0, %s239
      $region36: #{bottleneck_forward.5} parent=31 // pred_fallthru
        _
    $region32: #{bottleneck_forward.5} parent=5 // pred_fallthru
      _
    %p241 = scmp.le.s32.totalorder 1, %s14
    %p242 = scmp.lt.s32.totalorder %s14, 3
    %p243 = pnand %p241, %p242
    %p244 = pneg %p243
    // Predicated region
    $region37: #{bottleneck_forward.5} parent=5 // pred_check
      _
    $region38: #{bottleneck_forward.5} parent=5 // pred_check_branch
      %246 = sbr.rel (%p243) target = $region40
    $region39: #{bottleneck_forward.5} parent=5 // pred_region
      %s247 = ssub.s32 %s14, 1
      %p248 = scmp.lt.s32.totalorder %s19, 1
      %s249 = scalar_select %p248, %s19, 1
      %s250 = smul.addr %s249, 36
      %s251 = smul.addr %s250, 4
      %s252 = scalar_lea.vmem %s0, %s251
      %p253 = pneg %p40
      %p254 = pneg %p37
      %p255 = pneg %p61
      %p256 = pneg %p58
      %p257 = pneg %p82
      %p258 = pneg %p79
      %p259 = pneg %p103
      %p260 = pneg %p100
      %p261 = pneg %p124
      %p262 = pneg %p121
      %p263 = pneg %p150
      %p264 = pneg %p147
      %p265 = scmp.lt.s32.totalorder %s19, 1
      %s266 = scalar_select %p265, %s19, 1
      %s267 = smul.addr %s266, 36
      %s268 = smul.addr %s267, 4
      %s269 = scalar_lea.vmem %s5, %s268
      %p270 = pneg %p176
      %p271 = pneg %p173
      %p272 = scmp.lt.s32.totalorder %s19, 1
      %s273 = scalar_select %p272, %s19, 1
      %s274 = smul.addr %s273, 8
      %s275 = scalar_lea.vmem %s6, %s274
      %p276 = pneg %p202
      %p277 = pneg %p199
      %p278 = scmp.lt.s32.totalorder %s19, 1
      %s279 = scalar_select %p278, %s19, 1
      %s280 = smul.addr %s279, 8
      %s281 = scalar_lea.vmem %s7, %s280
      %p282 = scmp.lt.s32.totalorder %s19, 1
      %s283 = scalar_select %p282, %s19, 1
      %s284 = smul.addr %s283, 36
      %s285 = smul.addr %s284, 4
      %s286 = scalar_lea.vmem %s0, %s285
      %p287 = scmp.lt.s32.totalorder %s19, 1
      %s288 = scalar_select %p287, %s19, 1
      %s289 = smul.addr %s288, 36
      %s290 = smul.addr %s289, 4
      %s291 = scalar_lea.vmem %s5, %s290
      %p292 = scmp.lt.s32.totalorder %s19, 1
      %s293 = scalar_select %p292, %s19, 1
      %s294 = smul.addr %s293, 8
      %s295 = scalar_lea.vmem %s6, %s294
      %p296 = scmp.lt.s32.totalorder %s19, 1
      %s297 = scalar_select %p296, %s19, 1
      %s298 = smul.addr %s297, 8
      %s299 = scalar_lea.vmem %s7, %s298
      %301 = vst [vmem:[#allocation2] sm:$0xff] 0.0
      %302 = vst [vmem:[#allocation2 + $0x8] sm:$0xff] 0.0
      %303 = vst [vmem:[#allocation2 + $0x10] sm:$0x7] 0.0
      %304 = vst [vmem:[#allocation2 + $0x133] sm:$0xff] 0.0
      %305 = vst [vmem:[#allocation2 + $0x13b] sm:$0xff] 0.0
      %306 = vst [vmem:[#allocation2 + $0x143] sm:$0x1f] 0.0
      %v307 = vld [vmem:[%s286] sm:$0xf]
      %v308 = vld [vmem:[%s286 + $0x4] sm:$0xf]
      %v309 = vld [vmem:[%s286 + $0x8] sm:$0xf]
      %v310 = vld [vmem:[%s286 + $0xc] sm:$0xf]
      %v311 = vld [vmem:[%s286 + $0x10] sm:$0xf]
      %v312 = vld [vmem:[%s286 + $0x14] sm:$0xf]
      %v313 = vld [vmem:[%s286 + $0x18] sm:$0xf]
      %v314 = vld [vmem:[%s286 + $0x1c] sm:$0xf]
      %v315 = vld [vmem:[%s286 + $0x20] sm:$0xf]
      %v316 = vld [vmem:[%s286 + $0x24] sm:$0xf]
      %v317 = vld [vmem:[%s286 + $0x28] sm:$0xf]
      %v318 = vld [vmem:[%s286 + $0x2c] sm:$0xf]
      %v319 = vld [vmem:[%s286 + $0x30] sm:$0xf]
      %v320 = vld [vmem:[%s286 + $0x34] sm:$0xf]
      %v321 = vld [vmem:[%s286 + $0x38] sm:$0xf]
      %v322 = vld [vmem:[%s286 + $0x3c] sm:$0xf]
      %v323 = vld [vmem:[%s286 + $0x40] sm:$0xf]
      %v324 = vld [vmem:[%s286 + $0x44] sm:$0xf]
      %v325 = vld [vmem:[%s286 + $0x48] sm:$0xf]
      %v326 = vld [vmem:[%s286 + $0x4c] sm:$0xf]
      %v327 = vld [vmem:[%s286 + $0x50] sm:$0xf]
      %v328 = vld [vmem:[%s286 + $0x54] sm:$0xf]
      %v329 = vld [vmem:[%s286 + $0x58] sm:$0xf]
      %v330 = vld [vmem:[%s286 + $0x5c] sm:$0xf]
      %v331 = vld [vmem:[%s286 + $0x60] sm:$0xf]
      %v332 = vld [vmem:[%s286 + $0x64] sm:$0xf]
      %v333 = vld [vmem:[%s286 + $0x68] sm:$0xf]
      %v334 = vld [vmem:[%s286 + $0x6c] sm:$0xf]
      %v335 = vld [vmem:[%s286 + $0x70] sm:$0xf]
      %v336 = vld [vmem:[%s286 + $0x74] sm:$0xf]
      %v337 = vld [vmem:[%s286 + $0x78] sm:$0xf]
      %v338 = vld [vmem:[%s286 + $0x7c] sm:$0xf]
      %v339 = vld [vmem:[%s286 + $0x80] sm:$0xf]
      %v340 = vld [vmem:[%s286 + $0x84] sm:$0xf]
      %v341 = vld [vmem:[%s286 + $0x88] sm:$0xf]
      %v342 = vld [vmem:[%s286 + $0x8c] sm:$0xf]
      %v343 = vunpack.c.l.bf16 %v307
      %v344 = vunpack.c.l.bf16 %v308
      %v345 = vunpack.c.l.bf16 %v309
      %v346 = vunpack.c.l.bf16 %v310
      %v347 = vunpack.c.l.bf16 %v311
      %v348 = vunpack.c.l.bf16 %v312
      %v349 = vunpack.c.l.bf16 %v313
      %v350 = vunpack.c.l.bf16 %v314
      %v351 = vunpack.c.l.bf16 %v315
      %v352 = vunpack.c.l.bf16 %v316
      %v353 = vunpack.c.l.bf16 %v317
      %v354 = vunpack.c.l.bf16 %v318
      %v355 = vunpack.c.l.bf16 %v319
      %v356 = vunpack.c.l.bf16 %v320
      %v357 = vunpack.c.l.bf16 %v321
      %v358 = vunpack.c.l.bf16 %v322
      %v359 = vunpack.c.l.bf16 %v323
      %v360 = vunpack.c.l.bf16 %v324
      %v361 = vunpack.c.l.bf16 %v325
      %v362 = vunpack.c.l.bf16 %v326
      %v363 = vunpack.c.l.bf16 %v327
      %v364 = vunpack.c.l.bf16 %v328
      %v365 = vunpack.c.l.bf16 %v329
      %v366 = vunpack.c.l.bf16 %v330
      %v367 = vunpack.c.l.bf16 %v331
      %v368 = vunpack.c.l.bf16 %v332
      %v369 = vunpack.c.l.bf16 %v333
      %v370 = vunpack.c.l.bf16 %v334
      %v371 = vunpack.c.l.bf16 %v335
      %v372 = vunpack.c.l.bf16 %v336
      %v373 = vunpack.c.l.bf16 %v337
      %v374 = vunpack.c.l.bf16 %v338
      %v375 = vunpack.c.l.bf16 %v339
      %v376 = vunpack.c.l.bf16 %v340
      %v377 = vunpack.c.l.bf16 %v341
      %v378 = vunpack.c.l.bf16 %v342
      %v379 = vld [vmem:[%s1] sm:$0x1]
      %v381 = vlaneseq
      %v382 = vshrl.u32 %v381, 7
      %v383 = vsub.s32 0, %v382
      %v384 = vrot.slane %v379, %v383
      %v386 = vmul.f32 %v343, %v384
      %v387 = vmul.f32 %v344, %v384
      %v388 = vmul.f32 %v345, %v384
      %v389 = vmul.f32 %v346, %v384
      %v390 = vmul.f32 %v347, %v384
      %v391 = vmul.f32 %v348, %v384
      %v392 = vmul.f32 %v349, %v384
      %v393 = vmul.f32 %v350, %v384
      %v394 = vmul.f32 %v351, %v384
      %v395 = vmul.f32 %v352, %v384
      %v396 = vmul.f32 %v353, %v384
      %v397 = vmul.f32 %v354, %v384
      %v398 = vmul.f32 %v355, %v384
      %v399 = vmul.f32 %v356, %v384
      %v400 = vmul.f32 %v357, %v384
      %v401 = vmul.f32 %v358, %v384
      %v402 = vmul.f32 %v359, %v384
      %v403 = vmul.f32 %v360, %v384
      %v404 = vmul.f32 %v361, %v384
      %v405 = vmul.f32 %v362, %v384
      %v406 = vmul.f32 %v363, %v384
      %v407 = vmul.f32 %v364, %v384
      %v408 = vmul.f32 %v365, %v384
      %v409 = vmul.f32 %v366, %v384
      %v410 = vmul.f32 %v367, %v384
      %v411 = vmul.f32 %v368, %v384
      %v412 = vmul.f32 %v369, %v384
      %v413 = vmul.f32 %v370, %v384
      %v414 = vmul.f32 %v371, %v384
      %v415 = vmul.f32 %v372, %v384
      %v416 = vmul.f32 %v373, %v384
      %v417 = vmul.f32 %v374, %v384
      %v418 = vmul.f32 %v375, %v384
      %v419 = vmul.f32 %v376, %v384
      %v420 = vmul.f32 %v377, %v384
      %v421 = vmul.f32 %v378, %v384
      %v422 = vld [vmem:[%s2] sm:$0x1]
      %v424 = vlaneseq
      %v425 = vshrl.u32 %v424, 7
      %v426 = vsub.s32 0, %v425
      %v427 = vrot.slane %v422, %v426
      %v429 = vadd.f32 %v386, %v427
      %v430 = vadd.f32 %v387, %v427
      %v431 = vadd.f32 %v388, %v427
      %v432 = vadd.f32 %v389, %v427
      %v433 = vadd.f32 %v390, %v427
      %v434 = vadd.f32 %v391, %v427
      %v435 = vadd.f32 %v392, %v427
      %v436 = vadd.f32 %v393, %v427
      %v437 = vadd.f32 %v394, %v427
      %v438 = vadd.f32 %v395, %v427
      %v439 = vadd.f32 %v396, %v427
      %v440 = vadd.f32 %v397, %v427
      %v441 = vadd.f32 %v398, %v427
      %v442 = vadd.f32 %v399, %v427
      %v443 = vadd.f32 %v400, %v427
      %v444 = vadd.f32 %v401, %v427
      %v445 = vadd.f32 %v402, %v427
      %v446 = vadd.f32 %v403, %v427
      %v447 = vadd.f32 %v404, %v427
      %v448 = vadd.f32 %v405, %v427
      %v449 = vadd.f32 %v406, %v427
      %v450 = vadd.f32 %v407, %v427
      %v451 = vadd.f32 %v408, %v427
      %v452 = vadd.f32 %v409, %v427
      %v453 = vadd.f32 %v410, %v427
      %v454 = vadd.f32 %v411, %v427
      %v455 = vadd.f32 %v412, %v427
      %v456 = vadd.f32 %v413, %v427
      %v457 = vadd.f32 %v414, %v427
      %v458 = vadd.f32 %v415, %v427
      %v459 = vadd.f32 %v416, %v427
      %v460 = vadd.f32 %v417, %v427
      %v461 = vadd.f32 %v418, %v427
      %v462 = vadd.f32 %v419, %v427
      %v463 = vadd.f32 %v420, %v427
      %v464 = vadd.f32 %v421, %v427
      %v465 = vmax.f32 %v429, 0.0
      %v466 = vmax.f32 %v430, 0.0
      %v467 = vmax.f32 %v431, 0.0
      %v468 = vmax.f32 %v432, 0.0
      %v469 = vmax.f32 %v433, 0.0
      %v470 = vmax.f32 %v434, 0.0
      %v471 = vmax.f32 %v435, 0.0
      %v472 = vmax.f32 %v436, 0.0
      %v473 = vmax.f32 %v437, 0.0
      %v474 = vmax.f32 %v438, 0.0
      %v475 = vmax.f32 %v439, 0.0
      %v476 = vmax.f32 %v440, 0.0
      %v477 = vmax.f32 %v441, 0.0
      %v478 = vmax.f32 %v442, 0.0
      %v479 = vmax.f32 %v443, 0.0
      %v480 = vmax.f32 %v444, 0.0
      %v481 = vmax.f32 %v445, 0.0
      %v482 = vmax.f32 %v446, 0.0
      %v483 = vmax.f32 %v447, 0.0
      %v484 = vmax.f32 %v448, 0.0
      %v485 = vmax.f32 %v449, 0.0
      %v486 = vmax.f32 %v450, 0.0
      %v487 = vmax.f32 %v451, 0.0
      %v488 = vmax.f32 %v452, 0.0
      %v489 = vmax.f32 %v453, 0.0
      %v490 = vmax.f32 %v454, 0.0
      %v491 = vmax.f32 %v455, 0.0
      %v492 = vmax.f32 %v456, 0.0
      %v493 = vmax.f32 %v457, 0.0
      %v494 = vmax.f32 %v458, 0.0
      %v495 = vmax.f32 %v459, 0.0
      %v496 = vmax.f32 %v460, 0.0
      %v497 = vmax.f32 %v461, 0.0
      %v498 = vmax.f32 %v462, 0.0
      %v499 = vmax.f32 %v463, 0.0
      %v500 = vmax.f32 %v464, 0.0
      %v501 = vld [vmem:[%s4] sm:$0xff]
      %v502 = vld [vmem:[%s4 + $0x8] sm:$0xff]
      %v503 = vld [vmem:[%s4 + $0x10] sm:$0xff]
      %v504 = vld [vmem:[%s4 + $0x18] sm:$0xff]
      %v505 = vld [vmem:[%s4 + $0x20] sm:$0xff]
      %v506 = vld [vmem:[%s4 + $0x28] sm:$0xff]
      %v507 = vld [vmem:[%s4 + $0x30] sm:$0xff]
      %v508 = vld [vmem:[%s4 + $0x38] sm:$0xff]
      %v509 = vld [vmem:[%s4 + $0x40] sm:$0xff]
      %v510 = vld [vmem:[%s4 + $0x48] sm:$0xff]
      %v511 = vld [vmem:[%s4 + $0x50] sm:$0xff]
      %v512 = vld [vmem:[%s4 + $0x58] sm:$0xff]
      %v513 = vld [vmem:[%s4 + $0x60] sm:$0xff]
      %v514 = vld [vmem:[%s4 + $0x68] sm:$0xff]
      %v515 = vld [vmem:[%s4 + $0x70] sm:$0xff]
      %v516 = vld [vmem:[%s4 + $0x78] sm:$0xff]
      %v517 = vld [vmem:[%s4 + $0x80] sm:$0xff]
      %v518 = vld [vmem:[%s4 + $0x88] sm:$0xff]
      %v519 = vld [vmem:[%s4 + $0x90] sm:$0xff]
      %v520 = vld [vmem:[%s4 + $0x98] sm:$0xff]
      %v521 = vld [vmem:[%s4 + $0xa0] sm:$0xff]
      %v522 = vld [vmem:[%s4 + $0xa8] sm:$0xff]
      %v523 = vld [vmem:[%s4 + $0xb0] sm:$0xff]
      %v524 = vld [vmem:[%s4 + $0xb8] sm:$0xff]
      %v525 = vld [vmem:[%s4 + $0xc0] sm:$0xff]
      %v526 = vld [vmem:[%s4 + $0xc8] sm:$0xff]
      %v527 = vld [vmem:[%s4 + $0xd0] sm:$0xff]
      %v528 = vld [vmem:[%s4 + $0xd8] sm:$0xff]
      %v529 = vld [vmem:[%s4 + $0xe0] sm:$0xff]
      %v530 = vld [vmem:[%s4 + $0xe8] sm:$0xff]
      %v531 = vld [vmem:[%s4 + $0xf0] sm:$0xff]
      %v532 = vld [vmem:[%s4 + $0xf8] sm:$0xff]
      %v533 = vld [vmem:[%s4 + $0x100] sm:$0xff]
      %v534 = vld [vmem:[%s4 + $0x108] sm:$0xff]
      %v535 = vld [vmem:[%s4 + $0x110] sm:$0xff]
      %v536 = vld [vmem:[%s4 + $0x118] sm:$0xff]
      %538 = vset.pattern.permute.xlu0 0
      %539 = vperm.xlu0 %538, %v501
      %v540 = vpop.permute.xlu0 %539
      %543 = vset.pattern.permute.xlu0 0
      %544 = vperm.xlu0 %543, %v502
      %v545 = vpop.permute.xlu0 %544
      %548 = vset.pattern.permute.xlu0 0
      %549 = vperm.xlu0 %548, %v503
      %v550 = vpop.permute.xlu0 %549
      %553 = vset.pattern.permute.xlu0 0
      %554 = vperm.xlu0 %553, %v504
      %v555 = vpop.permute.xlu0 %554
      %558 = vset.pattern.permute.xlu0 0
      %559 = vperm.xlu0 %558, %v505
      %v560 = vpop.permute.xlu0 %559
      %563 = vset.pattern.permute.xlu0 0
      %564 = vperm.xlu0 %563, %v506
      %v565 = vpop.permute.xlu0 %564
      %568 = vset.pattern.permute.xlu0 0
      %569 = vperm.xlu0 %568, %v507
      %v570 = vpop.permute.xlu0 %569
      %573 = vset.pattern.permute.xlu0 0
      %574 = vperm.xlu0 %573, %v508
      %v575 = vpop.permute.xlu0 %574
      %578 = vset.pattern.permute.xlu0 0
      %579 = vperm.xlu0 %578, %v509
      %v580 = vpop.permute.xlu0 %579
      %583 = vset.pattern.permute.xlu0 0
      %584 = vperm.xlu0 %583, %v510
      %v585 = vpop.permute.xlu0 %584
      %588 = vset.pattern.permute.xlu0 0
      %589 = vperm.xlu0 %588, %v511
      %v590 = vpop.permute.xlu0 %589
      %593 = vset.pattern.permute.xlu0 0
      %594 = vperm.xlu0 %593, %v512
      %v595 = vpop.permute.xlu0 %594
      %598 = vset.pattern.permute.xlu0 0
      %599 = vperm.xlu0 %598, %v513
      %v600 = vpop.permute.xlu0 %599
      %603 = vset.pattern.permute.xlu0 0
      %604 = vperm.xlu0 %603, %v514
      %v605 = vpop.permute.xlu0 %604
      %608 = vset.pattern.permute.xlu0 0
      %609 = vperm.xlu0 %608, %v515
      %v610 = vpop.permute.xlu0 %609
      %613 = vset.pattern.permute.xlu0 0
      %614 = vperm.xlu0 %613, %v516
      %v615 = vpop.permute.xlu0 %614
      %618 = vset.pattern.permute.xlu0 0
      %619 = vperm.xlu0 %618, %v517
      %v620 = vpop.permute.xlu0 %619
      %623 = vset.pattern.permute.xlu0 0
      %624 = vperm.xlu0 %623, %v518
      %v625 = vpop.permute.xlu0 %624
      %628 = vset.pattern.permute.xlu0 0
      %629 = vperm.xlu0 %628, %v519
      %v630 = vpop.permute.xlu0 %629
      %633 = vset.pattern.permute.xlu0 0
      %634 = vperm.xlu0 %633, %v520
      %v635 = vpop.permute.xlu0 %634
      %638 = vset.pattern.permute.xlu0 0
      %639 = vperm.xlu0 %638, %v521
      %v640 = vpop.permute.xlu0 %639
      %643 = vset.pattern.permute.xlu0 0
      %644 = vperm.xlu0 %643, %v522
      %v645 = vpop.permute.xlu0 %644
      %648 = vset.pattern.permute.xlu0 0
      %649 = vperm.xlu0 %648, %v523
      %v650 = vpop.permute.xlu0 %649
      %653 = vset.pattern.permute.xlu0 0
      %654 = vperm.xlu0 %653, %v524
      %v655 = vpop.permute.xlu0 %654
      %658 = vset.pattern.permute.xlu0 0
      %659 = vperm.xlu0 %658, %v525
      %v660 = vpop.permute.xlu0 %659
      %663 = vset.pattern.permute.xlu0 0
      %664 = vperm.xlu0 %663, %v526
      %v665 = vpop.permute.xlu0 %664
      %668 = vset.pattern.permute.xlu0 0
      %669 = vperm.xlu0 %668, %v527
      %v670 = vpop.permute.xlu0 %669
      %673 = vset.pattern.permute.xlu0 0
      %674 = vperm.xlu0 %673, %v528
      %v675 = vpop.permute.xlu0 %674
      %678 = vset.pattern.permute.xlu0 0
      %679 = vperm.xlu0 %678, %v529
      %v680 = vpop.permute.xlu0 %679
      %683 = vset.pattern.permute.xlu0 0
      %684 = vperm.xlu0 %683, %v530
      %v685 = vpop.permute.xlu0 %684
      %688 = vset.pattern.permute.xlu0 0
      %689 = vperm.xlu0 %688, %v531
      %v690 = vpop.permute.xlu0 %689
      %693 = vset.pattern.permute.xlu0 0
      %694 = vperm.xlu0 %693, %v532
      %v695 = vpop.permute.xlu0 %694
      %698 = vset.pattern.permute.xlu0 0
      %699 = vperm.xlu0 %698, %v533
      %v700 = vpop.permute.xlu0 %699
      %703 = vset.pattern.permute.xlu0 0
      %704 = vperm.xlu0 %703, %v534
      %v705 = vpop.permute.xlu0 %704
      %708 = vset.pattern.permute.xlu0 0
      %709 = vperm.xlu0 %708, %v535
      %v710 = vpop.permute.xlu0 %709
      %713 = vset.pattern.permute.xlu0 0
      %714 = vperm.xlu0 %713, %v536
      %v715 = vpop.permute.xlu0 %714
      %v717 = vmul.f32 %v465, %v540
      %v718 = vmul.f32 %v466, %v545
      %v719 = vmul.f32 %v467, %v550
      %v720 = vmul.f32 %v468, %v555
      %v721 = vmul.f32 %v469, %v560
      %v722 = vmul.f32 %v470, %v565
      %v723 = vmul.f32 %v471, %v570
      %v724 = vmul.f32 %v472, %v575
      %v725 = vmul.f32 %v473, %v580
      %v726 = vmul.f32 %v474, %v585
      %v727 = vmul.f32 %v475, %v590
      %v728 = vmul.f32 %v476, %v595
      %v729 = vmul.f32 %v477, %v600
      %v730 = vmul.f32 %v478, %v605
      %v731 = vmul.f32 %v479, %v610
      %v732 = vmul.f32 %v480, %v615
      %v733 = vmul.f32 %v481, %v620
      %v734 = vmul.f32 %v482, %v625
      %v735 = vmul.f32 %v483, %v630
      %v736 = vmul.f32 %v484, %v635
      %v737 = vmul.f32 %v485, %v640
      %v738 = vmul.f32 %v486, %v645
      %v739 = vmul.f32 %v487, %v650
      %v740 = vmul.f32 %v488, %v655
      %v741 = vmul.f32 %v489, %v660
      %v742 = vmul.f32 %v490, %v665
      %v743 = vmul.f32 %v491, %v670
      %v744 = vmul.f32 %v492, %v675
      %v745 = vmul.f32 %v493, %v680
      %v746 = vmul.f32 %v494, %v685
      %v747 = vmul.f32 %v495, %v690
      %v748 = vmul.f32 %v496, %v695
      %v749 = vmul.f32 %v497, %v700
      %v750 = vmul.f32 %v498, %v705
      %v751 = vmul.f32 %v499, %v710
      %v752 = vmul.f32 %v500, %v715
      %753 = vst [vmem:[#allocation2 + $0x13] sm:$0xff] %v717
      %754 = vst [vmem:[#allocation2 + $0x1b] sm:$0xff] %v718
      %755 = vst [vmem:[#allocation2 + $0x23] sm:$0xff] %v719
      %756 = vst [vmem:[#allocation2 + $0x2b] sm:$0xff] %v720
      %757 = vst [vmem:[#allocation2 + $0x33] sm:$0xff] %v721
      %758 = vst [vmem:[#allocation2 + $0x3b] sm:$0xff] %v722
      %759 = vst [vmem:[#allocation2 + $0x43] sm:$0xff] %v723
      %760 = vst [vmem:[#allocation2 + $0x4b] sm:$0xff] %v724
      %761 = vst [vmem:[#allocation2 + $0x53] sm:$0xff] %v725
      %762 = vst [vmem:[#allocation2 + $0x5b] sm:$0xff] %v726
      %763 = vst [vmem:[#allocation2 + $0x63] sm:$0xff] %v727
      %764 = vst [vmem:[#allocation2 + $0x6b] sm:$0xff] %v728
      %765 = vst [vmem:[#allocation2 + $0x73] sm:$0xff] %v729
      %766 = vst [vmem:[#allocation2 + $0x7b] sm:$0xff] %v730
      %767 = vst [vmem:[#allocation2 + $0x83] sm:$0xff] %v731
      %768 = vst [vmem:[#allocation2 + $0x8b] sm:$0xff] %v732
      %769 = vst [vmem:[#allocation2 + $0x93] sm:$0xff] %v733
      %770 = vst [vmem:[#allocation2 + $0x9b] sm:$0xff] %v734
      %771 = vst [vmem:[#allocation2 + $0xa3] sm:$0xff] %v735
      %772 = vst [vmem:[#allocation2 + $0xab] sm:$0xff] %v736
      %773 = vst [vmem:[#allocation2 + $0xb3] sm:$0xff] %v737
      %774 = vst [vmem:[#allocation2 + $0xbb] sm:$0xff] %v738
      %775 = vst [vmem:[#allocation2 + $0xc3] sm:$0xff] %v739
      %776 = vst [vmem:[#allocation2 + $0xcb] sm:$0xff] %v740
      %777 = vst [vmem:[#allocation2 + $0xd3] sm:$0xff] %v741
      %778 = vst [vmem:[#allocation2 + $0xdb] sm:$0xff] %v742
      %779 = vst [vmem:[#allocation2 + $0xe3] sm:$0xff] %v743
      %780 = vst [vmem:[#allocation2 + $0xeb] sm:$0xff] %v744
      %781 = vst [vmem:[#allocation2 + $0xf3] sm:$0xff] %v745
      %782 = vst [vmem:[#allocation2 + $0xfb] sm:$0xff] %v746
      %783 = vst [vmem:[#allocation2 + $0x103] sm:$0xff] %v747
      %784 = vst [vmem:[#allocation2 + $0x10b] sm:$0xff] %v748
      %785 = vst [vmem:[#allocation2 + $0x113] sm:$0xff] %v749
      %786 = vst [vmem:[#allocation2 + $0x11b] sm:$0xff] %v750
      %787 = vst [vmem:[#allocation2 + $0x123] sm:$0xff] %v751
      %788 = vst [vmem:[#allocation2 + $0x12b] sm:$0xff] %v752
      %v789 = vld [vmem:[#allocation2] sm:$0xff]
      %v790 = vld [vmem:[#allocation2 + $0x8] sm:$0xff]
      %v791 = vld [vmem:[#allocation2 + $0x10] sm:$0xff]
      %v792 = vld [vmem:[#allocation2 + $0x18] sm:$0xff]
      %v793 = vld [vmem:[#allocation2 + $0x20] sm:$0xff]
      %v794 = vld [vmem:[#allocation2 + $0x28] sm:$0xff]
      %v795 = vld [vmem:[#allocation2 + $0x30] sm:$0xff]
      %v796 = vld [vmem:[#allocation2 + $0x38] sm:$0xff]
      %v797 = vld [vmem:[#allocation2 + $0x40] sm:$0xff]
      %v798 = vld [vmem:[#allocation2 + $0x48] sm:$0xff]
      %v799 = vld [vmem:[#allocation2 + $0x50] sm:$0xff]
      %v800 = vld [vmem:[#allocation2 + $0x58] sm:$0xff]
      %v801 = vld [vmem:[#allocation2 + $0x60] sm:$0xff]
      %v802 = vld [vmem:[#allocation2 + $0x68] sm:$0xff]
      %v803 = vld [vmem:[#allocation2 + $0x70] sm:$0xff]
      %v804 = vld [vmem:[#allocation2 + $0x78] sm:$0xff]
      %v805 = vld [vmem:[#allocation2 + $0x80] sm:$0xff]
      %v806 = vld [vmem:[#allocation2 + $0x88] sm:$0xff]
      %v807 = vld [vmem:[#allocation2 + $0x90] sm:$0xff]
      %v808 = vld [vmem:[#allocation2 + $0x98] sm:$0xff]
      %v809 = vld [vmem:[#allocation2 + $0xa0] sm:$0xff]
      %v810 = vld [vmem:[#allocation2 + $0xa8] sm:$0xff]
      %v811 = vld [vmem:[#allocation2 + $0xb0] sm:$0xff]
      %v812 = vld [vmem:[#allocation2 + $0xb8] sm:$0xff]
      %v813 = vld [vmem:[#allocation2 + $0xc0] sm:$0xff]
      %v814 = vld [vmem:[#allocation2 + $0xc8] sm:$0xff]
      %v815 = vld [vmem:[#allocation2 + $0xd0] sm:$0xff]
      %v816 = vld [vmem:[#allocation2 + $0xd8] sm:$0xff]
      %v817 = vld [vmem:[#allocation2 + $0xe0] sm:$0xff]
      %v818 = vld [vmem:[#allocation2 + $0xe8] sm:$0xff]
      %v819 = vld [vmem:[#allocation2 + $0xf0] sm:$0xff]
      %v820 = vld [vmem:[#allocation2 + $0xf8] sm:$0xff]
      %v821 = vld [vmem:[#allocation2 + $0x100] sm:$0xff]
      %v822 = vld [vmem:[#allocation2 + $0x108] sm:$0xff]
      %v823 = vld [vmem:[#allocation2 + $0x110] sm:$0xff]
      %v824 = vld [vmem:[#allocation2 + $0x118] sm:$0xff]
      %v825 = vpack.c.bf16 %v790, %v789
      %v826 = vpack.c.bf16 %v792, %v791
      %v827 = vpack.c.bf16 %v794, %v793
      %v828 = vpack.c.bf16 %v796, %v795
      %v829 = vpack.c.bf16 %v798, %v797
      %v830 = vpack.c.bf16 %v800, %v799
      %v831 = vpack.c.bf16 %v802, %v801
      %v832 = vpack.c.bf16 %v804, %v803
      %v833 = vpack.c.bf16 %v806, %v805
      %v834 = vpack.c.bf16 %v808, %v807
      %v835 = vpack.c.bf16 %v810, %v809
      %v836 = vpack.c.bf16 %v812, %v811
      %v837 = vpack.c.bf16 %v814, %v813
      %v838 = vpack.c.bf16 %v816, %v815
      %v839 = vpack.c.bf16 %v818, %v817
      %v840 = vpack.c.bf16 %v820, %v819
      %v841 = vpack.c.bf16 %v822, %v821
      %v842 = vpack.c.bf16 %v824, %v823
      %v843 = vld [vmem:[%s3] sm:$0xf]
      %v844 = vld [vmem:[%s3 + $0x4] sm:$0xf]
      %v845 = vld [vmem:[%s3 + $0x8] sm:$0xf]
      %v846 = vld [vmem:[%s3 + $0xc] sm:$0xf]
      %v847 = vld [vmem:[%s3 + $0x10] sm:$0xf]
      %v848 = vld [vmem:[%s3 + $0x14] sm:$0xf]
      %v849 = vld [vmem:[%s3 + $0x18] sm:$0xf]
      %v850 = vld [vmem:[%s3 + $0x1c] sm:$0xf]
      %v851 = vld [vmem:[%s3 + $0x20] sm:$0xf]
      %v852 = vld [vmem:[%s3 + $0x24] sm:$0xf]
      %v853 = vld [vmem:[%s3 + $0x28] sm:$0xf]
      %v854 = vld [vmem:[%s3 + $0x2c] sm:$0xf]
      %v855 = vld [vmem:[%s3 + $0x30] sm:$0xf]
      %v856 = vld [vmem:[%s3 + $0x34] sm:$0xf]
      %v857 = vld [vmem:[%s3 + $0x38] sm:$0xf]
      %v858 = vld [vmem:[%s3 + $0x3c] sm:$0xf]
      %v859 = vld [vmem:[#allocation2 + $0x1] sm:$0xff]
      %v860 = vld [vmem:[#allocation2 + $0x9] sm:$0xff]
      %v861 = vld [vmem:[#allocation2 + $0x11] sm:$0xff]
      %v862 = vld [vmem:[#allocation2 + $0x19] sm:$0xff]
      %v863 = vld [vmem:[#allocation2 + $0x21] sm:$0xff]
      %v864 = vld [vmem:[#allocation2 + $0x29] sm:$0xff]
      %v865 = vld [vmem:[#allocation2 + $0x31] sm:$0xff]
      %v866 = vld [vmem:[#allocation2 + $0x39] sm:$0xff]
      %v867 = vld [vmem:[#allocation2 + $0x41] sm:$0xff]
      %v868 = vld [vmem:[#allocation2 + $0x49] sm:$0xff]
      %v869 = vld [vmem:[#allocation2 + $0x51] sm:$0xff]
      %v870 = vld [vmem:[#allocation2 + $0x59] sm:$0xff]
      %v871 = vld [vmem:[#allocation2 + $0x61] sm:$0xff]
      %v872 = vld [vmem:[#allocation2 + $0x69] sm:$0xff]
      %v873 = vld [vmem:[#allocation2 + $0x71] sm:$0xff]
      %v874 = vld [vmem:[#allocation2 + $0x79] sm:$0xff]
      %v875 = vld [vmem:[#allocation2 + $0x81] sm:$0xff]
      %v876 = vld [vmem:[#allocation2 + $0x89] sm:$0xff]
      %v877 = vld [vmem:[#allocation2 + $0x91] sm:$0xff]
      %v878 = vld [vmem:[#allocation2 + $0x99] sm:$0xff]
      %v879 = vld [vmem:[#allocation2 + $0xa1] sm:$0xff]
      %v880 = vld [vmem:[#allocation2 + $0xa9] sm:$0xff]
      %v881 = vld [vmem:[#allocation2 + $0xb1] sm:$0xff]
      %v882 = vld [vmem:[#allocation2 + $0xb9] sm:$0xff]
      %v883 = vld [vmem:[#allocation2 + $0xc1] sm:$0xff]
      %v884 = vld [vmem:[#allocation2 + $0xc9] sm:$0xff]
      %v885 = vld [vmem:[#allocation2 + $0xd1] sm:$0xff]
      %v886 = vld [vmem:[#allocation2 + $0xd9] sm:$0xff]
      %v887 = vld [vmem:[#allocation2 + $0xe1] sm:$0xff]
      %v888 = vld [vmem:[#allocation2 + $0xe9] sm:$0xff]
      %v889 = vld [vmem:[#allocation2 + $0xf1] sm:$0xff]
      %v890 = vld [vmem:[#allocation2 + $0xf9] sm:$0xff]
      %v891 = vld [vmem:[#allocation2 + $0x101] sm:$0xff]
      %v892 = vld [vmem:[#allocation2 + $0x109] sm:$0xff]
      %v893 = vld [vmem:[#allocation2 + $0x111] sm:$0xff]
      %v894 = vld [vmem:[#allocation2 + $0x119] sm:$0xff]
      %v895 = vpack.c.bf16 %v860, %v859
      %v896 = vpack.c.bf16 %v862, %v861
      %v897 = vpack.c.bf16 %v864, %v863
      %v898 = vpack.c.bf16 %v866, %v865
      %v899 = vpack.c.bf16 %v868, %v867
      %v900 = vpack.c.bf16 %v870, %v869
      %v901 = vpack.c.bf16 %v872, %v871
      %v902 = vpack.c.bf16 %v874, %v873
      %v903 = vpack.c.bf16 %v876, %v875
      %v904 = vpack.c.bf16 %v878, %v877
      %v905 = vpack.c.bf16 %v880, %v879
      %v906 = vpack.c.bf16 %v882, %v881
      %v907 = vpack.c.bf16 %v884, %v883
      %v908 = vpack.c.bf16 %v886, %v885
      %v909 = vpack.c.bf16 %v888, %v887
      %v910 = vpack.c.bf16 %v890, %v889
      %v911 = vpack.c.bf16 %v892, %v891
      %v912 = vpack.c.bf16 %v894, %v893
      %s913 = scalar_lea.vmem %s3, 64
      %v914 = vld [vmem:[%s913] sm:$0xf]
      %v915 = vld [vmem:[%s913 + $0x4] sm:$0xf]
      %v916 = vld [vmem:[%s913 + $0x8] sm:$0xf]
      %v917 = vld [vmem:[%s913 + $0xc] sm:$0xf]
      %v918 = vld [vmem:[%s913 + $0x10] sm:$0xf]
      %v919 = vld [vmem:[%s913 + $0x14] sm:$0xf]
      %v920 = vld [vmem:[%s913 + $0x18] sm:$0xf]
      %v921 = vld [vmem:[%s913 + $0x1c] sm:$0xf]
      %v922 = vld [vmem:[%s913 + $0x20] sm:$0xf]
      %v923 = vld [vmem:[%s913 + $0x24] sm:$0xf]
      %v924 = vld [vmem:[%s913 + $0x28] sm:$0xf]
      %v925 = vld [vmem:[%s913 + $0x2c] sm:$0xf]
      %v926 = vld [vmem:[%s913 + $0x30] sm:$0xf]
      %v927 = vld [vmem:[%s913 + $0x34] sm:$0xf]
      %v928 = vld [vmem:[%s913 + $0x38] sm:$0xf]
      %v929 = vld [vmem:[%s913 + $0x3c] sm:$0xf]
      %v946 = vunpack.c.l.b16 %v914
      %v947 = vunpack.c.l.b16 %v915
      %v948 = vunpack.c.l.b16 %v916
      %v949 = vunpack.c.l.b16 %v917
      %v950 = vunpack.c.l.b16 %v918
      %v951 = vunpack.c.l.b16 %v919
      %v952 = vunpack.c.l.b16 %v920
      %v953 = vunpack.c.l.b16 %v921
      %v954 = vunpack.c.l.b16 %v922
      %v955 = vunpack.c.l.b16 %v923
      %v956 = vunpack.c.l.b16 %v924
      %v957 = vunpack.c.l.b16 %v925
      %v958 = vunpack.c.l.b16 %v926
      %v959 = vunpack.c.l.b16 %v927
      %v960 = vunpack.c.l.b16 %v928
      %v961 = vunpack.c.l.b16 %v929
      %v962 = vpack.c.b16 %v947, %v946
      %v963 = vpack.c.b16 %v949, %v948
      %v964 = vpack.c.b16 %v951, %v950
      %v965 = vpack.c.b16 %v953, %v952
      %v966 = vpack.c.b16 %v955, %v954
      %v967 = vpack.c.b16 %v957, %v956
      %v968 = vpack.c.b16 %v959, %v958
      %v969 = vpack.c.b16 %v961, %v960
      %978 = vmatprep.subr.bf16.mxu0 0
      %979 = vmatpush1.bf16.msra.mxu0 %v962
      %980 = vmatprep.subr.bf16.mxu0 0
      %981 = vmatpush1.bf16.msra.mxu0 %v963
      %982 = vmatprep.subr.bf16.mxu0 0
      %983 = vmatpush1.bf16.msra.mxu0 %v964
      %984 = vmatprep.subr.bf16.mxu0 0
      %985 = vmatpush1.bf16.msra.mxu0 %v965
      %986 = vmatprep.subr.bf16.mxu0 0
      %987 = vmatpush1.bf16.msra.mxu0 %v966
      %988 = vmatprep.subr.bf16.mxu0 0
      %989 = vmatpush1.bf16.msra.mxu0 %v967
      %990 = vmatprep.subr.bf16.mxu0 0
      %991 = vmatpush1.bf16.msra.mxu0 %v968
      %992 = vmatprep.subr.bf16.mxu0 0
      %993 = vmatpush1.bf16.msra.mxu0 %v969
      %994 = vmatprep.subr.bf16.mxu0 0
      %995 = vmatpush1.bf16.msra.mxu0 0
      %996 = vmatprep.subr.bf16.mxu0 0
      %997 = vmatpush1.bf16.msra.mxu0 0
      %998 = vmatprep.subr.bf16.mxu0 0
      %999 = vmatpush1.bf16.msra.mxu0 0
      %1000 = vmatprep.subr.bf16.mxu0 0
      %1001 = vmatpush1.bf16.msra.mxu0 0
      %1002 = vmatprep.subr.bf16.mxu0 0
      %1003 = vmatpush1.bf16.msra.mxu0 0
      %1004 = vmatprep.subr.bf16.mxu0 0
      %1005 = vmatpush1.bf16.msra.mxu0 0
      %1006 = vmatprep.subr.bf16.mxu0 0
      %1007 = vmatpush1.bf16.msra.mxu0 0
      %1008 = vmatprep.subr.bf16.mxu0 0
      %1009 = vmatpush1.bf16.msra.mxu0 0
      %1010 = vmatprep.mubr.bf16.mxu0 0
      %1011 = vmatmul.mubr.bf16.gmra.mrb[0].mxu0 %v895
      %v1012 = vpop.f32.mrb[0].mxu0
      %v1013 = vadd.f32 0.0, %v1012
      %v1014 = vpop.f32.mrb[0].mxu0
      %v1015 = vpop.f32.mrb[0].mxu0
      %v1016 = vadd.f32 0.0, %v1015
      %v1017 = vpop.f32.mrb[0].mxu0
      %1018 = vmatprep.mubr.bf16.mxu0 0
      %1019 = vmatmul.mubr.bf16.gmra.mrb[0].mxu0 %v896
      %v1020 = vpop.f32.mrb[0].mxu0
      %v1021 = vadd.f32 0.0, %v1020
      %v1022 = vpop.f32.mrb[0].mxu0
      %v1023 = vpop.f32.mrb[0].mxu0
      %v1024 = vadd.f32 0.0, %v1023
      %v1025 = vpop.f32.mrb[0].mxu0
      %1026 = vmatprep.mubr.bf16.mxu0 0
      %1027 = vmatmul.mubr.bf16.gmra.mrb[0].mxu0 %v897
      %v1028 = vpop.f32.mrb[0].mxu0
      %v1029 = vadd.f32 0.0, %v1028
      %v1030 = vpop.f32.mrb[0].mxu0
      %v1031 = vpop.f32.mrb[0].mxu0
      %v1032 = vadd.f32 0.0, %v1031
      %v1033 = vpop.f32.mrb[0].mxu0
      %1034 = vmatprep.mubr.bf16.mxu0 0
      %1035 = vmatmul.mubr.bf16.gmra.mrb[0].mxu0 %v898
      %v1036 = vpop.f32.mrb[0].mxu0
      %v1037 = vadd.f32 0.0, %v1036
      %v1038 = vpop.f32.mrb[0].mxu0
      %v1039 = vpop.f32.mrb[0].mxu0
      %v1040 = vadd.f32 0.0, %v1039
      %v1041 = vpop.f32.mrb[0].mxu0
      %1042 = vmatprep.mubr.bf16.mxu0 0
      %1043 = vmatmul.mubr.bf16.gmra.mrb[0].mxu0 %v899
      %v1044 = vpop.f32.mrb[0].mxu0
      %v1045 = vadd.f32 0.0, %v1044
      %v1046 = vpop.f32.mrb[0].mxu0
      %v1047 = vpop.f32.mrb[0].mxu0
      %v1048 = vadd.f32 0.0, %v1047
      %v1049 = vpop.f32.mrb[0].mxu0
      %1050 = vmatprep.mubr.bf16.mxu0 0
      %1051 = vmatmul.mubr.bf16.gmra.mrb[0].mxu0 %v900
      %v1052 = vpop.f32.mrb[0].mxu0
      %v1053 = vadd.f32 0.0, %v1052
      %v1054 = vpop.f32.mrb[0].mxu0
      %v1055 = vpop.f32.mrb[0].mxu0
      %v1056 = vadd.f32 0.0, %v1055
      %v1057 = vpop.f32.mrb[0].mxu0
      %1058 = vmatprep.mubr.bf16.mxu0 0
      %1059 = vmatmul.mubr.bf16.gmra.mrb[0].mxu0 %v901
      %v1060 = vpop.f32.mrb[0].mxu0
      %v1061 = vadd.f32 0.0, %v1060
      %v1062 = vpop.f32.mrb[0].mxu0
      %v1063 = vpop.f32.mrb[0].mxu0
      %v1064 = vadd.f32 0.0, %v1063
      %v1065 = vpop.f32.mrb[0].mxu0
      %1066 = vmatprep.mubr.bf16.mxu0 0
      %1067 = vmatmul.mubr.bf16.gmra.mrb[0].mxu0 %v902
      %v1068 = vpop.f32.mrb[0].mxu0
      %v1069 = vadd.f32 0.0, %v1068
      %v1070 = vpop.f32.mrb[0].mxu0
      %v1071 = vpop.f32.mrb[0].mxu0
      %v1072 = vadd.f32 0.0, %v1071
      %v1073 = vpop.f32.mrb[0].mxu0
      %1074 = vmatprep.mubr.bf16.mxu0 0
      %1075 = vmatmul.mubr.bf16.gmra.mrb[0].mxu0 %v903
      %v1076 = vpop.f32.mrb[0].mxu0
      %v1077 = vadd.f32 0.0, %v1076
      %v1078 = vpop.f32.mrb[0].mxu0
      %v1079 = vpop.f32.mrb[0].mxu0
      %v1080 = vadd.f32 0.0, %v1079
      %v1081 = vpop.f32.mrb[0].mxu0
      %1082 = vmatprep.mubr.bf16.mxu0 0
      %1083 = vmatmul.mubr.bf16.gmra.mrb[0].mxu0 %v904
      %v1084 = vpop.f32.mrb[0].mxu0
      %v1085 = vadd.f32 0.0, %v1084
      %v1086 = vpop.f32.mrb[0].mxu0
      %v1087 = vpop.f32.mrb[0].mxu0
      %v1088 = vadd.f32 0.0, %v1087
      %v1089 = vpop.f32.mrb[0].mxu0
      %1090 = vmatprep.mubr.bf16.mxu0 0
      %1091 = vmatmul.mubr.bf16.gmra.mrb[0].mxu0 %v905
      %v1092 = vpop.f32.mrb[0].mxu0
      %v1093 = vadd.f32 0.0, %v1092
      %v1094 = vpop.f32.mrb[0].mxu0
      %v1095 = vpop.f32.mrb[0].mxu0
      %v1096 = vadd.f32 0.0, %v1095
      %v1097 = vpop.f32.mrb[0].mxu0
      %1098 = vmatprep.mubr.bf16.mxu0 0
      %1099 = vmatmul.mubr.bf16.gmra.mrb[0].mxu0 %v906
      %v1100 = vpop.f32.mrb[0].mxu0
      %v1101 = vadd.f32 0.0, %v1100
      %v1102 = vpop.f32.mrb[0].mxu0
      %v1103 = vpop.f32.mrb[0].mxu0
      %v1104 = vadd.f32 0.0, %v1103
      %v1105 = vpop.f32.mrb[0].mxu0
      %1106 = vmatprep.mubr.bf16.mxu0 0
      %1107 = vmatmul.mubr.bf16.gmra.mrb[0].mxu0 %v907
      %v1108 = vpop.f32.mrb[0].mxu0
      %v1109 = vadd.f32 0.0, %v1108
      %v1110 = vpop.f32.mrb[0].mxu0
      %v1111 = vpop.f32.mrb[0].mxu0
      %v1112 = vadd.f32 0.0, %v1111
      %v1113 = vpop.f32.mrb[0].mxu0
      %1114 = vmatprep.mubr.bf16.mxu0 0
      %1115 = vmatmul.mubr.bf16.gmra.mrb[0].mxu0 %v908
      %v1116 = vpop.f32.mrb[0].mxu0
      %v1117 = vadd.f32 0.0, %v1116
      %v1118 = vpop.f32.mrb[0].mxu0
      %v1119 = vpop.f32.mrb[0].mxu0
      %v1120 = vadd.f32 0.0, %v1119
      %v1121 = vpop.f32.mrb[0].mxu0
      %1122 = vmatprep.mubr.bf16.mxu0 0
      %1123 = vmatmul.mubr.bf16.gmra.mrb[0].mxu0 %v909
      %v1124 = vpop.f32.mrb[0].mxu0
      %v1125 = vadd.f32 0.0, %v1124
      %v1126 = vpop.f32.mrb[0].mxu0
      %v1127 = vpop.f32.mrb[0].mxu0
      %v1128 = vadd.f32 0.0, %v1127
      %v1129 = vpop.f32.mrb[0].mxu0
      %1130 = vmatprep.mubr.bf16.mxu0 0
      %1131 = vmatmul.mubr.bf16.gmra.mrb[0].mxu0 %v910
      %v1132 = vpop.f32.mrb[0].mxu0
      %v1133 = vadd.f32 0.0, %v1132
      %v1134 = vpop.f32.mrb[0].mxu0
      %v1135 = vpop.f32.mrb[0].mxu0
      %v1136 = vadd.f32 0.0, %v1135
      %v1137 = vpop.f32.mrb[0].mxu0
      %1138 = vmatprep.mubr.bf16.mxu0 0
      %1139 = vmatmul.mubr.bf16.gmra.mrb[0].mxu0 %v911
      %v1140 = vpop.f32.mrb[0].mxu0
      %v1141 = vadd.f32 0.0, %v1140
      %v1142 = vpop.f32.mrb[0].mxu0
      %v1143 = vpop.f32.mrb[0].mxu0
      %v1144 = vadd.f32 0.0, %v1143
      %v1145 = vpop.f32.mrb[0].mxu0
      %1146 = vmatprep.mubr.bf16.mxu0 0
      %1147 = vmatmul.mubr.bf16.gmra.mrb[0].mxu0 %v912
      %v1148 = vpop.f32.mrb[0].mxu0
      %v1149 = vadd.f32 0.0, %v1148
      %v1150 = vpop.f32.mrb[0].mxu0
      %v1151 = vpop.f32.mrb[0].mxu0
      %v1152 = vadd.f32 0.0, %v1151
      %v1153 = vpop.f32.mrb[0].mxu0
      %1154 = vdwg.mxu0
      %v1171 = vunpack.c.l.b16 %v843
      %v1172 = vunpack.c.l.b16 %v844
      %v1173 = vunpack.c.l.b16 %v845
      %v1174 = vunpack.c.l.b16 %v846
      %v1175 = vunpack.c.l.b16 %v847
      %v1176 = vunpack.c.l.b16 %v848
      %v1177 = vunpack.c.l.b16 %v849
      %v1178 = vunpack.c.l.b16 %v850
      %v1179 = vunpack.c.l.b16 %v851
      %v1180 = vunpack.c.l.b16 %v852
      %v1181 = vunpack.c.l.b16 %v853
      %v1182 = vunpack.c.l.b16 %v854
      %v1183 = vunpack.c.l.b16 %v855
      %v1184 = vunpack.c.l.b16 %v856
      %v1185 = vunpack.c.l.b16 %v857
      %v1186 = vunpack.c.l.b16 %v858
      %v1187 = vpack.c.b16 %v1172, %v1171
      %v1188 = vpack.c.b16 %v1174, %v1173
      %v1189 = vpack.c.b16 %v1176, %v1175
      %v1190 = vpack.c.b16 %v1178, %v1177
      %v1191 = vpack.c.b16 %v1180, %v1179
      %v1192 = vpack.c.b16 %v1182, %v1181
      %v1193 = vpack.c.b16 %v1184, %v1183
      %v1194 = vpack.c.b16 %v1186, %v1185
      %1203 = vmatprep.subr.bf16.mxu0 0
      %1204 = vmatpush1.bf16.msra.mxu0 %v1187
      %1205 = vmatprep.subr.bf16.mxu0 0
      %1206 = vmatpush1.bf16.msra.mxu0 %v1188
      %1207 = vmatprep.subr.bf16.mxu0 0
      %1208 = vmatpush1.bf16.msra.mxu0 %v1189
      %1209 = vmatprep.subr.bf16.mxu0 0
      %1210 = vmatpush1.bf16.msra.mxu0 %v1190
      %1211 = vmatprep.subr.bf16.mxu0 0
      %1212 = vmatpush1.bf16.msra.mxu0 %v1191
      %1213 = vmatprep.subr.bf16.mxu0 0
      %1214 = vmatpush1.bf16.msra.mxu0 %v1192
      %1215 = vmatprep.subr.bf16.mxu0 0
      %1216 = vmatpush1.bf16.msra.mxu0 %v1193
      %1217 = vmatprep.subr.bf16.mxu0 0
      %1218 = vmatpush1.bf16.msra.mxu0 %v1194
      %1219 = vmatprep.subr.bf16.mxu0 0
      %1220 = vmatpush1.bf16.msra.mxu0 0
      %1221 = vmatprep.subr.bf16.mxu0 0
      %1222 = vmatpush1.bf16.msra.mxu0 0
      %1223 = vmatprep.subr.bf16.mxu0 0
      %1224 = vmatpush1.bf16.msra.mxu0 0
      %1225 = vmatprep.subr.bf16.mxu0 0
      %1226 = vmatpush1.bf16.msra.mxu0 0
      %1227 = vmatprep.subr.bf16.mxu0 0
      %1228 = vmatpush1.bf16.msra.mxu0 0
      %1229 = vmatprep.subr.bf16.mxu0 0
      %1230 = vmatpush1.bf16.msra.mxu0 0
      %1231 = vmatprep.subr.bf16.mxu0 0
      %1232 = vmatpush1.bf16.msra.mxu0 0
      %1233 = vmatprep.subr.bf16.mxu0 0
      %1234 = vmatpush1.bf16.msra.mxu0 0
      %1235 = vmatprep.mubr.bf16.mxu0 0
      %1236 = vmatmul.mubr.bf16.gmra.mrb[0].mxu0 %v825
      %v1237 = vpop.f32.mrb[0].mxu0
      %v1238 = vadd.f32 %v1013, %v1237
      %v1239 = vpop.f32.mrb[0].mxu0
      %v1240 = vpop.f32.mrb[0].mxu0
      %v1241 = vadd.f32 %v1016, %v1240
      %v1242 = vpop.f32.mrb[0].mxu0
      %1243 = vmatprep.mubr.bf16.mxu0 0
      %1244 = vmatmul.mubr.bf16.gmra.mrb[0].mxu0 %v826
      %v1245 = vpop.f32.mrb[0].mxu0
      %v1246 = vadd.f32 %v1021, %v1245
      %v1247 = vpop.f32.mrb[0].mxu0
      %v1248 = vpop.f32.mrb[0].mxu0
      %v1249 = vadd.f32 %v1024, %v1248
      %v1250 = vpop.f32.mrb[0].mxu0
      %1251 = vmatprep.mubr.bf16.mxu0 0
      %1252 = vmatmul.mubr.bf16.gmra.mrb[0].mxu0 %v827
      %v1253 = vpop.f32.mrb[0].mxu0
      %v1254 = vadd.f32 %v1029, %v1253
      %v1255 = vpop.f32.mrb[0].mxu0
      %v1256 = vpop.f32.mrb[0].mxu0
      %v1257 = vadd.f32 %v1032, %v1256
      %v1258 = vpop.f32.mrb[0].mxu0
      %1259 = vmatprep.mubr.bf16.mxu0 0
      %1260 = vmatmul.mubr.bf16.gmra.mrb[0].mxu0 %v828
      %v1261 = vpop.f32.mrb[0].mxu0
      %v1262 = vadd.f32 %v1037, %v1261
      %v1263 = vpop.f32.mrb[0].mxu0
      %v1264 = vpop.f32.mrb[0].mxu0
      %v1265 = vadd.f32 %v1040, %v1264
      %v1266 = vpop.f32.mrb[0].mxu0
      %1267 = vmatprep.mubr.bf16.mxu0 0
      %1268 = vmatmul.mubr.bf16.gmra.mrb[0].mxu0 %v829
      %v1269 = vpop.f32.mrb[0].mxu0
      %v1270 = vadd.f32 %v1045, %v1269
      %v1271 = vpop.f32.mrb[0].mxu0
      %v1272 = vpop.f32.mrb[0].mxu0
      %v1273 = vadd.f32 %v1048, %v1272
      %v1274 = vpop.f32.mrb[0].mxu0
      %1275 = vmatprep.mubr.bf16.mxu0 0
      %1276 = vmatmul.mubr.bf16.gmra.mrb[0].mxu0 %v830
      %v1277 = vpop.f32.mrb[0].mxu0
      %v1278 = vadd.f32 %v1053, %v1277
      %v1279 = vpop.f32.mrb[0].mxu0
      %v1280 = vpop.f32.mrb[0].mxu0
      %v1281 = vadd.f32 %v1056, %v1280
      %v1282 = vpop.f32.mrb[0].mxu0
      %1283 = vmatprep.mubr.bf16.mxu0 0
      %1284 = vmatmul.mubr.bf16.gmra.mrb[0].mxu0 %v831
      %v1285 = vpop.f32.mrb[0].mxu0
      %v1286 = vadd.f32 %v1061, %v1285
      %v1287 = vpop.f32.mrb[0].mxu0
      %v1288 = vpop.f32.mrb[0].mxu0
      %v1289 = vadd.f32 %v1064, %v1288
      %v1290 = vpop.f32.mrb[0].mxu0
      %1291 = vmatprep.mubr.bf16.mxu0 0
      %1292 = vmatmul.mubr.bf16.gmra.mrb[0].mxu0 %v832
      %v1293 = vpop.f32.mrb[0].mxu0
      %v1294 = vadd.f32 %v1069, %v1293
      %v1295 = vpop.f32.mrb[0].mxu0
      %v1296 = vpop.f32.mrb[0].mxu0
      %v1297 = vadd.f32 %v1072, %v1296
      %v1298 = vpop.f32.mrb[0].mxu0
      %1299 = vmatprep.mubr.bf16.mxu0 0
      %1300 = vmatmul.mubr.bf16.gmra.mrb[0].mxu0 %v833
      %v1301 = vpop.f32.mrb[0].mxu0
      %v1302 = vadd.f32 %v1077, %v1301
      %v1303 = vpop.f32.mrb[0].mxu0
      %v1304 = vpop.f32.mrb[0].mxu0
      %v1305 = vadd.f32 %v1080, %v1304
      %v1306 = vpop.f32.mrb[0].mxu0
      %1307 = vmatprep.mubr.bf16.mxu0 0
      %1308 = vmatmul.mubr.bf16.gmra.mrb[0].mxu0 %v834
      %v1309 = vpop.f32.mrb[0].mxu0
      %v1310 = vadd.f32 %v1085, %v1309
      %v1311 = vpop.f32.mrb[0].mxu0
      %v1312 = vpop.f32.mrb[0].mxu0
      %v1313 = vadd.f32 %v1088, %v1312
      %v1314 = vpop.f32.mrb[0].mxu0
      %1315 = vmatprep.mubr.bf16.mxu0 0
      %1316 = vmatmul.mubr.bf16.gmra.mrb[0].mxu0 %v835
      %v1317 = vpop.f32.mrb[0].mxu0
      %v1318 = vadd.f32 %v1093, %v1317
      %v1319 = vpop.f32.mrb[0].mxu0
      %v1320 = vpop.f32.mrb[0].mxu0
      %v1321 = vadd.f32 %v1096, %v1320
      %v1322 = vpop.f32.mrb[0].mxu0
      %1323 = vmatprep.mubr.bf16.mxu0 0
      %1324 = vmatmul.mubr.bf16.gmra.mrb[0].mxu0 %v836
      %v1325 = vpop.f32.mrb[0].mxu0
      %v1326 = vadd.f32 %v1101, %v1325
      %v1327 = vpop.f32.mrb[0].mxu0
      %v1328 = vpop.f32.mrb[0].mxu0
      %v1329 = vadd.f32 %v1104, %v1328
      %v1330 = vpop.f32.mrb[0].mxu0
      %1331 = vmatprep.mubr.bf16.mxu0 0
      %1332 = vmatmul.mubr.bf16.gmra.mrb[0].mxu0 %v837
      %v1333 = vpop.f32.mrb[0].mxu0
      %v1334 = vadd.f32 %v1109, %v1333
      %v1335 = vpop.f32.mrb[0].mxu0
      %v1336 = vpop.f32.mrb[0].mxu0
      %v1337 = vadd.f32 %v1112, %v1336
      %v1338 = vpop.f32.mrb[0].mxu0
      %1339 = vmatprep.mubr.bf16.mxu0 0
      %1340 = vmatmul.mubr.bf16.gmra.mrb[0].mxu0 %v838
      %v1341 = vpop.f32.mrb[0].mxu0
      %v1342 = vadd.f32 %v1117, %v1341
      %v1343 = vpop.f32.mrb[0].mxu0
      %v1344 = vpop.f32.mrb[0].mxu0
      %v1345 = vadd.f32 %v1120, %v1344
      %v1346 = vpop.f32.mrb[0].mxu0
      %1347 = vmatprep.mubr.bf16.mxu0 0
      %1348 = vmatmul.mubr.bf16.gmra.mrb[0].mxu0 %v839
      %v1349 = vpop.f32.mrb[0].mxu0
      %v1350 = vadd.f32 %v1125, %v1349
      %v1351 = vpop.f32.mrb[0].mxu0
      %v1352 = vpop.f32.mrb[0].mxu0
      %v1353 = vadd.f32 %v1128, %v1352
      %v1354 = vpop.f32.mrb[0].mxu0
      %1355 = vmatprep.mubr.bf16.mxu0 0
      %1356 = vmatmul.mubr.bf16.gmra.mrb[0].mxu0 %v840
      %v1357 = vpop.f32.mrb[0].mxu0
      %v1358 = vadd.f32 %v1133, %v1357
      %v1359 = vpop.f32.mrb[0].mxu0
      %v1360 = vpop.f32.mrb[0].mxu0
      %v1361 = vadd.f32 %v1136, %v1360
      %v1362 = vpop.f32.mrb[0].mxu0
      %1363 = vmatprep.mubr.bf16.mxu0 0
      %1364 = vmatmul.mubr.bf16.gmra.mrb[0].mxu0 %v841
      %v1365 = vpop.f32.mrb[0].mxu0
      %v1366 = vadd.f32 %v1141, %v1365
      %v1367 = vpop.f32.mrb[0].mxu0
      %v1368 = vpop.f32.mrb[0].mxu0
      %v1369 = vadd.f32 %v1144, %v1368
      %v1370 = vpop.f32.mrb[0].mxu0
      %1371 = vmatprep.mubr.bf16.mxu0 0
      %1372 = vmatmul.mubr.bf16.gmra.mrb[0].mxu0 %v842
      %v1373 = vpop.f32.mrb[0].mxu0
      %v1374 = vadd.f32 %v1149, %v1373
      %v1375 = vpop.f32.mrb[0].mxu0
      %v1376 = vpop.f32.mrb[0].mxu0
      %v1377 = vadd.f32 %v1152, %v1376
      %v1378 = vpop.f32.mrb[0].mxu0
      %1379 = vdwg.mxu0
      %v1380 = vld [vmem:[#allocation2 + $0x2] sm:$0xff]
      %v1381 = vld [vmem:[#allocation2 + $0xa] sm:$0xff]
      %v1382 = vld [vmem:[#allocation2 + $0x12] sm:$0xff]
      %v1383 = vld [vmem:[#allocation2 + $0x1a] sm:$0xff]
      %v1384 = vld [vmem:[#allocation2 + $0x22] sm:$0xff]
      %v1385 = vld [vmem:[#allocation2 + $0x2a] sm:$0xff]
      %v1386 = vld [vmem:[#allocation2 + $0x32] sm:$0xff]
      %v1387 = vld [vmem:[#allocation2 + $0x3a] sm:$0xff]
      %v1388 = vld [vmem:[#allocation2 + $0x42] sm:$0xff]
      %v1389 = vld [vmem:[#allocation2 + $0x4a] sm:$0xff]
      %v1390 = vld [vmem:[#allocation2 + $0x52] sm:$0xff]
      %v1391 = vld [vmem:[#allocation2 + $0x5a] sm:$0xff]
      %v1392 = vld [vmem:[#allocation2 + $0x62] sm:$0xff]
      %v1393 = vld [vmem:[#allocation2 + $0x6a] sm:$0xff]
      %v1394 = vld [vmem:[#allocation2 + $0x72] sm:$0xff]
      %v1395 = vld [vmem:[#allocation2 + $0x7a] sm:$0xff]
      %v1396 = vld [vmem:[#allocation2 + $0x82] sm:$0xff]
      %v1397 = vld [vmem:[#allocation2 + $0x8a] sm:$0xff]
      %v1398 = vld [vmem:[#allocation2 + $0x92] sm:$0xff]
      %v1399 = vld [vmem:[#allocation2 + $0x9a] sm:$0xff]
      %v1400 = vld [vmem:[#allocation2 + $0xa2] sm:$0xff]
      %v1401 = vld [vmem:[#allocation2 + $0xaa] sm:$0xff]
      %v1402 = vld [vmem:[#allocation2 + $0xb2] sm:$0xff]
      %v1403 = vld [vmem:[#allocation2 + $0xba] sm:$0xff]
      %v1404 = vld [vmem:[#allocation2 + $0xc2] sm:$0xff]
      %v1405 = vld [vmem:[#allocation2 + $0xca] sm:$0xff]
      %v1406 = vld [vmem:[#allocation2 + $0xd2] sm:$0xff]
      %v1407 = vld [vmem:[#allocation2 + $0xda] sm:$0xff]
      %v1408 = vld [vmem:[#allocation2 + $0xe2] sm:$0xff]
      %v1409 = vld [vmem:[#allocation2 + $0xea] sm:$0xff]
      %v1410 = vld [vmem:[#allocation2 + $0xf2] sm:$0xff]
      %v1411 = vld [vmem:[#allocation2 + $0xfa] sm:$0xff]
      %v1412 = vld [vmem:[#allocation2 + $0x102] sm:$0xff]
      %v1413 = vld [vmem:[#allocation2 + $0x10a] sm:$0xff]
      %v1414 = vld [vmem:[#allocation2 + $0x112] sm:$0xff]
      %v1415 = vld [vmem:[#allocation2 + $0x11a] sm:$0xff]
      %v1416 = vpack.c.bf16 %v1381, %v1380
      %v1417 = vpack.c.bf16 %v1383, %v1382
      %v1418 = vpack.c.bf16 %v1385, %v1384
      %v1419 = vpack.c.bf16 %v1387, %v1386
      %v1420 = vpack.c.bf16 %v1389, %v1388
      %v1421 = vpack.c.bf16 %v1391, %v1390
      %v1422 = vpack.c.bf16 %v1393, %v1392
      %v1423 = vpack.c.bf16 %v1395, %v1394
      %v1424 = vpack.c.bf16 %v1397, %v1396
      %v1425 = vpack.c.bf16 %v1399, %v1398
      %v1426 = vpack.c.bf16 %v1401, %v1400
      %v1427 = vpack.c.bf16 %v1403, %v1402
      %v1428 = vpack.c.bf16 %v1405, %v1404
      %v1429 = vpack.c.bf16 %v1407, %v1406
      %v1430 = vpack.c.bf16 %v1409, %v1408
      %v1431 = vpack.c.bf16 %v1411, %v1410
      %v1432 = vpack.c.bf16 %v1413, %v1412
      %v1433 = vpack.c.bf16 %v1415, %v1414
      %s1434 = scalar_lea.vmem %s3, 128
      %v1435 = vld [vmem:[%s1434] sm:$0xf]
      %v1436 = vld [vmem:[%s1434 + $0x4] sm:$0xf]
      %v1437 = vld [vmem:[%s1434 + $0x8] sm:$0xf]
      %v1438 = vld [vmem:[%s1434 + $0xc] sm:$0xf]
      %v1439 = vld [vmem:[%s1434 + $0x10] sm:$0xf]
      %v1440 = vld [vmem:[%s1434 + $0x14] sm:$0xf]
      %v1441 = vld [vmem:[%s1434 + $0x18] sm:$0xf]
      %v1442 = vld [vmem:[%s1434 + $0x1c] sm:$0xf]
      %v1443 = vld [vmem:[%s1434 + $0x20] sm:$0xf]
      %v1444 = vld [vmem:[%s1434 + $0x24] sm:$0xf]
      %v1445 = vld [vmem:[%s1434 + $0x28] sm:$0xf]
      %v1446 = vld [vmem:[%s1434 + $0x2c] sm:$0xf]
      %v1447 = vld [vmem:[%s1434 + $0x30] sm:$0xf]
      %v1448 = vld [vmem:[%s1434 + $0x34] sm:$0xf]
      %v1449 = vld [vmem:[%s1434 + $0x38] sm:$0xf]
      %v1450 = vld [vmem:[%s1434 + $0x3c] sm:$0xf]
      %v1467 = vunpack.c.l.b16 %v1435
      %v1468 = vunpack.c.l.b16 %v1436
      %v1469 = vunpack.c.l.b16 %v1437
      %v1470 = vunpack.c.l.b16 %v1438
      %v1471 = vunpack.c.l.b16 %v1439
      %v1472 = vunpack.c.l.b16 %v1440
      %v1473 = vunpack.c.l.b16 %v1441
      %v1474 = vunpack.c.l.b16 %v1442
      %v1475 = vunpack.c.l.b16 %v1443
      %v1476 = vunpack.c.l.b16 %v1444
      %v1477 = vunpack.c.l.b16 %v1445
      %v1478 = vunpack.c.l.b16 %v1446
      %v1479 = vunpack.c.l.b16 %v1447
      %v1480 = vunpack.c.l.b16 %v1448
      %v1481 = vunpack.c.l.b16 %v1449
      %v1482 = vunpack.c.l.b16 %v1450
      %v1483 = vpack.c.b16 %v1468, %v1467
      %v1484 = vpack.c.b16 %v1470, %v1469
      %v1485 = vpack.c.b16 %v1472, %v1471
      %v1486 = vpack.c.b16 %v1474, %v1473
      %v1487 = vpack.c.b16 %v1476, %v1475
      %v1488 = vpack.c.b16 %v1478, %v1477
      %v1489 = vpack.c.b16 %v1480, %v1479
      %v1490 = vpack.c.b16 %v1482, %v1481
      %1499 = vmatprep.subr.bf16.mxu0 0
      %1500 = vmatpush1.bf16.msra.mxu0 %v1483
      %1501 = vmatprep.subr.bf16.mxu0 0
      %1502 = vmatpush1.bf16.msra.mxu0 %v1484
      %1503 = vmatprep.subr.bf16.mxu0 0
      %1504 = vmatpush1.bf16.msra.mxu0 %v1485
      %1505 = vmatprep.subr.bf16.mxu0 0
      %1506 = vmatpush1.bf16.msra.mxu0 %v1486
      %1507 = vmatprep.subr.bf16.mxu0 0
      %1508 = vmatpush1.bf16.msra.mxu0 %v1487
      %1509 = vmatprep.subr.bf16.mxu0 0
      %1510 = vmatpush1.bf16.msra.mxu0 %v1488
      %1511 = vmatprep.subr.bf16.mxu0 0
      %1512 = vmatpush1.bf16.msra.mxu0 %v1489
      %1513 = vmatprep.subr.bf16.mxu0 0
      %1514 = vmatpush1.bf16.msra.mxu0 %v1490
      %1515 = vmatprep.subr.bf16.mxu0 0
      %1516 = vmatpush1.bf16.msra.mxu0 0
      %1517 = vmatprep.subr.bf16.mxu0 0
      %1518 = vmatpush1.bf16.msra.mxu0 0
      %1519 = vmatprep.subr.bf16.mxu0 0
      %1520 = vmatpush1.bf16.msra.mxu0 0
      %1521 = vmatprep.subr.bf16.mxu0 0
      %1522 = vmatpush1.bf16.msra.mxu0 0
      %1523 = vmatprep.subr.bf16.mxu0 0
      %1524 = vmatpush1.bf16.msra.mxu0 0
      %1525 = vmatprep.subr.bf16.mxu0 0
      %1526 = vmatpush1.bf16.msra.mxu0 0
      %1527 = vmatprep.subr.bf16.mxu0 0
      %1528 = vmatpush1.bf16.msra.mxu0 0
      %1529 = vmatprep.subr.bf16.mxu0 0
      %1530 = vmatpush1.bf16.msra.mxu0 0
      %1531 = vmatprep.mubr.bf16.mxu0 0
      %1532 = vmatmul.mubr.bf16.gmra.mrb[0].mxu0 %v1416
      %v1533 = vpop.f32.mrb[0].mxu0
      %v1534 = vadd.f32 0.0, %v1533
      %v1535 = vpop.f32.mrb[0].mxu0
      %v1536 = vpop.f32.mrb[0].mxu0
      %v1537 = vadd.f32 0.0, %v1536
      %v1538 = vpop.f32.mrb[0].mxu0
      %1539 = vmatprep.mubr.bf16.mxu0 0
      %1540 = vmatmul.mubr.bf16.gmra.mrb[0].mxu0 %v1417
      %v1541 = vpop.f32.mrb[0].mxu0
      %v1542 = vadd.f32 0.0, %v1541
      %v1543 = vpop.f32.mrb[0].mxu0
      %v1544 = vpop.f32.mrb[0].mxu0
      %v1545 = vadd.f32 0.0, %v1544
      %v1546 = vpop.f32.mrb[0].mxu0
      %1547 = vmatprep.mubr.bf16.mxu0 0
      %1548 = vmatmul.mubr.bf16.gmra.mrb[0].mxu0 %v1418
      %v1549 = vpop.f32.mrb[0].mxu0
      %v1550 = vadd.f32 0.0, %v1549
      %v1551 = vpop.f32.mrb[0].mxu0
      %v1552 = vpop.f32.mrb[0].mxu0
      %v1553 = vadd.f32 0.0, %v1552
      %v1554 = vpop.f32.mrb[0].mxu0
      %1555 = vmatprep.mubr.bf16.mxu0 0
      %1556 = vmatmul.mubr.bf16.gmra.mrb[0].mxu0 %v1419
      %v1557 = vpop.f32.mrb[0].mxu0
      %v1558 = vadd.f32 0.0, %v1557
      %v1559 = vpop.f32.mrb[0].mxu0
      %v1560 = vpop.f32.mrb[0].mxu0
      %v1561 = vadd.f32 0.0, %v1560
      %v1562 = vpop.f32.mrb[0].mxu0
      %1563 = vmatprep.mubr.bf16.mxu0 0
      %1564 = vmatmul.mubr.bf16.gmra.mrb[0].mxu0 %v1420
      %v1565 = vpop.f32.mrb[0].mxu0
      %v1566 = vadd.f32 0.0, %v1565
      %v1567 = vpop.f32.mrb[0].mxu0
      %v1568 = vpop.f32.mrb[0].mxu0
      %v1569 = vadd.f32 0.0, %v1568
      %v1570 = vpop.f32.mrb[0].mxu0
      %1571 = vmatprep.mubr.bf16.mxu0 0
      %1572 = vmatmul.mubr.bf16.gmra.mrb[0].mxu0 %v1421
      %v1573 = vpop.f32.mrb[0].mxu0
      %v1574 = vadd.f32 0.0, %v1573
      %v1575 = vpop.f32.mrb[0].mxu0
      %v1576 = vpop.f32.mrb[0].mxu0
      %v1577 = vadd.f32 0.0, %v1576
      %v1578 = vpop.f32.mrb[0].mxu0
      %1579 = vmatprep.mubr.bf16.mxu0 0
      %1580 = vmatmul.mubr.bf16.gmra.mrb[0].mxu0 %v1422
      %v1581 = vpop.f32.mrb[0].mxu0
      %v1582 = vadd.f32 0.0, %v1581
      %v1583 = vpop.f32.mrb[0].mxu0
      %v1584 = vpop.f32.mrb[0].mxu0
      %v1585 = vadd.f32 0.0, %v1584
      %v1586 = vpop.f32.mrb[0].mxu0
      %1587 = vmatprep.mubr.bf16.mxu0 0
      %1588 = vmatmul.mubr.bf16.gmra.mrb[0].mxu0 %v1423
      %v1589 = vpop.f32.mrb[0].mxu0
      %v1590 = vadd.f32 0.0, %v1589
      %v1591 = vpop.f32.mrb[0].mxu0
      %v1592 = vpop.f32.mrb[0].mxu0
      %v1593 = vadd.f32 0.0, %v1592
      %v1594 = vpop.f32.mrb[0].mxu0
      %1595 = vmatprep.mubr.bf16.mxu0 0
      %1596 = vmatmul.mubr.bf16.gmra.mrb[0].mxu0 %v1424
      %v1597 = vpop.f32.mrb[0].mxu0
      %v1598 = vadd.f32 0.0, %v1597
      %v1599 = vpop.f32.mrb[0].mxu0
      %v1600 = vpop.f32.mrb[0].mxu0
      %v1601 = vadd.f32 0.0, %v1600
      %v1602 = vpop.f32.mrb[0].mxu0
      %1603 = vmatprep.mubr.bf16.mxu0 0
      %1604 = vmatmul.mubr.bf16.gmra.mrb[0].mxu0 %v1425
      %v1605 = vpop.f32.mrb[0].mxu0
      %v1606 = vadd.f32 0.0, %v1605
      %v1607 = vpop.f32.mrb[0].mxu0
      %v1608 = vpop.f32.mrb[0].mxu0
      %v1609 = vadd.f32 0.0, %v1608
      %v1610 = vpop.f32.mrb[0].mxu0
      %1611 = vmatprep.mubr.bf16.mxu0 0
      %1612 = vmatmul.mubr.bf16.gmra.mrb[0].mxu0 %v1426
      %v1613 = vpop.f32.mrb[0].mxu0
      %v1614 = vadd.f32 0.0, %v1613
      %v1615 = vpop.f32.mrb[0].mxu0
      %v1616 = vpop.f32.mrb[0].mxu0
      %v1617 = vadd.f32 0.0, %v1616
      %v1618 = vpop.f32.mrb[0].mxu0
      %1619 = vmatprep.mubr.bf16.mxu0 0
      %1620 = vmatmul.mubr.bf16.gmra.mrb[0].mxu0 %v1427
      %v1621 = vpop.f32.mrb[0].mxu0
      %v1622 = vadd.f32 0.0, %v1621
      %v1623 = vpop.f32.mrb[0].mxu0
      %v1624 = vpop.f32.mrb[0].mxu0
      %v1625 = vadd.f32 0.0, %v1624
      %v1626 = vpop.f32.mrb[0].mxu0
      %1627 = vmatprep.mubr.bf16.mxu0 0
      %1628 = vmatmul.mubr.bf16.gmra.mrb[0].mxu0 %v1428
      %v1629 = vpop.f32.mrb[0].mxu0
      %v1630 = vadd.f32 0.0, %v1629
      %v1631 = vpop.f32.mrb[0].mxu0
      %v1632 = vpop.f32.mrb[0].mxu0
      %v1633 = vadd.f32 0.0, %v1632
      %v1634 = vpop.f32.mrb[0].mxu0
      %1635 = vmatprep.mubr.bf16.mxu0 0
      %1636 = vmatmul.mubr.bf16.gmra.mrb[0].mxu0 %v1429
      %v1637 = vpop.f32.mrb[0].mxu0
      %v1638 = vadd.f32 0.0, %v1637
      %v1639 = vpop.f32.mrb[0].mxu0
      %v1640 = vpop.f32.mrb[0].mxu0
      %v1641 = vadd.f32 0.0, %v1640
      %v1642 = vpop.f32.mrb[0].mxu0
      %1643 = vmatprep.mubr.bf16.mxu0 0
      %1644 = vmatmul.mubr.bf16.gmra.mrb[0].mxu0 %v1430
      %v1645 = vpop.f32.mrb[0].mxu0
      %v1646 = vadd.f32 0.0, %v1645
      %v1647 = vpop.f32.mrb[0].mxu0
      %v1648 = vpop.f32.mrb[0].mxu0
      %v1649 = vadd.f32 0.0, %v1648
      %v1650 = vpop.f32.mrb[0].mxu0
      %1651 = vmatprep.mubr.bf16.mxu0 0
      %1652 = vmatmul.mubr.bf16.gmra.mrb[0].mxu0 %v1431
      %v1653 = vpop.f32.mrb[0].mxu0
      %v1654 = vadd.f32 0.0, %v1653
      %v1655 = vpop.f32.mrb[0].mxu0
      %v1656 = vpop.f32.mrb[0].mxu0
      %v1657 = vadd.f32 0.0, %v1656
      %v1658 = vpop.f32.mrb[0].mxu0
      %1659 = vmatprep.mubr.bf16.mxu0 0
      %1660 = vmatmul.mubr.bf16.gmra.mrb[0].mxu0 %v1432
      %v1661 = vpop.f32.mrb[0].mxu0
      %v1662 = vadd.f32 0.0, %v1661
      %v1663 = vpop.f32.mrb[0].mxu0
      %v1664 = vpop.f32.mrb[0].mxu0
      %v1665 = vadd.f32 0.0, %v1664
      %v1666 = vpop.f32.mrb[0].mxu0
      %1667 = vmatprep.mubr.bf16.mxu0 0
      %1668 = vmatmul.mubr.bf16.gmra.mrb[0].mxu0 %v1433
      %v1669 = vpop.f32.mrb[0].mxu0
      %v1670 = vadd.f32 0.0, %v1669
      %v1671 = vpop.f32.mrb[0].mxu0
      %v1672 = vpop.f32.mrb[0].mxu0
      %v1673 = vadd.f32 0.0, %v1672
      %v1674 = vpop.f32.mrb[0].mxu0
      %1675 = vdwg.mxu0
      %v1676 = vadd.f32 %v1238, %v1534
      %v1677 = vadd.f32 %v1241, %v1537
      %v1678 = vadd.f32 %v1246, %v1542
      %v1679 = vadd.f32 %v1249, %v1545
      %v1680 = vadd.f32 %v1254, %v1550
      %v1681 = vadd.f32 %v1257, %v1553
      %v1682 = vadd.f32 %v1262, %v1558
      %v1683 = vadd.f32 %v1265, %v1561
      %v1684 = vadd.f32 %v1270, %v1566
      %v1685 = vadd.f32 %v1273, %v1569
      %v1686 = vadd.f32 %v1278, %v1574
      %v1687 = vadd.f32 %v1281, %v1577
      %v1688 = vadd.f32 %v1286, %v1582
      %v1689 = vadd.f32 %v1289, %v1585
      %v1690 = vadd.f32 %v1294, %v1590
      %v1691 = vadd.f32 %v1297, %v1593
      %v1692 = vadd.f32 %v1302, %v1598
      %v1693 = vadd.f32 %v1305, %v1601
      %v1694 = vadd.f32 %v1310, %v1606
      %v1695 = vadd.f32 %v1313, %v1609
      %v1696 = vadd.f32 %v1318, %v1614
      %v1697 = vadd.f32 %v1321, %v1617
      %v1698 = vadd.f32 %v1326, %v1622
      %v1699 = vadd.f32 %v1329, %v1625
      %v1700 = vadd.f32 %v1334, %v1630
      %v1701 = vadd.f32 %v1337, %v1633
      %v1702 = vadd.f32 %v1342, %v1638
      %v1703 = vadd.f32 %v1345, %v1641
      %v1704 = vadd.f32 %v1350, %v1646
      %v1705 = vadd.f32 %v1353, %v1649
      %v1706 = vadd.f32 %v1358, %v1654
      %v1707 = vadd.f32 %v1361, %v1657
      %v1708 = vadd.f32 %v1366, %v1662
      %v1709 = vadd.f32 %v1369, %v1665
      %v1710 = vadd.f32 %v1374, %v1670
      %v1711 = vadd.f32 %v1377, %v1673
      %v1712 = vld [vmem:[#allocation2 + $0x12] sm:$0xff]
      %v1713 = vld [vmem:[#allocation2 + $0x1a] sm:$0xff]
      %v1714 = vld [vmem:[#allocation2 + $0x22] sm:$0xff]
      %v1715 = vld [vmem:[#allocation2 + $0x2a] sm:$0xff]
      %v1716 = vld [vmem:[#allocation2 + $0x32] sm:$0xff]
      %v1717 = vld [vmem:[#allocation2 + $0x3a] sm:$0xff]
      %v1718 = vld [vmem:[#allocation2 + $0x42] sm:$0xff]
      %v1719 = vld [vmem:[#allocation2 + $0x4a] sm:$0xff]
      %v1720 = vld [vmem:[#allocation2 + $0x52] sm:$0xff]
      %v1721 = vld [vmem:[#allocation2 + $0x5a] sm:$0xff]
      %v1722 = vld [vmem:[#allocation2 + $0x62] sm:$0xff]
      %v1723 = vld [vmem:[#allocation2 + $0x6a] sm:$0xff]
      %v1724 = vld [vmem:[#allocation2 + $0x72] sm:$0xff]
      %v1725 = vld [vmem:[#allocation2 + $0x7a] sm:$0xff]
      %v1726 = vld [vmem:[#allocation2 + $0x82] sm:$0xff]
      %v1727 = vld [vmem:[#allocation2 + $0x8a] sm:$0xff]
      %v1728 = vld [vmem:[#allocation2 + $0x92] sm:$0xff]
      %v1729 = vld [vmem:[#allocation2 + $0x9a] sm:$0xff]
      %v1730 = vld [vmem:[#allocation2 + $0xa2] sm:$0xff]
      %v1731 = vld [vmem:[#allocation2 + $0xaa] sm:$0xff]
      %v1732 = vld [vmem:[#allocation2 + $0xb2] sm:$0xff]
      %v1733 = vld [vmem:[#allocation2 + $0xba] sm:$0xff]
      %v1734 = vld [vmem:[#allocation2 + $0xc2] sm:$0xff]
      %v1735 = vld [vmem:[#allocation2 + $0xca] sm:$0xff]
      %v1736 = vld [vmem:[#allocation2 + $0xd2] sm:$0xff]
      %v1737 = vld [vmem:[#allocation2 + $0xda] sm:$0xff]
      %v1738 = vld [vmem:[#allocation2 + $0xe2] sm:$0xff]
      %v1739 = vld [vmem:[#allocation2 + $0xea] sm:$0xff]
      %v1740 = vld [vmem:[#allocation2 + $0xf2] sm:$0xff]
      %v1741 = vld [vmem:[#allocation2 + $0xfa] sm:$0xff]
      %v1742 = vld [vmem:[#allocation2 + $0x102] sm:$0xff]
      %v1743 = vld [vmem:[#allocation2 + $0x10a] sm:$0xff]
      %v1744 = vld [vmem:[#allocation2 + $0x112] sm:$0xff]
      %v1745 = vld [vmem:[#allocation2 + $0x11a] sm:$0xff]
      %v1746 = vld [vmem:[#allocation2 + $0x122] sm:$0xff]
      %v1747 = vld [vmem:[#allocation2 + $0x12a] sm:$0xff]
      %v1748 = vpack.c.bf16 %v1713, %v1712
      %v1749 = vpack.c.bf16 %v1715, %v1714
      %v1750 = vpack.c.bf16 %v1717, %v1716
      %v1751 = vpack.c.bf16 %v1719, %v1718
      %v1752 = vpack.c.bf16 %v1721, %v1720
      %v1753 = vpack.c.bf16 %v1723, %v1722
      %v1754 = vpack.c.bf16 %v1725, %v1724
      %v1755 = vpack.c.bf16 %v1727, %v1726
      %v1756 = vpack.c.bf16 %v1729, %v1728
      %v1757 = vpack.c.bf16 %v1731, %v1730
      %v1758 = vpack.c.bf16 %v1733, %v1732
      %v1759 = vpack.c.bf16 %v1735, %v1734
      %v1760 = vpack.c.bf16 %v1737, %v1736
      %v1761 = vpack.c.bf16 %v1739, %v1738
      %v1762 = vpack.c.bf16 %v1741, %v1740
      %v1763 = vpack.c.bf16 %v1743, %v1742
      %v1764 = vpack.c.bf16 %v1745, %v1744
      %v1765 = vpack.c.bf16 %v1747, %v1746
      %s1766 = scalar_lea.vmem %s3, 192
      %v1767 = vld [vmem:[%s1766] sm:$0xf]
      %v1768 = vld [vmem:[%s1766 + $0x4] sm:$0xf]
      %v1769 = vld [vmem:[%s1766 + $0x8] sm:$0xf]
      %v1770 = vld [vmem:[%s1766 + $0xc] sm:$0xf]
      %v1771 = vld [vmem:[%s1766 + $0x10] sm:$0xf]
      %v1772 = vld [vmem:[%s1766 + $0x14] sm:$0xf]
      %v1773 = vld [vmem:[%s1766 + $0x18] sm:$0xf]
      %v1774 = vld [vmem:[%s1766 + $0x1c] sm:$0xf]
      %v1775 = vld [vmem:[%s1766 + $0x20] sm:$0xf]
      %v1776 = vld [vmem:[%s1766 + $0x24] sm:$0xf]
      %v1777 = vld [vmem:[%s1766 + $0x28] sm:$0xf]
      %v1778 = vld [vmem:[%s1766 + $0x2c] sm:$0xf]
      %v1779 = vld [vmem:[%s1766 + $0x30] sm:$0xf]
      %v1780 = vld [vmem:[%s1766 + $0x34] sm:$0xf]
      %v1781 = vld [vmem:[%s1766 + $0x38] sm:$0xf]
      %v1782 = vld [vmem:[%s1766 + $0x3c] sm:$0xf]
      %v1799 = vunpack.c.l.b16 %v1767
      %v1800 = vunpack.c.l.b16 %v1768
      %v1801 = vunpack.c.l.b16 %v1769
      %v1802 = vunpack.c.l.b16 %v1770
      %v1803 = vunpack.c.l.b16 %v1771
      %v1804 = vunpack.c.l.b16 %v1772
      %v1805 = vunpack.c.l.b16 %v1773
      %v1806 = vunpack.c.l.b16 %v1774
      %v1807 = vunpack.c.l.b16 %v1775
      %v1808 = vunpack.c.l.b16 %v1776
      %v1809 = vunpack.c.l.b16 %v1777
      %v1810 = vunpack.c.l.b16 %v1778
      %v1811 = vunpack.c.l.b16 %v1779
      %v1812 = vunpack.c.l.b16 %v1780
      %v1813 = vunpack.c.l.b16 %v1781
      %v1814 = vunpack.c.l.b16 %v1782
      %v1815 = vpack.c.b16 %v1800, %v1799
      %v1816 = vpack.c.b16 %v1802, %v1801
      %v1817 = vpack.c.b16 %v1804, %v1803
      %v1818 = vpack.c.b16 %v1806, %v1805
      %v1819 = vpack.c.b16 %v1808, %v1807
      %v1820 = vpack.c.b16 %v1810, %v1809
      %v1821 = vpack.c.b16 %v1812, %v1811
      %v1822 = vpack.c.b16 %v1814, %v1813
      %1831 = vmatprep.subr.bf16.mxu0 0
      %1832 = vmatpush1.bf16.msra.mxu0 %v1815
      %1833 = vmatprep.subr.bf16.mxu0 0
      %1834 = vmatpush1.bf16.msra.mxu0 %v1816
      %1835 = vmatprep.subr.bf16.mxu0 0
      %1836 = vmatpush1.bf16.msra.mxu0 %v1817
      %1837 = vmatprep.subr.bf16.mxu0 0
      %1838 = vmatpush1.bf16.msra.mxu0 %v1818
      %1839 = vmatprep.subr.bf16.mxu0 0
      %1840 = vmatpush1.bf16.msra.mxu0 %v1819
      %1841 = vmatprep.subr.bf16.mxu0 0
      %1842 = vmatpush1.bf16.msra.mxu0 %v1820
      %1843 = vmatprep.subr.bf16.mxu0 0
      %1844 = vmatpush1.bf16.msra.mxu0 %v1821
      %1845 = vmatprep.subr.bf16.mxu0 0
      %1846 = vmatpush1.bf16.msra.mxu0 %v1822
      %1847 = vmatprep.subr.bf16.mxu0 0
      %1848 = vmatpush1.bf16.msra.mxu0 0
      %1849 = vmatprep.subr.bf16.mxu0 0
      %1850 = vmatpush1.bf16.msra.mxu0 0
      %1851 = vmatprep.subr.bf16.mxu0 0
      %1852 = vmatpush1.bf16.msra.mxu0 0
      %1853 = vmatprep.subr.bf16.mxu0 0
      %1854 = vmatpush1.bf16.msra.mxu0 0
      %1855 = vmatprep.subr.bf16.mxu0 0
      %1856 = vmatpush1.bf16.msra.mxu0 0
      %1857 = vmatprep.subr.bf16.mxu0 0
      %1858 = vmatpush1.bf16.msra.mxu0 0
      %1859 = vmatprep.subr.bf16.mxu0 0
      %1860 = vmatpush1.bf16.msra.mxu0 0
      %1861 = vmatprep.subr.bf16.mxu0 0
      %1862 = vmatpush1.bf16.msra.mxu0 0
      %1863 = vmatprep.mubr.bf16.mxu0 0
      %1864 = vmatmul.mubr.bf16.gmra.mrb[0].mxu0 %v1748
      %v1865 = vpop.f32.mrb[0].mxu0
      %v1866 = vadd.f32 0.0, %v1865
      %v1867 = vpop.f32.mrb[0].mxu0
      %v1868 = vpop.f32.mrb[0].mxu0
      %v1869 = vadd.f32 0.0, %v1868
      %v1870 = vpop.f32.mrb[0].mxu0
      %1871 = vmatprep.mubr.bf16.mxu0 0
      %1872 = vmatmul.mubr.bf16.gmra.mrb[0].mxu0 %v1749
      %v1873 = vpop.f32.mrb[0].mxu0
      %v1874 = vadd.f32 0.0, %v1873
      %v1875 = vpop.f32.mrb[0].mxu0
      %v1876 = vpop.f32.mrb[0].mxu0
      %v1877 = vadd.f32 0.0, %v1876
      %v1878 = vpop.f32.mrb[0].mxu0
      %1879 = vmatprep.mubr.bf16.mxu0 0
      %1880 = vmatmul.mubr.bf16.gmra.mrb[0].mxu0 %v1750
      %v1881 = vpop.f32.mrb[0].mxu0
      %v1882 = vadd.f32 0.0, %v1881
      %v1883 = vpop.f32.mrb[0].mxu0
      %v1884 = vpop.f32.mrb[0].mxu0
      %v1885 = vadd.f32 0.0, %v1884
      %v1886 = vpop.f32.mrb[0].mxu0
      %1887 = vmatprep.mubr.bf16.mxu0 0
      %1888 = vmatmul.mubr.bf16.gmra.mrb[0].mxu0 %v1751
      %v1889 = vpop.f32.mrb[0].mxu0
      %v1890 = vadd.f32 0.0, %v1889
      %v1891 = vpop.f32.mrb[0].mxu0
      %v1892 = vpop.f32.mrb[0].mxu0
      %v1893 = vadd.f32 0.0, %v1892
      %v1894 = vpop.f32.mrb[0].mxu0
      %1895 = vmatprep.mubr.bf16.mxu0 0
      %1896 = vmatmul.mubr.bf16.gmra.mrb[0].mxu0 %v1752
      %v1897 = vpop.f32.mrb[0].mxu0
      %v1898 = vadd.f32 0.0, %v1897
      %v1899 = vpop.f32.mrb[0].mxu0
      %v1900 = vpop.f32.mrb[0].mxu0
      %v1901 = vadd.f32 0.0, %v1900
      %v1902 = vpop.f32.mrb[0].mxu0
      %1903 = vmatprep.mubr.bf16.mxu0 0
      %1904 = vmatmul.mubr.bf16.gmra.mrb[0].mxu0 %v1753
      %v1905 = vpop.f32.mrb[0].mxu0
      %v1906 = vadd.f32 0.0, %v1905
      %v1907 = vpop.f32.mrb[0].mxu0
      %v1908 = vpop.f32.mrb[0].mxu0
      %v1909 = vadd.f32 0.0, %v1908
      %v1910 = vpop.f32.mrb[0].mxu0
      %1911 = vmatprep.mubr.bf16.mxu0 0
      %1912 = vmatmul.mubr.bf16.gmra.mrb[0].mxu0 %v1754
      %v1913 = vpop.f32.mrb[0].mxu0
      %v1914 = vadd.f32 0.0, %v1913
      %v1915 = vpop.f32.mrb[0].mxu0
      %v1916 = vpop.f32.mrb[0].mxu0
      %v1917 = vadd.f32 0.0, %v1916
      %v1918 = vpop.f32.mrb[0].mxu0
      %1919 = vmatprep.mubr.bf16.mxu0 0
      %1920 = vmatmul.mubr.bf16.gmra.mrb[0].mxu0 %v1755
      %v1921 = vpop.f32.mrb[0].mxu0
      %v1922 = vadd.f32 0.0, %v1921
      %v1923 = vpop.f32.mrb[0].mxu0
      %v1924 = vpop.f32.mrb[0].mxu0
      %v1925 = vadd.f32 0.0, %v1924
      %v1926 = vpop.f32.mrb[0].mxu0
      %1927 = vmatprep.mubr.bf16.mxu0 0
      %1928 = vmatmul.mubr.bf16.gmra.mrb[0].mxu0 %v1756
      %v1929 = vpop.f32.mrb[0].mxu0
      %v1930 = vadd.f32 0.0, %v1929
      %v1931 = vpop.f32.mrb[0].mxu0
      %v1932 = vpop.f32.mrb[0].mxu0
      %v1933 = vadd.f32 0.0, %v1932
      %v1934 = vpop.f32.mrb[0].mxu0
      %1935 = vmatprep.mubr.bf16.mxu0 0
      %1936 = vmatmul.mubr.bf16.gmra.mrb[0].mxu0 %v1757
      %v1937 = vpop.f32.mrb[0].mxu0
      %v1938 = vadd.f32 0.0, %v1937
      %v1939 = vpop.f32.mrb[0].mxu0
      %v1940 = vpop.f32.mrb[0].mxu0
      %v1941 = vadd.f32 0.0, %v1940
      %v1942 = vpop.f32.mrb[0].mxu0
      %1943 = vmatprep.mubr.bf16.mxu0 0
      %1944 = vmatmul.mubr.bf16.gmra.mrb[0].mxu0 %v1758
      %v1945 = vpop.f32.mrb[0].mxu0
      %v1946 = vadd.f32 0.0, %v1945
      %v1947 = vpop.f32.mrb[0].mxu0
      %v1948 = vpop.f32.mrb[0].mxu0
      %v1949 = vadd.f32 0.0, %v1948
      %v1950 = vpop.f32.mrb[0].mxu0
      %1951 = vmatprep.mubr.bf16.mxu0 0
      %1952 = vmatmul.mubr.bf16.gmra.mrb[0].mxu0 %v1759
      %v1953 = vpop.f32.mrb[0].mxu0
      %v1954 = vadd.f32 0.0, %v1953
      %v1955 = vpop.f32.mrb[0].mxu0
      %v1956 = vpop.f32.mrb[0].mxu0
      %v1957 = vadd.f32 0.0, %v1956
      %v1958 = vpop.f32.mrb[0].mxu0
      %1959 = vmatprep.mubr.bf16.mxu0 0
      %1960 = vmatmul.mubr.bf16.gmra.mrb[0].mxu0 %v1760
      %v1961 = vpop.f32.mrb[0].mxu0
      %v1962 = vadd.f32 0.0, %v1961
      %v1963 = vpop.f32.mrb[0].mxu0
      %v1964 = vpop.f32.mrb[0].mxu0
      %v1965 = vadd.f32 0.0, %v1964
      %v1966 = vpop.f32.mrb[0].mxu0
      %1967 = vmatprep.mubr.bf16.mxu0 0
      %1968 = vmatmul.mubr.bf16.gmra.mrb[0].mxu0 %v1761
      %v1969 = vpop.f32.mrb[0].mxu0
      %v1970 = vadd.f32 0.0, %v1969
      %v1971 = vpop.f32.mrb[0].mxu0
      %v1972 = vpop.f32.mrb[0].mxu0
      %v1973 = vadd.f32 0.0, %v1972
      %v1974 = vpop.f32.mrb[0].mxu0
      %1975 = vmatprep.mubr.bf16.mxu0 0
      %1976 = vmatmul.mubr.bf16.gmra.mrb[0].mxu0 %v1762
      %v1977 = vpop.f32.mrb[0].mxu0
      %v1978 = vadd.f32 0.0, %v1977
      %v1979 = vpop.f32.mrb[0].mxu0
      %v1980 = vpop.f32.mrb[0].mxu0
      %v1981 = vadd.f32 0.0, %v1980
      %v1982 = vpop.f32.mrb[0].mxu0
      %1983 = vmatprep.mubr.bf16.mxu0 0
      %1984 = vmatmul.mubr.bf16.gmra.mrb[0].mxu0 %v1763
      %v1985 = vpop.f32.mrb[0].mxu0
      %v1986 = vadd.f32 0.0, %v1985
      %v1987 = vpop.f32.mrb[0].mxu0
      %v1988 = vpop.f32.mrb[0].mxu0
      %v1989 = vadd.f32 0.0, %v1988
      %v1990 = vpop.f32.mrb[0].mxu0
      %1991 = vmatprep.mubr.bf16.mxu0 0
      %1992 = vmatmul.mubr.bf16.gmra.mrb[0].mxu0 %v1764
      %v1993 = vpop.f32.mrb[0].mxu0
      %v1994 = vadd.f32 0.0, %v1993
      %v1995 = vpop.f32.mrb[0].mxu0
      %v1996 = vpop.f32.mrb[0].mxu0
      %v1997 = vadd.f32 0.0, %v1996
      %v1998 = vpop.f32.mrb[0].mxu0
      %1999 = vmatprep.mubr.bf16.mxu0 0
      %2000 = vmatmul.mubr.bf16.gmra.mrb[0].mxu0 %v1765
      %v2001 = vpop.f32.mrb[0].mxu0
      %v2002 = vadd.f32 0.0, %v2001
      %v2003 = vpop.f32.mrb[0].mxu0
      %v2004 = vpop.f32.mrb[0].mxu0
      %v2005 = vadd.f32 0.0, %v2004
      %v2006 = vpop.f32.mrb[0].mxu0
      %2007 = vdwg.mxu0
      %v2008 = vadd.f32 %v1676, %v1866
      %v2009 = vadd.f32 %v1677, %v1869
      %v2010 = vadd.f32 %v1678, %v1874
      %v2011 = vadd.f32 %v1679, %v1877
      %v2012 = vadd.f32 %v1680, %v1882
      %v2013 = vadd.f32 %v1681, %v1885
      %v2014 = vadd.f32 %v1682, %v1890
      %v2015 = vadd.f32 %v1683, %v1893
      %v2016 = vadd.f32 %v1684, %v1898
      %v2017 = vadd.f32 %v1685, %v1901
      %v2018 = vadd.f32 %v1686, %v1906
      %v2019 = vadd.f32 %v1687, %v1909
      %v2020 = vadd.f32 %v1688, %v1914
      %v2021 = vadd.f32 %v1689, %v1917
      %v2022 = vadd.f32 %v1690, %v1922
      %v2023 = vadd.f32 %v1691, %v1925
      %v2024 = vadd.f32 %v1692, %v1930
      %v2025 = vadd.f32 %v1693, %v1933
      %v2026 = vadd.f32 %v1694, %v1938
      %v2027 = vadd.f32 %v1695, %v1941
      %v2028 = vadd.f32 %v1696, %v1946
      %v2029 = vadd.f32 %v1697, %v1949
      %v2030 = vadd.f32 %v1698, %v1954
      %v2031 = vadd.f32 %v1699, %v1957
      %v2032 = vadd.f32 %v1700, %v1962
      %v2033 = vadd.f32 %v1701, %v1965
      %v2034 = vadd.f32 %v1702, %v1970
      %v2035 = vadd.f32 %v1703, %v1973
      %v2036 = vadd.f32 %v1704, %v1978
      %v2037 = vadd.f32 %v1705, %v1981
      %v2038 = vadd.f32 %v1706, %v1986
      %v2039 = vadd.f32 %v1707, %v1989
      %v2040 = vadd.f32 %v1708, %v1994
      %v2041 = vadd.f32 %v1709, %v1997
      %v2042 = vadd.f32 %v1710, %v2002
      %v2043 = vadd.f32 %v1711, %v2005
      %v2044 = vld [vmem:[#allocation2 + $0x13] sm:$0xff]
      %v2045 = vld [vmem:[#allocation2 + $0x1b] sm:$0xff]
      %v2046 = vld [vmem:[#allocation2 + $0x23] sm:$0xff]
      %v2047 = vld [vmem:[#allocation2 + $0x2b] sm:$0xff]
      %v2048 = vld [vmem:[#allocation2 + $0x33] sm:$0xff]
      %v2049 = vld [vmem:[#allocation2 + $0x3b] sm:$0xff]
      %v2050 = vld [vmem:[#allocation2 + $0x43] sm:$0xff]
      %v2051 = vld [vmem:[#allocation2 + $0x4b] sm:$0xff]
      %v2052 = vld [vmem:[#allocation2 + $0x53] sm:$0xff]
      %v2053 = vld [vmem:[#allocation2 + $0x5b] sm:$0xff]
      %v2054 = vld [vmem:[#allocation2 + $0x63] sm:$0xff]
      %v2055 = vld [vmem:[#allocation2 + $0x6b] sm:$0xff]
      %v2056 = vld [vmem:[#allocation2 + $0x73] sm:$0xff]
      %v2057 = vld [vmem:[#allocation2 + $0x7b] sm:$0xff]
      %v2058 = vld [vmem:[#allocation2 + $0x83] sm:$0xff]
      %v2059 = vld [vmem:[#allocation2 + $0x8b] sm:$0xff]
      %v2060 = vld [vmem:[#allocation2 + $0x93] sm:$0xff]
      %v2061 = vld [vmem:[#allocation2 + $0x9b] sm:$0xff]
      %v2062 = vld [vmem:[#allocation2 + $0xa3] sm:$0xff]
      %v2063 = vld [vmem:[#allocation2 + $0xab] sm:$0xff]
      %v2064 = vld [vmem:[#allocation2 + $0xb3] sm:$0xff]
      %v2065 = vld [vmem:[#allocation2 + $0xbb] sm:$0xff]
      %v2066 = vld [vmem:[#allocation2 + $0xc3] sm:$0xff]
      %v2067 = vld [vmem:[#allocation2 + $0xcb] sm:$0xff]
      %v2068 = vld [vmem:[#allocation2 + $0xd3] sm:$0xff]
      %v2069 = vld [vmem:[#allocation2 + $0xdb] sm:$0xff]
      %v2070 = vld [vmem:[#allocation2 + $0xe3] sm:$0xff]
      %v2071 = vld [vmem:[#allocation2 + $0xeb] sm:$0xff]
      %v2072 = vld [vmem:[#allocation2 + $0xf3] sm:$0xff]
      %v2073 = vld [vmem:[#allocation2 + $0xfb] sm:$0xff]
      %v2074 = vld [vmem:[#allocation2 + $0x103] sm:$0xff]
      %v2075 = vld [vmem:[#allocation2 + $0x10b] sm:$0xff]
      %v2076 = vld [vmem:[#allocation2 + $0x113] sm:$0xff]
      %v2077 = vld [vmem:[#allocation2 + $0x11b] sm:$0xff]
      %v2078 = vld [vmem:[#allocation2 + $0x123] sm:$0xff]
      %v2079 = vld [vmem:[#allocation2 + $0x12b] sm:$0xff]
      %v2080 = vpack.c.bf16 %v2045, %v2044
      %v2081 = vpack.c.bf16 %v2047, %v2046
      %v2082 = vpack.c.bf16 %v2049, %v2048
      %v2083 = vpack.c.bf16 %v2051, %v2050
      %v2084 = vpack.c.bf16 %v2053, %v2052
      %v2085 = vpack.c.bf16 %v2055, %v2054
      %v2086 = vpack.c.bf16 %v2057, %v2056
      %v2087 = vpack.c.bf16 %v2059, %v2058
      %v2088 = vpack.c.bf16 %v2061, %v2060
      %v2089 = vpack.c.bf16 %v2063, %v2062
      %v2090 = vpack.c.bf16 %v2065, %v2064
      %v2091 = vpack.c.bf16 %v2067, %v2066
      %v2092 = vpack.c.bf16 %v2069, %v2068
      %v2093 = vpack.c.bf16 %v2071, %v2070
      %v2094 = vpack.c.bf16 %v2073, %v2072
      %v2095 = vpack.c.bf16 %v2075, %v2074
      %v2096 = vpack.c.bf16 %v2077, %v2076
      %v2097 = vpack.c.bf16 %v2079, %v2078
      %s2098 = scalar_lea.vmem %s3, 256
      %v2099 = vld [vmem:[%s2098] sm:$0xf]
      %v2100 = vld [vmem:[%s2098 + $0x4] sm:$0xf]
      %v2101 = vld [vmem:[%s2098 + $0x8] sm:$0xf]
      %v2102 = vld [vmem:[%s2098 + $0xc] sm:$0xf]
      %v2103 = vld [vmem:[%s2098 + $0x10] sm:$0xf]
      %v2104 = vld [vmem:[%s2098 + $0x14] sm:$0xf]
      %v2105 = vld [vmem:[%s2098 + $0x18] sm:$0xf]
      %v2106 = vld [vmem:[%s2098 + $0x1c] sm:$0xf]
      %v2107 = vld [vmem:[%s2098 + $0x20] sm:$0xf]
      %v2108 = vld [vmem:[%s2098 + $0x24] sm:$0xf]
      %v2109 = vld [vmem:[%s2098 + $0x28] sm:$0xf]
      %v2110 = vld [vmem:[%s2098 + $0x2c] sm:$0xf]
      %v2111 = vld [vmem:[%s2098 + $0x30] sm:$0xf]
      %v2112 = vld [vmem:[%s2098 + $0x34] sm:$0xf]
      %v2113 = vld [vmem:[%s2098 + $0x38] sm:$0xf]
      %v2114 = vld [vmem:[%s2098 + $0x3c] sm:$0xf]
      %v2131 = vunpack.c.l.b16 %v2099
      %v2132 = vunpack.c.l.b16 %v2100
      %v2133 = vunpack.c.l.b16 %v2101
      %v2134 = vunpack.c.l.b16 %v2102
      %v2135 = vunpack.c.l.b16 %v2103
      %v2136 = vunpack.c.l.b16 %v2104
      %v2137 = vunpack.c.l.b16 %v2105
      %v2138 = vunpack.c.l.b16 %v2106
      %v2139 = vunpack.c.l.b16 %v2107
      %v2140 = vunpack.c.l.b16 %v2108
      %v2141 = vunpack.c.l.b16 %v2109
      %v2142 = vunpack.c.l.b16 %v2110
      %v2143 = vunpack.c.l.b16 %v2111
      %v2144 = vunpack.c.l.b16 %v2112
      %v2145 = vunpack.c.l.b16 %v2113
      %v2146 = vunpack.c.l.b16 %v2114
      %v2147 = vpack.c.b16 %v2132, %v2131
      %v2148 = vpack.c.b16 %v2134, %v2133
      %v2149 = vpack.c.b16 %v2136, %v2135
      %v2150 = vpack.c.b16 %v2138, %v2137
      %v2151 = vpack.c.b16 %v2140, %v2139
      %v2152 = vpack.c.b16 %v2142, %v2141
      %v2153 = vpack.c.b16 %v2144, %v2143
      %v2154 = vpack.c.b16 %v2146, %v2145
      %2163 = vmatprep.subr.bf16.mxu0 0
      %2164 = vmatpush1.bf16.msra.mxu0 %v2147
      %2165 = vmatprep.subr.bf16.mxu0 0
      %2166 = vmatpush1.bf16.msra.mxu0 %v2148
      %2167 = vmatprep.subr.bf16.mxu0 0
      %2168 = vmatpush1.bf16.msra.mxu0 %v2149
      %2169 = vmatprep.subr.bf16.mxu0 0
      %2170 = vmatpush1.bf16.msra.mxu0 %v2150
      %2171 = vmatprep.subr.bf16.mxu0 0
      %2172 = vmatpush1.bf16.msra.mxu0 %v2151
      %2173 = vmatprep.subr.bf16.mxu0 0
      %2174 = vmatpush1.bf16.msra.mxu0 %v2152
      %2175 = vmatprep.subr.bf16.mxu0 0
      %2176 = vmatpush1.bf16.msra.mxu0 %v2153
      %2177 = vmatprep.subr.bf16.mxu0 0
      %2178 = vmatpush1.bf16.msra.mxu0 %v2154
      %2179 = vmatprep.subr.bf16.mxu0 0
      %2180 = vmatpush1.bf16.msra.mxu0 0
      %2181 = vmatprep.subr.bf16.mxu0 0
      %2182 = vmatpush1.bf16.msra.mxu0 0
      %2183 = vmatprep.subr.bf16.mxu0 0
      %2184 = vmatpush1.bf16.msra.mxu0 0
      %2185 = vmatprep.subr.bf16.mxu0 0
      %2186 = vmatpush1.bf16.msra.mxu0 0
      %2187 = vmatprep.subr.bf16.mxu0 0
      %2188 = vmatpush1.bf16.msra.mxu0 0
      %2189 = vmatprep.subr.bf16.mxu0 0
      %2190 = vmatpush1.bf16.msra.mxu0 0
      %2191 = vmatprep.subr.bf16.mxu0 0
      %2192 = vmatpush1.bf16.msra.mxu0 0
      %2193 = vmatprep.subr.bf16.mxu0 0
      %2194 = vmatpush1.bf16.msra.mxu0 0
      %2195 = vmatprep.mubr.bf16.mxu0 0
      %2196 = vmatmul.mubr.bf16.gmra.mrb[0].mxu0 %v2080
      %v2197 = vpop.f32.mrb[0].mxu0
      %v2198 = vadd.f32 0.0, %v2197
      %v2199 = vpop.f32.mrb[0].mxu0
      %v2200 = vpop.f32.mrb[0].mxu0
      %v2201 = vadd.f32 0.0, %v2200
      %v2202 = vpop.f32.mrb[0].mxu0
      %2203 = vmatprep.mubr.bf16.mxu0 0
      %2204 = vmatmul.mubr.bf16.gmra.mrb[0].mxu0 %v2081
      %v2205 = vpop.f32.mrb[0].mxu0
      %v2206 = vadd.f32 0.0, %v2205
      %v2207 = vpop.f32.mrb[0].mxu0
      %v2208 = vpop.f32.mrb[0].mxu0
      %v2209 = vadd.f32 0.0, %v2208
      %v2210 = vpop.f32.mrb[0].mxu0
      %2211 = vmatprep.mubr.bf16.mxu0 0
      %2212 = vmatmul.mubr.bf16.gmra.mrb[0].mxu0 %v2082
      %v2213 = vpop.f32.mrb[0].mxu0
      %v2214 = vadd.f32 0.0, %v2213
      %v2215 = vpop.f32.mrb[0].mxu0
      %v2216 = vpop.f32.mrb[0].mxu0
      %v2217 = vadd.f32 0.0, %v2216
      %v2218 = vpop.f32.mrb[0].mxu0
      %2219 = vmatprep.mubr.bf16.mxu0 0
      %2220 = vmatmul.mubr.bf16.gmra.mrb[0].mxu0 %v2083
      %v2221 = vpop.f32.mrb[0].mxu0
      %v2222 = vadd.f32 0.0, %v2221
      %v2223 = vpop.f32.mrb[0].mxu0
      %v2224 = vpop.f32.mrb[0].mxu0
      %v2225 = vadd.f32 0.0, %v2224
      %v2226 = vpop.f32.mrb[0].mxu0
      %2227 = vmatprep.mubr.bf16.mxu0 0
      %2228 = vmatmul.mubr.bf16.gmra.mrb[0].mxu0 %v2084
      %v2229 = vpop.f32.mrb[0].mxu0
      %v2230 = vadd.f32 0.0, %v2229
      %v2231 = vpop.f32.mrb[0].mxu0
      %v2232 = vpop.f32.mrb[0].mxu0
      %v2233 = vadd.f32 0.0, %v2232
      %v2234 = vpop.f32.mrb[0].mxu0
      %2235 = vmatprep.mubr.bf16.mxu0 0
      %2236 = vmatmul.mubr.bf16.gmra.mrb[0].mxu0 %v2085
      %v2237 = vpop.f32.mrb[0].mxu0
      %v2238 = vadd.f32 0.0, %v2237
      %v2239 = vpop.f32.mrb[0].mxu0
      %v2240 = vpop.f32.mrb[0].mxu0
      %v2241 = vadd.f32 0.0, %v2240
      %v2242 = vpop.f32.mrb[0].mxu0
      %2243 = vmatprep.mubr.bf16.mxu0 0
      %2244 = vmatmul.mubr.bf16.gmra.mrb[0].mxu0 %v2086
      %v2245 = vpop.f32.mrb[0].mxu0
      %v2246 = vadd.f32 0.0, %v2245
      %v2247 = vpop.f32.mrb[0].mxu0
      %v2248 = vpop.f32.mrb[0].mxu0
      %v2249 = vadd.f32 0.0, %v2248
      %v2250 = vpop.f32.mrb[0].mxu0
      %2251 = vmatprep.mubr.bf16.mxu0 0
      %2252 = vmatmul.mubr.bf16.gmra.mrb[0].mxu0 %v2087
      %v2253 = vpop.f32.mrb[0].mxu0
      %v2254 = vadd.f32 0.0, %v2253
      %v2255 = vpop.f32.mrb[0].mxu0
      %v2256 = vpop.f32.mrb[0].mxu0
      %v2257 = vadd.f32 0.0, %v2256
      %v2258 = vpop.f32.mrb[0].mxu0
      %2259 = vmatprep.mubr.bf16.mxu0 0
      %2260 = vmatmul.mubr.bf16.gmra.mrb[0].mxu0 %v2088
      %v2261 = vpop.f32.mrb[0].mxu0
      %v2262 = vadd.f32 0.0, %v2261
      %v2263 = vpop.f32.mrb[0].mxu0
      %v2264 = vpop.f32.mrb[0].mxu0
      %v2265 = vadd.f32 0.0, %v2264
      %v2266 = vpop.f32.mrb[0].mxu0
      %2267 = vmatprep.mubr.bf16.mxu0 0
      %2268 = vmatmul.mubr.bf16.gmra.mrb[0].mxu0 %v2089
      %v2269 = vpop.f32.mrb[0].mxu0
      %v2270 = vadd.f32 0.0, %v2269
      %v2271 = vpop.f32.mrb[0].mxu0
      %v2272 = vpop.f32.mrb[0].mxu0
      %v2273 = vadd.f32 0.0, %v2272
      %v2274 = vpop.f32.mrb[0].mxu0
      %2275 = vmatprep.mubr.bf16.mxu0 0
      %2276 = vmatmul.mubr.bf16.gmra.mrb[0].mxu0 %v2090
      %v2277 = vpop.f32.mrb[0].mxu0
      %v2278 = vadd.f32 0.0, %v2277
      %v2279 = vpop.f32.mrb[0].mxu0
      %v2280 = vpop.f32.mrb[0].mxu0
      %v2281 = vadd.f32 0.0, %v2280
      %v2282 = vpop.f32.mrb[0].mxu0
      %2283 = vmatprep.mubr.bf16.mxu0 0
      %2284 = vmatmul.mubr.bf16.gmra.mrb[0].mxu0 %v2091
      %v2285 = vpop.f32.mrb[0].mxu0
      %v2286 = vadd.f32 0.0, %v2285
      %v2287 = vpop.f32.mrb[0].mxu0
      %v2288 = vpop.f32.mrb[0].mxu0
      %v2289 = vadd.f32 0.0, %v2288
      %v2290 = vpop.f32.mrb[0].mxu0
      %2291 = vmatprep.mubr.bf16.mxu0 0
      %2292 = vmatmul.mubr.bf16.gmra.mrb[0].mxu0 %v2092
      %v2293 = vpop.f32.mrb[0].mxu0
      %v2294 = vadd.f32 0.0, %v2293
      %v2295 = vpop.f32.mrb[0].mxu0
      %v2296 = vpop.f32.mrb[0].mxu0
      %v2297 = vadd.f32 0.0, %v2296
      %v2298 = vpop.f32.mrb[0].mxu0
      %2299 = vmatprep.mubr.bf16.mxu0 0
      %2300 = vmatmul.mubr.bf16.gmra.mrb[0].mxu0 %v2093
      %v2301 = vpop.f32.mrb[0].mxu0
      %v2302 = vadd.f32 0.0, %v2301
      %v2303 = vpop.f32.mrb[0].mxu0
      %v2304 = vpop.f32.mrb[0].mxu0
      %v2305 = vadd.f32 0.0, %v2304
      %v2306 = vpop.f32.mrb[0].mxu0
      %2307 = vmatprep.mubr.bf16.mxu0 0
      %2308 = vmatmul.mubr.bf16.gmra.mrb[0].mxu0 %v2094
      %v2309 = vpop.f32.mrb[0].mxu0
      %v2310 = vadd.f32 0.0, %v2309
      %v2311 = vpop.f32.mrb[0].mxu0
      %v2312 = vpop.f32.mrb[0].mxu0
      %v2313 = vadd.f32 0.0, %v2312
      %v2314 = vpop.f32.mrb[0].mxu0
      %2315 = vmatprep.mubr.bf16.mxu0 0
      %2316 = vmatmul.mubr.bf16.gmra.mrb[0].mxu0 %v2095
      %v2317 = vpop.f32.mrb[0].mxu0
      %v2318 = vadd.f32 0.0, %v2317
      %v2319 = vpop.f32.mrb[0].mxu0
      %v2320 = vpop.f32.mrb[0].mxu0
      %v2321 = vadd.f32 0.0, %v2320
      %v2322 = vpop.f32.mrb[0].mxu0
      %2323 = vmatprep.mubr.bf16.mxu0 0
      %2324 = vmatmul.mubr.bf16.gmra.mrb[0].mxu0 %v2096
      %v2325 = vpop.f32.mrb[0].mxu0
      %v2326 = vadd.f32 0.0, %v2325
      %v2327 = vpop.f32.mrb[0].mxu0
      %v2328 = vpop.f32.mrb[0].mxu0
      %v2329 = vadd.f32 0.0, %v2328
      %v2330 = vpop.f32.mrb[0].mxu0
      %2331 = vmatprep.mubr.bf16.mxu0 0
      %2332 = vmatmul.mubr.bf16.gmra.mrb[0].mxu0 %v2097
      %v2333 = vpop.f32.mrb[0].mxu0
      %v2334 = vadd.f32 0.0, %v2333
      %v2335 = vpop.f32.mrb[0].mxu0
      %v2336 = vpop.f32.mrb[0].mxu0
      %v2337 = vadd.f32 0.0, %v2336
      %v2338 = vpop.f32.mrb[0].mxu0
      %2339 = vdwg.mxu0
      %v2340 = vadd.f32 %v2008, %v2198
      %v2341 = vadd.f32 %v2009, %v2201
      %v2342 = vadd.f32 %v2010, %v2206
      %v2343 = vadd.f32 %v2011, %v2209
      %v2344 = vadd.f32 %v2012, %v2214
      %v2345 = vadd.f32 %v2013, %v2217
      %v2346 = vadd.f32 %v2014, %v2222
      %v2347 = vadd.f32 %v2015, %v2225
      %v2348 = vadd.f32 %v2016, %v2230
      %v2349 = vadd.f32 %v2017, %v2233
      %v2350 = vadd.f32 %v2018, %v2238
      %v2351 = vadd.f32 %v2019, %v2241
      %v2352 = vadd.f32 %v2020, %v2246
      %v2353 = vadd.f32 %v2021, %v2249
      %v2354 = vadd.f32 %v2022, %v2254
      %v2355 = vadd.f32 %v2023, %v2257
      %v2356 = vadd.f32 %v2024, %v2262
      %v2357 = vadd.f32 %v2025, %v2265
      %v2358 = vadd.f32 %v2026, %v2270
      %v2359 = vadd.f32 %v2027, %v2273
      %v2360 = vadd.f32 %v2028, %v2278
      %v2361 = vadd.f32 %v2029, %v2281
      %v2362 = vadd.f32 %v2030, %v2286
      %v2363 = vadd.f32 %v2031, %v2289
      %v2364 = vadd.f32 %v2032, %v2294
      %v2365 = vadd.f32 %v2033, %v2297
      %v2366 = vadd.f32 %v2034, %v2302
      %v2367 = vadd.f32 %v2035, %v2305
      %v2368 = vadd.f32 %v2036, %v2310
      %v2369 = vadd.f32 %v2037, %v2313
      %v2370 = vadd.f32 %v2038, %v2318
      %v2371 = vadd.f32 %v2039, %v2321
      %v2372 = vadd.f32 %v2040, %v2326
      %v2373 = vadd.f32 %v2041, %v2329
      %v2374 = vadd.f32 %v2042, %v2334
      %v2375 = vadd.f32 %v2043, %v2337
      %v2376 = vld [vmem:[#allocation2 + $0x14] sm:$0xff]
      %v2377 = vld [vmem:[#allocation2 + $0x1c] sm:$0xff]
      %v2378 = vld [vmem:[#allocation2 + $0x24] sm:$0xff]
      %v2379 = vld [vmem:[#allocation2 + $0x2c] sm:$0xff]
      %v2380 = vld [vmem:[#allocation2 + $0x34] sm:$0xff]
      %v2381 = vld [vmem:[#allocation2 + $0x3c] sm:$0xff]
      %v2382 = vld [vmem:[#allocation2 + $0x44] sm:$0xff]
      %v2383 = vld [vmem:[#allocation2 + $0x4c] sm:$0xff]
      %v2384 = vld [vmem:[#allocation2 + $0x54] sm:$0xff]
      %v2385 = vld [vmem:[#allocation2 + $0x5c] sm:$0xff]
      %v2386 = vld [vmem:[#allocation2 + $0x64] sm:$0xff]
      %v2387 = vld [vmem:[#allocation2 + $0x6c] sm:$0xff]
      %v2388 = vld [vmem:[#allocation2 + $0x74] sm:$0xff]
      %v2389 = vld [vmem:[#allocation2 + $0x7c] sm:$0xff]
      %v2390 = vld [vmem:[#allocation2 + $0x84] sm:$0xff]
      %v2391 = vld [vmem:[#allocation2 + $0x8c] sm:$0xff]
      %v2392 = vld [vmem:[#allocation2 + $0x94] sm:$0xff]
      %v2393 = vld [vmem:[#allocation2 + $0x9c] sm:$0xff]
      %v2394 = vld [vmem:[#allocation2 + $0xa4] sm:$0xff]
      %v2395 = vld [vmem:[#allocation2 + $0xac] sm:$0xff]
      %v2396 = vld [vmem:[#allocation2 + $0xb4] sm:$0xff]
      %v2397 = vld [vmem:[#allocation2 + $0xbc] sm:$0xff]
      %v2398 = vld [vmem:[#allocation2 + $0xc4] sm:$0xff]
      %v2399 = vld [vmem:[#allocation2 + $0xcc] sm:$0xff]
      %v2400 = vld [vmem:[#allocation2 + $0xd4] sm:$0xff]
      %v2401 = vld [vmem:[#allocation2 + $0xdc] sm:$0xff]
      %v2402 = vld [vmem:[#allocation2 + $0xe4] sm:$0xff]
      %v2403 = vld [vmem:[#allocation2 + $0xec] sm:$0xff]
      %v2404 = vld [vmem:[#allocation2 + $0xf4] sm:$0xff]
      %v2405 = vld [vmem:[#allocation2 + $0xfc] sm:$0xff]
      %v2406 = vld [vmem:[#allocation2 + $0x104] sm:$0xff]
      %v2407 = vld [vmem:[#allocation2 + $0x10c] sm:$0xff]
      %v2408 = vld [vmem:[#allocation2 + $0x114] sm:$0xff]
      %v2409 = vld [vmem:[#allocation2 + $0x11c] sm:$0xff]
      %v2410 = vld [vmem:[#allocation2 + $0x124] sm:$0xff]
      %v2411 = vld [vmem:[#allocation2 + $0x12c] sm:$0xff]
      %v2412 = vpack.c.bf16 %v2377, %v2376
      %v2413 = vpack.c.bf16 %v2379, %v2378
      %v2414 = vpack.c.bf16 %v2381, %v2380
      %v2415 = vpack.c.bf16 %v2383, %v2382
      %v2416 = vpack.c.bf16 %v2385, %v2384
      %v2417 = vpack.c.bf16 %v2387, %v2386
      %v2418 = vpack.c.bf16 %v2389, %v2388
      %v2419 = vpack.c.bf16 %v2391, %v2390
      %v2420 = vpack.c.bf16 %v2393, %v2392
      %v2421 = vpack.c.bf16 %v2395, %v2394
      %v2422 = vpack.c.bf16 %v2397, %v2396
      %v2423 = vpack.c.bf16 %v2399, %v2398
      %v2424 = vpack.c.bf16 %v2401, %v2400
      %v2425 = vpack.c.bf16 %v2403, %v2402
      %v2426 = vpack.c.bf16 %v2405, %v2404
      %v2427 = vpack.c.bf16 %v2407, %v2406
      %v2428 = vpack.c.bf16 %v2409, %v2408
      %v2429 = vpack.c.bf16 %v2411, %v2410
      %s2430 = scalar_lea.vmem %s3, 320
      %v2431 = vld [vmem:[%s2430] sm:$0xf]
      %v2432 = vld [vmem:[%s2430 + $0x4] sm:$0xf]
      %v2433 = vld [vmem:[%s2430 + $0x8] sm:$0xf]
      %v2434 = vld [vmem:[%s2430 + $0xc] sm:$0xf]
      %v2435 = vld [vmem:[%s2430 + $0x10] sm:$0xf]
      %v2436 = vld [vmem:[%s2430 + $0x14] sm:$0xf]
      %v2437 = vld [vmem:[%s2430 + $0x18] sm:$0xf]
      %v2438 = vld [vmem:[%s2430 + $0x1c] sm:$0xf]
      %v2439 = vld [vmem:[%s2430 + $0x20] sm:$0xf]
      %v2440 = vld [vmem:[%s2430 + $0x24] sm:$0xf]
      %v2441 = vld [vmem:[%s2430 + $0x28] sm:$0xf]
      %v2442 = vld [vmem:[%s2430 + $0x2c] sm:$0xf]
      %v2443 = vld [vmem:[%s2430 + $0x30] sm:$0xf]
      %v2444 = vld [vmem:[%s2430 + $0x34] sm:$0xf]
      %v2445 = vld [vmem:[%s2430 + $0x38] sm:$0xf]
      %v2446 = vld [vmem:[%s2430 + $0x3c] sm:$0xf]
      %v2463 = vunpack.c.l.b16 %v2431
      %v2464 = vunpack.c.l.b16 %v2432
      %v2465 = vunpack.c.l.b16 %v2433
      %v2466 = vunpack.c.l.b16 %v2434
      %v2467 = vunpack.c.l.b16 %v2435
      %v2468 = vunpack.c.l.b16 %v2436
      %v2469 = vunpack.c.l.b16 %v2437
      %v2470 = vunpack.c.l.b16 %v2438
      %v2471 = vunpack.c.l.b16 %v2439
      %v2472 = vunpack.c.l.b16 %v2440
      %v2473 = vunpack.c.l.b16 %v2441
      %v2474 = vunpack.c.l.b16 %v2442
      %v2475 = vunpack.c.l.b16 %v2443
      %v2476 = vunpack.c.l.b16 %v2444
      %v2477 = vunpack.c.l.b16 %v2445
      %v2478 = vunpack.c.l.b16 %v2446
      %v2479 = vpack.c.b16 %v2464, %v2463
      %v2480 = vpack.c.b16 %v2466, %v2465
      %v2481 = vpack.c.b16 %v2468, %v2467
      %v2482 = vpack.c.b16 %v2470, %v2469
      %v2483 = vpack.c.b16 %v2472, %v2471
      %v2484 = vpack.c.b16 %v2474, %v2473
      %v2485 = vpack.c.b16 %v2476, %v2475
      %v2486 = vpack.c.b16 %v2478, %v2477
      %2495 = vmatprep.subr.bf16.mxu0 0
      %2496 = vmatpush1.bf16.msra.mxu0 %v2479
      %2497 = vmatprep.subr.bf16.mxu0 0
      %2498 = vmatpush1.bf16.msra.mxu0 %v2480
      %2499 = vmatprep.subr.bf16.mxu0 0
      %2500 = vmatpush1.bf16.msra.mxu0 %v2481
      %2501 = vmatprep.subr.bf16.mxu0 0
      %2502 = vmatpush1.bf16.msra.mxu0 %v2482
      %2503 = vmatprep.subr.bf16.mxu0 0
      %2504 = vmatpush1.bf16.msra.mxu0 %v2483
      %2505 = vmatprep.subr.bf16.mxu0 0
      %2506 = vmatpush1.bf16.msra.mxu0 %v2484
      %2507 = vmatprep.subr.bf16.mxu0 0
      %2508 = vmatpush1.bf16.msra.mxu0 %v2485
      %2509 = vmatprep.subr.bf16.mxu0 0
      %2510 = vmatpush1.bf16.msra.mxu0 %v2486
      %2511 = vmatprep.subr.bf16.mxu0 0
      %2512 = vmatpush1.bf16.msra.mxu0 0
      %2513 = vmatprep.subr.bf16.mxu0 0
      %2514 = vmatpush1.bf16.msra.mxu0 0
      %2515 = vmatprep.subr.bf16.mxu0 0
      %2516 = vmatpush1.bf16.msra.mxu0 0
      %2517 = vmatprep.subr.bf16.mxu0 0
      %2518 = vmatpush1.bf16.msra.mxu0 0
      %2519 = vmatprep.subr.bf16.mxu0 0
      %2520 = vmatpush1.bf16.msra.mxu0 0
      %2521 = vmatprep.subr.bf16.mxu0 0
      %2522 = vmatpush1.bf16.msra.mxu0 0
      %2523 = vmatprep.subr.bf16.mxu0 0
      %2524 = vmatpush1.bf16.msra.mxu0 0
      %2525 = vmatprep.subr.bf16.mxu0 0
      %2526 = vmatpush1.bf16.msra.mxu0 0
      %2527 = vmatprep.mubr.bf16.mxu0 0
      %2528 = vmatmul.mubr.bf16.gmra.mrb[0].mxu0 %v2412
      %v2529 = vpop.f32.mrb[0].mxu0
      %v2530 = vadd.f32 0.0, %v2529
      %v2531 = vpop.f32.mrb[0].mxu0
      %v2532 = vpop.f32.mrb[0].mxu0
      %v2533 = vadd.f32 0.0, %v2532
      %v2534 = vpop.f32.mrb[0].mxu0
      %2535 = vmatprep.mubr.bf16.mxu0 0
      %2536 = vmatmul.mubr.bf16.gmra.mrb[0].mxu0 %v2413
      %v2537 = vpop.f32.mrb[0].mxu0
      %v2538 = vadd.f32 0.0, %v2537
      %v2539 = vpop.f32.mrb[0].mxu0
      %v2540 = vpop.f32.mrb[0].mxu0
      %v2541 = vadd.f32 0.0, %v2540
      %v2542 = vpop.f32.mrb[0].mxu0
      %2543 = vmatprep.mubr.bf16.mxu0 0
      %2544 = vmatmul.mubr.bf16.gmra.mrb[0].mxu0 %v2414
      %v2545 = vpop.f32.mrb[0].mxu0
      %v2546 = vadd.f32 0.0, %v2545
      %v2547 = vpop.f32.mrb[0].mxu0
      %v2548 = vpop.f32.mrb[0].mxu0
      %v2549 = vadd.f32 0.0, %v2548
      %v2550 = vpop.f32.mrb[0].mxu0
      %2551 = vmatprep.mubr.bf16.mxu0 0
      %2552 = vmatmul.mubr.bf16.gmra.mrb[0].mxu0 %v2415
      %v2553 = vpop.f32.mrb[0].mxu0
      %v2554 = vadd.f32 0.0, %v2553
      %v2555 = vpop.f32.mrb[0].mxu0
      %v2556 = vpop.f32.mrb[0].mxu0
      %v2557 = vadd.f32 0.0, %v2556
      %v2558 = vpop.f32.mrb[0].mxu0
      %2559 = vmatprep.mubr.bf16.mxu0 0
      %2560 = vmatmul.mubr.bf16.gmra.mrb[0].mxu0 %v2416
      %v2561 = vpop.f32.mrb[0].mxu0
      %v2562 = vadd.f32 0.0, %v2561
      %v2563 = vpop.f32.mrb[0].mxu0
      %v2564 = vpop.f32.mrb[0].mxu0
      %v2565 = vadd.f32 0.0, %v2564
      %v2566 = vpop.f32.mrb[0].mxu0
      %2567 = vmatprep.mubr.bf16.mxu0 0
      %2568 = vmatmul.mubr.bf16.gmra.mrb[0].mxu0 %v2417
      %v2569 = vpop.f32.mrb[0].mxu0
      %v2570 = vadd.f32 0.0, %v2569
      %v2571 = vpop.f32.mrb[0].mxu0
      %v2572 = vpop.f32.mrb[0].mxu0
      %v2573 = vadd.f32 0.0, %v2572
      %v2574 = vpop.f32.mrb[0].mxu0
      %2575 = vmatprep.mubr.bf16.mxu0 0
      %2576 = vmatmul.mubr.bf16.gmra.mrb[0].mxu0 %v2418
      %v2577 = vpop.f32.mrb[0].mxu0
      %v2578 = vadd.f32 0.0, %v2577
      %v2579 = vpop.f32.mrb[0].mxu0
      %v2580 = vpop.f32.mrb[0].mxu0
      %v2581 = vadd.f32 0.0, %v2580
      %v2582 = vpop.f32.mrb[0].mxu0
      %2583 = vmatprep.mubr.bf16.mxu0 0
      %2584 = vmatmul.mubr.bf16.gmra.mrb[0].mxu0 %v2419
      %v2585 = vpop.f32.mrb[0].mxu0
      %v2586 = vadd.f32 0.0, %v2585
      %v2587 = vpop.f32.mrb[0].mxu0
      %v2588 = vpop.f32.mrb[0].mxu0
      %v2589 = vadd.f32 0.0, %v2588
      %v2590 = vpop.f32.mrb[0].mxu0
      %2591 = vmatprep.mubr.bf16.mxu0 0
      %2592 = vmatmul.mubr.bf16.gmra.mrb[0].mxu0 %v2420
      %v2593 = vpop.f32.mrb[0].mxu0
      %v2594 = vadd.f32 0.0, %v2593
      %v2595 = vpop.f32.mrb[0].mxu0
      %v2596 = vpop.f32.mrb[0].mxu0
      %v2597 = vadd.f32 0.0, %v2596
      %v2598 = vpop.f32.mrb[0].mxu0
      %2599 = vmatprep.mubr.bf16.mxu0 0
      %2600 = vmatmul.mubr.bf16.gmra.mrb[0].mxu0 %v2421
      %v2601 = vpop.f32.mrb[0].mxu0
      %v2602 = vadd.f32 0.0, %v2601
      %v2603 = vpop.f32.mrb[0].mxu0
      %v2604 = vpop.f32.mrb[0].mxu0
      %v2605 = vadd.f32 0.0, %v2604
      %v2606 = vpop.f32.mrb[0].mxu0
      %2607 = vmatprep.mubr.bf16.mxu0 0
      %2608 = vmatmul.mubr.bf16.gmra.mrb[0].mxu0 %v2422
      %v2609 = vpop.f32.mrb[0].mxu0
      %v2610 = vadd.f32 0.0, %v2609
      %v2611 = vpop.f32.mrb[0].mxu0
      %v2612 = vpop.f32.mrb[0].mxu0
      %v2613 = vadd.f32 0.0, %v2612
      %v2614 = vpop.f32.mrb[0].mxu0
      %2615 = vmatprep.mubr.bf16.mxu0 0
      %2616 = vmatmul.mubr.bf16.gmra.mrb[0].mxu0 %v2423
      %v2617 = vpop.f32.mrb[0].mxu0
      %v2618 = vadd.f32 0.0, %v2617
      %v2619 = vpop.f32.mrb[0].mxu0
      %v2620 = vpop.f32.mrb[0].mxu0
      %v2621 = vadd.f32 0.0, %v2620
      %v2622 = vpop.f32.mrb[0].mxu0
      %2623 = vmatprep.mubr.bf16.mxu0 0
      %2624 = vmatmul.mubr.bf16.gmra.mrb[0].mxu0 %v2424
      %v2625 = vpop.f32.mrb[0].mxu0
      %v2626 = vadd.f32 0.0, %v2625
      %v2627 = vpop.f32.mrb[0].mxu0
      %v2628 = vpop.f32.mrb[0].mxu0
      %v2629 = vadd.f32 0.0, %v2628
      %v2630 = vpop.f32.mrb[0].mxu0
      %2631 = vmatprep.mubr.bf16.mxu0 0
      %2632 = vmatmul.mubr.bf16.gmra.mrb[0].mxu0 %v2425
      %v2633 = vpop.f32.mrb[0].mxu0
      %v2634 = vadd.f32 0.0, %v2633
      %v2635 = vpop.f32.mrb[0].mxu0
      %v2636 = vpop.f32.mrb[0].mxu0
      %v2637 = vadd.f32 0.0, %v2636
      %v2638 = vpop.f32.mrb[0].mxu0
      %2639 = vmatprep.mubr.bf16.mxu0 0
      %2640 = vmatmul.mubr.bf16.gmra.mrb[0].mxu0 %v2426
      %v2641 = vpop.f32.mrb[0].mxu0
      %v2642 = vadd.f32 0.0, %v2641
      %v2643 = vpop.f32.mrb[0].mxu0
      %v2644 = vpop.f32.mrb[0].mxu0
      %v2645 = vadd.f32 0.0, %v2644
      %v2646 = vpop.f32.mrb[0].mxu0
      %2647 = vmatprep.mubr.bf16.mxu0 0
      %2648 = vmatmul.mubr.bf16.gmra.mrb[0].mxu0 %v2427
      %v2649 = vpop.f32.mrb[0].mxu0
      %v2650 = vadd.f32 0.0, %v2649
      %v2651 = vpop.f32.mrb[0].mxu0
      %v2652 = vpop.f32.mrb[0].mxu0
      %v2653 = vadd.f32 0.0, %v2652
      %v2654 = vpop.f32.mrb[0].mxu0
      %2655 = vmatprep.mubr.bf16.mxu0 0
      %2656 = vmatmul.mubr.bf16.gmra.mrb[0].mxu0 %v2428
      %v2657 = vpop.f32.mrb[0].mxu0
      %v2658 = vadd.f32 0.0, %v2657
      %v2659 = vpop.f32.mrb[0].mxu0
      %v2660 = vpop.f32.mrb[0].mxu0
      %v2661 = vadd.f32 0.0, %v2660
      %v2662 = vpop.f32.mrb[0].mxu0
      %2663 = vmatprep.mubr.bf16.mxu0 0
      %2664 = vmatmul.mubr.bf16.gmra.mrb[0].mxu0 %v2429
      %v2665 = vpop.f32.mrb[0].mxu0
      %v2666 = vadd.f32 0.0, %v2665
      %v2667 = vpop.f32.mrb[0].mxu0
      %v2668 = vpop.f32.mrb[0].mxu0
      %v2669 = vadd.f32 0.0, %v2668
      %v2670 = vpop.f32.mrb[0].mxu0
      %2671 = vdwg.mxu0
      %v2672 = vadd.f32 %v2340, %v2530
      %v2673 = vadd.f32 %v2341, %v2533
      %v2674 = vadd.f32 %v2342, %v2538
      %v2675 = vadd.f32 %v2343, %v2541
      %v2676 = vadd.f32 %v2344, %v2546
      %v2677 = vadd.f32 %v2345, %v2549
      %v2678 = vadd.f32 %v2346, %v2554
      %v2679 = vadd.f32 %v2347, %v2557
      %v2680 = vadd.f32 %v2348, %v2562
      %v2681 = vadd.f32 %v2349, %v2565
      %v2682 = vadd.f32 %v2350, %v2570
      %v2683 = vadd.f32 %v2351, %v2573
      %v2684 = vadd.f32 %v2352, %v2578
      %v2685 = vadd.f32 %v2353, %v2581
      %v2686 = vadd.f32 %v2354, %v2586
      %v2687 = vadd.f32 %v2355, %v2589
      %v2688 = vadd.f32 %v2356, %v2594
      %v2689 = vadd.f32 %v2357, %v2597
      %v2690 = vadd.f32 %v2358, %v2602
      %v2691 = vadd.f32 %v2359, %v2605
      %v2692 = vadd.f32 %v2360, %v2610
      %v2693 = vadd.f32 %v2361, %v2613
      %v2694 = vadd.f32 %v2362, %v2618
      %v2695 = vadd.f32 %v2363, %v2621
      %v2696 = vadd.f32 %v2364, %v2626
      %v2697 = vadd.f32 %v2365, %v2629
      %v2698 = vadd.f32 %v2366, %v2634
      %v2699 = vadd.f32 %v2367, %v2637
      %v2700 = vadd.f32 %v2368, %v2642
      %v2701 = vadd.f32 %v2369, %v2645
      %v2702 = vadd.f32 %v2370, %v2650
      %v2703 = vadd.f32 %v2371, %v2653
      %v2704 = vadd.f32 %v2372, %v2658
      %v2705 = vadd.f32 %v2373, %v2661
      %v2706 = vadd.f32 %v2374, %v2666
      %v2707 = vadd.f32 %v2375, %v2669
      %v2708 = vld [vmem:[#allocation2 + $0x24] sm:$0xff]
      %v2709 = vld [vmem:[#allocation2 + $0x2c] sm:$0xff]
      %v2710 = vld [vmem:[#allocation2 + $0x34] sm:$0xff]
      %v2711 = vld [vmem:[#allocation2 + $0x3c] sm:$0xff]
      %v2712 = vld [vmem:[#allocation2 + $0x44] sm:$0xff]
      %v2713 = vld [vmem:[#allocation2 + $0x4c] sm:$0xff]
      %v2714 = vld [vmem:[#allocation2 + $0x54] sm:$0xff]
      %v2715 = vld [vmem:[#allocation2 + $0x5c] sm:$0xff]
      %v2716 = vld [vmem:[#allocation2 + $0x64] sm:$0xff]
      %v2717 = vld [vmem:[#allocation2 + $0x6c] sm:$0xff]
      %v2718 = vld [vmem:[#allocation2 + $0x74] sm:$0xff]
      %v2719 = vld [vmem:[#allocation2 + $0x7c] sm:$0xff]
      %v2720 = vld [vmem:[#allocation2 + $0x84] sm:$0xff]
      %v2721 = vld [vmem:[#allocation2 + $0x8c] sm:$0xff]
      %v2722 = vld [vmem:[#allocation2 + $0x94] sm:$0xff]
      %v2723 = vld [vmem:[#allocation2 + $0x9c] sm:$0xff]
      %v2724 = vld [vmem:[#allocation2 + $0xa4] sm:$0xff]
      %v2725 = vld [vmem:[#allocation2 + $0xac] sm:$0xff]
      %v2726 = vld [vmem:[#allocation2 + $0xb4] sm:$0xff]
      %v2727 = vld [vmem:[#allocation2 + $0xbc] sm:$0xff]
      %v2728 = vld [vmem:[#allocation2 + $0xc4] sm:$0xff]
      %v2729 = vld [vmem:[#allocation2 + $0xcc] sm:$0xff]
      %v2730 = vld [vmem:[#allocation2 + $0xd4] sm:$0xff]
      %v2731 = vld [vmem:[#allocation2 + $0xdc] sm:$0xff]
      %v2732 = vld [vmem:[#allocation2 + $0xe4] sm:$0xff]
      %v2733 = vld [vmem:[#allocation2 + $0xec] sm:$0xff]
      %v2734 = vld [vmem:[#allocation2 + $0xf4] sm:$0xff]
      %v2735 = vld [vmem:[#allocation2 + $0xfc] sm:$0xff]
      %v2736 = vld [vmem:[#allocation2 + $0x104] sm:$0xff]
      %v2737 = vld [vmem:[#allocation2 + $0x10c] sm:$0xff]
      %v2738 = vld [vmem:[#allocation2 + $0x114] sm:$0xff]
      %v2739 = vld [vmem:[#allocation2 + $0x11c] sm:$0xff]
      %v2740 = vld [vmem:[#allocation2 + $0x124] sm:$0xff]
      %v2741 = vld [vmem:[#allocation2 + $0x12c] sm:$0xff]
      %v2742 = vld [vmem:[#allocation2 + $0x134] sm:$0xff]
      %v2743 = vld [vmem:[#allocation2 + $0x13c] sm:$0xff]
      %v2744 = vpack.c.bf16 %v2709, %v2708
      %v2745 = vpack.c.bf16 %v2711, %v2710
      %v2746 = vpack.c.bf16 %v2713, %v2712
      %v2747 = vpack.c.bf16 %v2715, %v2714
      %v2748 = vpack.c.bf16 %v2717, %v2716
      %v2749 = vpack.c.bf16 %v2719, %v2718
      %v2750 = vpack.c.bf16 %v2721, %v2720
      %v2751 = vpack.c.bf16 %v2723, %v2722
      %v2752 = vpack.c.bf16 %v2725, %v2724
      %v2753 = vpack.c.bf16 %v2727, %v2726
      %v2754 = vpack.c.bf16 %v2729, %v2728
      %v2755 = vpack.c.bf16 %v2731, %v2730
      %v2756 = vpack.c.bf16 %v2733, %v2732
      %v2757 = vpack.c.bf16 %v2735, %v2734
      %v2758 = vpack.c.bf16 %v2737, %v2736
      %v2759 = vpack.c.bf16 %v2739, %v2738
      %v2760 = vpack.c.bf16 %v2741, %v2740
      %v2761 = vpack.c.bf16 %v2743, %v2742
      %s2762 = scalar_lea.vmem %s3, 384
      %v2763 = vld [vmem:[%s2762] sm:$0xf]
      %v2764 = vld [vmem:[%s2762 + $0x4] sm:$0xf]
      %v2765 = vld [vmem:[%s2762 + $0x8] sm:$0xf]
      %v2766 = vld [vmem:[%s2762 + $0xc] sm:$0xf]
      %v2767 = vld [vmem:[%s2762 + $0x10] sm:$0xf]
      %v2768 = vld [vmem:[%s2762 + $0x14] sm:$0xf]
      %v2769 = vld [vmem:[%s2762 + $0x18] sm:$0xf]
      %v2770 = vld [vmem:[%s2762 + $0x1c] sm:$0xf]
      %v2771 = vld [vmem:[%s2762 + $0x20] sm:$0xf]
      %v2772 = vld [vmem:[%s2762 + $0x24] sm:$0xf]
      %v2773 = vld [vmem:[%s2762 + $0x28] sm:$0xf]
      %v2774 = vld [vmem:[%s2762 + $0x2c] sm:$0xf]
      %v2775 = vld [vmem:[%s2762 + $0x30] sm:$0xf]
      %v2776 = vld [vmem:[%s2762 + $0x34] sm:$0xf]
      %v2777 = vld [vmem:[%s2762 + $0x38] sm:$0xf]
      %v2778 = vld [vmem:[%s2762 + $0x3c] sm:$0xf]
      %v2795 = vunpack.c.l.b16 %v2763
      %v2796 = vunpack.c.l.b16 %v2764
      %v2797 = vunpack.c.l.b16 %v2765
      %v2798 = vunpack.c.l.b16 %v2766
      %v2799 = vunpack.c.l.b16 %v2767
      %v2800 = vunpack.c.l.b16 %v2768
      %v2801 = vunpack.c.l.b16 %v2769
      %v2802 = vunpack.c.l.b16 %v2770
      %v2803 = vunpack.c.l.b16 %v2771
      %v2804 = vunpack.c.l.b16 %v2772
      %v2805 = vunpack.c.l.b16 %v2773
      %v2806 = vunpack.c.l.b16 %v2774
      %v2807 = vunpack.c.l.b16 %v2775
      %v2808 = vunpack.c.l.b16 %v2776
      %v2809 = vunpack.c.l.b16 %v2777
      %v2810 = vunpack.c.l.b16 %v2778
      %v2811 = vpack.c.b16 %v2796, %v2795
      %v2812 = vpack.c.b16 %v2798, %v2797
      %v2813 = vpack.c.b16 %v2800, %v2799
      %v2814 = vpack.c.b16 %v2802, %v2801
      %v2815 = vpack.c.b16 %v2804, %v2803
      %v2816 = vpack.c.b16 %v2806, %v2805
      %v2817 = vpack.c.b16 %v2808, %v2807
      %v2818 = vpack.c.b16 %v2810, %v2809
      %2827 = vmatprep.subr.bf16.mxu0 0
      %2828 = vmatpush1.bf16.msra.mxu0 %v2811
      %2829 = vmatprep.subr.bf16.mxu0 0
      %2830 = vmatpush1.bf16.msra.mxu0 %v2812
      %2831 = vmatprep.subr.bf16.mxu0 0
      %2832 = vmatpush1.bf16.msra.mxu0 %v2813
      %2833 = vmatprep.subr.bf16.mxu0 0
      %2834 = vmatpush1.bf16.msra.mxu0 %v2814
      %2835 = vmatprep.subr.bf16.mxu0 0
      %2836 = vmatpush1.bf16.msra.mxu0 %v2815
      %2837 = vmatprep.subr.bf16.mxu0 0
      %2838 = vmatpush1.bf16.msra.mxu0 %v2816
      %2839 = vmatprep.subr.bf16.mxu0 0
      %2840 = vmatpush1.bf16.msra.mxu0 %v2817
      %2841 = vmatprep.subr.bf16.mxu0 0
      %2842 = vmatpush1.bf16.msra.mxu0 %v2818
      %2843 = vmatprep.subr.bf16.mxu0 0
      %2844 = vmatpush1.bf16.msra.mxu0 0
      %2845 = vmatprep.subr.bf16.mxu0 0
      %2846 = vmatpush1.bf16.msra.mxu0 0
      %2847 = vmatprep.subr.bf16.mxu0 0
      %2848 = vmatpush1.bf16.msra.mxu0 0
      %2849 = vmatprep.subr.bf16.mxu0 0
      %2850 = vmatpush1.bf16.msra.mxu0 0
      %2851 = vmatprep.subr.bf16.mxu0 0
      %2852 = vmatpush1.bf16.msra.mxu0 0
      %2853 = vmatprep.subr.bf16.mxu0 0
      %2854 = vmatpush1.bf16.msra.mxu0 0
      %2855 = vmatprep.subr.bf16.mxu0 0
      %2856 = vmatpush1.bf16.msra.mxu0 0
      %2857 = vmatprep.subr.bf16.mxu0 0
      %2858 = vmatpush1.bf16.msra.mxu0 0
      %2859 = vmatprep.mubr.bf16.mxu0 0
      %2860 = vmatmul.mubr.bf16.gmra.mrb[0].mxu0 %v2744
      %v2861 = vpop.f32.mrb[0].mxu0
      %v2862 = vadd.f32 0.0, %v2861
      %v2863 = vpop.f32.mrb[0].mxu0
      %v2864 = vpop.f32.mrb[0].mxu0
      %v2865 = vadd.f32 0.0, %v2864
      %v2866 = vpop.f32.mrb[0].mxu0
      %2867 = vmatprep.mubr.bf16.mxu0 0
      %2868 = vmatmul.mubr.bf16.gmra.mrb[0].mxu0 %v2745
      %v2869 = vpop.f32.mrb[0].mxu0
      %v2870 = vadd.f32 0.0, %v2869
      %v2871 = vpop.f32.mrb[0].mxu0
      %v2872 = vpop.f32.mrb[0].mxu0
      %v2873 = vadd.f32 0.0, %v2872
      %v2874 = vpop.f32.mrb[0].mxu0
      %2875 = vmatprep.mubr.bf16.mxu0 0
      %2876 = vmatmul.mubr.bf16.gmra.mrb[0].mxu0 %v2746
      %v2877 = vpop.f32.mrb[0].mxu0
      %v2878 = vadd.f32 0.0, %v2877
      %v2879 = vpop.f32.mrb[0].mxu0
      %v2880 = vpop.f32.mrb[0].mxu0
      %v2881 = vadd.f32 0.0, %v2880
      %v2882 = vpop.f32.mrb[0].mxu0
      %2883 = vmatprep.mubr.bf16.mxu0 0
      %2884 = vmatmul.mubr.bf16.gmra.mrb[0].mxu0 %v2747
      %v2885 = vpop.f32.mrb[0].mxu0
      %v2886 = vadd.f32 0.0, %v2885
      %v2887 = vpop.f32.mrb[0].mxu0
      %v2888 = vpop.f32.mrb[0].mxu0
      %v2889 = vadd.f32 0.0, %v2888
      %v2890 = vpop.f32.mrb[0].mxu0
      %2891 = vmatprep.mubr.bf16.mxu0 0
      %2892 = vmatmul.mubr.bf16.gmra.mrb[0].mxu0 %v2748
      %v2893 = vpop.f32.mrb[0].mxu0
      %v2894 = vadd.f32 0.0, %v2893
      %v2895 = vpop.f32.mrb[0].mxu0
      %v2896 = vpop.f32.mrb[0].mxu0
      %v2897 = vadd.f32 0.0, %v2896
      %v2898 = vpop.f32.mrb[0].mxu0
      %2899 = vmatprep.mubr.bf16.mxu0 0
      %2900 = vmatmul.mubr.bf16.gmra.mrb[0].mxu0 %v2749
      %v2901 = vpop.f32.mrb[0].mxu0
      %v2902 = vadd.f32 0.0, %v2901
      %v2903 = vpop.f32.mrb[0].mxu0
      %v2904 = vpop.f32.mrb[0].mxu0
      %v2905 = vadd.f32 0.0, %v2904
      %v2906 = vpop.f32.mrb[0].mxu0
      %2907 = vmatprep.mubr.bf16.mxu0 0
      %2908 = vmatmul.mubr.bf16.gmra.mrb[0].mxu0 %v2750
      %v2909 = vpop.f32.mrb[0].mxu0
      %v2910 = vadd.f32 0.0, %v2909
      %v2911 = vpop.f32.mrb[0].mxu0
      %v2912 = vpop.f32.mrb[0].mxu0
      %v2913 = vadd.f32 0.0, %v2912
      %v2914 = vpop.f32.mrb[0].mxu0
      %2915 = vmatprep.mubr.bf16.mxu0 0
      %2916 = vmatmul.mubr.bf16.gmra.mrb[0].mxu0 %v2751
      %v2917 = vpop.f32.mrb[0].mxu0
      %v2918 = vadd.f32 0.0, %v2917
      %v2919 = vpop.f32.mrb[0].mxu0
      %v2920 = vpop.f32.mrb[0].mxu0
      %v2921 = vadd.f32 0.0, %v2920
      %v2922 = vpop.f32.mrb[0].mxu0
      %2923 = vmatprep.mubr.bf16.mxu0 0
      %2924 = vmatmul.mubr.bf16.gmra.mrb[0].mxu0 %v2752
      %v2925 = vpop.f32.mrb[0].mxu0
      %v2926 = vadd.f32 0.0, %v2925
      %v2927 = vpop.f32.mrb[0].mxu0
      %v2928 = vpop.f32.mrb[0].mxu0
      %v2929 = vadd.f32 0.0, %v2928
      %v2930 = vpop.f32.mrb[0].mxu0
      %2931 = vmatprep.mubr.bf16.mxu0 0
      %2932 = vmatmul.mubr.bf16.gmra.mrb[0].mxu0 %v2753
      %v2933 = vpop.f32.mrb[0].mxu0
      %v2934 = vadd.f32 0.0, %v2933
      %v2935 = vpop.f32.mrb[0].mxu0
      %v2936 = vpop.f32.mrb[0].mxu0
      %v2937 = vadd.f32 0.0, %v2936
      %v2938 = vpop.f32.mrb[0].mxu0
      %2939 = vmatprep.mubr.bf16.mxu0 0
      %2940 = vmatmul.mubr.bf16.gmra.mrb[0].mxu0 %v2754
      %v2941 = vpop.f32.mrb[0].mxu0
      %v2942 = vadd.f32 0.0, %v2941
      %v2943 = vpop.f32.mrb[0].mxu0
      %v2944 = vpop.f32.mrb[0].mxu0
      %v2945 = vadd.f32 0.0, %v2944
      %v2946 = vpop.f32.mrb[0].mxu0
      %2947 = vmatprep.mubr.bf16.mxu0 0
      %2948 = vmatmul.mubr.bf16.gmra.mrb[0].mxu0 %v2755
      %v2949 = vpop.f32.mrb[0].mxu0
      %v2950 = vadd.f32 0.0, %v2949
      %v2951 = vpop.f32.mrb[0].mxu0
      %v2952 = vpop.f32.mrb[0].mxu0
      %v2953 = vadd.f32 0.0, %v2952
      %v2954 = vpop.f32.mrb[0].mxu0
      %2955 = vmatprep.mubr.bf16.mxu0 0
      %2956 = vmatmul.mubr.bf16.gmra.mrb[0].mxu0 %v2756
      %v2957 = vpop.f32.mrb[0].mxu0
      %v2958 = vadd.f32 0.0, %v2957
      %v2959 = vpop.f32.mrb[0].mxu0
      %v2960 = vpop.f32.mrb[0].mxu0
      %v2961 = vadd.f32 0.0, %v2960
      %v2962 = vpop.f32.mrb[0].mxu0
      %2963 = vmatprep.mubr.bf16.mxu0 0
      %2964 = vmatmul.mubr.bf16.gmra.mrb[0].mxu0 %v2757
      %v2965 = vpop.f32.mrb[0].mxu0
      %v2966 = vadd.f32 0.0, %v2965
      %v2967 = vpop.f32.mrb[0].mxu0
      %v2968 = vpop.f32.mrb[0].mxu0
      %v2969 = vadd.f32 0.0, %v2968
      %v2970 = vpop.f32.mrb[0].mxu0
      %2971 = vmatprep.mubr.bf16.mxu0 0
      %2972 = vmatmul.mubr.bf16.gmra.mrb[0].mxu0 %v2758
      %v2973 = vpop.f32.mrb[0].mxu0
      %v2974 = vadd.f32 0.0, %v2973
      %v2975 = vpop.f32.mrb[0].mxu0
      %v2976 = vpop.f32.mrb[0].mxu0
      %v2977 = vadd.f32 0.0, %v2976
      %v2978 = vpop.f32.mrb[0].mxu0
      %2979 = vmatprep.mubr.bf16.mxu0 0
      %2980 = vmatmul.mubr.bf16.gmra.mrb[0].mxu0 %v2759
      %v2981 = vpop.f32.mrb[0].mxu0
      %v2982 = vadd.f32 0.0, %v2981
      %v2983 = vpop.f32.mrb[0].mxu0
      %v2984 = vpop.f32.mrb[0].mxu0
      %v2985 = vadd.f32 0.0, %v2984
      %v2986 = vpop.f32.mrb[0].mxu0
      %2987 = vmatprep.mubr.bf16.mxu0 0
      %2988 = vmatmul.mubr.bf16.gmra.mrb[0].mxu0 %v2760
      %v2989 = vpop.f32.mrb[0].mxu0
      %v2990 = vadd.f32 0.0, %v2989
      %v2991 = vpop.f32.mrb[0].mxu0
      %v2992 = vpop.f32.mrb[0].mxu0
      %v2993 = vadd.f32 0.0, %v2992
      %v2994 = vpop.f32.mrb[0].mxu0
      %2995 = vmatprep.mubr.bf16.mxu0 0
      %2996 = vmatmul.mubr.bf16.gmra.mrb[0].mxu0 %v2761
      %v2997 = vpop.f32.mrb[0].mxu0
      %v2998 = vadd.f32 0.0, %v2997
      %v2999 = vpop.f32.mrb[0].mxu0
      %v3000 = vpop.f32.mrb[0].mxu0
      %v3001 = vadd.f32 0.0, %v3000
      %v3002 = vpop.f32.mrb[0].mxu0
      %3003 = vdwg.mxu0
      %v3004 = vadd.f32 %v2672, %v2862
      %v3005 = vadd.f32 %v2673, %v2865
      %v3006 = vadd.f32 %v2674, %v2870
      %v3007 = vadd.f32 %v2675, %v2873
      %v3008 = vadd.f32 %v2676, %v2878
      %v3009 = vadd.f32 %v2677, %v2881
      %v3010 = vadd.f32 %v2678, %v2886
      %v3011 = vadd.f32 %v2679, %v2889
      %v3012 = vadd.f32 %v2680, %v2894
      %v3013 = vadd.f32 %v2681, %v2897
      %v3014 = vadd.f32 %v2682, %v2902
      %v3015 = vadd.f32 %v2683, %v2905
      %v3016 = vadd.f32 %v2684, %v2910
      %v3017 = vadd.f32 %v2685, %v2913
      %v3018 = vadd.f32 %v2686, %v2918
      %v3019 = vadd.f32 %v2687, %v2921
      %v3020 = vadd.f32 %v2688, %v2926
      %v3021 = vadd.f32 %v2689, %v2929
      %v3022 = vadd.f32 %v2690, %v2934
      %v3023 = vadd.f32 %v2691, %v2937
      %v3024 = vadd.f32 %v2692, %v2942
      %v3025 = vadd.f32 %v2693, %v2945
      %v3026 = vadd.f32 %v2694, %v2950
      %v3027 = vadd.f32 %v2695, %v2953
      %v3028 = vadd.f32 %v2696, %v2958
      %v3029 = vadd.f32 %v2697, %v2961
      %v3030 = vadd.f32 %v2698, %v2966
      %v3031 = vadd.f32 %v2699, %v2969
      %v3032 = vadd.f32 %v2700, %v2974
      %v3033 = vadd.f32 %v2701, %v2977
      %v3034 = vadd.f32 %v2702, %v2982
      %v3035 = vadd.f32 %v2703, %v2985
      %v3036 = vadd.f32 %v2704, %v2990
      %v3037 = vadd.f32 %v2705, %v2993
      %v3038 = vadd.f32 %v2706, %v2998
      %v3039 = vadd.f32 %v2707, %v3001
      %v3040 = vld [vmem:[#allocation2 + $0x25] sm:$0xff]
      %v3041 = vld [vmem:[#allocation2 + $0x2d] sm:$0xff]
      %v3042 = vld [vmem:[#allocation2 + $0x35] sm:$0xff]
      %v3043 = vld [vmem:[#allocation2 + $0x3d] sm:$0xff]
      %v3044 = vld [vmem:[#allocation2 + $0x45] sm:$0xff]
      %v3045 = vld [vmem:[#allocation2 + $0x4d] sm:$0xff]
      %v3046 = vld [vmem:[#allocation2 + $0x55] sm:$0xff]
      %v3047 = vld [vmem:[#allocation2 + $0x5d] sm:$0xff]
      %v3048 = vld [vmem:[#allocation2 + $0x65] sm:$0xff]
      %v3049 = vld [vmem:[#allocation2 + $0x6d] sm:$0xff]
      %v3050 = vld [vmem:[#allocation2 + $0x75] sm:$0xff]
      %v3051 = vld [vmem:[#allocation2 + $0x7d] sm:$0xff]
      %v3052 = vld [vmem:[#allocation2 + $0x85] sm:$0xff]
      %v3053 = vld [vmem:[#allocation2 + $0x8d] sm:$0xff]
      %v3054 = vld [vmem:[#allocation2 + $0x95] sm:$0xff]
      %v3055 = vld [vmem:[#allocation2 + $0x9d] sm:$0xff]
      %v3056 = vld [vmem:[#allocation2 + $0xa5] sm:$0xff]
      %v3057 = vld [vmem:[#allocation2 + $0xad] sm:$0xff]
      %v3058 = vld [vmem:[#allocation2 + $0xb5] sm:$0xff]
      %v3059 = vld [vmem:[#allocation2 + $0xbd] sm:$0xff]
      %v3060 = vld [vmem:[#allocation2 + $0xc5] sm:$0xff]
      %v3061 = vld [vmem:[#allocation2 + $0xcd] sm:$0xff]
      %v3062 = vld [vmem:[#allocation2 + $0xd5] sm:$0xff]
      %v3063 = vld [vmem:[#allocation2 + $0xdd] sm:$0xff]
      %v3064 = vld [vmem:[#allocation2 + $0xe5] sm:$0xff]
      %v3065 = vld [vmem:[#allocation2 + $0xed] sm:$0xff]
      %v3066 = vld [vmem:[#allocation2 + $0xf5] sm:$0xff]
      %v3067 = vld [vmem:[#allocation2 + $0xfd] sm:$0xff]
      %v3068 = vld [vmem:[#allocation2 + $0x105] sm:$0xff]
      %v3069 = vld [vmem:[#allocation2 + $0x10d] sm:$0xff]
      %v3070 = vld [vmem:[#allocation2 + $0x115] sm:$0xff]
      %v3071 = vld [vmem:[#allocation2 + $0x11d] sm:$0xff]
      %v3072 = vld [vmem:[#allocation2 + $0x125] sm:$0xff]
      %v3073 = vld [vmem:[#allocation2 + $0x12d] sm:$0xff]
      %v3074 = vld [vmem:[#allocation2 + $0x135] sm:$0xff]
      %v3075 = vld [vmem:[#allocation2 + $0x13d] sm:$0xff]
      %v3076 = vpack.c.bf16 %v3041, %v3040
      %v3077 = vpack.c.bf16 %v3043, %v3042
      %v3078 = vpack.c.bf16 %v3045, %v3044
      %v3079 = vpack.c.bf16 %v3047, %v3046
      %v3080 = vpack.c.bf16 %v3049, %v3048
      %v3081 = vpack.c.bf16 %v3051, %v3050
      %v3082 = vpack.c.bf16 %v3053, %v3052
      %v3083 = vpack.c.bf16 %v3055, %v3054
      %v3084 = vpack.c.bf16 %v3057, %v3056
      %v3085 = vpack.c.bf16 %v3059, %v3058
      %v3086 = vpack.c.bf16 %v3061, %v3060
      %v3087 = vpack.c.bf16 %v3063, %v3062
      %v3088 = vpack.c.bf16 %v3065, %v3064
      %v3089 = vpack.c.bf16 %v3067, %v3066
      %v3090 = vpack.c.bf16 %v3069, %v3068
      %v3091 = vpack.c.bf16 %v3071, %v3070
      %v3092 = vpack.c.bf16 %v3073, %v3072
      %v3093 = vpack.c.bf16 %v3075, %v3074
      %s3094 = scalar_lea.vmem %s3, 448
      %v3095 = vld [vmem:[%s3094] sm:$0xf]
      %v3096 = vld [vmem:[%s3094 + $0x4] sm:$0xf]
      %v3097 = vld [vmem:[%s3094 + $0x8] sm:$0xf]
      %v3098 = vld [vmem:[%s3094 + $0xc] sm:$0xf]
      %v3099 = vld [vmem:[%s3094 + $0x10] sm:$0xf]
      %v3100 = vld [vmem:[%s3094 + $0x14] sm:$0xf]
      %v3101 = vld [vmem:[%s3094 + $0x18] sm:$0xf]
      %v3102 = vld [vmem:[%s3094 + $0x1c] sm:$0xf]
      %v3103 = vld [vmem:[%s3094 + $0x20] sm:$0xf]
      %v3104 = vld [vmem:[%s3094 + $0x24] sm:$0xf]
      %v3105 = vld [vmem:[%s3094 + $0x28] sm:$0xf]
      %v3106 = vld [vmem:[%s3094 + $0x2c] sm:$0xf]
      %v3107 = vld [vmem:[%s3094 + $0x30] sm:$0xf]
      %v3108 = vld [vmem:[%s3094 + $0x34] sm:$0xf]
      %v3109 = vld [vmem:[%s3094 + $0x38] sm:$0xf]
      %v3110 = vld [vmem:[%s3094 + $0x3c] sm:$0xf]
      %v3127 = vunpack.c.l.b16 %v3095
      %v3128 = vunpack.c.l.b16 %v3096
      %v3129 = vunpack.c.l.b16 %v3097
      %v3130 = vunpack.c.l.b16 %v3098
      %v3131 = vunpack.c.l.b16 %v3099
      %v3132 = vunpack.c.l.b16 %v3100
      %v3133 = vunpack.c.l.b16 %v3101
      %v3134 = vunpack.c.l.b16 %v3102
      %v3135 = vunpack.c.l.b16 %v3103
      %v3136 = vunpack.c.l.b16 %v3104
      %v3137 = vunpack.c.l.b16 %v3105
      %v3138 = vunpack.c.l.b16 %v3106
      %v3139 = vunpack.c.l.b16 %v3107
      %v3140 = vunpack.c.l.b16 %v3108
      %v3141 = vunpack.c.l.b16 %v3109
      %v3142 = vunpack.c.l.b16 %v3110
      %v3143 = vpack.c.b16 %v3128, %v3127
      %v3144 = vpack.c.b16 %v3130, %v3129
      %v3145 = vpack.c.b16 %v3132, %v3131
      %v3146 = vpack.c.b16 %v3134, %v3133
      %v3147 = vpack.c.b16 %v3136, %v3135
      %v3148 = vpack.c.b16 %v3138, %v3137
      %v3149 = vpack.c.b16 %v3140, %v3139
      %v3150 = vpack.c.b16 %v3142, %v3141
      %3159 = vmatprep.subr.bf16.mxu0 0
      %3160 = vmatpush1.bf16.msra.mxu0 %v3143
      %3161 = vmatprep.subr.bf16.mxu0 0
      %3162 = vmatpush1.bf16.msra.mxu0 %v3144
      %3163 = vmatprep.subr.bf16.mxu0 0
      %3164 = vmatpush1.bf16.msra.mxu0 %v3145
      %3165 = vmatprep.subr.bf16.mxu0 0
      %3166 = vmatpush1.bf16.msra.mxu0 %v3146
      %3167 = vmatprep.subr.bf16.mxu0 0
      %3168 = vmatpush1.bf16.msra.mxu0 %v3147
      %3169 = vmatprep.subr.bf16.mxu0 0
      %3170 = vmatpush1.bf16.msra.mxu0 %v3148
      %3171 = vmatprep.subr.bf16.mxu0 0
      %3172 = vmatpush1.bf16.msra.mxu0 %v3149
      %3173 = vmatprep.subr.bf16.mxu0 0
      %3174 = vmatpush1.bf16.msra.mxu0 %v3150
      %3175 = vmatprep.subr.bf16.mxu0 0
      %3176 = vmatpush1.bf16.msra.mxu0 0
      %3177 = vmatprep.subr.bf16.mxu0 0
      %3178 = vmatpush1.bf16.msra.mxu0 0
      %3179 = vmatprep.subr.bf16.mxu0 0
      %3180 = vmatpush1.bf16.msra.mxu0 0
      %3181 = vmatprep.subr.bf16.mxu0 0
      %3182 = vmatpush1.bf16.msra.mxu0 0
      %3183 = vmatprep.subr.bf16.mxu0 0
      %3184 = vmatpush1.bf16.msra.mxu0 0
      %3185 = vmatprep.subr.bf16.mxu0 0
      %3186 = vmatpush1.bf16.msra.mxu0 0
      %3187 = vmatprep.subr.bf16.mxu0 0
      %3188 = vmatpush1.bf16.msra.mxu0 0
      %3189 = vmatprep.subr.bf16.mxu0 0
      %3190 = vmatpush1.bf16.msra.mxu0 0
      %3191 = vmatprep.mubr.bf16.mxu0 0
      %3192 = vmatmul.mubr.bf16.gmra.mrb[0].mxu0 %v3076
      %v3193 = vpop.f32.mrb[0].mxu0
      %v3194 = vadd.f32 0.0, %v3193
      %v3195 = vpop.f32.mrb[0].mxu0
      %v3196 = vpop.f32.mrb[0].mxu0
      %v3197 = vadd.f32 0.0, %v3196
      %v3198 = vpop.f32.mrb[0].mxu0
      %3199 = vmatprep.mubr.bf16.mxu0 0
      %3200 = vmatmul.mubr.bf16.gmra.mrb[0].mxu0 %v3077
      %v3201 = vpop.f32.mrb[0].mxu0
      %v3202 = vadd.f32 0.0, %v3201
      %v3203 = vpop.f32.mrb[0].mxu0
      %v3204 = vpop.f32.mrb[0].mxu0
      %v3205 = vadd.f32 0.0, %v3204
      %v3206 = vpop.f32.mrb[0].mxu0
      %3207 = vmatprep.mubr.bf16.mxu0 0
      %3208 = vmatmul.mubr.bf16.gmra.mrb[0].mxu0 %v3078
      %v3209 = vpop.f32.mrb[0].mxu0
      %v3210 = vadd.f32 0.0, %v3209
      %v3211 = vpop.f32.mrb[0].mxu0
      %v3212 = vpop.f32.mrb[0].mxu0
      %v3213 = vadd.f32 0.0, %v3212
      %v3214 = vpop.f32.mrb[0].mxu0
      %3215 = vmatprep.mubr.bf16.mxu0 0
      %3216 = vmatmul.mubr.bf16.gmra.mrb[0].mxu0 %v3079
      %v3217 = vpop.f32.mrb[0].mxu0
      %v3218 = vadd.f32 0.0, %v3217
      %v3219 = vpop.f32.mrb[0].mxu0
      %v3220 = vpop.f32.mrb[0].mxu0
      %v3221 = vadd.f32 0.0, %v3220
      %v3222 = vpop.f32.mrb[0].mxu0
      %3223 = vmatprep.mubr.bf16.mxu0 0
      %3224 = vmatmul.mubr.bf16.gmra.mrb[0].mxu0 %v3080
      %v3225 = vpop.f32.mrb[0].mxu0
      %v3226 = vadd.f32 0.0, %v3225
      %v3227 = vpop.f32.mrb[0].mxu0
      %v3228 = vpop.f32.mrb[0].mxu0
      %v3229 = vadd.f32 0.0, %v3228
      %v3230 = vpop.f32.mrb[0].mxu0
      %3231 = vmatprep.mubr.bf16.mxu0 0
      %3232 = vmatmul.mubr.bf16.gmra.mrb[0].mxu0 %v3081
      %v3233 = vpop.f32.mrb[0].mxu0
      %v3234 = vadd.f32 0.0, %v3233
      %v3235 = vpop.f32.mrb[0].mxu0
      %v3236 = vpop.f32.mrb[0].mxu0
      %v3237 = vadd.f32 0.0, %v3236
      %v3238 = vpop.f32.mrb[0].mxu0
      %3239 = vmatprep.mubr.bf16.mxu0 0
      %3240 = vmatmul.mubr.bf16.gmra.mrb[0].mxu0 %v3082
      %v3241 = vpop.f32.mrb[0].mxu0
      %v3242 = vadd.f32 0.0, %v3241
      %v3243 = vpop.f32.mrb[0].mxu0
      %v3244 = vpop.f32.mrb[0].mxu0
      %v3245 = vadd.f32 0.0, %v3244
      %v3246 = vpop.f32.mrb[0].mxu0
      %3247 = vmatprep.mubr.bf16.mxu0 0
      %3248 = vmatmul.mubr.bf16.gmra.mrb[0].mxu0 %v3083
      %v3249 = vpop.f32.mrb[0].mxu0
      %v3250 = vadd.f32 0.0, %v3249
      %v3251 = vpop.f32.mrb[0].mxu0
      %v3252 = vpop.f32.mrb[0].mxu0
      %v3253 = vadd.f32 0.0, %v3252
      %v3254 = vpop.f32.mrb[0].mxu0
      %3255 = vmatprep.mubr.bf16.mxu0 0
      %3256 = vmatmul.mubr.bf16.gmra.mrb[0].mxu0 %v3084
      %v3257 = vpop.f32.mrb[0].mxu0
      %v3258 = vadd.f32 0.0, %v3257
      %v3259 = vpop.f32.mrb[0].mxu0
      %v3260 = vpop.f32.mrb[0].mxu0
      %v3261 = vadd.f32 0.0, %v3260
      %v3262 = vpop.f32.mrb[0].mxu0
      %3263 = vmatprep.mubr.bf16.mxu0 0
      %3264 = vmatmul.mubr.bf16.gmra.mrb[0].mxu0 %v3085
      %v3265 = vpop.f32.mrb[0].mxu0
      %v3266 = vadd.f32 0.0, %v3265
      %v3267 = vpop.f32.mrb[0].mxu0
      %v3268 = vpop.f32.mrb[0].mxu0
      %v3269 = vadd.f32 0.0, %v3268
      %v3270 = vpop.f32.mrb[0].mxu0
      %3271 = vmatprep.mubr.bf16.mxu0 0
      %3272 = vmatmul.mubr.bf16.gmra.mrb[0].mxu0 %v3086
      %v3273 = vpop.f32.mrb[0].mxu0
      %v3274 = vadd.f32 0.0, %v3273
      %v3275 = vpop.f32.mrb[0].mxu0
      %v3276 = vpop.f32.mrb[0].mxu0
      %v3277 = vadd.f32 0.0, %v3276
      %v3278 = vpop.f32.mrb[0].mxu0
      %3279 = vmatprep.mubr.bf16.mxu0 0
      %3280 = vmatmul.mubr.bf16.gmra.mrb[0].mxu0 %v3087
      %v3281 = vpop.f32.mrb[0].mxu0
      %v3282 = vadd.f32 0.0, %v3281
      %v3283 = vpop.f32.mrb[0].mxu0
      %v3284 = vpop.f32.mrb[0].mxu0
      %v3285 = vadd.f32 0.0, %v3284
      %v3286 = vpop.f32.mrb[0].mxu0
      %3287 = vmatprep.mubr.bf16.mxu0 0
      %3288 = vmatmul.mubr.bf16.gmra.mrb[0].mxu0 %v3088
      %v3289 = vpop.f32.mrb[0].mxu0
      %v3290 = vadd.f32 0.0, %v3289
      %v3291 = vpop.f32.mrb[0].mxu0
      %v3292 = vpop.f32.mrb[0].mxu0
      %v3293 = vadd.f32 0.0, %v3292
      %v3294 = vpop.f32.mrb[0].mxu0
      %3295 = vmatprep.mubr.bf16.mxu0 0
      %3296 = vmatmul.mubr.bf16.gmra.mrb[0].mxu0 %v3089
      %v3297 = vpop.f32.mrb[0].mxu0
      %v3298 = vadd.f32 0.0, %v3297
      %v3299 = vpop.f32.mrb[0].mxu0
      %v3300 = vpop.f32.mrb[0].mxu0
      %v3301 = vadd.f32 0.0, %v3300
      %v3302 = vpop.f32.mrb[0].mxu0
      %3303 = vmatprep.mubr.bf16.mxu0 0
      %3304 = vmatmul.mubr.bf16.gmra.mrb[0].mxu0 %v3090
      %v3305 = vpop.f32.mrb[0].mxu0
      %v3306 = vadd.f32 0.0, %v3305
      %v3307 = vpop.f32.mrb[0].mxu0
      %v3308 = vpop.f32.mrb[0].mxu0
      %v3309 = vadd.f32 0.0, %v3308
      %v3310 = vpop.f32.mrb[0].mxu0
      %3311 = vmatprep.mubr.bf16.mxu0 0
      %3312 = vmatmul.mubr.bf16.gmra.mrb[0].mxu0 %v3091
      %v3313 = vpop.f32.mrb[0].mxu0
      %v3314 = vadd.f32 0.0, %v3313
      %v3315 = vpop.f32.mrb[0].mxu0
      %v3316 = vpop.f32.mrb[0].mxu0
      %v3317 = vadd.f32 0.0, %v3316
      %v3318 = vpop.f32.mrb[0].mxu0
      %3319 = vmatprep.mubr.bf16.mxu0 0
      %3320 = vmatmul.mubr.bf16.gmra.mrb[0].mxu0 %v3092
      %v3321 = vpop.f32.mrb[0].mxu0
      %v3322 = vadd.f32 0.0, %v3321
      %v3323 = vpop.f32.mrb[0].mxu0
      %v3324 = vpop.f32.mrb[0].mxu0
      %v3325 = vadd.f32 0.0, %v3324
      %v3326 = vpop.f32.mrb[0].mxu0
      %3327 = vmatprep.mubr.bf16.mxu0 0
      %3328 = vmatmul.mubr.bf16.gmra.mrb[0].mxu0 %v3093
      %v3329 = vpop.f32.mrb[0].mxu0
      %v3330 = vadd.f32 0.0, %v3329
      %v3331 = vpop.f32.mrb[0].mxu0
      %v3332 = vpop.f32.mrb[0].mxu0
      %v3333 = vadd.f32 0.0, %v3332
      %v3334 = vpop.f32.mrb[0].mxu0
      %3335 = vdwg.mxu0
      %v3336 = vadd.f32 %v3004, %v3194
      %v3337 = vadd.f32 %v3005, %v3197
      %v3338 = vadd.f32 %v3006, %v3202
      %v3339 = vadd.f32 %v3007, %v3205
      %v3340 = vadd.f32 %v3008, %v3210
      %v3341 = vadd.f32 %v3009, %v3213
      %v3342 = vadd.f32 %v3010, %v3218
      %v3343 = vadd.f32 %v3011, %v3221
      %v3344 = vadd.f32 %v3012, %v3226
      %v3345 = vadd.f32 %v3013, %v3229
      %v3346 = vadd.f32 %v3014, %v3234
      %v3347 = vadd.f32 %v3015, %v3237
      %v3348 = vadd.f32 %v3016, %v3242
      %v3349 = vadd.f32 %v3017, %v3245
      %v3350 = vadd.f32 %v3018, %v3250
      %v3351 = vadd.f32 %v3019, %v3253
      %v3352 = vadd.f32 %v3020, %v3258
      %v3353 = vadd.f32 %v3021, %v3261
      %v3354 = vadd.f32 %v3022, %v3266
      %v3355 = vadd.f32 %v3023, %v3269
      %v3356 = vadd.f32 %v3024, %v3274
      %v3357 = vadd.f32 %v3025, %v3277
      %v3358 = vadd.f32 %v3026, %v3282
      %v3359 = vadd.f32 %v3027, %v3285
      %v3360 = vadd.f32 %v3028, %v3290
      %v3361 = vadd.f32 %v3029, %v3293
      %v3362 = vadd.f32 %v3030, %v3298
      %v3363 = vadd.f32 %v3031, %v3301
      %v3364 = vadd.f32 %v3032, %v3306
      %v3365 = vadd.f32 %v3033, %v3309
      %v3366 = vadd.f32 %v3034, %v3314
      %v3367 = vadd.f32 %v3035, %v3317
      %v3368 = vadd.f32 %v3036, %v3322
      %v3369 = vadd.f32 %v3037, %v3325
      %v3370 = vadd.f32 %v3038, %v3330
      %v3371 = vadd.f32 %v3039, %v3333
      %v3372 = vld [vmem:[#allocation2 + $0x26] sm:$0xff]
      %v3373 = vld [vmem:[#allocation2 + $0x2e] sm:$0xff]
      %v3374 = vld [vmem:[#allocation2 + $0x36] sm:$0xff]
      %v3375 = vld [vmem:[#allocation2 + $0x3e] sm:$0xff]
      %v3376 = vld [vmem:[#allocation2 + $0x46] sm:$0xff]
      %v3377 = vld [vmem:[#allocation2 + $0x4e] sm:$0xff]
      %v3378 = vld [vmem:[#allocation2 + $0x56] sm:$0xff]
      %v3379 = vld [vmem:[#allocation2 + $0x5e] sm:$0xff]
      %v3380 = vld [vmem:[#allocation2 + $0x66] sm:$0xff]
      %v3381 = vld [vmem:[#allocation2 + $0x6e] sm:$0xff]
      %v3382 = vld [vmem:[#allocation2 + $0x76] sm:$0xff]
      %v3383 = vld [vmem:[#allocation2 + $0x7e] sm:$0xff]
      %v3384 = vld [vmem:[#allocation2 + $0x86] sm:$0xff]
      %v3385 = vld [vmem:[#allocation2 + $0x8e] sm:$0xff]
      %v3386 = vld [vmem:[#allocation2 + $0x96] sm:$0xff]
      %v3387 = vld [vmem:[#allocation2 + $0x9e] sm:$0xff]
      %v3388 = vld [vmem:[#allocation2 + $0xa6] sm:$0xff]
      %v3389 = vld [vmem:[#allocation2 + $0xae] sm:$0xff]
      %v3390 = vld [vmem:[#allocation2 + $0xb6] sm:$0xff]
      %v3391 = vld [vmem:[#allocation2 + $0xbe] sm:$0xff]
      %v3392 = vld [vmem:[#allocation2 + $0xc6] sm:$0xff]
      %v3393 = vld [vmem:[#allocation2 + $0xce] sm:$0xff]
      %v3394 = vld [vmem:[#allocation2 + $0xd6] sm:$0xff]
      %v3395 = vld [vmem:[#allocation2 + $0xde] sm:$0xff]
      %v3396 = vld [vmem:[#allocation2 + $0xe6] sm:$0xff]
      %v3397 = vld [vmem:[#allocation2 + $0xee] sm:$0xff]
      %v3398 = vld [vmem:[#allocation2 + $0xf6] sm:$0xff]
      %v3399 = vld [vmem:[#allocation2 + $0xfe] sm:$0xff]
      %v3400 = vld [vmem:[#allocation2 + $0x106] sm:$0xff]
      %v3401 = vld [vmem:[#allocation2 + $0x10e] sm:$0xff]
      %v3402 = vld [vmem:[#allocation2 + $0x116] sm:$0xff]
      %v3403 = vld [vmem:[#allocation2 + $0x11e] sm:$0xff]
      %v3404 = vld [vmem:[#allocation2 + $0x126] sm:$0xff]
      %v3405 = vld [vmem:[#allocation2 + $0x12e] sm:$0xff]
      %v3406 = vld [vmem:[#allocation2 + $0x136] sm:$0xff]
      %v3407 = vld [vmem:[#allocation2 + $0x13e] sm:$0xff]
      %v3408 = vpack.c.bf16 %v3373, %v3372
      %v3409 = vpack.c.bf16 %v3375, %v3374
      %v3410 = vpack.c.bf16 %v3377, %v3376
      %v3411 = vpack.c.bf16 %v3379, %v3378
      %v3412 = vpack.c.bf16 %v3381, %v3380
      %v3413 = vpack.c.bf16 %v3383, %v3382
      %v3414 = vpack.c.bf16 %v3385, %v3384
      %v3415 = vpack.c.bf16 %v3387, %v3386
      %v3416 = vpack.c.bf16 %v3389, %v3388
      %v3417 = vpack.c.bf16 %v3391, %v3390
      %v3418 = vpack.c.bf16 %v3393, %v3392
      %v3419 = vpack.c.bf16 %v3395, %v3394
      %v3420 = vpack.c.bf16 %v3397, %v3396
      %v3421 = vpack.c.bf16 %v3399, %v3398
      %v3422 = vpack.c.bf16 %v3401, %v3400
      %v3423 = vpack.c.bf16 %v3403, %v3402
      %v3424 = vpack.c.bf16 %v3405, %v3404
      %v3425 = vpack.c.bf16 %v3407, %v3406
      %s3426 = scalar_lea.vmem %s3, 512
      %v3427 = vld [vmem:[%s3426] sm:$0xf]
      %v3428 = vld [vmem:[%s3426 + $0x4] sm:$0xf]
      %v3429 = vld [vmem:[%s3426 + $0x8] sm:$0xf]
      %v3430 = vld [vmem:[%s3426 + $0xc] sm:$0xf]
      %v3431 = vld [vmem:[%s3426 + $0x10] sm:$0xf]
      %v3432 = vld [vmem:[%s3426 + $0x14] sm:$0xf]
      %v3433 = vld [vmem:[%s3426 + $0x18] sm:$0xf]
      %v3434 = vld [vmem:[%s3426 + $0x1c] sm:$0xf]
      %v3435 = vld [vmem:[%s3426 + $0x20] sm:$0xf]
      %v3436 = vld [vmem:[%s3426 + $0x24] sm:$0xf]
      %v3437 = vld [vmem:[%s3426 + $0x28] sm:$0xf]
      %v3438 = vld [vmem:[%s3426 + $0x2c] sm:$0xf]
      %v3439 = vld [vmem:[%s3426 + $0x30] sm:$0xf]
      %v3440 = vld [vmem:[%s3426 + $0x34] sm:$0xf]
      %v3441 = vld [vmem:[%s3426 + $0x38] sm:$0xf]
      %v3442 = vld [vmem:[%s3426 + $0x3c] sm:$0xf]
      %v3459 = vunpack.c.l.b16 %v3427
      %v3460 = vunpack.c.l.b16 %v3428
      %v3461 = vunpack.c.l.b16 %v3429
      %v3462 = vunpack.c.l.b16 %v3430
      %v3463 = vunpack.c.l.b16 %v3431
      %v3464 = vunpack.c.l.b16 %v3432
      %v3465 = vunpack.c.l.b16 %v3433
      %v3466 = vunpack.c.l.b16 %v3434
      %v3467 = vunpack.c.l.b16 %v3435
      %v3468 = vunpack.c.l.b16 %v3436
      %v3469 = vunpack.c.l.b16 %v3437
      %v3470 = vunpack.c.l.b16 %v3438
      %v3471 = vunpack.c.l.b16 %v3439
      %v3472 = vunpack.c.l.b16 %v3440
      %v3473 = vunpack.c.l.b16 %v3441
      %v3474 = vunpack.c.l.b16 %v3442
      %v3475 = vpack.c.b16 %v3460, %v3459
      %v3476 = vpack.c.b16 %v3462, %v3461
      %v3477 = vpack.c.b16 %v3464, %v3463
      %v3478 = vpack.c.b16 %v3466, %v3465
      %v3479 = vpack.c.b16 %v3468, %v3467
      %v3480 = vpack.c.b16 %v3470, %v3469
      %v3481 = vpack.c.b16 %v3472, %v3471
      %v3482 = vpack.c.b16 %v3474, %v3473
      %3491 = vmatprep.subr.bf16.mxu0 0
      %3492 = vmatpush1.bf16.msra.mxu0 %v3475
      %3493 = vmatprep.subr.bf16.mxu0 0
      %3494 = vmatpush1.bf16.msra.mxu0 %v3476
      %3495 = vmatprep.subr.bf16.mxu0 0
      %3496 = vmatpush1.bf16.msra.mxu0 %v3477
      %3497 = vmatprep.subr.bf16.mxu0 0
      %3498 = vmatpush1.bf16.msra.mxu0 %v3478
      %3499 = vmatprep.subr.bf16.mxu0 0
      %3500 = vmatpush1.bf16.msra.mxu0 %v3479
      %3501 = vmatprep.subr.bf16.mxu0 0
      %3502 = vmatpush1.bf16.msra.mxu0 %v3480
      %3503 = vmatprep.subr.bf16.mxu0 0
      %3504 = vmatpush1.bf16.msra.mxu0 %v3481
      %3505 = vmatprep.subr.bf16.mxu0 0
      %3506 = vmatpush1.bf16.msra.mxu0 %v3482
      %3507 = vmatprep.subr.bf16.mxu0 0
      %3508 = vmatpush1.bf16.msra.mxu0 0
      %3509 = vmatprep.subr.bf16.mxu0 0
      %3510 = vmatpush1.bf16.msra.mxu0 0
      %3511 = vmatprep.subr.bf16.mxu0 0
      %3512 = vmatpush1.bf16.msra.mxu0 0
      %3513 = vmatprep.subr.bf16.mxu0 0
      %3514 = vmatpush1.bf16.msra.mxu0 0
      %3515 = vmatprep.subr.bf16.mxu0 0
      %3516 = vmatpush1.bf16.msra.mxu0 0
      %3517 = vmatprep.subr.bf16.mxu0 0
      %3518 = vmatpush1.bf16.msra.mxu0 0
      %3519 = vmatprep.subr.bf16.mxu0 0
      %3520 = vmatpush1.bf16.msra.mxu0 0
      %3521 = vmatprep.subr.bf16.mxu0 0
      %3522 = vmatpush1.bf16.msra.mxu0 0
      %3523 = vmatprep.mubr.bf16.mxu0 0
      %3524 = vmatmul.mubr.bf16.gmra.mrb[0].mxu0 %v3408
      %v3525 = vpop.f32.mrb[0].mxu0
      %v3526 = vadd.f32 0.0, %v3525
      %v3527 = vpop.f32.mrb[0].mxu0
      %v3528 = vpop.f32.mrb[0].mxu0
      %v3529 = vadd.f32 0.0, %v3528
      %v3530 = vpop.f32.mrb[0].mxu0
      %3531 = vmatprep.mubr.bf16.mxu0 0
      %3532 = vmatmul.mubr.bf16.gmra.mrb[0].mxu0 %v3409
      %v3533 = vpop.f32.mrb[0].mxu0
      %v3534 = vadd.f32 0.0, %v3533
      %v3535 = vpop.f32.mrb[0].mxu0
      %v3536 = vpop.f32.mrb[0].mxu0
      %v3537 = vadd.f32 0.0, %v3536
      %v3538 = vpop.f32.mrb[0].mxu0
      %3539 = vmatprep.mubr.bf16.mxu0 0
      %3540 = vmatmul.mubr.bf16.gmra.mrb[0].mxu0 %v3410
      %v3541 = vpop.f32.mrb[0].mxu0
      %v3542 = vadd.f32 0.0, %v3541
      %v3543 = vpop.f32.mrb[0].mxu0
      %v3544 = vpop.f32.mrb[0].mxu0
      %v3545 = vadd.f32 0.0, %v3544
      %v3546 = vpop.f32.mrb[0].mxu0
      %3547 = vmatprep.mubr.bf16.mxu0 0
      %3548 = vmatmul.mubr.bf16.gmra.mrb[0].mxu0 %v3411
      %v3549 = vpop.f32.mrb[0].mxu0
      %v3550 = vadd.f32 0.0, %v3549
      %v3551 = vpop.f32.mrb[0].mxu0
      %v3552 = vpop.f32.mrb[0].mxu0
      %v3553 = vadd.f32 0.0, %v3552
      %v3554 = vpop.f32.mrb[0].mxu0
      %3555 = vmatprep.mubr.bf16.mxu0 0
      %3556 = vmatmul.mubr.bf16.gmra.mrb[0].mxu0 %v3412
      %v3557 = vpop.f32.mrb[0].mxu0
      %v3558 = vadd.f32 0.0, %v3557
      %v3559 = vpop.f32.mrb[0].mxu0
      %v3560 = vpop.f32.mrb[0].mxu0
      %v3561 = vadd.f32 0.0, %v3560
      %v3562 = vpop.f32.mrb[0].mxu0
      %3563 = vmatprep.mubr.bf16.mxu0 0
      %3564 = vmatmul.mubr.bf16.gmra.mrb[0].mxu0 %v3413
      %v3565 = vpop.f32.mrb[0].mxu0
      %v3566 = vadd.f32 0.0, %v3565
      %v3567 = vpop.f32.mrb[0].mxu0
      %v3568 = vpop.f32.mrb[0].mxu0
      %v3569 = vadd.f32 0.0, %v3568
      %v3570 = vpop.f32.mrb[0].mxu0
      %3571 = vmatprep.mubr.bf16.mxu0 0
      %3572 = vmatmul.mubr.bf16.gmra.mrb[0].mxu0 %v3414
      %v3573 = vpop.f32.mrb[0].mxu0
      %v3574 = vadd.f32 0.0, %v3573
      %v3575 = vpop.f32.mrb[0].mxu0
      %v3576 = vpop.f32.mrb[0].mxu0
      %v3577 = vadd.f32 0.0, %v3576
      %v3578 = vpop.f32.mrb[0].mxu0
      %3579 = vmatprep.mubr.bf16.mxu0 0
      %3580 = vmatmul.mubr.bf16.gmra.mrb[0].mxu0 %v3415
      %v3581 = vpop.f32.mrb[0].mxu0
      %v3582 = vadd.f32 0.0, %v3581
      %v3583 = vpop.f32.mrb[0].mxu0
      %v3584 = vpop.f32.mrb[0].mxu0
      %v3585 = vadd.f32 0.0, %v3584
      %v3586 = vpop.f32.mrb[0].mxu0
      %3587 = vmatprep.mubr.bf16.mxu0 0
      %3588 = vmatmul.mubr.bf16.gmra.mrb[0].mxu0 %v3416
      %v3589 = vpop.f32.mrb[0].mxu0
      %v3590 = vadd.f32 0.0, %v3589
      %v3591 = vpop.f32.mrb[0].mxu0
      %v3592 = vpop.f32.mrb[0].mxu0
      %v3593 = vadd.f32 0.0, %v3592
      %v3594 = vpop.f32.mrb[0].mxu0
      %3595 = vmatprep.mubr.bf16.mxu0 0
      %3596 = vmatmul.mubr.bf16.gmra.mrb[0].mxu0 %v3417
      %v3597 = vpop.f32.mrb[0].mxu0
      %v3598 = vadd.f32 0.0, %v3597
      %v3599 = vpop.f32.mrb[0].mxu0
      %v3600 = vpop.f32.mrb[0].mxu0
      %v3601 = vadd.f32 0.0, %v3600
      %v3602 = vpop.f32.mrb[0].mxu0
      %3603 = vmatprep.mubr.bf16.mxu0 0
      %3604 = vmatmul.mubr.bf16.gmra.mrb[0].mxu0 %v3418
      %v3605 = vpop.f32.mrb[0].mxu0
      %v3606 = vadd.f32 0.0, %v3605
      %v3607 = vpop.f32.mrb[0].mxu0
      %v3608 = vpop.f32.mrb[0].mxu0
      %v3609 = vadd.f32 0.0, %v3608
      %v3610 = vpop.f32.mrb[0].mxu0
      %3611 = vmatprep.mubr.bf16.mxu0 0
      %3612 = vmatmul.mubr.bf16.gmra.mrb[0].mxu0 %v3419
      %v3613 = vpop.f32.mrb[0].mxu0
      %v3614 = vadd.f32 0.0, %v3613
      %v3615 = vpop.f32.mrb[0].mxu0
      %v3616 = vpop.f32.mrb[0].mxu0
      %v3617 = vadd.f32 0.0, %v3616
      %v3618 = vpop.f32.mrb[0].mxu0
      %3619 = vmatprep.mubr.bf16.mxu0 0
      %3620 = vmatmul.mubr.bf16.gmra.mrb[0].mxu0 %v3420
      %v3621 = vpop.f32.mrb[0].mxu0
      %v3622 = vadd.f32 0.0, %v3621
      %v3623 = vpop.f32.mrb[0].mxu0
      %v3624 = vpop.f32.mrb[0].mxu0
      %v3625 = vadd.f32 0.0, %v3624
      %v3626 = vpop.f32.mrb[0].mxu0
      %3627 = vmatprep.mubr.bf16.mxu0 0
      %3628 = vmatmul.mubr.bf16.gmra.mrb[0].mxu0 %v3421
      %v3629 = vpop.f32.mrb[0].mxu0
      %v3630 = vadd.f32 0.0, %v3629
      %v3631 = vpop.f32.mrb[0].mxu0
      %v3632 = vpop.f32.mrb[0].mxu0
      %v3633 = vadd.f32 0.0, %v3632
      %v3634 = vpop.f32.mrb[0].mxu0
      %3635 = vmatprep.mubr.bf16.mxu0 0
      %3636 = vmatmul.mubr.bf16.gmra.mrb[0].mxu0 %v3422
      %v3637 = vpop.f32.mrb[0].mxu0
      %v3638 = vadd.f32 0.0, %v3637
      %v3639 = vpop.f32.mrb[0].mxu0
      %v3640 = vpop.f32.mrb[0].mxu0
      %v3641 = vadd.f32 0.0, %v3640
      %v3642 = vpop.f32.mrb[0].mxu0
      %3643 = vmatprep.mubr.bf16.mxu0 0
      %3644 = vmatmul.mubr.bf16.gmra.mrb[0].mxu0 %v3423
      %v3645 = vpop.f32.mrb[0].mxu0
      %v3646 = vadd.f32 0.0, %v3645
      %v3647 = vpop.f32.mrb[0].mxu0
      %v3648 = vpop.f32.mrb[0].mxu0
      %v3649 = vadd.f32 0.0, %v3648
      %v3650 = vpop.f32.mrb[0].mxu0
      %3651 = vmatprep.mubr.bf16.mxu0 0
      %3652 = vmatmul.mubr.bf16.gmra.mrb[0].mxu0 %v3424
      %v3653 = vpop.f32.mrb[0].mxu0
      %v3654 = vadd.f32 0.0, %v3653
      %v3655 = vpop.f32.mrb[0].mxu0
      %v3656 = vpop.f32.mrb[0].mxu0
      %v3657 = vadd.f32 0.0, %v3656
      %v3658 = vpop.f32.mrb[0].mxu0
      %3659 = vmatprep.mubr.bf16.mxu0 0
      %3660 = vmatmul.mubr.bf16.gmra.mrb[0].mxu0 %v3425
      %v3661 = vpop.f32.mrb[0].mxu0
      %v3662 = vadd.f32 0.0, %v3661
      %v3663 = vpop.f32.mrb[0].mxu0
      %v3664 = vpop.f32.mrb[0].mxu0
      %v3665 = vadd.f32 0.0, %v3664
      %v3666 = vpop.f32.mrb[0].mxu0
      %3667 = vdwg.mxu0
      %v3668 = vadd.f32 %v3336, %v3526
      %v3669 = vadd.f32 %v3337, %v3529
      %v3670 = vadd.f32 %v3338, %v3534
      %v3671 = vadd.f32 %v3339, %v3537
      %v3672 = vadd.f32 %v3340, %v3542
      %v3673 = vadd.f32 %v3341, %v3545
      %v3674 = vadd.f32 %v3342, %v3550
      %v3675 = vadd.f32 %v3343, %v3553
      %v3676 = vadd.f32 %v3344, %v3558
      %v3677 = vadd.f32 %v3345, %v3561
      %v3678 = vadd.f32 %v3346, %v3566
      %v3679 = vadd.f32 %v3347, %v3569
      %v3680 = vadd.f32 %v3348, %v3574
      %v3681 = vadd.f32 %v3349, %v3577
      %v3682 = vadd.f32 %v3350, %v3582
      %v3683 = vadd.f32 %v3351, %v3585
      %v3684 = vadd.f32 %v3352, %v3590
      %v3685 = vadd.f32 %v3353, %v3593
      %v3686 = vadd.f32 %v3354, %v3598
      %v3687 = vadd.f32 %v3355, %v3601
      %v3688 = vadd.f32 %v3356, %v3606
      %v3689 = vadd.f32 %v3357, %v3609
      %v3690 = vadd.f32 %v3358, %v3614
      %v3691 = vadd.f32 %v3359, %v3617
      %v3692 = vadd.f32 %v3360, %v3622
      %v3693 = vadd.f32 %v3361, %v3625
      %v3694 = vadd.f32 %v3362, %v3630
      %v3695 = vadd.f32 %v3363, %v3633
      %v3696 = vadd.f32 %v3364, %v3638
      %v3697 = vadd.f32 %v3365, %v3641
      %v3698 = vadd.f32 %v3366, %v3646
      %v3699 = vadd.f32 %v3367, %v3649
      %v3700 = vadd.f32 %v3368, %v3654
      %v3701 = vadd.f32 %v3369, %v3657
      %v3702 = vadd.f32 %v3370, %v3662
      %v3703 = vadd.f32 %v3371, %v3665
      %v3704 = vld [vmem:[%s4] sm:$0xff]
      %v3705 = vld [vmem:[%s4 + $0x8] sm:$0xff]
      %v3706 = vld [vmem:[%s4 + $0x10] sm:$0xff]
      %v3707 = vld [vmem:[%s4 + $0x18] sm:$0xff]
      %v3708 = vld [vmem:[%s4 + $0x20] sm:$0xff]
      %v3709 = vld [vmem:[%s4 + $0x28] sm:$0xff]
      %v3710 = vld [vmem:[%s4 + $0x30] sm:$0xff]
      %v3711 = vld [vmem:[%s4 + $0x38] sm:$0xff]
      %v3712 = vld [vmem:[%s4 + $0x40] sm:$0xff]
      %v3713 = vld [vmem:[%s4 + $0x48] sm:$0xff]
      %v3714 = vld [vmem:[%s4 + $0x50] sm:$0xff]
      %v3715 = vld [vmem:[%s4 + $0x58] sm:$0xff]
      %v3716 = vld [vmem:[%s4 + $0x60] sm:$0xff]
      %v3717 = vld [vmem:[%s4 + $0x68] sm:$0xff]
      %v3718 = vld [vmem:[%s4 + $0x70] sm:$0xff]
      %v3719 = vld [vmem:[%s4 + $0x78] sm:$0xff]
      %v3720 = vld [vmem:[%s4 + $0x80] sm:$0xff]
      %v3721 = vld [vmem:[%s4 + $0x88] sm:$0xff]
      %v3722 = vld [vmem:[%s4 + $0x90] sm:$0xff]
      %v3723 = vld [vmem:[%s4 + $0x98] sm:$0xff]
      %v3724 = vld [vmem:[%s4 + $0xa0] sm:$0xff]
      %v3725 = vld [vmem:[%s4 + $0xa8] sm:$0xff]
      %v3726 = vld [vmem:[%s4 + $0xb0] sm:$0xff]
      %v3727 = vld [vmem:[%s4 + $0xb8] sm:$0xff]
      %v3728 = vld [vmem:[%s4 + $0xc0] sm:$0xff]
      %v3729 = vld [vmem:[%s4 + $0xc8] sm:$0xff]
      %v3730 = vld [vmem:[%s4 + $0xd0] sm:$0xff]
      %v3731 = vld [vmem:[%s4 + $0xd8] sm:$0xff]
      %v3732 = vld [vmem:[%s4 + $0xe0] sm:$0xff]
      %v3733 = vld [vmem:[%s4 + $0xe8] sm:$0xff]
      %v3734 = vld [vmem:[%s4 + $0xf0] sm:$0xff]
      %v3735 = vld [vmem:[%s4 + $0xf8] sm:$0xff]
      %v3736 = vld [vmem:[%s4 + $0x100] sm:$0xff]
      %v3737 = vld [vmem:[%s4 + $0x108] sm:$0xff]
      %v3738 = vld [vmem:[%s4 + $0x110] sm:$0xff]
      %v3739 = vld [vmem:[%s4 + $0x118] sm:$0xff]
      %3741 = vset.pattern.permute.xlu0 0
      %3742 = vperm.xlu0 %3741, %v3704
      %v3743 = vpop.permute.xlu0 %3742
      %3746 = vset.pattern.permute.xlu0 0
      %3747 = vperm.xlu0 %3746, %v3705
      %v3748 = vpop.permute.xlu0 %3747
      %3751 = vset.pattern.permute.xlu0 0
      %3752 = vperm.xlu0 %3751, %v3706
      %v3753 = vpop.permute.xlu0 %3752
      %3756 = vset.pattern.permute.xlu0 0
      %3757 = vperm.xlu0 %3756, %v3707
      %v3758 = vpop.permute.xlu0 %3757
      %3761 = vset.pattern.permute.xlu0 0
      %3762 = vperm.xlu0 %3761, %v3708
      %v3763 = vpop.permute.xlu0 %3762
      %3766 = vset.pattern.permute.xlu0 0
      %3767 = vperm.xlu0 %3766, %v3709
      %v3768 = vpop.permute.xlu0 %3767
      %3771 = vset.pattern.permute.xlu0 0
      %3772 = vperm.xlu0 %3771, %v3710
      %v3773 = vpop.permute.xlu0 %3772
      %3776 = vset.pattern.permute.xlu0 0
      %3777 = vperm.xlu0 %3776, %v3711
      %v3778 = vpop.permute.xlu0 %3777
      %3781 = vset.pattern.permute.xlu0 0
      %3782 = vperm.xlu0 %3781, %v3712
      %v3783 = vpop.permute.xlu0 %3782
      %3786 = vset.pattern.permute.xlu0 0
      %3787 = vperm.xlu0 %3786, %v3713
      %v3788 = vpop.permute.xlu0 %3787
      %3791 = vset.pattern.permute.xlu0 0
      %3792 = vperm.xlu0 %3791, %v3714
      %v3793 = vpop.permute.xlu0 %3792
      %3796 = vset.pattern.permute.xlu0 0
      %3797 = vperm.xlu0 %3796, %v3715
      %v3798 = vpop.permute.xlu0 %3797
      %3801 = vset.pattern.permute.xlu0 0
      %3802 = vperm.xlu0 %3801, %v3716
      %v3803 = vpop.permute.xlu0 %3802
      %3806 = vset.pattern.permute.xlu0 0
      %3807 = vperm.xlu0 %3806, %v3717
      %v3808 = vpop.permute.xlu0 %3807
      %3811 = vset.pattern.permute.xlu0 0
      %3812 = vperm.xlu0 %3811, %v3718
      %v3813 = vpop.permute.xlu0 %3812
      %3816 = vset.pattern.permute.xlu0 0
      %3817 = vperm.xlu0 %3816, %v3719
      %v3818 = vpop.permute.xlu0 %3817
      %3821 = vset.pattern.permute.xlu0 0
      %3822 = vperm.xlu0 %3821, %v3720
      %v3823 = vpop.permute.xlu0 %3822
      %3826 = vset.pattern.permute.xlu0 0
      %3827 = vperm.xlu0 %3826, %v3721
      %v3828 = vpop.permute.xlu0 %3827
      %3831 = vset.pattern.permute.xlu0 0
      %3832 = vperm.xlu0 %3831, %v3722
      %v3833 = vpop.permute.xlu0 %3832
      %3836 = vset.pattern.permute.xlu0 0
      %3837 = vperm.xlu0 %3836, %v3723
      %v3838 = vpop.permute.xlu0 %3837
      %3841 = vset.pattern.permute.xlu0 0
      %3842 = vperm.xlu0 %3841, %v3724
      %v3843 = vpop.permute.xlu0 %3842
      %3846 = vset.pattern.permute.xlu0 0
      %3847 = vperm.xlu0 %3846, %v3725
      %v3848 = vpop.permute.xlu0 %3847
      %3851 = vset.pattern.permute.xlu0 0
      %3852 = vperm.xlu0 %3851, %v3726
      %v3853 = vpop.permute.xlu0 %3852
      %3856 = vset.pattern.permute.xlu0 0
      %3857 = vperm.xlu0 %3856, %v3727
      %v3858 = vpop.permute.xlu0 %3857
      %3861 = vset.pattern.permute.xlu0 0
      %3862 = vperm.xlu0 %3861, %v3728
      %v3863 = vpop.permute.xlu0 %3862
      %3866 = vset.pattern.permute.xlu0 0
      %3867 = vperm.xlu0 %3866, %v3729
      %v3868 = vpop.permute.xlu0 %3867
      %3871 = vset.pattern.permute.xlu0 0
      %3872 = vperm.xlu0 %3871, %v3730
      %v3873 = vpop.permute.xlu0 %3872
      %3876 = vset.pattern.permute.xlu0 0
      %3877 = vperm.xlu0 %3876, %v3731
      %v3878 = vpop.permute.xlu0 %3877
      %3881 = vset.pattern.permute.xlu0 0
      %3882 = vperm.xlu0 %3881, %v3732
      %v3883 = vpop.permute.xlu0 %3882
      %3886 = vset.pattern.permute.xlu0 0
      %3887 = vperm.xlu0 %3886, %v3733
      %v3888 = vpop.permute.xlu0 %3887
      %3891 = vset.pattern.permute.xlu0 0
      %3892 = vperm.xlu0 %3891, %v3734
      %v3893 = vpop.permute.xlu0 %3892
      %3896 = vset.pattern.permute.xlu0 0
      %3897 = vperm.xlu0 %3896, %v3735
      %v3898 = vpop.permute.xlu0 %3897
      %3901 = vset.pattern.permute.xlu0 0
      %3902 = vperm.xlu0 %3901, %v3736
      %v3903 = vpop.permute.xlu0 %3902
      %3906 = vset.pattern.permute.xlu0 0
      %3907 = vperm.xlu0 %3906, %v3737
      %v3908 = vpop.permute.xlu0 %3907
      %3911 = vset.pattern.permute.xlu0 0
      %3912 = vperm.xlu0 %3911, %v3738
      %v3913 = vpop.permute.xlu0 %3912
      %3916 = vset.pattern.permute.xlu0 0
      %3917 = vperm.xlu0 %3916, %v3739
      %v3918 = vpop.permute.xlu0 %3917
      %v3920 = vmul.f32 %v3668, %v3743
      %v3921 = vmul.f32 %v3669, %v3748
      %v3922 = vmul.f32 %v3670, %v3753
      %v3923 = vmul.f32 %v3671, %v3758
      %v3924 = vmul.f32 %v3672, %v3763
      %v3925 = vmul.f32 %v3673, %v3768
      %v3926 = vmul.f32 %v3674, %v3773
      %v3927 = vmul.f32 %v3675, %v3778
      %v3928 = vmul.f32 %v3676, %v3783
      %v3929 = vmul.f32 %v3677, %v3788
      %v3930 = vmul.f32 %v3678, %v3793
      %v3931 = vmul.f32 %v3679, %v3798
      %v3932 = vmul.f32 %v3680, %v3803
      %v3933 = vmul.f32 %v3681, %v3808
      %v3934 = vmul.f32 %v3682, %v3813
      %v3935 = vmul.f32 %v3683, %v3818
      %v3936 = vmul.f32 %v3684, %v3823
      %v3937 = vmul.f32 %v3685, %v3828
      %v3938 = vmul.f32 %v3686, %v3833
      %v3939 = vmul.f32 %v3687, %v3838
      %v3940 = vmul.f32 %v3688, %v3843
      %v3941 = vmul.f32 %v3689, %v3848
      %v3942 = vmul.f32 %v3690, %v3853
      %v3943 = vmul.f32 %v3691, %v3858
      %v3944 = vmul.f32 %v3692, %v3863
      %v3945 = vmul.f32 %v3693, %v3868
      %v3946 = vmul.f32 %v3694, %v3873
      %v3947 = vmul.f32 %v3695, %v3878
      %v3948 = vmul.f32 %v3696, %v3883
      %v3949 = vmul.f32 %v3697, %v3888
      %v3950 = vmul.f32 %v3698, %v3893
      %v3951 = vmul.f32 %v3699, %v3898
      %v3952 = vmul.f32 %v3700, %v3903
      %v3953 = vmul.f32 %v3701, %v3908
      %v3954 = vmul.f32 %v3702, %v3913
      %v3955 = vmul.f32 %v3703, %v3918
      %v3956 = vpack.c.bf16 %v3921, %v3920
      %v3957 = vpack.c.bf16 %v3923, %v3922
      %v3958 = vpack.c.bf16 %v3925, %v3924
      %v3959 = vpack.c.bf16 %v3927, %v3926
      %v3960 = vpack.c.bf16 %v3929, %v3928
      %v3961 = vpack.c.bf16 %v3931, %v3930
      %v3962 = vpack.c.bf16 %v3933, %v3932
      %v3963 = vpack.c.bf16 %v3935, %v3934
      %v3964 = vpack.c.bf16 %v3937, %v3936
      %v3965 = vpack.c.bf16 %v3939, %v3938
      %v3966 = vpack.c.bf16 %v3941, %v3940
      %v3967 = vpack.c.bf16 %v3943, %v3942
      %v3968 = vpack.c.bf16 %v3945, %v3944
      %v3969 = vpack.c.bf16 %v3947, %v3946
      %v3970 = vpack.c.bf16 %v3949, %v3948
      %v3971 = vpack.c.bf16 %v3951, %v3950
      %v3972 = vpack.c.bf16 %v3953, %v3952
      %v3973 = vpack.c.bf16 %v3955, %v3954
      %v3992 = vunpack.c.l.b16 %v3956
      %v3993 = vunpack.c.h.b16 %v3956
      %v3994 = vunpack.c.l.b16 %v3957
      %v3995 = vunpack.c.h.b16 %v3957
      %v3996 = vunpack.c.l.b16 %v3958
      %v3997 = vunpack.c.h.b16 %v3958
      %v3998 = vunpack.c.l.b16 %v3959
      %v3999 = vunpack.c.h.b16 %v3959
      %v4000 = vunpack.c.l.b16 %v3960
      %v4001 = vunpack.c.h.b16 %v3960
      %v4002 = vunpack.c.l.b16 %v3961
      %v4003 = vunpack.c.h.b16 %v3961
      %v4004 = vunpack.c.l.b16 %v3962
      %v4005 = vunpack.c.h.b16 %v3962
      %v4006 = vunpack.c.l.b16 %v3963
      %v4007 = vunpack.c.h.b16 %v3963
      %v4008 = vunpack.c.l.b16 %v3964
      %v4009 = vunpack.c.h.b16 %v3964
      %v4010 = vunpack.c.l.b16 %v3965
      %v4011 = vunpack.c.h.b16 %v3965
      %v4012 = vunpack.c.l.b16 %v3966
      %v4013 = vunpack.c.h.b16 %v3966
      %v4014 = vunpack.c.l.b16 %v3967
      %v4015 = vunpack.c.h.b16 %v3967
      %v4016 = vunpack.c.l.b16 %v3968
      %v4017 = vunpack.c.h.b16 %v3968
      %v4018 = vunpack.c.l.b16 %v3969
      %v4019 = vunpack.c.h.b16 %v3969
      %v4020 = vunpack.c.l.b16 %v3970
      %v4021 = vunpack.c.h.b16 %v3970
      %v4022 = vunpack.c.l.b16 %v3971
      %v4023 = vunpack.c.h.b16 %v3971
      %v4024 = vunpack.c.l.b16 %v3972
      %v4025 = vunpack.c.h.b16 %v3972
      %v4026 = vunpack.c.l.b16 %v3973
      %v4027 = vunpack.c.h.b16 %v3973
      %v4028 = vpack.c.b16 %v3992, %v3992
      %v4029 = vpack.c.b16 %v3993, %v3993
      %v4030 = vpack.c.b16 %v3994, %v3994
      %v4031 = vpack.c.b16 %v3995, %v3995
      %v4032 = vpack.c.b16 %v3996, %v3996
      %v4033 = vpack.c.b16 %v3997, %v3997
      %v4034 = vpack.c.b16 %v3998, %v3998
      %v4035 = vpack.c.b16 %v3999, %v3999
      %v4036 = vpack.c.b16 %v4000, %v4000
      %v4037 = vpack.c.b16 %v4001, %v4001
      %v4038 = vpack.c.b16 %v4002, %v4002
      %v4039 = vpack.c.b16 %v4003, %v4003
      %v4040 = vpack.c.b16 %v4004, %v4004
      %v4041 = vpack.c.b16 %v4005, %v4005
      %v4042 = vpack.c.b16 %v4006, %v4006
      %v4043 = vpack.c.b16 %v4007, %v4007
      %v4044 = vpack.c.b16 %v4008, %v4008
      %v4045 = vpack.c.b16 %v4009, %v4009
      %v4046 = vpack.c.b16 %v4010, %v4010
      %v4047 = vpack.c.b16 %v4011, %v4011
      %v4048 = vpack.c.b16 %v4012, %v4012
      %v4049 = vpack.c.b16 %v4013, %v4013
      %v4050 = vpack.c.b16 %v4014, %v4014
      %v4051 = vpack.c.b16 %v4015, %v4015
      %v4052 = vpack.c.b16 %v4016, %v4016
      %v4053 = vpack.c.b16 %v4017, %v4017
      %v4054 = vpack.c.b16 %v4018, %v4018
      %v4055 = vpack.c.b16 %v4019, %v4019
      %v4056 = vpack.c.b16 %v4020, %v4020
      %v4057 = vpack.c.b16 %v4021, %v4021
      %v4058 = vpack.c.b16 %v4022, %v4022
      %v4059 = vpack.c.b16 %v4023, %v4023
      %v4060 = vpack.c.b16 %v4024, %v4024
      %v4061 = vpack.c.b16 %v4025, %v4025
      %v4062 = vpack.c.b16 %v4026, %v4026
      %v4063 = vpack.c.b16 %v4027, %v4027
      %4100 = vst [vmem:[%s291] sm:$0xf] %v4028
      %4101 = vst [vmem:[%s291 + $0x4] sm:$0xf] %v4029
      %4102 = vst [vmem:[%s291 + $0x8] sm:$0xf] %v4030
      %4103 = vst [vmem:[%s291 + $0xc] sm:$0xf] %v4031
      %4104 = vst [vmem:[%s291 + $0x10] sm:$0xf] %v4032
      %4105 = vst [vmem:[%s291 + $0x14] sm:$0xf] %v4033
      %4106 = vst [vmem:[%s291 + $0x18] sm:$0xf] %v4034
      %4107 = vst [vmem:[%s291 + $0x1c] sm:$0xf] %v4035
      %4108 = vst [vmem:[%s291 + $0x20] sm:$0xf] %v4036
      %4109 = vst [vmem:[%s291 + $0x24] sm:$0xf] %v4037
      %4110 = vst [vmem:[%s291 + $0x28] sm:$0xf] %v4038
      %4111 = vst [vmem:[%s291 + $0x2c] sm:$0xf] %v4039
      %4112 = vst [vmem:[%s291 + $0x30] sm:$0xf] %v4040
      %4113 = vst [vmem:[%s291 + $0x34] sm:$0xf] %v4041
      %4114 = vst [vmem:[%s291 + $0x38] sm:$0xf] %v4042
      %4115 = vst [vmem:[%s291 + $0x3c] sm:$0xf] %v4043
      %4116 = vst [vmem:[%s291 + $0x40] sm:$0xf] %v4044
      %4117 = vst [vmem:[%s291 + $0x44] sm:$0xf] %v4045
      %4118 = vst [vmem:[%s291 + $0x48] sm:$0xf] %v4046
      %4119 = vst [vmem:[%s291 + $0x4c] sm:$0xf] %v4047
      %4120 = vst [vmem:[%s291 + $0x50] sm:$0xf] %v4048
      %4121 = vst [vmem:[%s291 + $0x54] sm:$0xf] %v4049
      %4122 = vst [vmem:[%s291 + $0x58] sm:$0xf] %v4050
      %4123 = vst [vmem:[%s291 + $0x5c] sm:$0xf] %v4051
      %4124 = vst [vmem:[%s291 + $0x60] sm:$0xf] %v4052
      %4125 = vst [vmem:[%s291 + $0x64] sm:$0xf] %v4053
      %4126 = vst [vmem:[%s291 + $0x68] sm:$0xf] %v4054
      %4127 = vst [vmem:[%s291 + $0x6c] sm:$0xf] %v4055
      %4128 = vst [vmem:[%s291 + $0x70] sm:$0xf] %v4056
      %4129 = vst [vmem:[%s291 + $0x74] sm:$0xf] %v4057
      %4130 = vst [vmem:[%s291 + $0x78] sm:$0xf] %v4058
      %4131 = vst [vmem:[%s291 + $0x7c] sm:$0xf] %v4059
      %4132 = vst [vmem:[%s291 + $0x80] sm:$0xf] %v4060
      %4133 = vst [vmem:[%s291 + $0x84] sm:$0xf] %v4061
      %4134 = vst [vmem:[%s291 + $0x88] sm:$0xf] %v4062
      %4135 = vst [vmem:[%s291 + $0x8c] sm:$0xf] %v4063
      %v4136 = vlaneseq
      %v4137 = vshrl.u32 %v4136, 7
      %vm4138 = vcmp.eq.s32.totalorder %v4137, 0
      %v4139 = vadd.f32 %v3920, %v3921
      %v4140 = vadd.f32 %v4139, %v3922
      %v4141 = vadd.f32 %v4140, %v3923
      %v4142 = vadd.f32 %v4141, %v3924
      %v4143 = vadd.f32 %v4142, %v3925
      %v4144 = vadd.f32 %v4143, %v3926
      %v4145 = vadd.f32 %v4144, %v3927
      %v4146 = vadd.f32 %v4145, %v3928
      %v4147 = vadd.f32 %v4146, %v3929
      %v4148 = vadd.f32 %v4147, %v3930
      %v4149 = vadd.f32 %v4148, %v3931
      %v4150 = vadd.f32 %v4149, %v3932
      %v4151 = vadd.f32 %v4150, %v3933
      %v4152 = vadd.f32 %v4151, %v3934
      %v4153 = vadd.f32 %v4152, %v3935
      %v4154 = vadd.f32 %v4153, %v3936
      %v4155 = vadd.f32 %v4154, %v3937
      %v4156 = vadd.f32 %v4155, %v3938
      %v4157 = vadd.f32 %v4156, %v3939
      %v4158 = vadd.f32 %v4157, %v3940
      %v4159 = vadd.f32 %v4158, %v3941
      %v4160 = vadd.f32 %v4159, %v3942
      %v4161 = vadd.f32 %v4160, %v3943
      %v4162 = vadd.f32 %v4161, %v3944
      %v4163 = vadd.f32 %v4162, %v3945
      %v4164 = vadd.f32 %v4163, %v3946
      %v4165 = vadd.f32 %v4164, %v3947
      %v4166 = vadd.f32 %v4165, %v3948
      %v4167 = vadd.f32 %v4166, %v3949
      %v4168 = vadd.f32 %v4167, %v3950
      %v4169 = vadd.f32 %v4168, %v3951
      %v4170 = vadd.f32 %v4169, %v3952
      %v4171 = vadd.f32 %v4170, %v3953
      %v4172 = vadd.f32 %v4171, %v3954
      %v4173 = vadd.f32 %v4172, %v3955
      %v4174 = vrot.slane %v4173, 4
      %v4175 = vadd.f32 %v4173, %v4174
      %v4176 = vrot.slane %v4175, 2
      %v4177 = vadd.f32 %v4175, %v4176
      %v4178 = vrot.slane %v4177, 1
      %v4179 = vadd.f32 %v4177, %v4178
      %v4180 = vsel %vm4138, %v4179, 0.0
      %4181 = vst [vmem:[%s295] sm:$0xff] %v4180
      %v4182 = vmul.f32 %v3920, %v3920
      %v4183 = vmul.f32 %v3921, %v3921
      %v4184 = vmul.f32 %v3922, %v3922
      %v4185 = vmul.f32 %v3923, %v3923
      %v4186 = vmul.f32 %v3924, %v3924
      %v4187 = vmul.f32 %v3925, %v3925
      %v4188 = vmul.f32 %v3926, %v3926
      %v4189 = vmul.f32 %v3927, %v3927
      %v4190 = vmul.f32 %v3928, %v3928
      %v4191 = vmul.f32 %v3929, %v3929
      %v4192 = vmul.f32 %v3930, %v3930
      %v4193 = vmul.f32 %v3931, %v3931
      %v4194 = vmul.f32 %v3932, %v3932
      %v4195 = vmul.f32 %v3933, %v3933
      %v4196 = vmul.f32 %v3934, %v3934
      %v4197 = vmul.f32 %v3935, %v3935
      %v4198 = vmul.f32 %v3936, %v3936
      %v4199 = vmul.f32 %v3937, %v3937
      %v4200 = vmul.f32 %v3938, %v3938
      %v4201 = vmul.f32 %v3939, %v3939
      %v4202 = vmul.f32 %v3940, %v3940
      %v4203 = vmul.f32 %v3941, %v3941
      %v4204 = vmul.f32 %v3942, %v3942
      %v4205 = vmul.f32 %v3943, %v3943
      %v4206 = vmul.f32 %v3944, %v3944
      %v4207 = vmul.f32 %v3945, %v3945
      %v4208 = vmul.f32 %v3946, %v3946
      %v4209 = vmul.f32 %v3947, %v3947
      %v4210 = vmul.f32 %v3948, %v3948
      %v4211 = vmul.f32 %v3949, %v3949
      %v4212 = vmul.f32 %v3950, %v3950
      %v4213 = vmul.f32 %v3951, %v3951
      %v4214 = vmul.f32 %v3952, %v3952
      %v4215 = vmul.f32 %v3953, %v3953
      %v4216 = vmul.f32 %v3954, %v3954
      %v4217 = vmul.f32 %v3955, %v3955
      %v4218 = vadd.f32 %v4182, %v4183
      %v4219 = vadd.f32 %v4218, %v4184
      %v4220 = vadd.f32 %v4219, %v4185
      %v4221 = vadd.f32 %v4220, %v4186
      %v4222 = vadd.f32 %v4221, %v4187
      %v4223 = vadd.f32 %v4222, %v4188
      %v4224 = vadd.f32 %v4223, %v4189
      %v4225 = vadd.f32 %v4224, %v4190
      %v4226 = vadd.f32 %v4225, %v4191
      %v4227 = vadd.f32 %v4226, %v4192
      %v4228 = vadd.f32 %v4227, %v4193
      %v4229 = vadd.f32 %v4228, %v4194
      %v4230 = vadd.f32 %v4229, %v4195
      %v4231 = vadd.f32 %v4230, %v4196
      %v4232 = vadd.f32 %v4231, %v4197
      %v4233 = vadd.f32 %v4232, %v4198
      %v4234 = vadd.f32 %v4233, %v4199
      %v4235 = vadd.f32 %v4234, %v4200
      %v4236 = vadd.f32 %v4235, %v4201
      %v4237 = vadd.f32 %v4236, %v4202
      %v4238 = vadd.f32 %v4237, %v4203
      %v4239 = vadd.f32 %v4238, %v4204
      %v4240 = vadd.f32 %v4239, %v4205
      %v4241 = vadd.f32 %v4240, %v4206
      %v4242 = vadd.f32 %v4241, %v4207
      %v4243 = vadd.f32 %v4242, %v4208
      %v4244 = vadd.f32 %v4243, %v4209
      %v4245 = vadd.f32 %v4244, %v4210
      %v4246 = vadd.f32 %v4245, %v4211
      %v4247 = vadd.f32 %v4246, %v4212
      %v4248 = vadd.f32 %v4247, %v4213
      %v4249 = vadd.f32 %v4248, %v4214
      %v4250 = vadd.f32 %v4249, %v4215
      %v4251 = vadd.f32 %v4250, %v4216
      %v4252 = vadd.f32 %v4251, %v4217
      %v4253 = vrot.slane %v4252, 4
      %v4254 = vadd.f32 %v4252, %v4253
      %v4255 = vrot.slane %v4254, 2
      %v4256 = vadd.f32 %v4254, %v4255
      %v4257 = vrot.slane %v4256, 1
      %v4258 = vadd.f32 %v4256, %v4257
      %v4259 = vsel %vm4138, %v4258, 0.0
      %4260 = vst [vmem:[%s299] sm:$0xff] %v4259
      %p4261 = scmp.lt.s32.totalorder %s19, 1
      %s4262 = scalar_select %p4261, %s19, 1
      %s4263 = smul.addr %s4262, 36
      %s4264 = smul.addr %s4263, 4
      %s4265 = scalar_lea.vmem %s5, %s4264
      %p4266 = scmp.lt.s32.totalorder %s19, 1
      %s4267 = scalar_select %p4266, %s19, 1
      %s4268 = smul.addr %s4267, 8
      %s4269 = scalar_lea.vmem %s6, %s4268
      %p4270 = scmp.lt.s32.totalorder %s19, 1
      %s4271 = scalar_select %p4270, %s19, 1
      %s4272 = smul.addr %s4271, 8
      %s4273 = scalar_lea.vmem %s7, %s4272
      // Predicated region
      $region41: #{bottleneck_forward.5} parent=39 // pred_check
        %p4274 = pneg %p147
      $region42: #{bottleneck_forward.5} parent=39 // pred_check_branch
        %4276 = sbr.rel (%p4274) target = $region44
      $region43: #{bottleneck_forward.5} parent=39 // pred_region
        _
      $region44: #{bottleneck_forward.5} parent=39 // pred_fallthru
        _
      // Predicated region
      $region45: #{bottleneck_forward.5} parent=39 // pred_check
        %p4277 = pneg %p173
      $region46: #{bottleneck_forward.5} parent=39 // pred_check_branch
        %4279 = sbr.rel (%p4277) target = $region48
      $region47: #{bottleneck_forward.5} parent=39 // pred_region
        _
      $region48: #{bottleneck_forward.5} parent=39 // pred_fallthru
        _
      // Predicated region
      $region49: #{bottleneck_forward.5} parent=39 // pred_check
        %p4280 = pneg %p199
      $region50: #{bottleneck_forward.5} parent=39 // pred_check_branch
        %4282 = sbr.rel (%p4280) target = $region52
      $region51: #{bottleneck_forward.5} parent=39 // pred_region
        _
      $region52: #{bottleneck_forward.5} parent=39 // pred_fallthru
        _
    $region40: #{bottleneck_forward.5} parent=5 // pred_fallthru
      _
    %p4283 = scmp.le.s32.totalorder 2, %s14
    // Predicated region
    $region53: #{bottleneck_forward.5} parent=5 // pred_check
      %p4284 = pneg %p4283
    $region54: #{bottleneck_forward.5} parent=5 // pred_check_branch
      %4286 = sbr.rel (%p4284) target = $region56
    $region55: #{bottleneck_forward.5} parent=5 // pred_region
      %s4287 = ssub.s32 %s14, 2
      // Predicated region
      $region57: #{bottleneck_forward.5} parent=55 // pred_check
        %p4288 = pneg %p153
      $region58: #{bottleneck_forward.5} parent=55 // pred_check_branch
        %4290 = sbr.rel (%p4288) target = $region60
      $region59: #{bottleneck_forward.5} parent=55 // pred_region
        %p4291 = scmp.lt.s32.totalorder %s20, 1
        %s4292 = scalar_select %p4291, %s20, 1
        %s4293 = smul.addr %s4292, 36
        %s4294 = smul.addr %s4293, 4
        %s4295 = scalar_lea.vmem %s5, %s4294
      $region60: #{bottleneck_forward.5} parent=55 // pred_fallthru
        _
      // Predicated region
      $region61: #{bottleneck_forward.5} parent=55 // pred_check
        %p4296 = pneg %p179
      $region62: #{bottleneck_forward.5} parent=55 // pred_check_branch
        %4298 = sbr.rel (%p4296) target = $region64
      $region63: #{bottleneck_forward.5} parent=55 // pred_region
        %p4299 = scmp.lt.s32.totalorder %s20, 1
        %s4300 = scalar_select %p4299, %s20, 1
        %s4301 = smul.addr %s4300, 8
        %s4302 = scalar_lea.vmem %s6, %s4301
      $region64: #{bottleneck_forward.5} parent=55 // pred_fallthru
        _
      // Predicated region
      $region65: #{bottleneck_forward.5} parent=55 // pred_check
        %p4303 = pneg %p205
      $region66: #{bottleneck_forward.5} parent=55 // pred_check_branch
        %4305 = sbr.rel (%p4303) target = $region68
      $region67: #{bottleneck_forward.5} parent=55 // pred_region
        %p4306 = scmp.lt.s32.totalorder %s20, 1
        %s4307 = scalar_select %p4306, %s20, 1
        %s4308 = smul.addr %s4307, 8
        %s4309 = scalar_lea.vmem %s7, %s4308
      $region68: #{bottleneck_forward.5} parent=55 // pred_fallthru
        _
    $region56: #{bottleneck_forward.5} parent=5 // pred_fallthru
      _
  $region6: #{bottleneck_forward.5} parent=0 // loop_footer
    %s18 = sadd.s32 1, %s14
  $region7: #{bottleneck_forward.5} parent=0 // loop_footer_branch
    %13 = sbr.rel target = $region3
  $region8: #{bottleneck_forward.5} parent=0 // loop_exit
    _

</llo_original>
